<compile_context>
chip_gen: v7x
topology: tpu7x:2x2x1
jax: 0.10.0
libtpu: 0.0.40
codegen_flags: <defaults>
</compile_context>

<pallas_src>
import numpy as np

import jax
import jax.numpy as jnp
from jax import lax
from jax.experimental import pallas as pl
from jax.experimental.pallas import tpu as pltpu

# ---------------- static problem dimensions (small-input variant) ----------
BATCH = 2
K = 5                                   # conv kernel size
C0, H0, W0 = 3, 32, 32                  # input (NCHW)
C1, C2 = 6, 16                          # conv1 / conv2 output channels
PH2 = PW2 = 5                           # final pooled spatial size
FC1_IN = C2 * PH2 * PW2                 # 400
FC1_OUT, FC2_OUT, FC3_OUT = 120, 84, 9

# ---------------- in-kernel layout constants --------------------------------
# conv1 output is kept flat per batch as lane j = oh*32 + ow (full-width rows).
M1B = 1024                              # per-batch conv1 flat width (8 lane tiles)
X1LEN = 1280                            # per-batch zero-padded flat input width
U1 = 1152                               # per-batch conv1 im2col segment width
# conv2 runs on the pair-maxed conv1 map in a "stretched" layout where output
# position (oh2, ow2) lives at lane n2 = 64*oh2 + 2*ow2.
M2S = 640                               # per-batch conv2 stretched width (5 tiles)
U2 = 648                                # per-batch conv2 im2col valid width
SEG2 = 768                              # per-batch conv2 im2col segment stride
V1LEN = M1B - W0 - 1                    # 991  (width after pool-1 pair-maxes)
V2LEN = M2S - 64 - 2                    # 574  (width after pool-2 pair-maxes)
FC1_ROWS = C2 * 32                      # 512  (padded, channel-blocked fc1 rows)


# ---------------------------------------------------------------------------
# Fused Pallas kernel: whole batch, whole network, one invocation, all VMEM.
# ---------------------------------------------------------------------------
def _lenet5_kernel(x_ref, w1_ref, b1_ref, w2_ref, b2_ref, sel_ref,
                   wf1_ref, bf1_ref, wf2_ref, bf2_ref, wf3_ref, bf3_ref,
                   out_ref, x1_ref, x2_ref):
    f32 = jnp.float32
    bf16 = jnp.bfloat16
    n = x_ref.shape[0]

    # -------- conv1 (3->6, k=5) : (kh, ci) in the contraction, kw on output --
    for b in range(n):
        xb = x_ref[b]                                       # (3, 1280) f32
        for kh in range(K):
            x1_ref[3 * kh:3 * kh + 3, b * U1:(b + 1) * U1] = \
                xb[:, 32 * kh:32 * kh + U1]
    acc1 = [jnp.zeros((C1, M1B), f32) for _ in range(n)]
    for kw in range(K):
        part = jnp.dot(w1_ref[:, kw * 15:(kw + 1) * 15], x1_ref[...],
                       preferred_element_type=f32)          # (6, n*1152)
        for b in range(n):
            acc1[b] = acc1[b] + part[:, b * U1 + kw:b * U1 + kw + M1B]
    b1 = b1_ref[...]                                        # (6, 1)
    a1 = [jnp.maximum(acc1[b] + b1, 0.0) for b in range(n)]  # (6, 1024)

    # -------- maxpool1 2x2/2: two shifted maxes, anchors stay where they are
    v1 = []
    for b in range(n):
        h = jnp.maximum(a1[b][:, :M1B - 1], a1[b][:, 1:])            # (6, 1023)
        v1.append(jnp.maximum(h[:, :V1LEN], h[:, W0:W0 + V1LEN]))    # (6, 991)

    # -------- conv2 (6->16, k=5) on the stretched layout ---------------------
    x2_ref[...] = jnp.zeros(x2_ref.shape, f32)              # cover unused gap cols
    for b in range(n):
        for kh in range(K):
            x2_ref[6 * kh:6 * kh + 6, b * SEG2:b * SEG2 + U2] = \
                v1[b][:, 64 * kh:64 * kh + U2]
    acc2 = [jnp.zeros((C2, M2S), f32) for _ in range(n)]
    for kw in range(K):
        part = jnp.dot(w2_ref[:, kw * 30:(kw + 1) * 30], x2_ref[...],
                       preferred_element_type=f32)          # (16, n*768)
        for b in range(n):
            acc2[b] = acc2[b] + \
                part[:, b * SEG2 + 2 * kw:b * SEG2 + 2 * kw + M2S]
    b2 = b2_ref[...]                                        # (16, 1)

    # -------- relu + maxpool2 + anchor selection + flatten -------------------
    feat_rows = []
    for b in range(n):
        a2 = jnp.maximum(acc2[b] + b2, 0.0)                 # (16, 640)
        h = jnp.maximum(a2[:, :M2S - 2], a2[:, 2:])         # (16, 638)
        v2 = jnp.maximum(h[:, :V2LEN], h[:, 64:64 + V2LEN])  # (16, 574)
        # 0/1 selection (exact in bf16): picks lanes 128*ph2 + 4*pw2 and
        # compacts them to columns 5*ph2 + pw2 (cols 25..31 stay zero).
        z = jnp.dot(v2.astype(bf16), sel_ref[...],
                    preferred_element_type=f32)             # (16, 32)
        # flatten channel rows into one lane-dense row: lane = co*32 + m
        feat_rows.append(jnp.concatenate(
            [z[c:c + 1, :] for c in range(C2)], axis=1))    # (1, 512)
    feat = jnp.concatenate(feat_rows, axis=0).astype(bf16)  # (n, 512)

    # -------- fc1 -> relu -> fc2 -> relu -> fc3 ------------------------------
    y = jnp.dot(feat, wf1_ref[...], preferred_element_type=f32) + bf1_ref[...]
    y = jnp.maximum(y, 0.0)                                 # (n, 120)
    y = jnp.dot(y, wf2_ref[...], preferred_element_type=f32) + bf2_ref[...]
    y = jnp.maximum(y, 0.0)                                 # (n, 84)
    y = jnp.dot(y, wf3_ref[...], preferred_element_type=f32) + bf3_ref[...]
    out_ref[...] = y.astype(out_ref.dtype)                  # (n, 9)


# ---------------------------------------------------------------------------
# Parameter preparation (done once, outside the jitted forward).
# ---------------------------------------------------------------------------
def prepare_params(p):
    # conv weights: (Cout, Cin, KH, KW) -> (Cout, KW*KH*Cin); columns ordered
    # (kw major, kh, ci minor) so the kernel slices a (Cout, K*Cin) block / kw.
    w1h = jnp.transpose(p["w_conv1"], (0, 3, 2, 1)).reshape(C1, K * K * C0)
    w2h = jnp.transpose(p["w_conv2"], (0, 3, 2, 1)).reshape(C2, K * K * C1)

    # pool-2 anchor selection: stretched lane 128*ph2 + 4*pw2 -> column 5*ph2+pw2
    sel = np.zeros((V2LEN, 32), np.float32)
    for ph in range(PH2):
        for pw in range(PW2):
            sel[128 * ph + 4 * pw, 5 * ph + pw] = 1.0

    # fc1 weight re-indexed to the kernel's channel-blocked flatten order
    # (row co*32 + (ph2*5 + pw2)); padding rows stay zero.
    wf1p = np.zeros((FC1_ROWS, FC1_OUT), np.float32)
    wsrc = np.asarray(p["w_fc1"])
    for co in range(C2):
        wf1p[co * 32:co * 32 + 25, :] = wsrc[co * 25:(co + 1) * 25, :]

    return {
        "w1": w1h, "b1": p["b_conv1"].reshape(C1, 1),
        "w2": w2h, "b2": p["b_conv2"].reshape(C2, 1),
        "sel": jnp.asarray(sel, jnp.bfloat16),              # exact 0/1 in bf16
        "wf1": jnp.asarray(wf1p, jnp.bfloat16),
        "bf1": p["b_fc1"].reshape(1, FC1_OUT),
        "wf2": p["w_fc2"], "bf2": p["b_fc2"].reshape(1, FC2_OUT),
        "wf3": p["w_fc3"], "bf3": p["b_fc3"].reshape(1, FC3_OUT),
    }


# ---------------------------------------------------------------------------
# Forward pass: one grid-less pallas_call over the whole batch.
# ---------------------------------------------------------------------------
def lenet5_forward(x_nchw, kp):
    n = x_nchw.shape[0]
    # Glue: flatten spatial into the lane dim and zero-pad the tail so the
    # in-kernel shifted-window reads stay in bounds (pad only feeds garbage
    # output lanes that are never selected downstream).
    x_flat = x_nchw.reshape(n, C0, H0 * W0)
    x_flat = jnp.pad(x_flat, ((0, 0), (0, 0), (0, X1LEN - H0 * W0)))

    flops = 2 * (C1 * (K * K * C0) * n * U1          # conv1 (5 K=15 dots)
                 + C2 * (K * K * C1) * n * SEG2      # conv2 (5 K=30 dots)
                 + n * C2 * V2LEN * 32               # pool-2 anchor selection
                 + n * FC1_ROWS * FC1_OUT
                 + n * FC1_OUT * FC2_OUT
                 + n * FC2_OUT * FC3_OUT)
    bytes_accessed = (x_flat.size * 4
                      + kp["w1"].size * 4 + kp["b1"].size * 4
                      + kp["w2"].size * 4 + kp["b2"].size * 4
                      + kp["sel"].size * 2 + kp["wf1"].size * 2
                      + kp["bf1"].size * 4 + kp["wf2"].size * 4
                      + kp["bf2"].size * 4 + kp["wf3"].size * 4
                      + kp["bf3"].size * 4 + n * FC3_OUT * 4)

    out = pl.pallas_call(
        _lenet5_kernel,
        out_shape=jax.ShapeDtypeStruct((n, FC3_OUT), jnp.float32),
        scratch_shapes=[
            pltpu.VMEM((K * C0, n * U1), jnp.float32),      # conv1 im2col (15, n*1152)
            pltpu.VMEM((K * C1, n * SEG2), jnp.float32),    # conv2 im2col (30, n*768)
        ],
        cost_estimate=pl.CostEstimate(flops=flops, transcendentals=0,
                                      bytes_accessed=bytes_accessed),
    )(x_flat, kp["w1"], kp["b1"], kp["w2"], kp["b2"], kp["sel"],
      kp["wf1"], kp["bf1"], kp["wf2"], kp["bf2"], kp["wf3"], kp["bf3"])
    return out


# ---------------------------------------------------------------------------
# Pure-JAX reference (PyTorch semantics) for the correctness check.
# ---------------------------------------------------------------------------
def lenet5_reference(x, p):
    dn = ("NCHW", "OIHW", "NCHW")
    hp = lax.Precision.HIGHEST
    y = lax.conv_general_dilated(x, p["w_conv1"], (1, 1), "VALID",
                                 dimension_numbers=dn, precision=hp)
    y = jnp.maximum(y + p["b_conv1"][None, :, None, None], 0.0)
    y = lax.reduce_window(y, -jnp.inf, lax.max, (1, 1, 2, 2), (1, 1, 2, 2), "VALID")
    y = lax.conv_general_dilated(y, p["w_conv2"], (1, 1), "VALID",
                                 dimension_numbers=dn, precision=hp)
    y = jnp.maximum(y + p["b_conv2"][None, :, None, None], 0.0)
    y = lax.reduce_window(y, -jnp.inf, lax.max, (1, 1, 2, 2), (1, 1, 2, 2), "VALID")
    y = y.reshape(y.shape[0], -1)                            # torch.flatten(x, 1)
    y = jnp.maximum(jnp.dot(y, p["w_fc1"], precision=hp) + p["b_fc1"], 0.0)
    y = jnp.maximum(jnp.dot(y, p["w_fc2"], precision=hp) + p["b_fc2"], 0.0)
    return jnp.dot(y, p["w_fc3"], precision=hp) + p["b_fc3"]


def init_params(key):
    ks = jax.random.split(key, 10)

    def w(k, shape, fan_in):
        return jax.random.normal(k, shape, jnp.float32) / jnp.sqrt(fan_in)

    return {
        "w_conv1": w(ks[0], (C1, C0, K, K), C0 * K * K),
        "b_conv1": jnp.zeros((C1,), jnp.float32),
        "w_conv2": w(ks[1], (C2, C1, K, K), C1 * K * K),
        "b_conv2": jnp.zeros((C2,), jnp.float32),
        "w_fc1": w(ks[2], (FC1_IN, FC1_OUT), FC1_IN),
        "b_fc1": jnp.zeros((FC1_OUT,), jnp.float32),
        "w_fc2": w(ks[3], (FC1_OUT, FC2_OUT), FC1_OUT),
        "b_fc2": jnp.zeros((FC2_OUT,), jnp.float32),
        "w_fc3": w(ks[4], (FC2_OUT, FC3_OUT), FC2_OUT),
        "b_fc3": jnp.zeros((FC3_OUT,), jnp.float32),
    }


if __name__ == "__main__":
    key = jax.random.PRNGKey(0)
    k_x, k_p = jax.random.split(key)
    x = jax.random.normal(k_x, (BATCH, C0, H0, W0), jnp.float32)   # NCHW, small
    params = init_params(k_p)
    kparams = prepare_params(params)

    fwd = jax.jit(lenet5_forward)
    out = jax.block_until_ready(fwd(x, kparams))

    assert out.shape == (BATCH, FC3_OUT), out.shape
    assert out.dtype == jnp.float32

    ref = jax.block_until_ready(lenet5_reference(x, params))
    max_err = float(jnp.max(jnp.abs(out - ref)))
    assert jnp.allclose(out, ref, atol=2e-2, rtol=2e-2), max_err

    print("KERNEL_OK")
</pallas_src>

<mosaic_0001>
module attributes {stable_mosaic.version = 11 : i64} {
  func.func @_lenet5_kernel(%arg0: memref<2x3x1280xf32, #tpu.memory_space<vmem>>, %arg1: memref<6x75xf32, #tpu.memory_space<vmem>>, %arg2: memref<6x1xf32, #tpu.memory_space<vmem>>, %arg3: memref<16x150xf32, #tpu.memory_space<vmem>>, %arg4: memref<16x1xf32, #tpu.memory_space<vmem>>, %arg5: memref<574x32xbf16, #tpu.memory_space<vmem>>, %arg6: memref<512x120xbf16, #tpu.memory_space<vmem>>, %arg7: memref<1x120xf32, #tpu.memory_space<vmem>>, %arg8: memref<120x84xf32, #tpu.memory_space<vmem>>, %arg9: memref<1x84xf32, #tpu.memory_space<vmem>>, %arg10: memref<84x9xf32, #tpu.memory_space<vmem>>, %arg11: memref<1x9xf32, #tpu.memory_space<vmem>>, %arg12: memref<2x9xf32, #tpu.memory_space<vmem>>, %arg13: memref<15x2304xf32, #tpu.memory_space<vmem>>, %arg14: memref<30x1536xf32, #tpu.memory_space<vmem>>) attributes {dimension_semantics = [], scalar_prefetch = 0 : i64, scratch_operands = 2 : i64, tpu.core_type = #tpu.core_type<tc>} {
    %c0 = arith.constant 0 : index
    %c0_0 = arith.constant 0 : index
    %c0_1 = arith.constant 0 : index
    %0 = vector.load %arg0[%c0, %c0_0, %c0_1] : memref<2x3x1280xf32, #tpu.memory_space<vmem>>, vector<1x3x1280xf32>
    %1 = vector.shape_cast %0 : vector<1x3x1280xf32> to vector<3x1280xf32>
    %2 = vector.extract_strided_slice %1 {offsets = [0, 0], sizes = [3, 1152], strides = [1, 1]} : vector<3x1280xf32> to vector<3x1152xf32>
    %c0_2 = arith.constant 0 : index
    %c0_3 = arith.constant 0 : index
    %3 = vector.load %arg13[%c0_2, %c0_3] : memref<15x2304xf32, #tpu.memory_space<vmem>>, vector<3x1152xf32>
    tpu.vector_store %arg13[%c0_2, %c0_3], %2 {strides = array<i32>} : memref<15x2304xf32, #tpu.memory_space<vmem>>, vector<3x1152xf32>,
    %4 = vector.extract_strided_slice %1 {offsets = [0, 32], sizes = [3, 1152], strides = [1, 1]} : vector<3x1280xf32> to vector<3x1152xf32>
    %c3 = arith.constant 3 : index
    %c0_4 = arith.constant 0 : index
    %5 = vector.load %arg13[%c3, %c0_4] : memref<15x2304xf32, #tpu.memory_space<vmem>>, vector<3x1152xf32>
    tpu.vector_store %arg13[%c3, %c0_4], %4 {strides = array<i32>} : memref<15x2304xf32, #tpu.memory_space<vmem>>, vector<3x1152xf32>,
    %6 = vector.extract_strided_slice %1 {offsets = [0, 64], sizes = [3, 1152], strides = [1, 1]} : vector<3x1280xf32> to vector<3x1152xf32>
    %c6 = arith.constant 6 : index
    %c0_5 = arith.constant 0 : index
    %7 = vector.load %arg13[%c6, %c0_5] : memref<15x2304xf32, #tpu.memory_space<vmem>>, vector<3x1152xf32>
    tpu.vector_store %arg13[%c6, %c0_5], %6 {strides = array<i32>} : memref<15x2304xf32, #tpu.memory_space<vmem>>, vector<3x1152xf32>,
    %8 = vector.extract_strided_slice %1 {offsets = [0, 96], sizes = [3, 1152], strides = [1, 1]} : vector<3x1280xf32> to vector<3x1152xf32>
    %c9 = arith.constant 9 : index
    %c0_6 = arith.constant 0 : index
    %9 = vector.load %arg13[%c9, %c0_6] : memref<15x2304xf32, #tpu.memory_space<vmem>>, vector<3x1152xf32>
    tpu.vector_store %arg13[%c9, %c0_6], %8 {strides = array<i32>} : memref<15x2304xf32, #tpu.memory_space<vmem>>, vector<3x1152xf32>,
    %10 = vector.extract_strided_slice %1 {offsets = [0, 128], sizes = [3, 1152], strides = [1, 1]} : vector<3x1280xf32> to vector<3x1152xf32>
    %c12 = arith.constant 12 : index
    %c0_7 = arith.constant 0 : index
    %11 = vector.load %arg13[%c12, %c0_7] : memref<15x2304xf32, #tpu.memory_space<vmem>>, vector<3x1152xf32>
    tpu.vector_store %arg13[%c12, %c0_7], %10 {strides = array<i32>} : memref<15x2304xf32, #tpu.memory_space<vmem>>, vector<3x1152xf32>,
    %c1 = arith.constant 1 : index
    %c0_8 = arith.constant 0 : index
    %c0_9 = arith.constant 0 : index
    %12 = vector.load %arg0[%c1, %c0_8, %c0_9] : memref<2x3x1280xf32, #tpu.memory_space<vmem>>, vector<1x3x1280xf32>
    %13 = vector.shape_cast %12 : vector<1x3x1280xf32> to vector<3x1280xf32>
    %14 = vector.extract_strided_slice %13 {offsets = [0, 0], sizes = [3, 1152], strides = [1, 1]} : vector<3x1280xf32> to vector<3x1152xf32>
    %c0_10 = arith.constant 0 : index
    %c1152 = arith.constant 1152 : index
    %15 = vector.load %arg13[%c0_10, %c1152] : memref<15x2304xf32, #tpu.memory_space<vmem>>, vector<3x1152xf32>
    tpu.vector_store %arg13[%c0_10, %c1152], %14 {strides = array<i32>} : memref<15x2304xf32, #tpu.memory_space<vmem>>, vector<3x1152xf32>,
    %16 = vector.extract_strided_slice %13 {offsets = [0, 32], sizes = [3, 1152], strides = [1, 1]} : vector<3x1280xf32> to vector<3x1152xf32>
    %c3_11 = arith.constant 3 : index
    %c1152_12 = arith.constant 1152 : index
    %17 = vector.load %arg13[%c3_11, %c1152_12] : memref<15x2304xf32, #tpu.memory_space<vmem>>, vector<3x1152xf32>
    tpu.vector_store %arg13[%c3_11, %c1152_12], %16 {strides = array<i32>} : memref<15x2304xf32, #tpu.memory_space<vmem>>, vector<3x1152xf32>,
    %18 = vector.extract_strided_slice %13 {offsets = [0, 64], sizes = [3, 1152], strides = [1, 1]} : vector<3x1280xf32> to vector<3x1152xf32>
    %c6_13 = arith.constant 6 : index
    %c1152_14 = arith.constant 1152 : index
    %19 = vector.load %arg13[%c6_13, %c1152_14] : memref<15x2304xf32, #tpu.memory_space<vmem>>, vector<3x1152xf32>
    tpu.vector_store %arg13[%c6_13, %c1152_14], %18 {strides = array<i32>} : memref<15x2304xf32, #tpu.memory_space<vmem>>, vector<3x1152xf32>,
    %20 = vector.extract_strided_slice %13 {offsets = [0, 96], sizes = [3, 1152], strides = [1, 1]} : vector<3x1280xf32> to vector<3x1152xf32>
    %c9_15 = arith.constant 9 : index
    %c1152_16 = arith.constant 1152 : index
    %21 = vector.load %arg13[%c9_15, %c1152_16] : memref<15x2304xf32, #tpu.memory_space<vmem>>, vector<3x1152xf32>
    tpu.vector_store %arg13[%c9_15, %c1152_16], %20 {strides = array<i32>} : memref<15x2304xf32, #tpu.memory_space<vmem>>, vector<3x1152xf32>,
    %22 = vector.extract_strided_slice %13 {offsets = [0, 128], sizes = [3, 1152], strides = [1, 1]} : vector<3x1280xf32> to vector<3x1152xf32>
    %c12_17 = arith.constant 12 : index
    %c1152_18 = arith.constant 1152 : index
    %23 = vector.load %arg13[%c12_17, %c1152_18] : memref<15x2304xf32, #tpu.memory_space<vmem>>, vector<3x1152xf32>
    tpu.vector_store %arg13[%c12_17, %c1152_18], %22 {strides = array<i32>} : memref<15x2304xf32, #tpu.memory_space<vmem>>, vector<3x1152xf32>,
    %cst = arith.constant 0.000000e+00 : f32
    %24 = vector.broadcast %cst : f32 to vector<6x1024xf32>
    %cst_19 = arith.constant 0.000000e+00 : f32
    %25 = vector.broadcast %cst_19 : f32 to vector<6x1024xf32>
    %c0_20 = arith.constant 0 : index
    %c0_21 = arith.constant 0 : index
    %26 = vector.load %arg1[%c0_20, %c0_21] : memref<6x75xf32, #tpu.memory_space<vmem>>, vector<6x15xf32>
    %c0_22 = arith.constant 0 : index
    %c0_23 = arith.constant 0 : index
    %27 = vector.load %arg13[%c0_22, %c0_23] : memref<15x2304xf32, #tpu.memory_space<vmem>>, vector<15x2304xf32>
    %cst_24 = arith.constant dense<0.000000e+00> : vector<6x2304xf32>
    %28 = tpu.matmul %26, %27, %cst_24 {dimension_numbers = #tpu.dot_dimension_numbers<[1], [0], [0], [1], [0, 0, 1, 1], [], []>} : vector<6x15xf32>, vector<15x2304xf32>, vector<6x2304xf32> -> vector<6x2304xf32>
    %29 = vector.extract_strided_slice %28 {offsets = [0, 0], sizes = [6, 1024], strides = [1, 1]} : vector<6x2304xf32> to vector<6x1024xf32>
    %30 = arith.addf %24, %29 : vector<6x1024xf32>
    %31 = vector.extract_strided_slice %28 {offsets = [0, 1152], sizes = [6, 1024], strides = [1, 1]} : vector<6x2304xf32> to vector<6x1024xf32>
    %32 = arith.addf %25, %31 : vector<6x1024xf32>
    %c0_25 = arith.constant 0 : index
    %c15 = arith.constant 15 : index
    %33 = vector.load %arg1[%c0_25, %c15] : memref<6x75xf32, #tpu.memory_space<vmem>>, vector<6x15xf32>
    %c0_26 = arith.constant 0 : index
    %c0_27 = arith.constant 0 : index
    %34 = vector.load %arg13[%c0_26, %c0_27] : memref<15x2304xf32, #tpu.memory_space<vmem>>, vector<15x2304xf32>
    %cst_28 = arith.constant dense<0.000000e+00> : vector<6x2304xf32>
    %35 = tpu.matmul %33, %34, %cst_28 {dimension_numbers = #tpu.dot_dimension_numbers<[1], [0], [0], [1], [0, 0, 1, 1], [], []>} : vector<6x15xf32>, vector<15x2304xf32>, vector<6x2304xf32> -> vector<6x2304xf32>
    %36 = vector.extract_strided_slice %35 {offsets = [0, 1], sizes = [6, 1024], strides = [1, 1]} : vector<6x2304xf32> to vector<6x1024xf32>
    %37 = arith.addf %30, %36 : vector<6x1024xf32>
    %38 = vector.extract_strided_slice %35 {offsets = [0, 1153], sizes = [6, 1024], strides = [1, 1]} : vector<6x2304xf32> to vector<6x1024xf32>
    %39 = arith.addf %32, %38 : vector<6x1024xf32>
    %c0_29 = arith.constant 0 : index
    %c30 = arith.constant 30 : index
    %40 = vector.load %arg1[%c0_29, %c30] : memref<6x75xf32, #tpu.memory_space<vmem>>, vector<6x15xf32>
    %c0_30 = arith.constant 0 : index
    %c0_31 = arith.constant 0 : index
    %41 = vector.load %arg13[%c0_30, %c0_31] : memref<15x2304xf32, #tpu.memory_space<vmem>>, vector<15x2304xf32>
    %cst_32 = arith.constant dense<0.000000e+00> : vector<6x2304xf32>
    %42 = tpu.matmul %40, %41, %cst_32 {dimension_numbers = #tpu.dot_dimension_numbers<[1], [0], [0], [1], [0, 0, 1, 1], [], []>} : vector<6x15xf32>, vector<15x2304xf32>, vector<6x2304xf32> -> vector<6x2304xf32>
    %43 = vector.extract_strided_slice %42 {offsets = [0, 2], sizes = [6, 1024], strides = [1, 1]} : vector<6x2304xf32> to vector<6x1024xf32>
    %44 = arith.addf %37, %43 : vector<6x1024xf32>
    %45 = vector.extract_strided_slice %42 {offsets = [0, 1154], sizes = [6, 1024], strides = [1, 1]} : vector<6x2304xf32> to vector<6x1024xf32>
    %46 = arith.addf %39, %45 : vector<6x1024xf32>
    %c0_33 = arith.constant 0 : index
    %c45 = arith.constant 45 : index
    %47 = vector.load %arg1[%c0_33, %c45] : memref<6x75xf32, #tpu.memory_space<vmem>>, vector<6x15xf32>
    %c0_34 = arith.constant 0 : index
    %c0_35 = arith.constant 0 : index
    %48 = vector.load %arg13[%c0_34, %c0_35] : memref<15x2304xf32, #tpu.memory_space<vmem>>, vector<15x2304xf32>
    %cst_36 = arith.constant dense<0.000000e+00> : vector<6x2304xf32>
    %49 = tpu.matmul %47, %48, %cst_36 {dimension_numbers = #tpu.dot_dimension_numbers<[1], [0], [0], [1], [0, 0, 1, 1], [], []>} : vector<6x15xf32>, vector<15x2304xf32>, vector<6x2304xf32> -> vector<6x2304xf32>
    %50 = vector.extract_strided_slice %49 {offsets = [0, 3], sizes = [6, 1024], strides = [1, 1]} : vector<6x2304xf32> to vector<6x1024xf32>
    %51 = arith.addf %44, %50 : vector<6x1024xf32>
    %52 = vector.extract_strided_slice %49 {offsets = [0, 1155], sizes = [6, 1024], strides = [1, 1]} : vector<6x2304xf32> to vector<6x1024xf32>
    %53 = arith.addf %46, %52 : vector<6x1024xf32>
    %c0_37 = arith.constant 0 : index
    %c60 = arith.constant 60 : index
    %54 = vector.load %arg1[%c0_37, %c60] : memref<6x75xf32, #tpu.memory_space<vmem>>, vector<6x15xf32>
    %c0_38 = arith.constant 0 : index
    %c0_39 = arith.constant 0 : index
    %55 = vector.load %arg13[%c0_38, %c0_39] : memref<15x2304xf32, #tpu.memory_space<vmem>>, vector<15x2304xf32>
    %cst_40 = arith.constant dense<0.000000e+00> : vector<6x2304xf32>
    %56 = tpu.matmul %54, %55, %cst_40 {dimension_numbers = #tpu.dot_dimension_numbers<[1], [0], [0], [1], [0, 0, 1, 1], [], []>} : vector<6x15xf32>, vector<15x2304xf32>, vector<6x2304xf32> -> vector<6x2304xf32>
    %57 = vector.extract_strided_slice %56 {offsets = [0, 4], sizes = [6, 1024], strides = [1, 1]} : vector<6x2304xf32> to vector<6x1024xf32>
    %58 = arith.addf %51, %57 : vector<6x1024xf32>
    %59 = vector.extract_strided_slice %56 {offsets = [0, 1156], sizes = [6, 1024], strides = [1, 1]} : vector<6x2304xf32> to vector<6x1024xf32>
    %60 = arith.addf %53, %59 : vector<6x1024xf32>
    %c0_41 = arith.constant 0 : index
    %c0_42 = arith.constant 0 : index
    %61 = vector.load %arg2[%c0_41, %c0_42] : memref<6x1xf32, #tpu.memory_space<vmem>>, vector<6x1xf32>
    %62 = vector.broadcast %61 : vector<6x1xf32> to vector<6x1024xf32>
    %63 = arith.addf %58, %62 : vector<6x1024xf32>
    %cst_43 = arith.constant 0.000000e+00 : f32
    %64 = vector.broadcast %cst_43 : f32 to vector<6x1024xf32>
    %65 = arith.maximumf %63, %64 : vector<6x1024xf32>
    %66 = vector.broadcast %61 : vector<6x1xf32> to vector<6x1024xf32>
    %67 = arith.addf %60, %66 : vector<6x1024xf32>
    %cst_44 = arith.constant 0.000000e+00 : f32
    %68 = vector.broadcast %cst_44 : f32 to vector<6x1024xf32>
    %69 = arith.maximumf %67, %68 : vector<6x1024xf32>
    %70 = vector.extract_strided_slice %65 {offsets = [0, 0], sizes = [6, 1023], strides = [1, 1]} : vector<6x1024xf32> to vector<6x1023xf32>
    %71 = vector.extract_strided_slice %65 {offsets = [0, 1], sizes = [6, 1023], strides = [1, 1]} : vector<6x1024xf32> to vector<6x1023xf32>
    %72 = arith.maximumf %70, %71 : vector<6x1023xf32>
    %73 = vector.extract_strided_slice %72 {offsets = [0, 0], sizes = [6, 991], strides = [1, 1]} : vector<6x1023xf32> to vector<6x991xf32>
    %74 = vector.extract_strided_slice %72 {offsets = [0, 32], sizes = [6, 991], strides = [1, 1]} : vector<6x1023xf32> to vector<6x991xf32>
    %75 = arith.maximumf %73, %74 : vector<6x991xf32>
    %76 = vector.extract_strided_slice %69 {offsets = [0, 0], sizes = [6, 1023], strides = [1, 1]} : vector<6x1024xf32> to vector<6x1023xf32>
    %77 = vector.extract_strided_slice %69 {offsets = [0, 1], sizes = [6, 1023], strides = [1, 1]} : vector<6x1024xf32> to vector<6x1023xf32>
    %78 = arith.maximumf %76, %77 : vector<6x1023xf32>
    %79 = vector.extract_strided_slice %78 {offsets = [0, 0], sizes = [6, 991], strides = [1, 1]} : vector<6x1023xf32> to vector<6x991xf32>
    %80 = vector.extract_strided_slice %78 {offsets = [0, 32], sizes = [6, 991], strides = [1, 1]} : vector<6x1023xf32> to vector<6x991xf32>
    %81 = arith.maximumf %79, %80 : vector<6x991xf32>
    %cst_45 = arith.constant 0.000000e+00 : f32
    %82 = vector.broadcast %cst_45 : f32 to vector<30x1536xf32>
    %c0_46 = arith.constant 0 : index
    %c0_47 = arith.constant 0 : index
    %83 = vector.load %arg14[%c0_46, %c0_47] : memref<30x1536xf32, #tpu.memory_space<vmem>>, vector<30x1536xf32>
    tpu.vector_store %arg14[%c0_46, %c0_47], %82 {strides = array<i32>} : memref<30x1536xf32, #tpu.memory_space<vmem>>, vector<30x1536xf32>,
    %84 = vector.extract_strided_slice %75 {offsets = [0, 0], sizes = [6, 648], strides = [1, 1]} : vector<6x991xf32> to vector<6x648xf32>
    %c0_48 = arith.constant 0 : index
    %c0_49 = arith.constant 0 : index
    %85 = vector.load %arg14[%c0_48, %c0_49] : memref<30x1536xf32, #tpu.memory_space<vmem>>, vector<6x648xf32>
    tpu.vector_store %arg14[%c0_48, %c0_49], %84 {strides = array<i32>} : memref<30x1536xf32, #tpu.memory_space<vmem>>, vector<6x648xf32>,
    %86 = vector.extract_strided_slice %75 {offsets = [0, 64], sizes = [6, 648], strides = [1, 1]} : vector<6x991xf32> to vector<6x648xf32>
    %c6_50 = arith.constant 6 : index
    %c0_51 = arith.constant 0 : index
    %87 = vector.load %arg14[%c6_50, %c0_51] : memref<30x1536xf32, #tpu.memory_space<vmem>>, vector<6x648xf32>
    tpu.vector_store %arg14[%c6_50, %c0_51], %86 {strides = array<i32>} : memref<30x1536xf32, #tpu.memory_space<vmem>>, vector<6x648xf32>,
    %88 = vector.extract_strided_slice %75 {offsets = [0, 128], sizes = [6, 648], strides = [1, 1]} : vector<6x991xf32> to vector<6x648xf32>
    %c12_52 = arith.constant 12 : index
    %c0_53 = arith.constant 0 : index
    %89 = vector.load %arg14[%c12_52, %c0_53] : memref<30x1536xf32, #tpu.memory_space<vmem>>, vector<6x648xf32>
    tpu.vector_store %arg14[%c12_52, %c0_53], %88 {strides = array<i32>} : memref<30x1536xf32, #tpu.memory_space<vmem>>, vector<6x648xf32>,
    %90 = vector.extract_strided_slice %75 {offsets = [0, 192], sizes = [6, 648], strides = [1, 1]} : vector<6x991xf32> to vector<6x648xf32>
    %c18 = arith.constant 18 : index
    %c0_54 = arith.constant 0 : index
    %91 = vector.load %arg14[%c18, %c0_54] : memref<30x1536xf32, #tpu.memory_space<vmem>>, vector<6x648xf32>
    tpu.vector_store %arg14[%c18, %c0_54], %90 {strides = array<i32>} : memref<30x1536xf32, #tpu.memory_space<vmem>>, vector<6x648xf32>,
    %92 = vector.extract_strided_slice %75 {offsets = [0, 256], sizes = [6, 648], strides = [1, 1]} : vector<6x991xf32> to vector<6x648xf32>
    %c24 = arith.constant 24 : index
    %c0_55 = arith.constant 0 : index
    %93 = vector.load %arg14[%c24, %c0_55] : memref<30x1536xf32, #tpu.memory_space<vmem>>, vector<6x648xf32>
    tpu.vector_store %arg14[%c24, %c0_55], %92 {strides = array<i32>} : memref<30x1536xf32, #tpu.memory_space<vmem>>, vector<6x648xf32>,
    %94 = vector.extract_strided_slice %81 {offsets = [0, 0], sizes = [6, 648], strides = [1, 1]} : vector<6x991xf32> to vector<6x648xf32>
    %c0_56 = arith.constant 0 : index
    %c768 = arith.constant 768 : index
    %95 = vector.load %arg14[%c0_56, %c768] : memref<30x1536xf32, #tpu.memory_space<vmem>>, vector<6x648xf32>
    tpu.vector_store %arg14[%c0_56, %c768], %94 {strides = array<i32>} : memref<30x1536xf32, #tpu.memory_space<vmem>>, vector<6x648xf32>,
    %96 = vector.extract_strided_slice %81 {offsets = [0, 64], sizes = [6, 648], strides = [1, 1]} : vector<6x991xf32> to vector<6x648xf32>
    %c6_57 = arith.constant 6 : index
    %c768_58 = arith.constant 768 : index
    %97 = vector.load %arg14[%c6_57, %c768_58] : memref<30x1536xf32, #tpu.memory_space<vmem>>, vector<6x648xf32>
    tpu.vector_store %arg14[%c6_57, %c768_58], %96 {strides = array<i32>} : memref<30x1536xf32, #tpu.memory_space<vmem>>, vector<6x648xf32>,
    %98 = vector.extract_strided_slice %81 {offsets = [0, 128], sizes = [6, 648], strides = [1, 1]} : vector<6x991xf32> to vector<6x648xf32>
    %c12_59 = arith.constant 12 : index
    %c768_60 = arith.constant 768 : index
    %99 = vector.load %arg14[%c12_59, %c768_60] : memref<30x1536xf32, #tpu.memory_space<vmem>>, vector<6x648xf32>
    tpu.vector_store %arg14[%c12_59, %c768_60], %98 {strides = array<i32>} : memref<30x1536xf32, #tpu.memory_space<vmem>>, vector<6x648xf32>,
    %100 = vector.extract_strided_slice %81 {offsets = [0, 192], sizes = [6, 648], strides = [1, 1]} : vector<6x991xf32> to vector<6x648xf32>
    %c18_61 = arith.constant 18 : index
    %c768_62 = arith.constant 768 : index
    %101 = vector.load %arg14[%c18_61, %c768_62] : memref<30x1536xf32, #tpu.memory_space<vmem>>, vector<6x648xf32>
    tpu.vector_store %arg14[%c18_61, %c768_62], %100 {strides = array<i32>} : memref<30x1536xf32, #tpu.memory_space<vmem>>, vector<6x648xf32>,
    %102 = vector.extract_strided_slice %81 {offsets = [0, 256], sizes = [6, 648], strides = [1, 1]} : vector<6x991xf32> to vector<6x648xf32>
    %c24_63 = arith.constant 24 : index
    %c768_64 = arith.constant 768 : index
    %103 = vector.load %arg14[%c24_63, %c768_64] : memref<30x1536xf32, #tpu.memory_space<vmem>>, vector<6x648xf32>
    tpu.vector_store %arg14[%c24_63, %c768_64], %102 {strides = array<i32>} : memref<30x1536xf32, #tpu.memory_space<vmem>>, vector<6x648xf32>,
    %cst_65 = arith.constant 0.000000e+00 : f32
    %104 = vector.broadcast %cst_65 : f32 to vector<16x640xf32>
    %cst_66 = arith.constant 0.000000e+00 : f32
    %105 = vector.broadcast %cst_66 : f32 to vector<16x640xf32>
    %c0_67 = arith.constant 0 : index
    %c0_68 = arith.constant 0 : index
    %106 = vector.load %arg3[%c0_67, %c0_68] : memref<16x150xf32, #tpu.memory_space<vmem>>, vector<16x30xf32>
    %c0_69 = arith.constant 0 : index
    %c0_70 = arith.constant 0 : index
    %107 = vector.load %arg14[%c0_69, %c0_70] : memref<30x1536xf32, #tpu.memory_space<vmem>>, vector<30x1536xf32>
    %cst_71 = arith.constant dense<0.000000e+00> : vector<16x1536xf32>
    %108 = tpu.matmul %106, %107, %cst_71 {dimension_numbers = #tpu.dot_dimension_numbers<[1], [0], [0], [1], [0, 0, 1, 1], [], []>} : vector<16x30xf32>, vector<30x1536xf32>, vector<16x1536xf32> -> vector<16x1536xf32>
    %109 = vector.extract_strided_slice %108 {offsets = [0, 0], sizes = [16, 640], strides = [1, 1]} : vector<16x1536xf32> to vector<16x640xf32>
    %110 = arith.addf %104, %109 : vector<16x640xf32>
    %111 = vector.extract_strided_slice %108 {offsets = [0, 768], sizes = [16, 640], strides = [1, 1]} : vector<16x1536xf32> to vector<16x640xf32>
    %112 = arith.addf %105, %111 : vector<16x640xf32>
    %c0_72 = arith.constant 0 : index
    %c30_73 = arith.constant 30 : index
    %113 = vector.load %arg3[%c0_72, %c30_73] : memref<16x150xf32, #tpu.memory_space<vmem>>, vector<16x30xf32>
    %c0_74 = arith.constant 0 : index
    %c0_75 = arith.constant 0 : index
    %114 = vector.load %arg14[%c0_74, %c0_75] : memref<30x1536xf32, #tpu.memory_space<vmem>>, vector<30x1536xf32>
    %cst_76 = arith.constant dense<0.000000e+00> : vector<16x1536xf32>
    %115 = tpu.matmul %113, %114, %cst_76 {dimension_numbers = #tpu.dot_dimension_numbers<[1], [0], [0], [1], [0, 0, 1, 1], [], []>} : vector<16x30xf32>, vector<30x1536xf32>, vector<16x1536xf32> -> vector<16x1536xf32>
    %116 = vector.extract_strided_slice %115 {offsets = [0, 2], sizes = [16, 640], strides = [1, 1]} : vector<16x1536xf32> to vector<16x640xf32>
    %117 = arith.addf %110, %116 : vector<16x640xf32>
    %118 = vector.extract_strided_slice %115 {offsets = [0, 770], sizes = [16, 640], strides = [1, 1]} : vector<16x1536xf32> to vector<16x640xf32>
    %119 = arith.addf %112, %118 : vector<16x640xf32>
    %c0_77 = arith.constant 0 : index
    %c60_78 = arith.constant 60 : index
    %120 = vector.load %arg3[%c0_77, %c60_78] : memref<16x150xf32, #tpu.memory_space<vmem>>, vector<16x30xf32>
    %c0_79 = arith.constant 0 : index
    %c0_80 = arith.constant 0 : index
    %121 = vector.load %arg14[%c0_79, %c0_80] : memref<30x1536xf32, #tpu.memory_space<vmem>>, vector<30x1536xf32>
    %cst_81 = arith.constant dense<0.000000e+00> : vector<16x1536xf32>
    %122 = tpu.matmul %120, %121, %cst_81 {dimension_numbers = #tpu.dot_dimension_numbers<[1], [0], [0], [1], [0, 0, 1, 1], [], []>} : vector<16x30xf32>, vector<30x1536xf32>, vector<16x1536xf32> -> vector<16x1536xf32>
    %123 = vector.extract_strided_slice %122 {offsets = [0, 4], sizes = [16, 640], strides = [1, 1]} : vector<16x1536xf32> to vector<16x640xf32>
    %124 = arith.addf %117, %123 : vector<16x640xf32>
    %125 = vector.extract_strided_slice %122 {offsets = [0, 772], sizes = [16, 640], strides = [1, 1]} : vector<16x1536xf32> to vector<16x640xf32>
    %126 = arith.addf %119, %125 : vector<16x640xf32>
    %c0_82 = arith.constant 0 : index
    %c90 = arith.constant 90 : index
    %127 = vector.load %arg3[%c0_82, %c90] : memref<16x150xf32, #tpu.memory_space<vmem>>, vector<16x30xf32>
    %c0_83 = arith.constant 0 : index
    %c0_84 = arith.constant 0 : index
    %128 = vector.load %arg14[%c0_83, %c0_84] : memref<30x1536xf32, #tpu.memory_space<vmem>>, vector<30x1536xf32>
    %cst_85 = arith.constant dense<0.000000e+00> : vector<16x1536xf32>
    %129 = tpu.matmul %127, %128, %cst_85 {dimension_numbers = #tpu.dot_dimension_numbers<[1], [0], [0], [1], [0, 0, 1, 1], [], []>} : vector<16x30xf32>, vector<30x1536xf32>, vector<16x1536xf32> -> vector<16x1536xf32>
    %130 = vector.extract_strided_slice %129 {offsets = [0, 6], sizes = [16, 640], strides = [1, 1]} : vector<16x1536xf32> to vector<16x640xf32>
    %131 = arith.addf %124, %130 : vector<16x640xf32>
    %132 = vector.extract_strided_slice %129 {offsets = [0, 774], sizes = [16, 640], strides = [1, 1]} : vector<16x1536xf32> to vector<16x640xf32>
    %133 = arith.addf %126, %132 : vector<16x640xf32>
    %c0_86 = arith.constant 0 : index
    %c120 = arith.constant 120 : index
    %134 = vector.load %arg3[%c0_86, %c120] : memref<16x150xf32, #tpu.memory_space<vmem>>, vector<16x30xf32>
    %c0_87 = arith.constant 0 : index
    %c0_88 = arith.constant 0 : index
    %135 = vector.load %arg14[%c0_87, %c0_88] : memref<30x1536xf32, #tpu.memory_space<vmem>>, vector<30x1536xf32>
    %cst_89 = arith.constant dense<0.000000e+00> : vector<16x1536xf32>
    %136 = tpu.matmul %134, %135, %cst_89 {dimension_numbers = #tpu.dot_dimension_numbers<[1], [0], [0], [1], [0, 0, 1, 1], [], []>} : vector<16x30xf32>, vector<30x1536xf32>, vector<16x1536xf32> -> vector<16x1536xf32>
    %137 = vector.extract_strided_slice %136 {offsets = [0, 8], sizes = [16, 640], strides = [1, 1]} : vector<16x1536xf32> to vector<16x640xf32>
    %138 = arith.addf %131, %137 : vector<16x640xf32>
    %139 = vector.extract_strided_slice %136 {offsets = [0, 776], sizes = [16, 640], strides = [1, 1]} : vector<16x1536xf32> to vector<16x640xf32>
    %140 = arith.addf %133, %139 : vector<16x640xf32>
    %c0_90 = arith.constant 0 : index
    %c0_91 = arith.constant 0 : index
    %141 = vector.load %arg4[%c0_90, %c0_91] : memref<16x1xf32, #tpu.memory_space<vmem>>, vector<16x1xf32>
    %142 = vector.broadcast %141 : vector<16x1xf32> to vector<16x640xf32>
    %143 = arith.addf %138, %142 : vector<16x640xf32>
    %cst_92 = arith.constant 0.000000e+00 : f32
    %144 = vector.broadcast %cst_92 : f32 to vector<16x640xf32>
    %145 = arith.maximumf %143, %144 : vector<16x640xf32>
    %146 = vector.extract_strided_slice %145 {offsets = [0, 0], sizes = [16, 638], strides = [1, 1]} : vector<16x640xf32> to vector<16x638xf32>
    %147 = vector.extract_strided_slice %145 {offsets = [0, 2], sizes = [16, 638], strides = [1, 1]} : vector<16x640xf32> to vector<16x638xf32>
    %148 = arith.maximumf %146, %147 : vector<16x638xf32>
    %149 = vector.extract_strided_slice %148 {offsets = [0, 0], sizes = [16, 574], strides = [1, 1]} : vector<16x638xf32> to vector<16x574xf32>
    %150 = vector.extract_strided_slice %148 {offsets = [0, 64], sizes = [16, 574], strides = [1, 1]} : vector<16x638xf32> to vector<16x574xf32>
    %151 = arith.maximumf %149, %150 : vector<16x574xf32>
    %152 = arith.truncf %151 : vector<16x574xf32> to vector<16x574xbf16>
    %c0_93 = arith.constant 0 : index
    %c0_94 = arith.constant 0 : index
    %153 = vector.load %arg5[%c0_93, %c0_94] : memref<574x32xbf16, #tpu.memory_space<vmem>>, vector<574x32xbf16>
    %cst_95 = arith.constant dense<0.000000e+00> : vector<16x32xf32>
    %154 = tpu.matmul %152, %153, %cst_95 {dimension_numbers = #tpu.dot_dimension_numbers<[1], [0], [0], [1], [0, 0, 1, 1], [], []>} : vector<16x574xbf16>, vector<574x32xbf16>, vector<16x32xf32> -> vector<16x32xf32>
    %155 = vector.extract_strided_slice %154 {offsets = [0, 0], sizes = [1, 32], strides = [1, 1]} : vector<16x32xf32> to vector<1x32xf32>
    %156 = vector.extract_strided_slice %154 {offsets = [1, 0], sizes = [1, 32], strides = [1, 1]} : vector<16x32xf32> to vector<1x32xf32>
    %157 = vector.extract_strided_slice %154 {offsets = [2, 0], sizes = [1, 32], strides = [1, 1]} : vector<16x32xf32> to vector<1x32xf32>
    %158 = vector.extract_strided_slice %154 {offsets = [3, 0], sizes = [1, 32], strides = [1, 1]} : vector<16x32xf32> to vector<1x32xf32>
    %159 = vector.extract_strided_slice %154 {offsets = [4, 0], sizes = [1, 32], strides = [1, 1]} : vector<16x32xf32> to vector<1x32xf32>
    %160 = vector.extract_strided_slice %154 {offsets = [5, 0], sizes = [1, 32], strides = [1, 1]} : vector<16x32xf32> to vector<1x32xf32>
    %161 = vector.extract_strided_slice %154 {offsets = [6, 0], sizes = [1, 32], strides = [1, 1]} : vector<16x32xf32> to vector<1x32xf32>
    %162 = vector.extract_strided_slice %154 {offsets = [7, 0], sizes = [1, 32], strides = [1, 1]} : vector<16x32xf32> to vector<1x32xf32>
    %163 = vector.extract_strided_slice %154 {offsets = [8, 0], sizes = [1, 32], strides = [1, 1]} : vector<16x32xf32> to vector<1x32xf32>
    %164 = vector.extract_strided_slice %154 {offsets = [9, 0], sizes = [1, 32], strides = [1, 1]} : vector<16x32xf32> to vector<1x32xf32>
    %165 = vector.extract_strided_slice %154 {offsets = [10, 0], sizes = [1, 32], strides = [1, 1]} : vector<16x32xf32> to vector<1x32xf32>
    %166 = vector.extract_strided_slice %154 {offsets = [11, 0], sizes = [1, 32], strides = [1, 1]} : vector<16x32xf32> to vector<1x32xf32>
    %167 = vector.extract_strided_slice %154 {offsets = [12, 0], sizes = [1, 32], strides = [1, 1]} : vector<16x32xf32> to vector<1x32xf32>
    %168 = vector.extract_strided_slice %154 {offsets = [13, 0], sizes = [1, 32], strides = [1, 1]} : vector<16x32xf32> to vector<1x32xf32>
    %169 = vector.extract_strided_slice %154 {offsets = [14, 0], sizes = [1, 32], strides = [1, 1]} : vector<16x32xf32> to vector<1x32xf32>
    %170 = vector.extract_strided_slice %154 {offsets = [15, 0], sizes = [1, 32], strides = [1, 1]} : vector<16x32xf32> to vector<1x32xf32>
    %171 = tpu.concatenate %155, %156, %157, %158, %159, %160, %161, %162, %163, %164, %165, %166, %167, %168, %169, %170 in 1 : vector<1x32xf32>, vector<1x32xf32>, vector<1x32xf32>, vector<1x32xf32>, vector<1x32xf32>, vector<1x32xf32>, vector<1x32xf32>, vector<1x32xf32>, vector<1x32xf32>, vector<1x32xf32>, vector<1x32xf32>, vector<1x32xf32>, vector<1x32xf32>, vector<1x32xf32>, vector<1x32xf32>, vector<1x32xf32> -> vector<1x512xf32>
    %172 = vector.broadcast %141 : vector<16x1xf32> to vector<16x640xf32>
    %173 = arith.addf %140, %172 : vector<16x640xf32>
    %cst_96 = arith.constant 0.000000e+00 : f32
    %174 = vector.broadcast %cst_96 : f32 to vector<16x640xf32>
    %175 = arith.maximumf %173, %174 : vector<16x640xf32>
    %176 = vector.extract_strided_slice %175 {offsets = [0, 0], sizes = [16, 638], strides = [1, 1]} : vector<16x640xf32> to vector<16x638xf32>
    %177 = vector.extract_strided_slice %175 {offsets = [0, 2], sizes = [16, 638], strides = [1, 1]} : vector<16x640xf32> to vector<16x638xf32>
    %178 = arith.maximumf %176, %177 : vector<16x638xf32>
    %179 = vector.extract_strided_slice %178 {offsets = [0, 0], sizes = [16, 574], strides = [1, 1]} : vector<16x638xf32> to vector<16x574xf32>
    %180 = vector.extract_strided_slice %178 {offsets = [0, 64], sizes = [16, 574], strides = [1, 1]} : vector<16x638xf32> to vector<16x574xf32>
    %181 = arith.maximumf %179, %180 : vector<16x574xf32>
    %182 = arith.truncf %181 : vector<16x574xf32> to vector<16x574xbf16>
    %c0_97 = arith.constant 0 : index
    %c0_98 = arith.constant 0 : index
    %183 = vector.load %arg5[%c0_97, %c0_98] : memref<574x32xbf16, #tpu.memory_space<vmem>>, vector<574x32xbf16>
    %cst_99 = arith.constant dense<0.000000e+00> : vector<16x32xf32>
    %184 = tpu.matmul %182, %183, %cst_99 {dimension_numbers = #tpu.dot_dimension_numbers<[1], [0], [0], [1], [0, 0, 1, 1], [], []>} : vector<16x574xbf16>, vector<574x32xbf16>, vector<16x32xf32> -> vector<16x32xf32>
    %185 = vector.extract_strided_slice %184 {offsets = [0, 0], sizes = [1, 32], strides = [1, 1]} : vector<16x32xf32> to vector<1x32xf32>
    %186 = vector.extract_strided_slice %184 {offsets = [1, 0], sizes = [1, 32], strides = [1, 1]} : vector<16x32xf32> to vector<1x32xf32>
    %187 = vector.extract_strided_slice %184 {offsets = [2, 0], sizes = [1, 32], strides = [1, 1]} : vector<16x32xf32> to vector<1x32xf32>
    %188 = vector.extract_strided_slice %184 {offsets = [3, 0], sizes = [1, 32], strides = [1, 1]} : vector<16x32xf32> to vector<1x32xf32>
    %189 = vector.extract_strided_slice %184 {offsets = [4, 0], sizes = [1, 32], strides = [1, 1]} : vector<16x32xf32> to vector<1x32xf32>
    %190 = vector.extract_strided_slice %184 {offsets = [5, 0], sizes = [1, 32], strides = [1, 1]} : vector<16x32xf32> to vector<1x32xf32>
    %191 = vector.extract_strided_slice %184 {offsets = [6, 0], sizes = [1, 32], strides = [1, 1]} : vector<16x32xf32> to vector<1x32xf32>
    %192 = vector.extract_strided_slice %184 {offsets = [7, 0], sizes = [1, 32], strides = [1, 1]} : vector<16x32xf32> to vector<1x32xf32>
    %193 = vector.extract_strided_slice %184 {offsets = [8, 0], sizes = [1, 32], strides = [1, 1]} : vector<16x32xf32> to vector<1x32xf32>
    %194 = vector.extract_strided_slice %184 {offsets = [9, 0], sizes = [1, 32], strides = [1, 1]} : vector<16x32xf32> to vector<1x32xf32>
    %195 = vector.extract_strided_slice %184 {offsets = [10, 0], sizes = [1, 32], strides = [1, 1]} : vector<16x32xf32> to vector<1x32xf32>
    %196 = vector.extract_strided_slice %184 {offsets = [11, 0], sizes = [1, 32], strides = [1, 1]} : vector<16x32xf32> to vector<1x32xf32>
    %197 = vector.extract_strided_slice %184 {offsets = [12, 0], sizes = [1, 32], strides = [1, 1]} : vector<16x32xf32> to vector<1x32xf32>
    %198 = vector.extract_strided_slice %184 {offsets = [13, 0], sizes = [1, 32], strides = [1, 1]} : vector<16x32xf32> to vector<1x32xf32>
    %199 = vector.extract_strided_slice %184 {offsets = [14, 0], sizes = [1, 32], strides = [1, 1]} : vector<16x32xf32> to vector<1x32xf32>
    %200 = vector.extract_strided_slice %184 {offsets = [15, 0], sizes = [1, 32], strides = [1, 1]} : vector<16x32xf32> to vector<1x32xf32>
    %201 = tpu.concatenate %185, %186, %187, %188, %189, %190, %191, %192, %193, %194, %195, %196, %197, %198, %199, %200 in 1 : vector<1x32xf32>, vector<1x32xf32>, vector<1x32xf32>, vector<1x32xf32>, vector<1x32xf32>, vector<1x32xf32>, vector<1x32xf32>, vector<1x32xf32>, vector<1x32xf32>, vector<1x32xf32>, vector<1x32xf32>, vector<1x32xf32>, vector<1x32xf32>, vector<1x32xf32>, vector<1x32xf32>, vector<1x32xf32> -> vector<1x512xf32>
    %202 = tpu.concatenate %171, %201 in 0 : vector<1x512xf32>, vector<1x512xf32> -> vector<2x512xf32>
    %203 = arith.truncf %202 : vector<2x512xf32> to vector<2x512xbf16>
    %c0_100 = arith.constant 0 : index
    %c0_101 = arith.constant 0 : index
    %204 = vector.load %arg6[%c0_100, %c0_101] : memref<512x120xbf16, #tpu.memory_space<vmem>>, vector<512x120xbf16>
    %cst_102 = arith.constant dense<0.000000e+00> : vector<2x120xf32>
    %205 = tpu.matmul %203, %204, %cst_102 {dimension_numbers = #tpu.dot_dimension_numbers<[1], [0], [0], [1], [0, 0, 1, 1], [], []>} : vector<2x512xbf16>, vector<512x120xbf16>, vector<2x120xf32> -> vector<2x120xf32>
    %c0_103 = arith.constant 0 : index
    %c0_104 = arith.constant 0 : index
    %206 = vector.load %arg7[%c0_103, %c0_104] : memref<1x120xf32, #tpu.memory_space<vmem>>, vector<1x120xf32>
    %207 = vector.broadcast %206 : vector<1x120xf32> to vector<2x120xf32>
    %208 = arith.addf %205, %207 : vector<2x120xf32>
    %cst_105 = arith.constant 0.000000e+00 : f32
    %209 = vector.broadcast %cst_105 : f32 to vector<2x120xf32>
    %210 = arith.maximumf %208, %209 : vector<2x120xf32>
    %c0_106 = arith.constant 0 : index
    %c0_107 = arith.constant 0 : index
    %211 = vector.load %arg8[%c0_106, %c0_107] : memref<120x84xf32, #tpu.memory_space<vmem>>, vector<120x84xf32>
    %cst_108 = arith.constant dense<0.000000e+00> : vector<2x84xf32>
    %212 = tpu.matmul %210, %211, %cst_108 {dimension_numbers = #tpu.dot_dimension_numbers<[1], [0], [0], [1], [0, 0, 1, 1], [], []>} : vector<2x120xf32>, vector<120x84xf32>, vector<2x84xf32> -> vector<2x84xf32>
    %c0_109 = arith.constant 0 : index
    %c0_110 = arith.constant 0 : index
    %213 = vector.load %arg9[%c0_109, %c0_110] : memref<1x84xf32, #tpu.memory_space<vmem>>, vector<1x84xf32>
    %214 = vector.broadcast %213 : vector<1x84xf32> to vector<2x84xf32>
    %215 = arith.addf %212, %214 : vector<2x84xf32>
    %cst_111 = arith.constant 0.000000e+00 : f32
    %216 = vector.broadcast %cst_111 : f32 to vector<2x84xf32>
    %217 = arith.maximumf %215, %216 : vector<2x84xf32>
    %c0_112 = arith.constant 0 : index
    %c0_113 = arith.constant 0 : index
    %218 = vector.load %arg10[%c0_112, %c0_113] : memref<84x9xf32, #tpu.memory_space<vmem>>, vector<84x9xf32>
    %cst_114 = arith.constant dense<0.000000e+00> : vector<2x9xf32>
    %219 = tpu.matmul %217, %218, %cst_114 {dimension_numbers = #tpu.dot_dimension_numbers<[1], [0], [0], [1], [0, 0, 1, 1], [], []>} : vector<2x84xf32>, vector<84x9xf32>, vector<2x9xf32> -> vector<2x9xf32>
    %c0_115 = arith.constant 0 : index
    %c0_116 = arith.constant 0 : index
    %220 = vector.load %arg11[%c0_115, %c0_116] : memref<1x9xf32, #tpu.memory_space<vmem>>, vector<1x9xf32>
    %221 = vector.broadcast %220 : vector<1x9xf32> to vector<2x9xf32>
    %222 = arith.addf %219, %221 : vector<2x9xf32>
    %c0_117 = arith.constant 0 : index
    %c0_118 = arith.constant 0 : index
    %223 = vector.load %arg12[%c0_117, %c0_118] : memref<2x9xf32, #tpu.memory_space<vmem>>, vector<2x9xf32>
    tpu.vector_store %arg12[%c0_117, %c0_118], %222 {strides = array<i32>} : memref<2x9xf32, #tpu.memory_space<vmem>>, vector<2x9xf32>,
    return
  }
}

</mosaic_0001>

<llo_original>
// kernel: lenet5_forward.1
$region0: #{lenet5_forward.1}
  #allocation0 [shape = 'u32[]', space=smem, size = 0x4, offset = 0x4, fixed_abs, tag = 'smem constant byte address 0x4 - core index']
  #allocation1 [shape = 'u32[144,128]{1,0:T(1,128)}', space=vmem, size = 0x12000, scoped, tag = 'internal scratch']
  #allocation2 [shape = 'f32[15,2304]{1,0:T(8,128)}', space=vmem, size = 0x24000, scoped, tag = 'scratch operand']
  #allocation3 [shape = 'f32[30,1536]{1,0:T(8,128)}', space=vmem, size = 0x30000, scoped, tag = 'scratch operand']
  %s0 = inlined_call_operand.vmem [shape: f32[2,3,1280], index: 0, kind: input, shape index: {}]
  %s1 = inlined_call_operand.vmem [shape: f32[6,75], index: 1, kind: input, shape index: {}]
  %s2 = inlined_call_operand.vmem [shape: f32[6,1], index: 2, kind: input, shape index: {}]
  %s3 = inlined_call_operand.vmem [shape: f32[16,150], index: 3, kind: input, shape index: {}]
  %s4 = inlined_call_operand.vmem [shape: f32[16,1], index: 4, kind: input, shape index: {}]
  %s5 = inlined_call_operand.vmem [shape: bf16[574,32], index: 5, kind: input, shape index: {}]
  %s6 = inlined_call_operand.vmem [shape: bf16[512,120], index: 6, kind: input, shape index: {}]
  %s7 = inlined_call_operand.vmem [shape: f32[1,120], index: 7, kind: input, shape index: {}]
  %s8 = inlined_call_operand.vmem [shape: f32[120,84], index: 8, kind: input, shape index: {}]
  %s9 = inlined_call_operand.vmem [shape: f32[1,84], index: 9, kind: input, shape index: {}]
  %s10 = inlined_call_operand.vmem [shape: f32[84,9], index: 10, kind: input, shape index: {}]
  %s11 = inlined_call_operand.vmem [shape: f32[1,9], index: 11, kind: input, shape index: {}]
  %s12 = inlined_call_operand.hbm [shape: f32[2,9], index: 12, kind: output, shape index: {}]
  %s13 = sld [smem:[#allocation0]]
  $region58: #{lenet5_forward.1} parent=0
    _
  %s15 = ssub.s32 1, %s13
  %s16 = scalar_select 0, %s15, %s13
  $region1: #{lenet5_forward.1} parent=0
    #allocation4 [shape = 'u8[1024]{0}', space=vmem, size = 0x400, scoped, tag = 'output window, operand 0, single buffered']
    #allocation5 [shape = 's32[1]{0}', space=sflag, size = 0x4, scoped, tag = 'scoped memory for lenet5_forward.1']
    %17 = vsyncpa [#allocation5], 0
    // Predicated region
    $region2: #{lenet5_forward.1} parent=1 // pred_check
      _
    $region3: #{lenet5_forward.1} parent=1 // pred_check_branch
      %19 = sbr.rel (0) target = $region5
    $region4: #{lenet5_forward.1} parent=1 // pred_region
      _
    $region5: #{lenet5_forward.1} parent=1 // pred_fallthru
      _
    // Predicated region
    $region6: #{lenet5_forward.1} parent=1 // pred_check
      _
    $region7: #{lenet5_forward.1} parent=1 // pred_check_branch
      %21 = sbr.rel (0) target = $region9
    $region8: #{lenet5_forward.1} parent=1 // pred_region
      _
    $region9: #{lenet5_forward.1} parent=1 // pred_fallthru
      _
    // Predicated region
    $region10: #{lenet5_forward.1} parent=1 // pred_check
      _
    $region11: #{lenet5_forward.1} parent=1 // pred_check_branch
      %23 = sbr.rel (0) target = $region13
    $region12: #{lenet5_forward.1} parent=1 // pred_region
      _
    $region13: #{lenet5_forward.1} parent=1 // pred_fallthru
      _
    // Predicated region
    $region14: #{lenet5_forward.1} parent=1 // pred_check
      _
    $region15: #{lenet5_forward.1} parent=1 // pred_check_branch
      %25 = sbr.rel (0) target = $region17
    $region16: #{lenet5_forward.1} parent=1 // pred_region
      _
    $region17: #{lenet5_forward.1} parent=1 // pred_fallthru
      _
    // Predicated region
    $region18: #{lenet5_forward.1} parent=1 // pred_check
      _
    $region19: #{lenet5_forward.1} parent=1 // pred_check_branch
      %27 = sbr.rel (0) target = $region21
    $region20: #{lenet5_forward.1} parent=1 // pred_region
      _
    $region21: #{lenet5_forward.1} parent=1 // pred_fallthru
      _
    // Predicated region
    $region22: #{lenet5_forward.1} parent=1 // pred_check
      _
    $region23: #{lenet5_forward.1} parent=1 // pred_check_branch
      %29 = sbr.rel (0) target = $region25
    $region24: #{lenet5_forward.1} parent=1 // pred_region
      _
    $region25: #{lenet5_forward.1} parent=1 // pred_fallthru
      _
    // Predicated region
    $region26: #{lenet5_forward.1} parent=1 // pred_check
      _
    $region27: #{lenet5_forward.1} parent=1 // pred_check_branch
      %31 = sbr.rel (0) target = $region29
    $region28: #{lenet5_forward.1} parent=1 // pred_region
      _
    $region29: #{lenet5_forward.1} parent=1 // pred_fallthru
      _
    // Predicated region
    $region30: #{lenet5_forward.1} parent=1 // pred_check
      _
    $region31: #{lenet5_forward.1} parent=1 // pred_check_branch
      %33 = sbr.rel (0) target = $region33
    $region32: #{lenet5_forward.1} parent=1 // pred_region
      _
    $region33: #{lenet5_forward.1} parent=1 // pred_fallthru
      _
    // Predicated region
    $region34: #{lenet5_forward.1} parent=1 // pred_check
      _
    $region35: #{lenet5_forward.1} parent=1 // pred_check_branch
      %35 = sbr.rel (0) target = $region37
    $region36: #{lenet5_forward.1} parent=1 // pred_region
      _
    $region37: #{lenet5_forward.1} parent=1 // pred_fallthru
      _
    // Predicated region
    $region38: #{lenet5_forward.1} parent=1 // pred_check
      _
    $region39: #{lenet5_forward.1} parent=1 // pred_check_branch
      %37 = sbr.rel (0) target = $region41
    $region40: #{lenet5_forward.1} parent=1 // pred_region
      _
    $region41: #{lenet5_forward.1} parent=1 // pred_fallthru
      _
    // Predicated region
    $region42: #{lenet5_forward.1} parent=1 // pred_check
      _
    $region43: #{lenet5_forward.1} parent=1 // pred_check_branch
      %39 = sbr.rel (0) target = $region45
    $region44: #{lenet5_forward.1} parent=1 // pred_region
      _
    $region45: #{lenet5_forward.1} parent=1 // pred_fallthru
      _
    // Predicated region
    $region46: #{lenet5_forward.1} parent=1 // pred_check
      _
    $region47: #{lenet5_forward.1} parent=1 // pred_check_branch
      %41 = sbr.rel (0) target = $region49
    $region48: #{lenet5_forward.1} parent=1 // pred_region
      _
    $region49: #{lenet5_forward.1} parent=1 // pred_fallthru
      _
    %v43 = vld [vmem:[%s0] sm:$0x77]
    %v44 = vld [vmem:[%s0 + $0x8] sm:$0x77]
    %v45 = vld [vmem:[%s0 + $0x10] sm:$0x77]
    %v46 = vld [vmem:[%s0 + $0x18] sm:$0x77]
    %v47 = vld [vmem:[%s0 + $0x20] sm:$0x77]
    %v53 = vcombine.high %v43, %v43
    %v54 = vcombine.high %v44, %v44
    %v55 = vcombine.high %v45, %v45
    %v56 = vcombine.high %v46, %v46
    %61 = vst [vmem:[#allocation2] sm:$0x7] %v43
    %62 = vst [vmem:[#allocation2 + $0x8] sm:$0x7] %v53
    %63 = vst [vmem:[#allocation2 + $0x10] sm:$0x7] %v44
    %64 = vst [vmem:[#allocation2 + $0x18] sm:$0x7] %v54
    %65 = vst [vmem:[#allocation2 + $0x20] sm:$0x7] %v45
    %66 = vst [vmem:[#allocation2 + $0x28] sm:$0x7] %v55
    %67 = vst [vmem:[#allocation2 + $0x30] sm:$0x7] %v46
    %68 = vst [vmem:[#allocation2 + $0x38] sm:$0x7] %v56
    %69 = vst [vmem:[#allocation2 + $0x40] sm:$0x7] %v47
    %v70 = vcombine.high %v47, %v47
    %v71 = vrot.slane %v43, 5
    %v72 = vrot.slane %v53, 5
    %v73 = vrot.slane %v44, 5
    %v74 = vrot.slane %v54, 5
    %v75 = vrot.slane %v45, 5
    %v76 = vrot.slane %v55, 5
    %v77 = vrot.slane %v46, 5
    %v78 = vrot.slane %v56, 5
    %v79 = vrot.slane %v47, 5
    %v80 = vrot.slane %v70, 5
    %81 = vrot.lane.b32.xlu0 %v71, 96
    %v82 = vpop.permute.xlu0 %81
    %83 = vrot.lane.b32.xlu0 %v72, 96
    %v84 = vpop.permute.xlu0 %83
    %85 = vrot.lane.b32.xlu0 %v73, 96
    %v86 = vpop.permute.xlu0 %85
    %87 = vrot.lane.b32.xlu0 %v74, 96
    %v88 = vpop.permute.xlu0 %87
    %89 = vrot.lane.b32.xlu0 %v75, 96
    %v90 = vpop.permute.xlu0 %89
    %91 = vrot.lane.b32.xlu0 %v76, 96
    %v92 = vpop.permute.xlu0 %91
    %93 = vrot.lane.b32.xlu0 %v77, 96
    %v94 = vpop.permute.xlu0 %93
    %95 = vrot.lane.b32.xlu0 %v78, 96
    %v96 = vpop.permute.xlu0 %95
    %97 = vrot.lane.b32.xlu0 %v79, 96
    %v98 = vpop.permute.xlu0 %97
    %99 = vrot.lane.b32.xlu0 %v80, 96
    %v100 = vpop.permute.xlu0 %99
    %vm101 = vcmask 785408
    %v102 = vsel %vm101, %v82, %v84
    %v103 = vsel %vm101, %v84, %v86
    %v104 = vsel %vm101, %v86, %v88
    %v105 = vsel %vm101, %v88, %v90
    %v106 = vsel %vm101, %v90, %v92
    %v107 = vsel %vm101, %v92, %v94
    %v108 = vsel %vm101, %v94, %v96
    %v109 = vsel %vm101, %v96, %v98
    %v110 = vsel %vm101, %v98, %v100
    %120 = vst [vmem:[#allocation2] sm:$0x38] %v102
    %121 = vst [vmem:[#allocation2 + $0x8] sm:$0x38] %v103
    %122 = vst [vmem:[#allocation2 + $0x10] sm:$0x38] %v104
    %123 = vst [vmem:[#allocation2 + $0x18] sm:$0x38] %v105
    %124 = vst [vmem:[#allocation2 + $0x20] sm:$0x38] %v106
    %125 = vst [vmem:[#allocation2 + $0x28] sm:$0x38] %v107
    %126 = vst [vmem:[#allocation2 + $0x30] sm:$0x38] %v108
    %127 = vst [vmem:[#allocation2 + $0x38] sm:$0x38] %v109
    %128 = vst [vmem:[#allocation2 + $0x40] sm:$0x38] %v110
    %v129 = vrot.slane %v43, 2
    %v130 = vrot.slane %v53, 2
    %v131 = vrot.slane %v44, 2
    %v132 = vrot.slane %v54, 2
    %v133 = vrot.slane %v45, 2
    %v134 = vrot.slane %v55, 2
    %v135 = vrot.slane %v46, 2
    %v136 = vrot.slane %v56, 2
    %v137 = vrot.slane %v47, 2
    %v138 = vrot.slane %v70, 2
    %139 = vrot.lane.b32.xlu0 %v129, 64
    %v140 = vpop.permute.xlu0 %139
    %141 = vrot.lane.b32.xlu0 %v130, 64
    %v142 = vpop.permute.xlu0 %141
    %143 = vrot.lane.b32.xlu0 %v131, 64
    %v144 = vpop.permute.xlu0 %143
    %145 = vrot.lane.b32.xlu0 %v132, 64
    %v146 = vpop.permute.xlu0 %145
    %147 = vrot.lane.b32.xlu0 %v133, 64
    %v148 = vpop.permute.xlu0 %147
    %149 = vrot.lane.b32.xlu0 %v134, 64
    %v150 = vpop.permute.xlu0 %149
    %151 = vrot.lane.b32.xlu0 %v135, 64
    %v152 = vpop.permute.xlu0 %151
    %153 = vrot.lane.b32.xlu0 %v136, 64
    %v154 = vpop.permute.xlu0 %153
    %155 = vrot.lane.b32.xlu0 %v137, 64
    %v156 = vpop.permute.xlu0 %155
    %157 = vrot.lane.b32.xlu0 %v138, 64
    %v158 = vpop.permute.xlu0 %157
    %vm159 = vcmask 523264
    %v160 = vsel %vm159, %v140, %v142
    %v161 = vsel %vm159, %v142, %v144
    %v162 = vsel %vm159, %v144, %v146
    %v163 = vsel %vm159, %v146, %v148
    %v164 = vsel %vm159, %v148, %v150
    %v165 = vsel %vm159, %v150, %v152
    %v166 = vsel %vm159, %v152, %v154
    %v167 = vsel %vm159, %v154, %v156
    %v168 = vsel %vm159, %v156, %v158
    %178 = vst [vmem:[#allocation2] sm:$0xc0] %v160
    %179 = vst [vmem:[#allocation2 + $0x8] sm:$0xc0] %v161
    %180 = vst [vmem:[#allocation2 + $0x10] sm:$0xc0] %v162
    %181 = vst [vmem:[#allocation2 + $0x18] sm:$0xc0] %v163
    %182 = vst [vmem:[#allocation2 + $0x20] sm:$0xc0] %v164
    %183 = vst [vmem:[#allocation2 + $0x28] sm:$0xc0] %v165
    %184 = vst [vmem:[#allocation2 + $0x30] sm:$0xc0] %v166
    %185 = vst [vmem:[#allocation2 + $0x38] sm:$0xc0] %v167
    %186 = vst [vmem:[#allocation2 + $0x40] sm:$0xc0] %v168
    %187 = vst [vmem:[#allocation2 + $0x90] sm:$0x1] %v160
    %188 = vst [vmem:[#allocation2 + $0x98] sm:$0x1] %v161
    %189 = vst [vmem:[#allocation2 + $0xa0] sm:$0x1] %v162
    %190 = vst [vmem:[#allocation2 + $0xa8] sm:$0x1] %v163
    %191 = vst [vmem:[#allocation2 + $0xb0] sm:$0x1] %v164
    %192 = vst [vmem:[#allocation2 + $0xb8] sm:$0x1] %v165
    %193 = vst [vmem:[#allocation2 + $0xc0] sm:$0x1] %v166
    %194 = vst [vmem:[#allocation2 + $0xc8] sm:$0x1] %v167
    %195 = vst [vmem:[#allocation2 + $0xd0] sm:$0x1] %v168
    %v196 = vrot.slane %v43, 7
    %v197 = vrot.slane %v53, 7
    %v198 = vrot.slane %v44, 7
    %v199 = vrot.slane %v54, 7
    %v200 = vrot.slane %v45, 7
    %v201 = vrot.slane %v55, 7
    %v202 = vrot.slane %v46, 7
    %v203 = vrot.slane %v56, 7
    %v204 = vrot.slane %v47, 7
    %v205 = vrot.slane %v70, 7
    %206 = vrot.lane.b32.xlu0 %v196, 32
    %v207 = vpop.permute.xlu0 %206
    %208 = vrot.lane.b32.xlu0 %v197, 32
    %v209 = vpop.permute.xlu0 %208
    %210 = vrot.lane.b32.xlu0 %v198, 32
    %v211 = vpop.permute.xlu0 %210
    %212 = vrot.lane.b32.xlu0 %v199, 32
    %v213 = vpop.permute.xlu0 %212
    %214 = vrot.lane.b32.xlu0 %v200, 32
    %v215 = vpop.permute.xlu0 %214
    %216 = vrot.lane.b32.xlu0 %v201, 32
    %v217 = vpop.permute.xlu0 %216
    %218 = vrot.lane.b32.xlu0 %v202, 32
    %v219 = vpop.permute.xlu0 %218
    %220 = vrot.lane.b32.xlu0 %v203, 32
    %v221 = vpop.permute.xlu0 %220
    %222 = vrot.lane.b32.xlu0 %v204, 32
    %v223 = vpop.permute.xlu0 %222
    %224 = vrot.lane.b32.xlu0 %v205, 32
    %v225 = vpop.permute.xlu0 %224
    %vm226 = vcmask 261120
    %v227 = vsel %vm226, %v207, %v209
    %v228 = vsel %vm226, %v209, %v211
    %v229 = vsel %vm226, %v211, %v213
    %v230 = vsel %vm226, %v213, %v215
    %v231 = vsel %vm226, %v215, %v217
    %v232 = vsel %vm226, %v217, %v219
    %v233 = vsel %vm226, %v219, %v221
    %v234 = vsel %vm226, %v221, %v223
    %v235 = vsel %vm226, %v223, %v225
    %245 = vst [vmem:[#allocation2 + $0x90] sm:$0xe] %v227
    %246 = vst [vmem:[#allocation2 + $0x98] sm:$0xe] %v228
    %247 = vst [vmem:[#allocation2 + $0xa0] sm:$0xe] %v229
    %248 = vst [vmem:[#allocation2 + $0xa8] sm:$0xe] %v230
    %249 = vst [vmem:[#allocation2 + $0xb0] sm:$0xe] %v231
    %250 = vst [vmem:[#allocation2 + $0xb8] sm:$0xe] %v232
    %251 = vst [vmem:[#allocation2 + $0xc0] sm:$0xe] %v233
    %252 = vst [vmem:[#allocation2 + $0xc8] sm:$0xe] %v234
    %253 = vst [vmem:[#allocation2 + $0xd0] sm:$0xe] %v235
    %v254 = vcombine.low %v44, %v44
    %v255 = vcombine.low %v45, %v45
    %v256 = vcombine.low %v46, %v46
    %v257 = vcombine.low %v47, %v47
    %262 = vst [vmem:[#allocation2 + $0x90] sm:$0x70] %v43
    %263 = vst [vmem:[#allocation2 + $0x98] sm:$0x70] %v254
    %264 = vst [vmem:[#allocation2 + $0xa0] sm:$0x70] %v44
    %265 = vst [vmem:[#allocation2 + $0xa8] sm:$0x70] %v255
    %266 = vst [vmem:[#allocation2 + $0xb0] sm:$0x70] %v45
    %267 = vst [vmem:[#allocation2 + $0xb8] sm:$0x70] %v256
    %268 = vst [vmem:[#allocation2 + $0xc0] sm:$0x70] %v46
    %269 = vst [vmem:[#allocation2 + $0xc8] sm:$0x70] %v257
    %270 = vst [vmem:[#allocation2 + $0xd0] sm:$0x70] %v47
    %s271 = scalar_lea.vmem %s0, 40
    %v272 = vld [vmem:[%s271] sm:$0x77]
    %v273 = vld [vmem:[%s271 + $0x8] sm:$0x77]
    %v274 = vld [vmem:[%s271 + $0x10] sm:$0x77]
    %v275 = vld [vmem:[%s271 + $0x18] sm:$0x77]
    %v276 = vld [vmem:[%s271 + $0x20] sm:$0x77]
    %v282 = vcombine.high %v272, %v272
    %v283 = vcombine.high %v273, %v273
    %v284 = vcombine.high %v274, %v274
    %v285 = vcombine.high %v275, %v275
    %290 = vst [vmem:[#allocation2 + $0x48] sm:$0x7] %v272
    %291 = vst [vmem:[#allocation2 + $0x50] sm:$0x7] %v282
    %292 = vst [vmem:[#allocation2 + $0x58] sm:$0x7] %v273
    %293 = vst [vmem:[#allocation2 + $0x60] sm:$0x7] %v283
    %294 = vst [vmem:[#allocation2 + $0x68] sm:$0x7] %v274
    %295 = vst [vmem:[#allocation2 + $0x70] sm:$0x7] %v284
    %296 = vst [vmem:[#allocation2 + $0x78] sm:$0x7] %v275
    %297 = vst [vmem:[#allocation2 + $0x80] sm:$0x7] %v285
    %298 = vst [vmem:[#allocation2 + $0x88] sm:$0x7] %v276
    %v299 = vcombine.high %v276, %v276
    %v300 = vrot.slane %v272, 5
    %v301 = vrot.slane %v282, 5
    %v302 = vrot.slane %v273, 5
    %v303 = vrot.slane %v283, 5
    %v304 = vrot.slane %v274, 5
    %v305 = vrot.slane %v284, 5
    %v306 = vrot.slane %v275, 5
    %v307 = vrot.slane %v285, 5
    %v308 = vrot.slane %v276, 5
    %v309 = vrot.slane %v299, 5
    %310 = vrot.lane.b32.xlu0 %v300, 96
    %v311 = vpop.permute.xlu0 %310
    %312 = vrot.lane.b32.xlu0 %v301, 96
    %v313 = vpop.permute.xlu0 %312
    %314 = vrot.lane.b32.xlu0 %v302, 96
    %v315 = vpop.permute.xlu0 %314
    %316 = vrot.lane.b32.xlu0 %v303, 96
    %v317 = vpop.permute.xlu0 %316
    %318 = vrot.lane.b32.xlu0 %v304, 96
    %v319 = vpop.permute.xlu0 %318
    %320 = vrot.lane.b32.xlu0 %v305, 96
    %v321 = vpop.permute.xlu0 %320
    %322 = vrot.lane.b32.xlu0 %v306, 96
    %v323 = vpop.permute.xlu0 %322
    %324 = vrot.lane.b32.xlu0 %v307, 96
    %v325 = vpop.permute.xlu0 %324
    %326 = vrot.lane.b32.xlu0 %v308, 96
    %v327 = vpop.permute.xlu0 %326
    %328 = vrot.lane.b32.xlu0 %v309, 96
    %v329 = vpop.permute.xlu0 %328
    %v330 = vsel %vm101, %v311, %v313
    %v331 = vsel %vm101, %v313, %v315
    %v332 = vsel %vm101, %v315, %v317
    %v333 = vsel %vm101, %v317, %v319
    %v334 = vsel %vm101, %v319, %v321
    %v335 = vsel %vm101, %v321, %v323
    %v336 = vsel %vm101, %v323, %v325
    %v337 = vsel %vm101, %v325, %v327
    %v338 = vsel %vm101, %v327, %v329
    %348 = vst [vmem:[#allocation2 + $0x48] sm:$0x38] %v330
    %349 = vst [vmem:[#allocation2 + $0x50] sm:$0x38] %v331
    %350 = vst [vmem:[#allocation2 + $0x58] sm:$0x38] %v332
    %351 = vst [vmem:[#allocation2 + $0x60] sm:$0x38] %v333
    %352 = vst [vmem:[#allocation2 + $0x68] sm:$0x38] %v334
    %353 = vst [vmem:[#allocation2 + $0x70] sm:$0x38] %v335
    %354 = vst [vmem:[#allocation2 + $0x78] sm:$0x38] %v336
    %355 = vst [vmem:[#allocation2 + $0x80] sm:$0x38] %v337
    %356 = vst [vmem:[#allocation2 + $0x88] sm:$0x38] %v338
    %v357 = vrot.slane %v272, 2
    %v358 = vrot.slane %v282, 2
    %v359 = vrot.slane %v273, 2
    %v360 = vrot.slane %v283, 2
    %v361 = vrot.slane %v274, 2
    %v362 = vrot.slane %v284, 2
    %v363 = vrot.slane %v275, 2
    %v364 = vrot.slane %v285, 2
    %v365 = vrot.slane %v276, 2
    %v366 = vrot.slane %v299, 2
    %367 = vrot.lane.b32.xlu0 %v357, 64
    %v368 = vpop.permute.xlu0 %367
    %369 = vrot.lane.b32.xlu0 %v358, 64
    %v370 = vpop.permute.xlu0 %369
    %371 = vrot.lane.b32.xlu0 %v359, 64
    %v372 = vpop.permute.xlu0 %371
    %373 = vrot.lane.b32.xlu0 %v360, 64
    %v374 = vpop.permute.xlu0 %373
    %375 = vrot.lane.b32.xlu0 %v361, 64
    %v376 = vpop.permute.xlu0 %375
    %377 = vrot.lane.b32.xlu0 %v362, 64
    %v378 = vpop.permute.xlu0 %377
    %379 = vrot.lane.b32.xlu0 %v363, 64
    %v380 = vpop.permute.xlu0 %379
    %381 = vrot.lane.b32.xlu0 %v364, 64
    %v382 = vpop.permute.xlu0 %381
    %383 = vrot.lane.b32.xlu0 %v365, 64
    %v384 = vpop.permute.xlu0 %383
    %385 = vrot.lane.b32.xlu0 %v366, 64
    %v386 = vpop.permute.xlu0 %385
    %v387 = vsel %vm159, %v368, %v370
    %v388 = vsel %vm159, %v370, %v372
    %v389 = vsel %vm159, %v372, %v374
    %v390 = vsel %vm159, %v374, %v376
    %v391 = vsel %vm159, %v376, %v378
    %v392 = vsel %vm159, %v378, %v380
    %v393 = vsel %vm159, %v380, %v382
    %v394 = vsel %vm159, %v382, %v384
    %v395 = vsel %vm159, %v384, %v386
    %405 = vst [vmem:[#allocation2 + $0x48] sm:$0xc0] %v387
    %406 = vst [vmem:[#allocation2 + $0x50] sm:$0xc0] %v388
    %407 = vst [vmem:[#allocation2 + $0x58] sm:$0xc0] %v389
    %408 = vst [vmem:[#allocation2 + $0x60] sm:$0xc0] %v390
    %409 = vst [vmem:[#allocation2 + $0x68] sm:$0xc0] %v391
    %410 = vst [vmem:[#allocation2 + $0x70] sm:$0xc0] %v392
    %411 = vst [vmem:[#allocation2 + $0x78] sm:$0xc0] %v393
    %412 = vst [vmem:[#allocation2 + $0x80] sm:$0xc0] %v394
    %413 = vst [vmem:[#allocation2 + $0x88] sm:$0xc0] %v395
    %414 = vst [vmem:[#allocation2 + $0xd8] sm:$0x1] %v387
    %415 = vst [vmem:[#allocation2 + $0xe0] sm:$0x1] %v388
    %416 = vst [vmem:[#allocation2 + $0xe8] sm:$0x1] %v389
    %417 = vst [vmem:[#allocation2 + $0xf0] sm:$0x1] %v390
    %418 = vst [vmem:[#allocation2 + $0xf8] sm:$0x1] %v391
    %419 = vst [vmem:[#allocation2 + $0x100] sm:$0x1] %v392
    %420 = vst [vmem:[#allocation2 + $0x108] sm:$0x1] %v393
    %421 = vst [vmem:[#allocation2 + $0x110] sm:$0x1] %v394
    %422 = vst [vmem:[#allocation2 + $0x118] sm:$0x1] %v395
    %v423 = vrot.slane %v272, 7
    %v424 = vrot.slane %v282, 7
    %v425 = vrot.slane %v273, 7
    %v426 = vrot.slane %v283, 7
    %v427 = vrot.slane %v274, 7
    %v428 = vrot.slane %v284, 7
    %v429 = vrot.slane %v275, 7
    %v430 = vrot.slane %v285, 7
    %v431 = vrot.slane %v276, 7
    %v432 = vrot.slane %v299, 7
    %433 = vrot.lane.b32.xlu0 %v423, 32
    %v434 = vpop.permute.xlu0 %433
    %435 = vrot.lane.b32.xlu0 %v424, 32
    %v436 = vpop.permute.xlu0 %435
    %437 = vrot.lane.b32.xlu0 %v425, 32
    %v438 = vpop.permute.xlu0 %437
    %439 = vrot.lane.b32.xlu0 %v426, 32
    %v440 = vpop.permute.xlu0 %439
    %441 = vrot.lane.b32.xlu0 %v427, 32
    %v442 = vpop.permute.xlu0 %441
    %443 = vrot.lane.b32.xlu0 %v428, 32
    %v444 = vpop.permute.xlu0 %443
    %445 = vrot.lane.b32.xlu0 %v429, 32
    %v446 = vpop.permute.xlu0 %445
    %447 = vrot.lane.b32.xlu0 %v430, 32
    %v448 = vpop.permute.xlu0 %447
    %449 = vrot.lane.b32.xlu0 %v431, 32
    %v450 = vpop.permute.xlu0 %449
    %451 = vrot.lane.b32.xlu0 %v432, 32
    %v452 = vpop.permute.xlu0 %451
    %v453 = vsel %vm226, %v434, %v436
    %v454 = vsel %vm226, %v436, %v438
    %v455 = vsel %vm226, %v438, %v440
    %v456 = vsel %vm226, %v440, %v442
    %v457 = vsel %vm226, %v442, %v444
    %v458 = vsel %vm226, %v444, %v446
    %v459 = vsel %vm226, %v446, %v448
    %v460 = vsel %vm226, %v448, %v450
    %v461 = vsel %vm226, %v450, %v452
    %471 = vst [vmem:[#allocation2 + $0xd8] sm:$0xe] %v453
    %472 = vst [vmem:[#allocation2 + $0xe0] sm:$0xe] %v454
    %473 = vst [vmem:[#allocation2 + $0xe8] sm:$0xe] %v455
    %474 = vst [vmem:[#allocation2 + $0xf0] sm:$0xe] %v456
    %475 = vst [vmem:[#allocation2 + $0xf8] sm:$0xe] %v457
    %476 = vst [vmem:[#allocation2 + $0x100] sm:$0xe] %v458
    %477 = vst [vmem:[#allocation2 + $0x108] sm:$0xe] %v459
    %478 = vst [vmem:[#allocation2 + $0x110] sm:$0xe] %v460
    %479 = vst [vmem:[#allocation2 + $0x118] sm:$0xe] %v461
    %v480 = vcombine.low %v273, %v273
    %v481 = vcombine.low %v274, %v274
    %v482 = vcombine.low %v275, %v275
    %v483 = vcombine.low %v276, %v276
    %488 = vst [vmem:[#allocation2 + $0xd8] sm:$0x70] %v272
    %489 = vst [vmem:[#allocation2 + $0xe0] sm:$0x70] %v480
    %490 = vst [vmem:[#allocation2 + $0xe8] sm:$0x70] %v273
    %491 = vst [vmem:[#allocation2 + $0xf0] sm:$0x70] %v481
    %492 = vst [vmem:[#allocation2 + $0xf8] sm:$0x70] %v274
    %493 = vst [vmem:[#allocation2 + $0x100] sm:$0x70] %v482
    %494 = vst [vmem:[#allocation2 + $0x108] sm:$0x70] %v275
    %495 = vst [vmem:[#allocation2 + $0x110] sm:$0x70] %v483
    %496 = vst [vmem:[#allocation2 + $0x118] sm:$0x70] %v276
    %v497 = vld [vmem:[%s1] sm:$0x3f]
    %v498 = vld [vmem:[#allocation2] sm:$0xff]
    %v499 = vld [vmem:[#allocation2 + $0x8] sm:$0xff]
    %v500 = vld [vmem:[#allocation2 + $0x10] sm:$0xff]
    %v501 = vld [vmem:[#allocation2 + $0x18] sm:$0xff]
    %v502 = vld [vmem:[#allocation2 + $0x20] sm:$0xff]
    %v503 = vld [vmem:[#allocation2 + $0x28] sm:$0xff]
    %v504 = vld [vmem:[#allocation2 + $0x30] sm:$0xff]
    %v505 = vld [vmem:[#allocation2 + $0x38] sm:$0xff]
    %v506 = vld [vmem:[#allocation2 + $0x40] sm:$0xff]
    %v507 = vld [vmem:[#allocation2 + $0x48] sm:$0xff]
    %v508 = vld [vmem:[#allocation2 + $0x50] sm:$0xff]
    %v509 = vld [vmem:[#allocation2 + $0x58] sm:$0xff]
    %v510 = vld [vmem:[#allocation2 + $0x60] sm:$0xff]
    %v511 = vld [vmem:[#allocation2 + $0x68] sm:$0xff]
    %v512 = vld [vmem:[#allocation2 + $0x70] sm:$0xff]
    %v513 = vld [vmem:[#allocation2 + $0x78] sm:$0xff]
    %v514 = vld [vmem:[#allocation2 + $0x80] sm:$0xff]
    %v515 = vld [vmem:[#allocation2 + $0x88] sm:$0xff]
    %v516 = vld [vmem:[#allocation2 + $0x90] sm:$0x7f]
    %v517 = vld [vmem:[#allocation2 + $0x98] sm:$0x7f]
    %v518 = vld [vmem:[#allocation2 + $0xa0] sm:$0x7f]
    %v519 = vld [vmem:[#allocation2 + $0xa8] sm:$0x7f]
    %v520 = vld [vmem:[#allocation2 + $0xb0] sm:$0x7f]
    %v521 = vld [vmem:[#allocation2 + $0xb8] sm:$0x7f]
    %v522 = vld [vmem:[#allocation2 + $0xc0] sm:$0x7f]
    %v523 = vld [vmem:[#allocation2 + $0xc8] sm:$0x7f]
    %v524 = vld [vmem:[#allocation2 + $0xd0] sm:$0x7f]
    %v525 = vld [vmem:[#allocation2 + $0xd8] sm:$0x7f]
    %v526 = vld [vmem:[#allocation2 + $0xe0] sm:$0x7f]
    %v527 = vld [vmem:[#allocation2 + $0xe8] sm:$0x7f]
    %v528 = vld [vmem:[#allocation2 + $0xf0] sm:$0x7f]
    %v529 = vld [vmem:[#allocation2 + $0xf8] sm:$0x7f]
    %v530 = vld [vmem:[#allocation2 + $0x100] sm:$0x7f]
    %v531 = vld [vmem:[#allocation2 + $0x108] sm:$0x7f]
    %v532 = vld [vmem:[#allocation2 + $0x110] sm:$0x7f]
    %v533 = vld [vmem:[#allocation2 + $0x118] sm:$0x7f]
    %vm534 = vcmask 121856
    %v536 = vsel %vm534, %v497, 0
    %vm538 = vcmask 1046528
    %v540 = vsel %vm538, %v516, 0
    %v543 = vsel %vm538, %v517, 0
    %v546 = vsel %vm538, %v518, 0
    %v549 = vsel %vm538, %v519, 0
    %v552 = vsel %vm538, %v520, 0
    %v555 = vsel %vm538, %v521, 0
    %v558 = vsel %vm538, %v522, 0
    %v561 = vsel %vm538, %v523, 0
    %v564 = vsel %vm538, %v524, 0
    %v567 = vsel %vm538, %v525, 0
    %v570 = vsel %vm538, %v526, 0
    %v573 = vsel %vm538, %v527, 0
    %v576 = vsel %vm538, %v528, 0
    %v579 = vsel %vm538, %v529, 0
    %v582 = vsel %vm538, %v530, 0
    %v585 = vsel %vm538, %v531, 0
    %v588 = vsel %vm538, %v532, 0
    %v591 = vsel %vm538, %v533, 0
    %593 = vmatprep.subr.mxu0 %v499
    %594 = vmatpush1.msra.mxu0 %v498
    %595 = vmatprep.subr.mxu0 %v543
    %596 = vmatpush1.msra.mxu0 %v540
    %597 = vmatprep.subr.mxu0 0.0
    %598 = vmatpush1.msra.mxu0 0.0
    %599 = vmatprep.subr.mxu0 0.0
    %600 = vmatpush1.msra.mxu0 0.0
    %601 = vmatprep.subr.mxu0 0.0
    %602 = vmatpush1.msra.mxu0 0.0
    %603 = vmatprep.subr.mxu0 0.0
    %604 = vmatpush1.msra.mxu0 0.0
    %605 = vmatprep.subr.mxu0 0.0
    %606 = vmatpush1.msra.mxu0 0.0
    %607 = vmatprep.subr.mxu0 0.0
    %608 = vmatpush1.msra.mxu0 0.0
    %609 = vmatprep.subr.mxu0 0.0
    %610 = vmatpush1.msra.mxu0 0.0
    %611 = vmatprep.subr.mxu0 0.0
    %612 = vmatpush1.msra.mxu0 0.0
    %613 = vmatprep.subr.mxu0 0.0
    %614 = vmatpush1.msra.mxu0 0.0
    %615 = vmatprep.subr.mxu0 0.0
    %616 = vmatpush1.msra.mxu0 0.0
    %617 = vmatprep.subr.mxu0 0.0
    %618 = vmatpush1.msra.mxu0 0.0
    %619 = vmatprep.subr.mxu0 0.0
    %620 = vmatpush1.msra.mxu0 0.0
    %621 = vmatprep.subr.mxu0 0.0
    %622 = vmatpush1.msra.mxu0 0.0
    %623 = vmatprep.subr.mxu0 0.0
    %624 = vmatpush1.msra.mxu0 0.0
    %625 = vmatprep.subr.mxu0 0.0
    %626 = vmatpush1.msra.mxu0 0.0
    %627 = vmatprep.subr.mxu0 0.0
    %628 = vmatpush1.msra.mxu0 0.0
    %629 = vmatprep.subr.mxu0 0.0
    %630 = vmatpush1.msra.mxu0 0.0
    %631 = vmatprep.subr.mxu0 0.0
    %632 = vmatpush1.msra.mxu0 0.0
    %633 = vmatprep.subr.mxu0 0.0
    %634 = vmatpush1.msra.mxu0 0.0
    %635 = vmatprep.subr.mxu0 0.0
    %636 = vmatpush1.msra.mxu0 0.0
    %637 = vmatprep.subr.mxu0 0.0
    %638 = vmatpush1.msra.mxu0 0.0
    %639 = vmatprep.subr.mxu0 0.0
    %640 = vmatpush1.msra.mxu0 0.0
    %641 = vmatprep.subr.mxu0 0.0
    %642 = vmatpush1.msra.mxu0 0.0
    %643 = vmatprep.subr.mxu0 0.0
    %644 = vmatpush1.msra.mxu0 0.0
    %645 = vmatprep.subr.mxu0 0.0
    %646 = vmatpush1.msra.mxu0 0.0
    %647 = vmatprep.subr.mxu0 0.0
    %648 = vmatpush1.msra.mxu0 0.0
    %649 = vmatprep.subr.mxu0 0.0
    %650 = vmatpush1.msra.mxu0 0.0
    %651 = vmatprep.subr.mxu0 0.0
    %652 = vmatpush1.msra.mxu0 0.0
    %653 = vmatprep.subr.mxu0 0.0
    %654 = vmatpush1.msra.mxu0 0.0
    %655 = vmatprep.subr.mxu0 0.0
    %656 = vmatpush1.msra.mxu0 0.0
    %657 = vmatprep.mubr.f32.mxu0 0.0
    %658 = vmatmul.mubr.f32.gmra.mrb[0].mxu0 %v536
    %v659 = vpop.f32.mrb[0].mxu0
    %v660 = vadd.f32 0.0, %v659
    %v661 = vpop.f32.mrb[0].mxu0
    %v662 = vadd.f32 0.0, %v661
    %663 = vdwg.mxu0
    %664 = vmatprep.subr.mxu0 %v501
    %665 = vmatpush1.msra.mxu0 %v500
    %666 = vmatprep.subr.mxu0 %v549
    %667 = vmatpush1.msra.mxu0 %v546
    %668 = vmatprep.subr.mxu0 0.0
    %669 = vmatpush1.msra.mxu0 0.0
    %670 = vmatprep.subr.mxu0 0.0
    %671 = vmatpush1.msra.mxu0 0.0
    %672 = vmatprep.subr.mxu0 0.0
    %673 = vmatpush1.msra.mxu0 0.0
    %674 = vmatprep.subr.mxu0 0.0
    %675 = vmatpush1.msra.mxu0 0.0
    %676 = vmatprep.subr.mxu0 0.0
    %677 = vmatpush1.msra.mxu0 0.0
    %678 = vmatprep.subr.mxu0 0.0
    %679 = vmatpush1.msra.mxu0 0.0
    %680 = vmatprep.subr.mxu0 0.0
    %681 = vmatpush1.msra.mxu0 0.0
    %682 = vmatprep.subr.mxu0 0.0
    %683 = vmatpush1.msra.mxu0 0.0
    %684 = vmatprep.subr.mxu0 0.0
    %685 = vmatpush1.msra.mxu0 0.0
    %686 = vmatprep.subr.mxu0 0.0
    %687 = vmatpush1.msra.mxu0 0.0
    %688 = vmatprep.subr.mxu0 0.0
    %689 = vmatpush1.msra.mxu0 0.0
    %690 = vmatprep.subr.mxu0 0.0
    %691 = vmatpush1.msra.mxu0 0.0
    %692 = vmatprep.subr.mxu0 0.0
    %693 = vmatpush1.msra.mxu0 0.0
    %694 = vmatprep.subr.mxu0 0.0
    %695 = vmatpush1.msra.mxu0 0.0
    %696 = vmatprep.subr.mxu0 0.0
    %697 = vmatpush1.msra.mxu0 0.0
    %698 = vmatprep.subr.mxu0 0.0
    %699 = vmatpush1.msra.mxu0 0.0
    %700 = vmatprep.subr.mxu0 0.0
    %701 = vmatpush1.msra.mxu0 0.0
    %702 = vmatprep.subr.mxu0 0.0
    %703 = vmatpush1.msra.mxu0 0.0
    %704 = vmatprep.subr.mxu0 0.0
    %705 = vmatpush1.msra.mxu0 0.0
    %706 = vmatprep.subr.mxu0 0.0
    %707 = vmatpush1.msra.mxu0 0.0
    %708 = vmatprep.subr.mxu0 0.0
    %709 = vmatpush1.msra.mxu0 0.0
    %710 = vmatprep.subr.mxu0 0.0
    %711 = vmatpush1.msra.mxu0 0.0
    %712 = vmatprep.subr.mxu0 0.0
    %713 = vmatpush1.msra.mxu0 0.0
    %714 = vmatprep.subr.mxu0 0.0
    %715 = vmatpush1.msra.mxu0 0.0
    %716 = vmatprep.subr.mxu0 0.0
    %717 = vmatpush1.msra.mxu0 0.0
    %718 = vmatprep.subr.mxu0 0.0
    %719 = vmatpush1.msra.mxu0 0.0
    %720 = vmatprep.subr.mxu0 0.0
    %721 = vmatpush1.msra.mxu0 0.0
    %722 = vmatprep.subr.mxu0 0.0
    %723 = vmatpush1.msra.mxu0 0.0
    %724 = vmatprep.subr.mxu0 0.0
    %725 = vmatpush1.msra.mxu0 0.0
    %726 = vmatprep.subr.mxu0 0.0
    %727 = vmatpush1.msra.mxu0 0.0
    %728 = vmatprep.mubr.f32.mxu0 0.0
    %729 = vmatmul.mubr.f32.gmra.mrb[0].mxu0 %v536
    %v730 = vpop.f32.mrb[0].mxu0
    %v731 = vadd.f32 0.0, %v730
    %v732 = vpop.f32.mrb[0].mxu0
    %v733 = vadd.f32 0.0, %v732
    %734 = vdwg.mxu0
    %735 = vmatprep.subr.mxu0 %v503
    %736 = vmatpush1.msra.mxu0 %v502
    %737 = vmatprep.subr.mxu0 %v555
    %738 = vmatpush1.msra.mxu0 %v552
    %739 = vmatprep.subr.mxu0 0.0
    %740 = vmatpush1.msra.mxu0 0.0
    %741 = vmatprep.subr.mxu0 0.0
    %742 = vmatpush1.msra.mxu0 0.0
    %743 = vmatprep.subr.mxu0 0.0
    %744 = vmatpush1.msra.mxu0 0.0
    %745 = vmatprep.subr.mxu0 0.0
    %746 = vmatpush1.msra.mxu0 0.0
    %747 = vmatprep.subr.mxu0 0.0
    %748 = vmatpush1.msra.mxu0 0.0
    %749 = vmatprep.subr.mxu0 0.0
    %750 = vmatpush1.msra.mxu0 0.0
    %751 = vmatprep.subr.mxu0 0.0
    %752 = vmatpush1.msra.mxu0 0.0
    %753 = vmatprep.subr.mxu0 0.0
    %754 = vmatpush1.msra.mxu0 0.0
    %755 = vmatprep.subr.mxu0 0.0
    %756 = vmatpush1.msra.mxu0 0.0
    %757 = vmatprep.subr.mxu0 0.0
    %758 = vmatpush1.msra.mxu0 0.0
    %759 = vmatprep.subr.mxu0 0.0
    %760 = vmatpush1.msra.mxu0 0.0
    %761 = vmatprep.subr.mxu0 0.0
    %762 = vmatpush1.msra.mxu0 0.0
    %763 = vmatprep.subr.mxu0 0.0
    %764 = vmatpush1.msra.mxu0 0.0
    %765 = vmatprep.subr.mxu0 0.0
    %766 = vmatpush1.msra.mxu0 0.0
    %767 = vmatprep.subr.mxu0 0.0
    %768 = vmatpush1.msra.mxu0 0.0
    %769 = vmatprep.subr.mxu0 0.0
    %770 = vmatpush1.msra.mxu0 0.0
    %771 = vmatprep.subr.mxu0 0.0
    %772 = vmatpush1.msra.mxu0 0.0
    %773 = vmatprep.subr.mxu0 0.0
    %774 = vmatpush1.msra.mxu0 0.0
    %775 = vmatprep.subr.mxu0 0.0
    %776 = vmatpush1.msra.mxu0 0.0
    %777 = vmatprep.subr.mxu0 0.0
    %778 = vmatpush1.msra.mxu0 0.0
    %779 = vmatprep.subr.mxu0 0.0
    %780 = vmatpush1.msra.mxu0 0.0
    %781 = vmatprep.subr.mxu0 0.0
    %782 = vmatpush1.msra.mxu0 0.0
    %783 = vmatprep.subr.mxu0 0.0
    %784 = vmatpush1.msra.mxu0 0.0
    %785 = vmatprep.subr.mxu0 0.0
    %786 = vmatpush1.msra.mxu0 0.0
    %787 = vmatprep.subr.mxu0 0.0
    %788 = vmatpush1.msra.mxu0 0.0
    %789 = vmatprep.subr.mxu0 0.0
    %790 = vmatpush1.msra.mxu0 0.0
    %791 = vmatprep.subr.mxu0 0.0
    %792 = vmatpush1.msra.mxu0 0.0
    %793 = vmatprep.subr.mxu0 0.0
    %794 = vmatpush1.msra.mxu0 0.0
    %795 = vmatprep.subr.mxu0 0.0
    %796 = vmatpush1.msra.mxu0 0.0
    %797 = vmatprep.subr.mxu0 0.0
    %798 = vmatpush1.msra.mxu0 0.0
    %799 = vmatprep.mubr.f32.mxu0 0.0
    %800 = vmatmul.mubr.f32.gmra.mrb[0].mxu0 %v536
    %v801 = vpop.f32.mrb[0].mxu0
    %v802 = vadd.f32 0.0, %v801
    %v803 = vpop.f32.mrb[0].mxu0
    %v804 = vadd.f32 0.0, %v803
    %805 = vdwg.mxu0
    %806 = vmatprep.subr.mxu0 %v505
    %807 = vmatpush1.msra.mxu0 %v504
    %808 = vmatprep.subr.mxu0 %v561
    %809 = vmatpush1.msra.mxu0 %v558
    %810 = vmatprep.subr.mxu0 0.0
    %811 = vmatpush1.msra.mxu0 0.0
    %812 = vmatprep.subr.mxu0 0.0
    %813 = vmatpush1.msra.mxu0 0.0
    %814 = vmatprep.subr.mxu0 0.0
    %815 = vmatpush1.msra.mxu0 0.0
    %816 = vmatprep.subr.mxu0 0.0
    %817 = vmatpush1.msra.mxu0 0.0
    %818 = vmatprep.subr.mxu0 0.0
    %819 = vmatpush1.msra.mxu0 0.0
    %820 = vmatprep.subr.mxu0 0.0
    %821 = vmatpush1.msra.mxu0 0.0
    %822 = vmatprep.subr.mxu0 0.0
    %823 = vmatpush1.msra.mxu0 0.0
    %824 = vmatprep.subr.mxu0 0.0
    %825 = vmatpush1.msra.mxu0 0.0
    %826 = vmatprep.subr.mxu0 0.0
    %827 = vmatpush1.msra.mxu0 0.0
    %828 = vmatprep.subr.mxu0 0.0
    %829 = vmatpush1.msra.mxu0 0.0
    %830 = vmatprep.subr.mxu0 0.0
    %831 = vmatpush1.msra.mxu0 0.0
    %832 = vmatprep.subr.mxu0 0.0
    %833 = vmatpush1.msra.mxu0 0.0
    %834 = vmatprep.subr.mxu0 0.0
    %835 = vmatpush1.msra.mxu0 0.0
    %836 = vmatprep.subr.mxu0 0.0
    %837 = vmatpush1.msra.mxu0 0.0
    %838 = vmatprep.subr.mxu0 0.0
    %839 = vmatpush1.msra.mxu0 0.0
    %840 = vmatprep.subr.mxu0 0.0
    %841 = vmatpush1.msra.mxu0 0.0
    %842 = vmatprep.subr.mxu0 0.0
    %843 = vmatpush1.msra.mxu0 0.0
    %844 = vmatprep.subr.mxu0 0.0
    %845 = vmatpush1.msra.mxu0 0.0
    %846 = vmatprep.subr.mxu0 0.0
    %847 = vmatpush1.msra.mxu0 0.0
    %848 = vmatprep.subr.mxu0 0.0
    %849 = vmatpush1.msra.mxu0 0.0
    %850 = vmatprep.subr.mxu0 0.0
    %851 = vmatpush1.msra.mxu0 0.0
    %852 = vmatprep.subr.mxu0 0.0
    %853 = vmatpush1.msra.mxu0 0.0
    %854 = vmatprep.subr.mxu0 0.0
    %855 = vmatpush1.msra.mxu0 0.0
    %856 = vmatprep.subr.mxu0 0.0
    %857 = vmatpush1.msra.mxu0 0.0
    %858 = vmatprep.subr.mxu0 0.0
    %859 = vmatpush1.msra.mxu0 0.0
    %860 = vmatprep.subr.mxu0 0.0
    %861 = vmatpush1.msra.mxu0 0.0
    %862 = vmatprep.subr.mxu0 0.0
    %863 = vmatpush1.msra.mxu0 0.0
    %864 = vmatprep.subr.mxu0 0.0
    %865 = vmatpush1.msra.mxu0 0.0
    %866 = vmatprep.subr.mxu0 0.0
    %867 = vmatpush1.msra.mxu0 0.0
    %868 = vmatprep.subr.mxu0 0.0
    %869 = vmatpush1.msra.mxu0 0.0
    %870 = vmatprep.mubr.f32.mxu0 0.0
    %871 = vmatmul.mubr.f32.gmra.mrb[0].mxu0 %v536
    %v872 = vpop.f32.mrb[0].mxu0
    %v873 = vadd.f32 0.0, %v872
    %v874 = vpop.f32.mrb[0].mxu0
    %v875 = vadd.f32 0.0, %v874
    %876 = vdwg.mxu0
    %877 = vmatprep.subr.mxu0 %v507
    %878 = vmatpush1.msra.mxu0 %v506
    %879 = vmatprep.subr.mxu0 %v567
    %880 = vmatpush1.msra.mxu0 %v564
    %881 = vmatprep.subr.mxu0 0.0
    %882 = vmatpush1.msra.mxu0 0.0
    %883 = vmatprep.subr.mxu0 0.0
    %884 = vmatpush1.msra.mxu0 0.0
    %885 = vmatprep.subr.mxu0 0.0
    %886 = vmatpush1.msra.mxu0 0.0
    %887 = vmatprep.subr.mxu0 0.0
    %888 = vmatpush1.msra.mxu0 0.0
    %889 = vmatprep.subr.mxu0 0.0
    %890 = vmatpush1.msra.mxu0 0.0
    %891 = vmatprep.subr.mxu0 0.0
    %892 = vmatpush1.msra.mxu0 0.0
    %893 = vmatprep.subr.mxu0 0.0
    %894 = vmatpush1.msra.mxu0 0.0
    %895 = vmatprep.subr.mxu0 0.0
    %896 = vmatpush1.msra.mxu0 0.0
    %897 = vmatprep.subr.mxu0 0.0
    %898 = vmatpush1.msra.mxu0 0.0
    %899 = vmatprep.subr.mxu0 0.0
    %900 = vmatpush1.msra.mxu0 0.0
    %901 = vmatprep.subr.mxu0 0.0
    %902 = vmatpush1.msra.mxu0 0.0
    %903 = vmatprep.subr.mxu0 0.0
    %904 = vmatpush1.msra.mxu0 0.0
    %905 = vmatprep.subr.mxu0 0.0
    %906 = vmatpush1.msra.mxu0 0.0
    %907 = vmatprep.subr.mxu0 0.0
    %908 = vmatpush1.msra.mxu0 0.0
    %909 = vmatprep.subr.mxu0 0.0
    %910 = vmatpush1.msra.mxu0 0.0
    %911 = vmatprep.subr.mxu0 0.0
    %912 = vmatpush1.msra.mxu0 0.0
    %913 = vmatprep.subr.mxu0 0.0
    %914 = vmatpush1.msra.mxu0 0.0
    %915 = vmatprep.subr.mxu0 0.0
    %916 = vmatpush1.msra.mxu0 0.0
    %917 = vmatprep.subr.mxu0 0.0
    %918 = vmatpush1.msra.mxu0 0.0
    %919 = vmatprep.subr.mxu0 0.0
    %920 = vmatpush1.msra.mxu0 0.0
    %921 = vmatprep.subr.mxu0 0.0
    %922 = vmatpush1.msra.mxu0 0.0
    %923 = vmatprep.subr.mxu0 0.0
    %924 = vmatpush1.msra.mxu0 0.0
    %925 = vmatprep.subr.mxu0 0.0
    %926 = vmatpush1.msra.mxu0 0.0
    %927 = vmatprep.subr.mxu0 0.0
    %928 = vmatpush1.msra.mxu0 0.0
    %929 = vmatprep.subr.mxu0 0.0
    %930 = vmatpush1.msra.mxu0 0.0
    %931 = vmatprep.subr.mxu0 0.0
    %932 = vmatpush1.msra.mxu0 0.0
    %933 = vmatprep.subr.mxu0 0.0
    %934 = vmatpush1.msra.mxu0 0.0
    %935 = vmatprep.subr.mxu0 0.0
    %936 = vmatpush1.msra.mxu0 0.0
    %937 = vmatprep.subr.mxu0 0.0
    %938 = vmatpush1.msra.mxu0 0.0
    %939 = vmatprep.subr.mxu0 0.0
    %940 = vmatpush1.msra.mxu0 0.0
    %941 = vmatprep.mubr.f32.mxu0 0.0
    %942 = vmatmul.mubr.f32.gmra.mrb[0].mxu0 %v536
    %v943 = vpop.f32.mrb[0].mxu0
    %v944 = vpop.f32.mrb[0].mxu0
    %v945 = vadd.f32 0.0, %v944
    %946 = vdwg.mxu0
    %947 = vmatprep.subr.mxu0 %v509
    %948 = vmatpush1.msra.mxu0 %v508
    %949 = vmatprep.subr.mxu0 %v573
    %950 = vmatpush1.msra.mxu0 %v570
    %951 = vmatprep.subr.mxu0 0.0
    %952 = vmatpush1.msra.mxu0 0.0
    %953 = vmatprep.subr.mxu0 0.0
    %954 = vmatpush1.msra.mxu0 0.0
    %955 = vmatprep.subr.mxu0 0.0
    %956 = vmatpush1.msra.mxu0 0.0
    %957 = vmatprep.subr.mxu0 0.0
    %958 = vmatpush1.msra.mxu0 0.0
    %959 = vmatprep.subr.mxu0 0.0
    %960 = vmatpush1.msra.mxu0 0.0
    %961 = vmatprep.subr.mxu0 0.0
    %962 = vmatpush1.msra.mxu0 0.0
    %963 = vmatprep.subr.mxu0 0.0
    %964 = vmatpush1.msra.mxu0 0.0
    %965 = vmatprep.subr.mxu0 0.0
    %966 = vmatpush1.msra.mxu0 0.0
    %967 = vmatprep.subr.mxu0 0.0
    %968 = vmatpush1.msra.mxu0 0.0
    %969 = vmatprep.subr.mxu0 0.0
    %970 = vmatpush1.msra.mxu0 0.0
    %971 = vmatprep.subr.mxu0 0.0
    %972 = vmatpush1.msra.mxu0 0.0
    %973 = vmatprep.subr.mxu0 0.0
    %974 = vmatpush1.msra.mxu0 0.0
    %975 = vmatprep.subr.mxu0 0.0
    %976 = vmatpush1.msra.mxu0 0.0
    %977 = vmatprep.subr.mxu0 0.0
    %978 = vmatpush1.msra.mxu0 0.0
    %979 = vmatprep.subr.mxu0 0.0
    %980 = vmatpush1.msra.mxu0 0.0
    %981 = vmatprep.subr.mxu0 0.0
    %982 = vmatpush1.msra.mxu0 0.0
    %983 = vmatprep.subr.mxu0 0.0
    %984 = vmatpush1.msra.mxu0 0.0
    %985 = vmatprep.subr.mxu0 0.0
    %986 = vmatpush1.msra.mxu0 0.0
    %987 = vmatprep.subr.mxu0 0.0
    %988 = vmatpush1.msra.mxu0 0.0
    %989 = vmatprep.subr.mxu0 0.0
    %990 = vmatpush1.msra.mxu0 0.0
    %991 = vmatprep.subr.mxu0 0.0
    %992 = vmatpush1.msra.mxu0 0.0
    %993 = vmatprep.subr.mxu0 0.0
    %994 = vmatpush1.msra.mxu0 0.0
    %995 = vmatprep.subr.mxu0 0.0
    %996 = vmatpush1.msra.mxu0 0.0
    %997 = vmatprep.subr.mxu0 0.0
    %998 = vmatpush1.msra.mxu0 0.0
    %999 = vmatprep.subr.mxu0 0.0
    %1000 = vmatpush1.msra.mxu0 0.0
    %1001 = vmatprep.subr.mxu0 0.0
    %1002 = vmatpush1.msra.mxu0 0.0
    %1003 = vmatprep.subr.mxu0 0.0
    %1004 = vmatpush1.msra.mxu0 0.0
    %1005 = vmatprep.subr.mxu0 0.0
    %1006 = vmatpush1.msra.mxu0 0.0
    %1007 = vmatprep.subr.mxu0 0.0
    %1008 = vmatpush1.msra.mxu0 0.0
    %1009 = vmatprep.subr.mxu0 0.0
    %1010 = vmatpush1.msra.mxu0 0.0
    %1011 = vmatprep.mubr.f32.mxu0 0.0
    %1012 = vmatmul.mubr.f32.gmra.mrb[0].mxu0 %v536
    %v1013 = vpop.f32.mrb[0].mxu0
    %v1014 = vadd.f32 0.0, %v1013
    %v1015 = vpop.f32.mrb[0].mxu0
    %v1016 = vadd.f32 0.0, %v1015
    %1017 = vdwg.mxu0
    %1018 = vmatprep.subr.mxu0 %v511
    %1019 = vmatpush1.msra.mxu0 %v510
    %1020 = vmatprep.subr.mxu0 %v579
    %1021 = vmatpush1.msra.mxu0 %v576
    %1022 = vmatprep.subr.mxu0 0.0
    %1023 = vmatpush1.msra.mxu0 0.0
    %1024 = vmatprep.subr.mxu0 0.0
    %1025 = vmatpush1.msra.mxu0 0.0
    %1026 = vmatprep.subr.mxu0 0.0
    %1027 = vmatpush1.msra.mxu0 0.0
    %1028 = vmatprep.subr.mxu0 0.0
    %1029 = vmatpush1.msra.mxu0 0.0
    %1030 = vmatprep.subr.mxu0 0.0
    %1031 = vmatpush1.msra.mxu0 0.0
    %1032 = vmatprep.subr.mxu0 0.0
    %1033 = vmatpush1.msra.mxu0 0.0
    %1034 = vmatprep.subr.mxu0 0.0
    %1035 = vmatpush1.msra.mxu0 0.0
    %1036 = vmatprep.subr.mxu0 0.0
    %1037 = vmatpush1.msra.mxu0 0.0
    %1038 = vmatprep.subr.mxu0 0.0
    %1039 = vmatpush1.msra.mxu0 0.0
    %1040 = vmatprep.subr.mxu0 0.0
    %1041 = vmatpush1.msra.mxu0 0.0
    %1042 = vmatprep.subr.mxu0 0.0
    %1043 = vmatpush1.msra.mxu0 0.0
    %1044 = vmatprep.subr.mxu0 0.0
    %1045 = vmatpush1.msra.mxu0 0.0
    %1046 = vmatprep.subr.mxu0 0.0
    %1047 = vmatpush1.msra.mxu0 0.0
    %1048 = vmatprep.subr.mxu0 0.0
    %1049 = vmatpush1.msra.mxu0 0.0
    %1050 = vmatprep.subr.mxu0 0.0
    %1051 = vmatpush1.msra.mxu0 0.0
    %1052 = vmatprep.subr.mxu0 0.0
    %1053 = vmatpush1.msra.mxu0 0.0
    %1054 = vmatprep.subr.mxu0 0.0
    %1055 = vmatpush1.msra.mxu0 0.0
    %1056 = vmatprep.subr.mxu0 0.0
    %1057 = vmatpush1.msra.mxu0 0.0
    %1058 = vmatprep.subr.mxu0 0.0
    %1059 = vmatpush1.msra.mxu0 0.0
    %1060 = vmatprep.subr.mxu0 0.0
    %1061 = vmatpush1.msra.mxu0 0.0
    %1062 = vmatprep.subr.mxu0 0.0
    %1063 = vmatpush1.msra.mxu0 0.0
    %1064 = vmatprep.subr.mxu0 0.0
    %1065 = vmatpush1.msra.mxu0 0.0
    %1066 = vmatprep.subr.mxu0 0.0
    %1067 = vmatpush1.msra.mxu0 0.0
    %1068 = vmatprep.subr.mxu0 0.0
    %1069 = vmatpush1.msra.mxu0 0.0
    %1070 = vmatprep.subr.mxu0 0.0
    %1071 = vmatpush1.msra.mxu0 0.0
    %1072 = vmatprep.subr.mxu0 0.0
    %1073 = vmatpush1.msra.mxu0 0.0
    %1074 = vmatprep.subr.mxu0 0.0
    %1075 = vmatpush1.msra.mxu0 0.0
    %1076 = vmatprep.subr.mxu0 0.0
    %1077 = vmatpush1.msra.mxu0 0.0
    %1078 = vmatprep.subr.mxu0 0.0
    %1079 = vmatpush1.msra.mxu0 0.0
    %1080 = vmatprep.subr.mxu0 0.0
    %1081 = vmatpush1.msra.mxu0 0.0
    %1082 = vmatprep.mubr.f32.mxu0 0.0
    %1083 = vmatmul.mubr.f32.gmra.mrb[0].mxu0 %v536
    %v1084 = vpop.f32.mrb[0].mxu0
    %v1085 = vadd.f32 0.0, %v1084
    %v1086 = vpop.f32.mrb[0].mxu0
    %v1087 = vadd.f32 0.0, %v1086
    %1088 = vdwg.mxu0
    %1089 = vmatprep.subr.mxu0 %v513
    %1090 = vmatpush1.msra.mxu0 %v512
    %1091 = vmatprep.subr.mxu0 %v585
    %1092 = vmatpush1.msra.mxu0 %v582
    %1093 = vmatprep.subr.mxu0 0.0
    %1094 = vmatpush1.msra.mxu0 0.0
    %1095 = vmatprep.subr.mxu0 0.0
    %1096 = vmatpush1.msra.mxu0 0.0
    %1097 = vmatprep.subr.mxu0 0.0
    %1098 = vmatpush1.msra.mxu0 0.0
    %1099 = vmatprep.subr.mxu0 0.0
    %1100 = vmatpush1.msra.mxu0 0.0
    %1101 = vmatprep.subr.mxu0 0.0
    %1102 = vmatpush1.msra.mxu0 0.0
    %1103 = vmatprep.subr.mxu0 0.0
    %1104 = vmatpush1.msra.mxu0 0.0
    %1105 = vmatprep.subr.mxu0 0.0
    %1106 = vmatpush1.msra.mxu0 0.0
    %1107 = vmatprep.subr.mxu0 0.0
    %1108 = vmatpush1.msra.mxu0 0.0
    %1109 = vmatprep.subr.mxu0 0.0
    %1110 = vmatpush1.msra.mxu0 0.0
    %1111 = vmatprep.subr.mxu0 0.0
    %1112 = vmatpush1.msra.mxu0 0.0
    %1113 = vmatprep.subr.mxu0 0.0
    %1114 = vmatpush1.msra.mxu0 0.0
    %1115 = vmatprep.subr.mxu0 0.0
    %1116 = vmatpush1.msra.mxu0 0.0
    %1117 = vmatprep.subr.mxu0 0.0
    %1118 = vmatpush1.msra.mxu0 0.0
    %1119 = vmatprep.subr.mxu0 0.0
    %1120 = vmatpush1.msra.mxu0 0.0
    %1121 = vmatprep.subr.mxu0 0.0
    %1122 = vmatpush1.msra.mxu0 0.0
    %1123 = vmatprep.subr.mxu0 0.0
    %1124 = vmatpush1.msra.mxu0 0.0
    %1125 = vmatprep.subr.mxu0 0.0
    %1126 = vmatpush1.msra.mxu0 0.0
    %1127 = vmatprep.subr.mxu0 0.0
    %1128 = vmatpush1.msra.mxu0 0.0
    %1129 = vmatprep.subr.mxu0 0.0
    %1130 = vmatpush1.msra.mxu0 0.0
    %1131 = vmatprep.subr.mxu0 0.0
    %1132 = vmatpush1.msra.mxu0 0.0
    %1133 = vmatprep.subr.mxu0 0.0
    %1134 = vmatpush1.msra.mxu0 0.0
    %1135 = vmatprep.subr.mxu0 0.0
    %1136 = vmatpush1.msra.mxu0 0.0
    %1137 = vmatprep.subr.mxu0 0.0
    %1138 = vmatpush1.msra.mxu0 0.0
    %1139 = vmatprep.subr.mxu0 0.0
    %1140 = vmatpush1.msra.mxu0 0.0
    %1141 = vmatprep.subr.mxu0 0.0
    %1142 = vmatpush1.msra.mxu0 0.0
    %1143 = vmatprep.subr.mxu0 0.0
    %1144 = vmatpush1.msra.mxu0 0.0
    %1145 = vmatprep.subr.mxu0 0.0
    %1146 = vmatpush1.msra.mxu0 0.0
    %1147 = vmatprep.subr.mxu0 0.0
    %1148 = vmatpush1.msra.mxu0 0.0
    %1149 = vmatprep.subr.mxu0 0.0
    %1150 = vmatpush1.msra.mxu0 0.0
    %1151 = vmatprep.subr.mxu0 0.0
    %1152 = vmatpush1.msra.mxu0 0.0
    %1153 = vmatprep.mubr.f32.mxu0 0.0
    %1154 = vmatmul.mubr.f32.gmra.mrb[0].mxu0 %v536
    %v1155 = vpop.f32.mrb[0].mxu0
    %v1156 = vadd.f32 0.0, %v1155
    %v1157 = vpop.f32.mrb[0].mxu0
    %v1158 = vadd.f32 0.0, %v1157
    %1159 = vdwg.mxu0
    %1160 = vmatprep.subr.mxu0 %v515
    %1161 = vmatpush1.msra.mxu0 %v514
    %1162 = vmatprep.subr.mxu0 %v591
    %1163 = vmatpush1.msra.mxu0 %v588
    %1164 = vmatprep.subr.mxu0 0.0
    %1165 = vmatpush1.msra.mxu0 0.0
    %1166 = vmatprep.subr.mxu0 0.0
    %1167 = vmatpush1.msra.mxu0 0.0
    %1168 = vmatprep.subr.mxu0 0.0
    %1169 = vmatpush1.msra.mxu0 0.0
    %1170 = vmatprep.subr.mxu0 0.0
    %1171 = vmatpush1.msra.mxu0 0.0
    %1172 = vmatprep.subr.mxu0 0.0
    %1173 = vmatpush1.msra.mxu0 0.0
    %1174 = vmatprep.subr.mxu0 0.0
    %1175 = vmatpush1.msra.mxu0 0.0
    %1176 = vmatprep.subr.mxu0 0.0
    %1177 = vmatpush1.msra.mxu0 0.0
    %1178 = vmatprep.subr.mxu0 0.0
    %1179 = vmatpush1.msra.mxu0 0.0
    %1180 = vmatprep.subr.mxu0 0.0
    %1181 = vmatpush1.msra.mxu0 0.0
    %1182 = vmatprep.subr.mxu0 0.0
    %1183 = vmatpush1.msra.mxu0 0.0
    %1184 = vmatprep.subr.mxu0 0.0
    %1185 = vmatpush1.msra.mxu0 0.0
    %1186 = vmatprep.subr.mxu0 0.0
    %1187 = vmatpush1.msra.mxu0 0.0
    %1188 = vmatprep.subr.mxu0 0.0
    %1189 = vmatpush1.msra.mxu0 0.0
    %1190 = vmatprep.subr.mxu0 0.0
    %1191 = vmatpush1.msra.mxu0 0.0
    %1192 = vmatprep.subr.mxu0 0.0
    %1193 = vmatpush1.msra.mxu0 0.0
    %1194 = vmatprep.subr.mxu0 0.0
    %1195 = vmatpush1.msra.mxu0 0.0
    %1196 = vmatprep.subr.mxu0 0.0
    %1197 = vmatpush1.msra.mxu0 0.0
    %1198 = vmatprep.subr.mxu0 0.0
    %1199 = vmatpush1.msra.mxu0 0.0
    %1200 = vmatprep.subr.mxu0 0.0
    %1201 = vmatpush1.msra.mxu0 0.0
    %1202 = vmatprep.subr.mxu0 0.0
    %1203 = vmatpush1.msra.mxu0 0.0
    %1204 = vmatprep.subr.mxu0 0.0
    %1205 = vmatpush1.msra.mxu0 0.0
    %1206 = vmatprep.subr.mxu0 0.0
    %1207 = vmatpush1.msra.mxu0 0.0
    %1208 = vmatprep.subr.mxu0 0.0
    %1209 = vmatpush1.msra.mxu0 0.0
    %1210 = vmatprep.subr.mxu0 0.0
    %1211 = vmatpush1.msra.mxu0 0.0
    %1212 = vmatprep.subr.mxu0 0.0
    %1213 = vmatpush1.msra.mxu0 0.0
    %1214 = vmatprep.subr.mxu0 0.0
    %1215 = vmatpush1.msra.mxu0 0.0
    %1216 = vmatprep.subr.mxu0 0.0
    %1217 = vmatpush1.msra.mxu0 0.0
    %1218 = vmatprep.subr.mxu0 0.0
    %1219 = vmatpush1.msra.mxu0 0.0
    %1220 = vmatprep.subr.mxu0 0.0
    %1221 = vmatpush1.msra.mxu0 0.0
    %1222 = vmatprep.subr.mxu0 0.0
    %1223 = vmatpush1.msra.mxu0 0.0
    %1224 = vmatprep.mubr.f32.mxu0 0.0
    %1225 = vmatmul.mubr.f32.gmra.mrb[0].mxu0 %v536
    %v1226 = vpop.f32.mrb[0].mxu0
    %v1227 = vadd.f32 0.0, %v1226
    %v1228 = vpop.f32.mrb[0].mxu0
    %1229 = vdwg.mxu0
    %v1230 = vadd.f32 %v660, 0.0
    %v1231 = vadd.f32 %v662, 0.0
    %v1232 = vadd.f32 %v731, 0.0
    %v1233 = vadd.f32 %v733, 0.0
    %v1234 = vadd.f32 %v802, 0.0
    %v1235 = vadd.f32 %v804, 0.0
    %v1236 = vadd.f32 %v873, 0.0
    %v1237 = vadd.f32 %v875, 0.0
    %v1238 = vadd.f32 %v945, 0.0
    %v1239 = vadd.f32 %v1014, 0.0
    %v1240 = vadd.f32 %v1016, 0.0
    %v1241 = vadd.f32 %v1085, 0.0
    %v1242 = vadd.f32 %v1087, 0.0
    %v1243 = vadd.f32 %v1156, 0.0
    %v1244 = vadd.f32 %v1158, 0.0
    %v1245 = vadd.f32 %v1227, 0.0
    %1246 = vrot.lane.b32.xlu0 %v497, 113
    %v1247 = vpop.permute.xlu0 %1246
    %v1248 = vsel %vm534, %v1247, 0
    %1250 = vmatprep.subr.mxu0 %v499
    %1251 = vmatpush1.msra.mxu0 %v498
    %1252 = vmatprep.subr.mxu0 %v543
    %1253 = vmatpush1.msra.mxu0 %v540
    %1254 = vmatprep.subr.mxu0 0.0
    %1255 = vmatpush1.msra.mxu0 0.0
    %1256 = vmatprep.subr.mxu0 0.0
    %1257 = vmatpush1.msra.mxu0 0.0
    %1258 = vmatprep.subr.mxu0 0.0
    %1259 = vmatpush1.msra.mxu0 0.0
    %1260 = vmatprep.subr.mxu0 0.0
    %1261 = vmatpush1.msra.mxu0 0.0
    %1262 = vmatprep.subr.mxu0 0.0
    %1263 = vmatpush1.msra.mxu0 0.0
    %1264 = vmatprep.subr.mxu0 0.0
    %1265 = vmatpush1.msra.mxu0 0.0
    %1266 = vmatprep.subr.mxu0 0.0
    %1267 = vmatpush1.msra.mxu0 0.0
    %1268 = vmatprep.subr.mxu0 0.0
    %1269 = vmatpush1.msra.mxu0 0.0
    %1270 = vmatprep.subr.mxu0 0.0
    %1271 = vmatpush1.msra.mxu0 0.0
    %1272 = vmatprep.subr.mxu0 0.0
    %1273 = vmatpush1.msra.mxu0 0.0
    %1274 = vmatprep.subr.mxu0 0.0
    %1275 = vmatpush1.msra.mxu0 0.0
    %1276 = vmatprep.subr.mxu0 0.0
    %1277 = vmatpush1.msra.mxu0 0.0
    %1278 = vmatprep.subr.mxu0 0.0
    %1279 = vmatpush1.msra.mxu0 0.0
    %1280 = vmatprep.subr.mxu0 0.0
    %1281 = vmatpush1.msra.mxu0 0.0
    %1282 = vmatprep.subr.mxu0 0.0
    %1283 = vmatpush1.msra.mxu0 0.0
    %1284 = vmatprep.subr.mxu0 0.0
    %1285 = vmatpush1.msra.mxu0 0.0
    %1286 = vmatprep.subr.mxu0 0.0
    %1287 = vmatpush1.msra.mxu0 0.0
    %1288 = vmatprep.subr.mxu0 0.0
    %1289 = vmatpush1.msra.mxu0 0.0
    %1290 = vmatprep.subr.mxu0 0.0
    %1291 = vmatpush1.msra.mxu0 0.0
    %1292 = vmatprep.subr.mxu0 0.0
    %1293 = vmatpush1.msra.mxu0 0.0
    %1294 = vmatprep.subr.mxu0 0.0
    %1295 = vmatpush1.msra.mxu0 0.0
    %1296 = vmatprep.subr.mxu0 0.0
    %1297 = vmatpush1.msra.mxu0 0.0
    %1298 = vmatprep.subr.mxu0 0.0
    %1299 = vmatpush1.msra.mxu0 0.0
    %1300 = vmatprep.subr.mxu0 0.0
    %1301 = vmatpush1.msra.mxu0 0.0
    %1302 = vmatprep.subr.mxu0 0.0
    %1303 = vmatpush1.msra.mxu0 0.0
    %1304 = vmatprep.subr.mxu0 0.0
    %1305 = vmatpush1.msra.mxu0 0.0
    %1306 = vmatprep.subr.mxu0 0.0
    %1307 = vmatpush1.msra.mxu0 0.0
    %1308 = vmatprep.subr.mxu0 0.0
    %1309 = vmatpush1.msra.mxu0 0.0
    %1310 = vmatprep.subr.mxu0 0.0
    %1311 = vmatpush1.msra.mxu0 0.0
    %1312 = vmatprep.subr.mxu0 0.0
    %1313 = vmatpush1.msra.mxu0 0.0
    %1314 = vmatprep.mubr.f32.mxu0 0.0
    %1315 = vmatmul.mubr.f32.gmra.mrb[0].mxu0 %v1248
    %v1316 = vpop.f32.mrb[0].mxu0
    %v1317 = vadd.f32 0.0, %v1316
    %v1318 = vpop.f32.mrb[0].mxu0
    %v1319 = vadd.f32 0.0, %v1318
    %1320 = vdwg.mxu0
    %1321 = vmatprep.subr.mxu0 %v501
    %1322 = vmatpush1.msra.mxu0 %v500
    %1323 = vmatprep.subr.mxu0 %v549
    %1324 = vmatpush1.msra.mxu0 %v546
    %1325 = vmatprep.subr.mxu0 0.0
    %1326 = vmatpush1.msra.mxu0 0.0
    %1327 = vmatprep.subr.mxu0 0.0
    %1328 = vmatpush1.msra.mxu0 0.0
    %1329 = vmatprep.subr.mxu0 0.0
    %1330 = vmatpush1.msra.mxu0 0.0
    %1331 = vmatprep.subr.mxu0 0.0
    %1332 = vmatpush1.msra.mxu0 0.0
    %1333 = vmatprep.subr.mxu0 0.0
    %1334 = vmatpush1.msra.mxu0 0.0
    %1335 = vmatprep.subr.mxu0 0.0
    %1336 = vmatpush1.msra.mxu0 0.0
    %1337 = vmatprep.subr.mxu0 0.0
    %1338 = vmatpush1.msra.mxu0 0.0
    %1339 = vmatprep.subr.mxu0 0.0
    %1340 = vmatpush1.msra.mxu0 0.0
    %1341 = vmatprep.subr.mxu0 0.0
    %1342 = vmatpush1.msra.mxu0 0.0
    %1343 = vmatprep.subr.mxu0 0.0
    %1344 = vmatpush1.msra.mxu0 0.0
    %1345 = vmatprep.subr.mxu0 0.0
    %1346 = vmatpush1.msra.mxu0 0.0
    %1347 = vmatprep.subr.mxu0 0.0
    %1348 = vmatpush1.msra.mxu0 0.0
    %1349 = vmatprep.subr.mxu0 0.0
    %1350 = vmatpush1.msra.mxu0 0.0
    %1351 = vmatprep.subr.mxu0 0.0
    %1352 = vmatpush1.msra.mxu0 0.0
    %1353 = vmatprep.subr.mxu0 0.0
    %1354 = vmatpush1.msra.mxu0 0.0
    %1355 = vmatprep.subr.mxu0 0.0
    %1356 = vmatpush1.msra.mxu0 0.0
    %1357 = vmatprep.subr.mxu0 0.0
    %1358 = vmatpush1.msra.mxu0 0.0
    %1359 = vmatprep.subr.mxu0 0.0
    %1360 = vmatpush1.msra.mxu0 0.0
    %1361 = vmatprep.subr.mxu0 0.0
    %1362 = vmatpush1.msra.mxu0 0.0
    %1363 = vmatprep.subr.mxu0 0.0
    %1364 = vmatpush1.msra.mxu0 0.0
    %1365 = vmatprep.subr.mxu0 0.0
    %1366 = vmatpush1.msra.mxu0 0.0
    %1367 = vmatprep.subr.mxu0 0.0
    %1368 = vmatpush1.msra.mxu0 0.0
    %1369 = vmatprep.subr.mxu0 0.0
    %1370 = vmatpush1.msra.mxu0 0.0
    %1371 = vmatprep.subr.mxu0 0.0
    %1372 = vmatpush1.msra.mxu0 0.0
    %1373 = vmatprep.subr.mxu0 0.0
    %1374 = vmatpush1.msra.mxu0 0.0
    %1375 = vmatprep.subr.mxu0 0.0
    %1376 = vmatpush1.msra.mxu0 0.0
    %1377 = vmatprep.subr.mxu0 0.0
    %1378 = vmatpush1.msra.mxu0 0.0
    %1379 = vmatprep.subr.mxu0 0.0
    %1380 = vmatpush1.msra.mxu0 0.0
    %1381 = vmatprep.subr.mxu0 0.0
    %1382 = vmatpush1.msra.mxu0 0.0
    %1383 = vmatprep.subr.mxu0 0.0
    %1384 = vmatpush1.msra.mxu0 0.0
    %1385 = vmatprep.mubr.f32.mxu0 0.0
    %1386 = vmatmul.mubr.f32.gmra.mrb[0].mxu0 %v1248
    %v1387 = vpop.f32.mrb[0].mxu0
    %v1388 = vadd.f32 0.0, %v1387
    %v1389 = vpop.f32.mrb[0].mxu0
    %v1390 = vadd.f32 0.0, %v1389
    %1391 = vdwg.mxu0
    %1392 = vmatprep.subr.mxu0 %v503
    %1393 = vmatpush1.msra.mxu0 %v502
    %1394 = vmatprep.subr.mxu0 %v555
    %1395 = vmatpush1.msra.mxu0 %v552
    %1396 = vmatprep.subr.mxu0 0.0
    %1397 = vmatpush1.msra.mxu0 0.0
    %1398 = vmatprep.subr.mxu0 0.0
    %1399 = vmatpush1.msra.mxu0 0.0
    %1400 = vmatprep.subr.mxu0 0.0
    %1401 = vmatpush1.msra.mxu0 0.0
    %1402 = vmatprep.subr.mxu0 0.0
    %1403 = vmatpush1.msra.mxu0 0.0
    %1404 = vmatprep.subr.mxu0 0.0
    %1405 = vmatpush1.msra.mxu0 0.0
    %1406 = vmatprep.subr.mxu0 0.0
    %1407 = vmatpush1.msra.mxu0 0.0
    %1408 = vmatprep.subr.mxu0 0.0
    %1409 = vmatpush1.msra.mxu0 0.0
    %1410 = vmatprep.subr.mxu0 0.0
    %1411 = vmatpush1.msra.mxu0 0.0
    %1412 = vmatprep.subr.mxu0 0.0
    %1413 = vmatpush1.msra.mxu0 0.0
    %1414 = vmatprep.subr.mxu0 0.0
    %1415 = vmatpush1.msra.mxu0 0.0
    %1416 = vmatprep.subr.mxu0 0.0
    %1417 = vmatpush1.msra.mxu0 0.0
    %1418 = vmatprep.subr.mxu0 0.0
    %1419 = vmatpush1.msra.mxu0 0.0
    %1420 = vmatprep.subr.mxu0 0.0
    %1421 = vmatpush1.msra.mxu0 0.0
    %1422 = vmatprep.subr.mxu0 0.0
    %1423 = vmatpush1.msra.mxu0 0.0
    %1424 = vmatprep.subr.mxu0 0.0
    %1425 = vmatpush1.msra.mxu0 0.0
    %1426 = vmatprep.subr.mxu0 0.0
    %1427 = vmatpush1.msra.mxu0 0.0
    %1428 = vmatprep.subr.mxu0 0.0
    %1429 = vmatpush1.msra.mxu0 0.0
    %1430 = vmatprep.subr.mxu0 0.0
    %1431 = vmatpush1.msra.mxu0 0.0
    %1432 = vmatprep.subr.mxu0 0.0
    %1433 = vmatpush1.msra.mxu0 0.0
    %1434 = vmatprep.subr.mxu0 0.0
    %1435 = vmatpush1.msra.mxu0 0.0
    %1436 = vmatprep.subr.mxu0 0.0
    %1437 = vmatpush1.msra.mxu0 0.0
    %1438 = vmatprep.subr.mxu0 0.0
    %1439 = vmatpush1.msra.mxu0 0.0
    %1440 = vmatprep.subr.mxu0 0.0
    %1441 = vmatpush1.msra.mxu0 0.0
    %1442 = vmatprep.subr.mxu0 0.0
    %1443 = vmatpush1.msra.mxu0 0.0
    %1444 = vmatprep.subr.mxu0 0.0
    %1445 = vmatpush1.msra.mxu0 0.0
    %1446 = vmatprep.subr.mxu0 0.0
    %1447 = vmatpush1.msra.mxu0 0.0
    %1448 = vmatprep.subr.mxu0 0.0
    %1449 = vmatpush1.msra.mxu0 0.0
    %1450 = vmatprep.subr.mxu0 0.0
    %1451 = vmatpush1.msra.mxu0 0.0
    %1452 = vmatprep.subr.mxu0 0.0
    %1453 = vmatpush1.msra.mxu0 0.0
    %1454 = vmatprep.subr.mxu0 0.0
    %1455 = vmatpush1.msra.mxu0 0.0
    %1456 = vmatprep.mubr.f32.mxu0 0.0
    %1457 = vmatmul.mubr.f32.gmra.mrb[0].mxu0 %v1248
    %v1458 = vpop.f32.mrb[0].mxu0
    %v1459 = vadd.f32 0.0, %v1458
    %v1460 = vpop.f32.mrb[0].mxu0
    %v1461 = vadd.f32 0.0, %v1460
    %1462 = vdwg.mxu0
    %1463 = vmatprep.subr.mxu0 %v505
    %1464 = vmatpush1.msra.mxu0 %v504
    %1465 = vmatprep.subr.mxu0 %v561
    %1466 = vmatpush1.msra.mxu0 %v558
    %1467 = vmatprep.subr.mxu0 0.0
    %1468 = vmatpush1.msra.mxu0 0.0
    %1469 = vmatprep.subr.mxu0 0.0
    %1470 = vmatpush1.msra.mxu0 0.0
    %1471 = vmatprep.subr.mxu0 0.0
    %1472 = vmatpush1.msra.mxu0 0.0
    %1473 = vmatprep.subr.mxu0 0.0
    %1474 = vmatpush1.msra.mxu0 0.0
    %1475 = vmatprep.subr.mxu0 0.0
    %1476 = vmatpush1.msra.mxu0 0.0
    %1477 = vmatprep.subr.mxu0 0.0
    %1478 = vmatpush1.msra.mxu0 0.0
    %1479 = vmatprep.subr.mxu0 0.0
    %1480 = vmatpush1.msra.mxu0 0.0
    %1481 = vmatprep.subr.mxu0 0.0
    %1482 = vmatpush1.msra.mxu0 0.0
    %1483 = vmatprep.subr.mxu0 0.0
    %1484 = vmatpush1.msra.mxu0 0.0
    %1485 = vmatprep.subr.mxu0 0.0
    %1486 = vmatpush1.msra.mxu0 0.0
    %1487 = vmatprep.subr.mxu0 0.0
    %1488 = vmatpush1.msra.mxu0 0.0
    %1489 = vmatprep.subr.mxu0 0.0
    %1490 = vmatpush1.msra.mxu0 0.0
    %1491 = vmatprep.subr.mxu0 0.0
    %1492 = vmatpush1.msra.mxu0 0.0
    %1493 = vmatprep.subr.mxu0 0.0
    %1494 = vmatpush1.msra.mxu0 0.0
    %1495 = vmatprep.subr.mxu0 0.0
    %1496 = vmatpush1.msra.mxu0 0.0
    %1497 = vmatprep.subr.mxu0 0.0
    %1498 = vmatpush1.msra.mxu0 0.0
    %1499 = vmatprep.subr.mxu0 0.0
    %1500 = vmatpush1.msra.mxu0 0.0
    %1501 = vmatprep.subr.mxu0 0.0
    %1502 = vmatpush1.msra.mxu0 0.0
    %1503 = vmatprep.subr.mxu0 0.0
    %1504 = vmatpush1.msra.mxu0 0.0
    %1505 = vmatprep.subr.mxu0 0.0
    %1506 = vmatpush1.msra.mxu0 0.0
    %1507 = vmatprep.subr.mxu0 0.0
    %1508 = vmatpush1.msra.mxu0 0.0
    %1509 = vmatprep.subr.mxu0 0.0
    %1510 = vmatpush1.msra.mxu0 0.0
    %1511 = vmatprep.subr.mxu0 0.0
    %1512 = vmatpush1.msra.mxu0 0.0
    %1513 = vmatprep.subr.mxu0 0.0
    %1514 = vmatpush1.msra.mxu0 0.0
    %1515 = vmatprep.subr.mxu0 0.0
    %1516 = vmatpush1.msra.mxu0 0.0
    %1517 = vmatprep.subr.mxu0 0.0
    %1518 = vmatpush1.msra.mxu0 0.0
    %1519 = vmatprep.subr.mxu0 0.0
    %1520 = vmatpush1.msra.mxu0 0.0
    %1521 = vmatprep.subr.mxu0 0.0
    %1522 = vmatpush1.msra.mxu0 0.0
    %1523 = vmatprep.subr.mxu0 0.0
    %1524 = vmatpush1.msra.mxu0 0.0
    %1525 = vmatprep.subr.mxu0 0.0
    %1526 = vmatpush1.msra.mxu0 0.0
    %1527 = vmatprep.mubr.f32.mxu0 0.0
    %1528 = vmatmul.mubr.f32.gmra.mrb[0].mxu0 %v1248
    %v1529 = vpop.f32.mrb[0].mxu0
    %v1530 = vadd.f32 0.0, %v1529
    %v1531 = vpop.f32.mrb[0].mxu0
    %v1532 = vadd.f32 0.0, %v1531
    %1533 = vdwg.mxu0
    %1534 = vmatprep.subr.mxu0 %v507
    %1535 = vmatpush1.msra.mxu0 %v506
    %1536 = vmatprep.subr.mxu0 %v567
    %1537 = vmatpush1.msra.mxu0 %v564
    %1538 = vmatprep.subr.mxu0 0.0
    %1539 = vmatpush1.msra.mxu0 0.0
    %1540 = vmatprep.subr.mxu0 0.0
    %1541 = vmatpush1.msra.mxu0 0.0
    %1542 = vmatprep.subr.mxu0 0.0
    %1543 = vmatpush1.msra.mxu0 0.0
    %1544 = vmatprep.subr.mxu0 0.0
    %1545 = vmatpush1.msra.mxu0 0.0
    %1546 = vmatprep.subr.mxu0 0.0
    %1547 = vmatpush1.msra.mxu0 0.0
    %1548 = vmatprep.subr.mxu0 0.0
    %1549 = vmatpush1.msra.mxu0 0.0
    %1550 = vmatprep.subr.mxu0 0.0
    %1551 = vmatpush1.msra.mxu0 0.0
    %1552 = vmatprep.subr.mxu0 0.0
    %1553 = vmatpush1.msra.mxu0 0.0
    %1554 = vmatprep.subr.mxu0 0.0
    %1555 = vmatpush1.msra.mxu0 0.0
    %1556 = vmatprep.subr.mxu0 0.0
    %1557 = vmatpush1.msra.mxu0 0.0
    %1558 = vmatprep.subr.mxu0 0.0
    %1559 = vmatpush1.msra.mxu0 0.0
    %1560 = vmatprep.subr.mxu0 0.0
    %1561 = vmatpush1.msra.mxu0 0.0
    %1562 = vmatprep.subr.mxu0 0.0
    %1563 = vmatpush1.msra.mxu0 0.0
    %1564 = vmatprep.subr.mxu0 0.0
    %1565 = vmatpush1.msra.mxu0 0.0
    %1566 = vmatprep.subr.mxu0 0.0
    %1567 = vmatpush1.msra.mxu0 0.0
    %1568 = vmatprep.subr.mxu0 0.0
    %1569 = vmatpush1.msra.mxu0 0.0
    %1570 = vmatprep.subr.mxu0 0.0
    %1571 = vmatpush1.msra.mxu0 0.0
    %1572 = vmatprep.subr.mxu0 0.0
    %1573 = vmatpush1.msra.mxu0 0.0
    %1574 = vmatprep.subr.mxu0 0.0
    %1575 = vmatpush1.msra.mxu0 0.0
    %1576 = vmatprep.subr.mxu0 0.0
    %1577 = vmatpush1.msra.mxu0 0.0
    %1578 = vmatprep.subr.mxu0 0.0
    %1579 = vmatpush1.msra.mxu0 0.0
    %1580 = vmatprep.subr.mxu0 0.0
    %1581 = vmatpush1.msra.mxu0 0.0
    %1582 = vmatprep.subr.mxu0 0.0
    %1583 = vmatpush1.msra.mxu0 0.0
    %1584 = vmatprep.subr.mxu0 0.0
    %1585 = vmatpush1.msra.mxu0 0.0
    %1586 = vmatprep.subr.mxu0 0.0
    %1587 = vmatpush1.msra.mxu0 0.0
    %1588 = vmatprep.subr.mxu0 0.0
    %1589 = vmatpush1.msra.mxu0 0.0
    %1590 = vmatprep.subr.mxu0 0.0
    %1591 = vmatpush1.msra.mxu0 0.0
    %1592 = vmatprep.subr.mxu0 0.0
    %1593 = vmatpush1.msra.mxu0 0.0
    %1594 = vmatprep.subr.mxu0 0.0
    %1595 = vmatpush1.msra.mxu0 0.0
    %1596 = vmatprep.subr.mxu0 0.0
    %1597 = vmatpush1.msra.mxu0 0.0
    %1598 = vmatprep.mubr.f32.mxu0 0.0
    %1599 = vmatmul.mubr.f32.gmra.mrb[0].mxu0 %v1248
    %v1600 = vpop.f32.mrb[0].mxu0
    %v1601 = vadd.f32 0.0, %v1600
    %v1602 = vpop.f32.mrb[0].mxu0
    %v1603 = vadd.f32 0.0, %v1602
    %1604 = vdwg.mxu0
    %1605 = vmatprep.subr.mxu0 %v509
    %1606 = vmatpush1.msra.mxu0 %v508
    %1607 = vmatprep.subr.mxu0 %v573
    %1608 = vmatpush1.msra.mxu0 %v570
    %1609 = vmatprep.subr.mxu0 0.0
    %1610 = vmatpush1.msra.mxu0 0.0
    %1611 = vmatprep.subr.mxu0 0.0
    %1612 = vmatpush1.msra.mxu0 0.0
    %1613 = vmatprep.subr.mxu0 0.0
    %1614 = vmatpush1.msra.mxu0 0.0
    %1615 = vmatprep.subr.mxu0 0.0
    %1616 = vmatpush1.msra.mxu0 0.0
    %1617 = vmatprep.subr.mxu0 0.0
    %1618 = vmatpush1.msra.mxu0 0.0
    %1619 = vmatprep.subr.mxu0 0.0
    %1620 = vmatpush1.msra.mxu0 0.0
    %1621 = vmatprep.subr.mxu0 0.0
    %1622 = vmatpush1.msra.mxu0 0.0
    %1623 = vmatprep.subr.mxu0 0.0
    %1624 = vmatpush1.msra.mxu0 0.0
    %1625 = vmatprep.subr.mxu0 0.0
    %1626 = vmatpush1.msra.mxu0 0.0
    %1627 = vmatprep.subr.mxu0 0.0
    %1628 = vmatpush1.msra.mxu0 0.0
    %1629 = vmatprep.subr.mxu0 0.0
    %1630 = vmatpush1.msra.mxu0 0.0
    %1631 = vmatprep.subr.mxu0 0.0
    %1632 = vmatpush1.msra.mxu0 0.0
    %1633 = vmatprep.subr.mxu0 0.0
    %1634 = vmatpush1.msra.mxu0 0.0
    %1635 = vmatprep.subr.mxu0 0.0
    %1636 = vmatpush1.msra.mxu0 0.0
    %1637 = vmatprep.subr.mxu0 0.0
    %1638 = vmatpush1.msra.mxu0 0.0
    %1639 = vmatprep.subr.mxu0 0.0
    %1640 = vmatpush1.msra.mxu0 0.0
    %1641 = vmatprep.subr.mxu0 0.0
    %1642 = vmatpush1.msra.mxu0 0.0
    %1643 = vmatprep.subr.mxu0 0.0
    %1644 = vmatpush1.msra.mxu0 0.0
    %1645 = vmatprep.subr.mxu0 0.0
    %1646 = vmatpush1.msra.mxu0 0.0
    %1647 = vmatprep.subr.mxu0 0.0
    %1648 = vmatpush1.msra.mxu0 0.0
    %1649 = vmatprep.subr.mxu0 0.0
    %1650 = vmatpush1.msra.mxu0 0.0
    %1651 = vmatprep.subr.mxu0 0.0
    %1652 = vmatpush1.msra.mxu0 0.0
    %1653 = vmatprep.subr.mxu0 0.0
    %1654 = vmatpush1.msra.mxu0 0.0
    %1655 = vmatprep.subr.mxu0 0.0
    %1656 = vmatpush1.msra.mxu0 0.0
    %1657 = vmatprep.subr.mxu0 0.0
    %1658 = vmatpush1.msra.mxu0 0.0
    %1659 = vmatprep.subr.mxu0 0.0
    %1660 = vmatpush1.msra.mxu0 0.0
    %1661 = vmatprep.subr.mxu0 0.0
    %1662 = vmatpush1.msra.mxu0 0.0
    %1663 = vmatprep.subr.mxu0 0.0
    %1664 = vmatpush1.msra.mxu0 0.0
    %1665 = vmatprep.subr.mxu0 0.0
    %1666 = vmatpush1.msra.mxu0 0.0
    %1667 = vmatprep.subr.mxu0 0.0
    %1668 = vmatpush1.msra.mxu0 0.0
    %1669 = vmatprep.mubr.f32.mxu0 0.0
    %1670 = vmatmul.mubr.f32.gmra.mrb[0].mxu0 %v1248
    %v1671 = vpop.f32.mrb[0].mxu0
    %v1672 = vadd.f32 0.0, %v1671
    %v1673 = vpop.f32.mrb[0].mxu0
    %v1674 = vadd.f32 0.0, %v1673
    %1675 = vdwg.mxu0
    %1676 = vmatprep.subr.mxu0 %v511
    %1677 = vmatpush1.msra.mxu0 %v510
    %1678 = vmatprep.subr.mxu0 %v579
    %1679 = vmatpush1.msra.mxu0 %v576
    %1680 = vmatprep.subr.mxu0 0.0
    %1681 = vmatpush1.msra.mxu0 0.0
    %1682 = vmatprep.subr.mxu0 0.0
    %1683 = vmatpush1.msra.mxu0 0.0
    %1684 = vmatprep.subr.mxu0 0.0
    %1685 = vmatpush1.msra.mxu0 0.0
    %1686 = vmatprep.subr.mxu0 0.0
    %1687 = vmatpush1.msra.mxu0 0.0
    %1688 = vmatprep.subr.mxu0 0.0
    %1689 = vmatpush1.msra.mxu0 0.0
    %1690 = vmatprep.subr.mxu0 0.0
    %1691 = vmatpush1.msra.mxu0 0.0
    %1692 = vmatprep.subr.mxu0 0.0
    %1693 = vmatpush1.msra.mxu0 0.0
    %1694 = vmatprep.subr.mxu0 0.0
    %1695 = vmatpush1.msra.mxu0 0.0
    %1696 = vmatprep.subr.mxu0 0.0
    %1697 = vmatpush1.msra.mxu0 0.0
    %1698 = vmatprep.subr.mxu0 0.0
    %1699 = vmatpush1.msra.mxu0 0.0
    %1700 = vmatprep.subr.mxu0 0.0
    %1701 = vmatpush1.msra.mxu0 0.0
    %1702 = vmatprep.subr.mxu0 0.0
    %1703 = vmatpush1.msra.mxu0 0.0
    %1704 = vmatprep.subr.mxu0 0.0
    %1705 = vmatpush1.msra.mxu0 0.0
    %1706 = vmatprep.subr.mxu0 0.0
    %1707 = vmatpush1.msra.mxu0 0.0
    %1708 = vmatprep.subr.mxu0 0.0
    %1709 = vmatpush1.msra.mxu0 0.0
    %1710 = vmatprep.subr.mxu0 0.0
    %1711 = vmatpush1.msra.mxu0 0.0
    %1712 = vmatprep.subr.mxu0 0.0
    %1713 = vmatpush1.msra.mxu0 0.0
    %1714 = vmatprep.subr.mxu0 0.0
    %1715 = vmatpush1.msra.mxu0 0.0
    %1716 = vmatprep.subr.mxu0 0.0
    %1717 = vmatpush1.msra.mxu0 0.0
    %1718 = vmatprep.subr.mxu0 0.0
    %1719 = vmatpush1.msra.mxu0 0.0
    %1720 = vmatprep.subr.mxu0 0.0
    %1721 = vmatpush1.msra.mxu0 0.0
    %1722 = vmatprep.subr.mxu0 0.0
    %1723 = vmatpush1.msra.mxu0 0.0
    %1724 = vmatprep.subr.mxu0 0.0
    %1725 = vmatpush1.msra.mxu0 0.0
    %1726 = vmatprep.subr.mxu0 0.0
    %1727 = vmatpush1.msra.mxu0 0.0
    %1728 = vmatprep.subr.mxu0 0.0
    %1729 = vmatpush1.msra.mxu0 0.0
    %1730 = vmatprep.subr.mxu0 0.0
    %1731 = vmatpush1.msra.mxu0 0.0
    %1732 = vmatprep.subr.mxu0 0.0
    %1733 = vmatpush1.msra.mxu0 0.0
    %1734 = vmatprep.subr.mxu0 0.0
    %1735 = vmatpush1.msra.mxu0 0.0
    %1736 = vmatprep.subr.mxu0 0.0
    %1737 = vmatpush1.msra.mxu0 0.0
    %1738 = vmatprep.subr.mxu0 0.0
    %1739 = vmatpush1.msra.mxu0 0.0
    %1740 = vmatprep.mubr.f32.mxu0 0.0
    %1741 = vmatmul.mubr.f32.gmra.mrb[0].mxu0 %v1248
    %v1742 = vpop.f32.mrb[0].mxu0
    %v1743 = vadd.f32 0.0, %v1742
    %v1744 = vpop.f32.mrb[0].mxu0
    %v1745 = vadd.f32 0.0, %v1744
    %1746 = vdwg.mxu0
    %1747 = vmatprep.subr.mxu0 %v513
    %1748 = vmatpush1.msra.mxu0 %v512
    %1749 = vmatprep.subr.mxu0 %v585
    %1750 = vmatpush1.msra.mxu0 %v582
    %1751 = vmatprep.subr.mxu0 0.0
    %1752 = vmatpush1.msra.mxu0 0.0
    %1753 = vmatprep.subr.mxu0 0.0
    %1754 = vmatpush1.msra.mxu0 0.0
    %1755 = vmatprep.subr.mxu0 0.0
    %1756 = vmatpush1.msra.mxu0 0.0
    %1757 = vmatprep.subr.mxu0 0.0
    %1758 = vmatpush1.msra.mxu0 0.0
    %1759 = vmatprep.subr.mxu0 0.0
    %1760 = vmatpush1.msra.mxu0 0.0
    %1761 = vmatprep.subr.mxu0 0.0
    %1762 = vmatpush1.msra.mxu0 0.0
    %1763 = vmatprep.subr.mxu0 0.0
    %1764 = vmatpush1.msra.mxu0 0.0
    %1765 = vmatprep.subr.mxu0 0.0
    %1766 = vmatpush1.msra.mxu0 0.0
    %1767 = vmatprep.subr.mxu0 0.0
    %1768 = vmatpush1.msra.mxu0 0.0
    %1769 = vmatprep.subr.mxu0 0.0
    %1770 = vmatpush1.msra.mxu0 0.0
    %1771 = vmatprep.subr.mxu0 0.0
    %1772 = vmatpush1.msra.mxu0 0.0
    %1773 = vmatprep.subr.mxu0 0.0
    %1774 = vmatpush1.msra.mxu0 0.0
    %1775 = vmatprep.subr.mxu0 0.0
    %1776 = vmatpush1.msra.mxu0 0.0
    %1777 = vmatprep.subr.mxu0 0.0
    %1778 = vmatpush1.msra.mxu0 0.0
    %1779 = vmatprep.subr.mxu0 0.0
    %1780 = vmatpush1.msra.mxu0 0.0
    %1781 = vmatprep.subr.mxu0 0.0
    %1782 = vmatpush1.msra.mxu0 0.0
    %1783 = vmatprep.subr.mxu0 0.0
    %1784 = vmatpush1.msra.mxu0 0.0
    %1785 = vmatprep.subr.mxu0 0.0
    %1786 = vmatpush1.msra.mxu0 0.0
    %1787 = vmatprep.subr.mxu0 0.0
    %1788 = vmatpush1.msra.mxu0 0.0
    %1789 = vmatprep.subr.mxu0 0.0
    %1790 = vmatpush1.msra.mxu0 0.0
    %1791 = vmatprep.subr.mxu0 0.0
    %1792 = vmatpush1.msra.mxu0 0.0
    %1793 = vmatprep.subr.mxu0 0.0
    %1794 = vmatpush1.msra.mxu0 0.0
    %1795 = vmatprep.subr.mxu0 0.0
    %1796 = vmatpush1.msra.mxu0 0.0
    %1797 = vmatprep.subr.mxu0 0.0
    %1798 = vmatpush1.msra.mxu0 0.0
    %1799 = vmatprep.subr.mxu0 0.0
    %1800 = vmatpush1.msra.mxu0 0.0
    %1801 = vmatprep.subr.mxu0 0.0
    %1802 = vmatpush1.msra.mxu0 0.0
    %1803 = vmatprep.subr.mxu0 0.0
    %1804 = vmatpush1.msra.mxu0 0.0
    %1805 = vmatprep.subr.mxu0 0.0
    %1806 = vmatpush1.msra.mxu0 0.0
    %1807 = vmatprep.subr.mxu0 0.0
    %1808 = vmatpush1.msra.mxu0 0.0
    %1809 = vmatprep.subr.mxu0 0.0
    %1810 = vmatpush1.msra.mxu0 0.0
    %1811 = vmatprep.mubr.f32.mxu0 0.0
    %1812 = vmatmul.mubr.f32.gmra.mrb[0].mxu0 %v1248
    %v1813 = vpop.f32.mrb[0].mxu0
    %v1814 = vadd.f32 0.0, %v1813
    %v1815 = vpop.f32.mrb[0].mxu0
    %v1816 = vadd.f32 0.0, %v1815
    %1817 = vdwg.mxu0
    %1818 = vmatprep.subr.mxu0 %v515
    %1819 = vmatpush1.msra.mxu0 %v514
    %1820 = vmatprep.subr.mxu0 %v591
    %1821 = vmatpush1.msra.mxu0 %v588
    %1822 = vmatprep.subr.mxu0 0.0
    %1823 = vmatpush1.msra.mxu0 0.0
    %1824 = vmatprep.subr.mxu0 0.0
    %1825 = vmatpush1.msra.mxu0 0.0
    %1826 = vmatprep.subr.mxu0 0.0
    %1827 = vmatpush1.msra.mxu0 0.0
    %1828 = vmatprep.subr.mxu0 0.0
    %1829 = vmatpush1.msra.mxu0 0.0
    %1830 = vmatprep.subr.mxu0 0.0
    %1831 = vmatpush1.msra.mxu0 0.0
    %1832 = vmatprep.subr.mxu0 0.0
    %1833 = vmatpush1.msra.mxu0 0.0
    %1834 = vmatprep.subr.mxu0 0.0
    %1835 = vmatpush1.msra.mxu0 0.0
    %1836 = vmatprep.subr.mxu0 0.0
    %1837 = vmatpush1.msra.mxu0 0.0
    %1838 = vmatprep.subr.mxu0 0.0
    %1839 = vmatpush1.msra.mxu0 0.0
    %1840 = vmatprep.subr.mxu0 0.0
    %1841 = vmatpush1.msra.mxu0 0.0
    %1842 = vmatprep.subr.mxu0 0.0
    %1843 = vmatpush1.msra.mxu0 0.0
    %1844 = vmatprep.subr.mxu0 0.0
    %1845 = vmatpush1.msra.mxu0 0.0
    %1846 = vmatprep.subr.mxu0 0.0
    %1847 = vmatpush1.msra.mxu0 0.0
    %1848 = vmatprep.subr.mxu0 0.0
    %1849 = vmatpush1.msra.mxu0 0.0
    %1850 = vmatprep.subr.mxu0 0.0
    %1851 = vmatpush1.msra.mxu0 0.0
    %1852 = vmatprep.subr.mxu0 0.0
    %1853 = vmatpush1.msra.mxu0 0.0
    %1854 = vmatprep.subr.mxu0 0.0
    %1855 = vmatpush1.msra.mxu0 0.0
    %1856 = vmatprep.subr.mxu0 0.0
    %1857 = vmatpush1.msra.mxu0 0.0
    %1858 = vmatprep.subr.mxu0 0.0
    %1859 = vmatpush1.msra.mxu0 0.0
    %1860 = vmatprep.subr.mxu0 0.0
    %1861 = vmatpush1.msra.mxu0 0.0
    %1862 = vmatprep.subr.mxu0 0.0
    %1863 = vmatpush1.msra.mxu0 0.0
    %1864 = vmatprep.subr.mxu0 0.0
    %1865 = vmatpush1.msra.mxu0 0.0
    %1866 = vmatprep.subr.mxu0 0.0
    %1867 = vmatpush1.msra.mxu0 0.0
    %1868 = vmatprep.subr.mxu0 0.0
    %1869 = vmatpush1.msra.mxu0 0.0
    %1870 = vmatprep.subr.mxu0 0.0
    %1871 = vmatpush1.msra.mxu0 0.0
    %1872 = vmatprep.subr.mxu0 0.0
    %1873 = vmatpush1.msra.mxu0 0.0
    %1874 = vmatprep.subr.mxu0 0.0
    %1875 = vmatpush1.msra.mxu0 0.0
    %1876 = vmatprep.subr.mxu0 0.0
    %1877 = vmatpush1.msra.mxu0 0.0
    %1878 = vmatprep.subr.mxu0 0.0
    %1879 = vmatpush1.msra.mxu0 0.0
    %1880 = vmatprep.subr.mxu0 0.0
    %1881 = vmatpush1.msra.mxu0 0.0
    %1882 = vmatprep.mubr.f32.mxu0 0.0
    %1883 = vmatmul.mubr.f32.gmra.mrb[0].mxu0 %v1248
    %v1884 = vpop.f32.mrb[0].mxu0
    %v1885 = vadd.f32 0.0, %v1884
    %v1886 = vpop.f32.mrb[0].mxu0
    %v1887 = vadd.f32 0.0, %v1886
    %1888 = vdwg.mxu0
    %1898 = vrot.lane.b32.xlu0 %v1317, 127
    %v1899 = vpop.permute.xlu0 %1898
    %1900 = vrot.lane.b32.xlu0 %v1319, 127
    %v1901 = vpop.permute.xlu0 %1900
    %1902 = vrot.lane.b32.xlu0 %v1388, 127
    %v1903 = vpop.permute.xlu0 %1902
    %1904 = vrot.lane.b32.xlu0 %v1390, 127
    %v1905 = vpop.permute.xlu0 %1904
    %1906 = vrot.lane.b32.xlu0 %v1459, 127
    %v1907 = vpop.permute.xlu0 %1906
    %1908 = vrot.lane.b32.xlu0 %v1461, 127
    %v1909 = vpop.permute.xlu0 %1908
    %1910 = vrot.lane.b32.xlu0 %v1530, 127
    %v1911 = vpop.permute.xlu0 %1910
    %1912 = vrot.lane.b32.xlu0 %v1532, 127
    %v1913 = vpop.permute.xlu0 %1912
    %1914 = vrot.lane.b32.xlu0 %v1601, 127
    %v1915 = vpop.permute.xlu0 %1914
    %vm1916 = vcmask 1039360
    %v1917 = vsel %vm1916, %v1899, %v1901
    %v1918 = vsel %vm1916, %v1901, %v1903
    %v1919 = vsel %vm1916, %v1903, %v1905
    %v1920 = vsel %vm1916, %v1905, %v1907
    %v1921 = vsel %vm1916, %v1907, %v1909
    %v1922 = vsel %vm1916, %v1909, %v1911
    %v1923 = vsel %vm1916, %v1911, %v1913
    %v1924 = vsel %vm1916, %v1913, %v1915
    %v1933 = vadd.f32 %v1230, %v1917
    %v1934 = vadd.f32 %v1231, %v1918
    %v1935 = vadd.f32 %v1232, %v1919
    %v1936 = vadd.f32 %v1233, %v1920
    %v1937 = vadd.f32 %v1234, %v1921
    %v1938 = vadd.f32 %v1235, %v1922
    %v1939 = vadd.f32 %v1236, %v1923
    %v1940 = vadd.f32 %v1237, %v1924
    %1950 = vrot.lane.b32.xlu0 %v1603, 127
    %v1951 = vpop.permute.xlu0 %1950
    %1952 = vrot.lane.b32.xlu0 %v1672, 127
    %v1953 = vpop.permute.xlu0 %1952
    %1954 = vrot.lane.b32.xlu0 %v1674, 127
    %v1955 = vpop.permute.xlu0 %1954
    %1956 = vrot.lane.b32.xlu0 %v1743, 127
    %v1957 = vpop.permute.xlu0 %1956
    %1958 = vrot.lane.b32.xlu0 %v1745, 127
    %v1959 = vpop.permute.xlu0 %1958
    %1960 = vrot.lane.b32.xlu0 %v1814, 127
    %v1961 = vpop.permute.xlu0 %1960
    %1962 = vrot.lane.b32.xlu0 %v1816, 127
    %v1963 = vpop.permute.xlu0 %1962
    %1964 = vrot.lane.b32.xlu0 %v1885, 127
    %v1965 = vpop.permute.xlu0 %1964
    %1966 = vrot.lane.b32.xlu0 %v1887, 127
    %v1967 = vpop.permute.xlu0 %1966
    %v1968 = vsel %vm1916, %v1951, %v1953
    %v1969 = vsel %vm1916, %v1953, %v1955
    %v1970 = vsel %vm1916, %v1955, %v1957
    %v1971 = vsel %vm1916, %v1957, %v1959
    %v1972 = vsel %vm1916, %v1959, %v1961
    %v1973 = vsel %vm1916, %v1961, %v1963
    %v1974 = vsel %vm1916, %v1963, %v1965
    %v1975 = vsel %vm1916, %v1965, %v1967
    %v1984 = vadd.f32 %v1238, %v1968
    %v1985 = vadd.f32 %v1239, %v1969
    %v1986 = vadd.f32 %v1240, %v1970
    %v1987 = vadd.f32 %v1241, %v1971
    %v1988 = vadd.f32 %v1242, %v1972
    %v1989 = vadd.f32 %v1243, %v1973
    %v1990 = vadd.f32 %v1244, %v1974
    %v1991 = vadd.f32 %v1245, %v1975
    %1992 = vrot.lane.b32.xlu0 %v497, 98
    %v1993 = vpop.permute.xlu0 %1992
    %v1994 = vsel %vm534, %v1993, 0
    %1996 = vmatprep.subr.mxu0 %v499
    %1997 = vmatpush1.msra.mxu0 %v498
    %1998 = vmatprep.subr.mxu0 %v543
    %1999 = vmatpush1.msra.mxu0 %v540
    %2000 = vmatprep.subr.mxu0 0.0
    %2001 = vmatpush1.msra.mxu0 0.0
    %2002 = vmatprep.subr.mxu0 0.0
    %2003 = vmatpush1.msra.mxu0 0.0
    %2004 = vmatprep.subr.mxu0 0.0
    %2005 = vmatpush1.msra.mxu0 0.0
    %2006 = vmatprep.subr.mxu0 0.0
    %2007 = vmatpush1.msra.mxu0 0.0
    %2008 = vmatprep.subr.mxu0 0.0
    %2009 = vmatpush1.msra.mxu0 0.0
    %2010 = vmatprep.subr.mxu0 0.0
    %2011 = vmatpush1.msra.mxu0 0.0
    %2012 = vmatprep.subr.mxu0 0.0
    %2013 = vmatpush1.msra.mxu0 0.0
    %2014 = vmatprep.subr.mxu0 0.0
    %2015 = vmatpush1.msra.mxu0 0.0
    %2016 = vmatprep.subr.mxu0 0.0
    %2017 = vmatpush1.msra.mxu0 0.0
    %2018 = vmatprep.subr.mxu0 0.0
    %2019 = vmatpush1.msra.mxu0 0.0
    %2020 = vmatprep.subr.mxu0 0.0
    %2021 = vmatpush1.msra.mxu0 0.0
    %2022 = vmatprep.subr.mxu0 0.0
    %2023 = vmatpush1.msra.mxu0 0.0
    %2024 = vmatprep.subr.mxu0 0.0
    %2025 = vmatpush1.msra.mxu0 0.0
    %2026 = vmatprep.subr.mxu0 0.0
    %2027 = vmatpush1.msra.mxu0 0.0
    %2028 = vmatprep.subr.mxu0 0.0
    %2029 = vmatpush1.msra.mxu0 0.0
    %2030 = vmatprep.subr.mxu0 0.0
    %2031 = vmatpush1.msra.mxu0 0.0
    %2032 = vmatprep.subr.mxu0 0.0
    %2033 = vmatpush1.msra.mxu0 0.0
    %2034 = vmatprep.subr.mxu0 0.0
    %2035 = vmatpush1.msra.mxu0 0.0
    %2036 = vmatprep.subr.mxu0 0.0
    %2037 = vmatpush1.msra.mxu0 0.0
    %2038 = vmatprep.subr.mxu0 0.0
    %2039 = vmatpush1.msra.mxu0 0.0
    %2040 = vmatprep.subr.mxu0 0.0
    %2041 = vmatpush1.msra.mxu0 0.0
    %2042 = vmatprep.subr.mxu0 0.0
    %2043 = vmatpush1.msra.mxu0 0.0
    %2044 = vmatprep.subr.mxu0 0.0
    %2045 = vmatpush1.msra.mxu0 0.0
    %2046 = vmatprep.subr.mxu0 0.0
    %2047 = vmatpush1.msra.mxu0 0.0
    %2048 = vmatprep.subr.mxu0 0.0
    %2049 = vmatpush1.msra.mxu0 0.0
    %2050 = vmatprep.subr.mxu0 0.0
    %2051 = vmatpush1.msra.mxu0 0.0
    %2052 = vmatprep.subr.mxu0 0.0
    %2053 = vmatpush1.msra.mxu0 0.0
    %2054 = vmatprep.subr.mxu0 0.0
    %2055 = vmatpush1.msra.mxu0 0.0
    %2056 = vmatprep.subr.mxu0 0.0
    %2057 = vmatpush1.msra.mxu0 0.0
    %2058 = vmatprep.subr.mxu0 0.0
    %2059 = vmatpush1.msra.mxu0 0.0
    %2060 = vmatprep.mubr.f32.mxu0 0.0
    %2061 = vmatmul.mubr.f32.gmra.mrb[0].mxu0 %v1994
    %v2062 = vpop.f32.mrb[0].mxu0
    %v2063 = vadd.f32 0.0, %v2062
    %v2064 = vpop.f32.mrb[0].mxu0
    %v2065 = vadd.f32 0.0, %v2064
    %2066 = vdwg.mxu0
    %2067 = vmatprep.subr.mxu0 %v501
    %2068 = vmatpush1.msra.mxu0 %v500
    %2069 = vmatprep.subr.mxu0 %v549
    %2070 = vmatpush1.msra.mxu0 %v546
    %2071 = vmatprep.subr.mxu0 0.0
    %2072 = vmatpush1.msra.mxu0 0.0
    %2073 = vmatprep.subr.mxu0 0.0
    %2074 = vmatpush1.msra.mxu0 0.0
    %2075 = vmatprep.subr.mxu0 0.0
    %2076 = vmatpush1.msra.mxu0 0.0
    %2077 = vmatprep.subr.mxu0 0.0
    %2078 = vmatpush1.msra.mxu0 0.0
    %2079 = vmatprep.subr.mxu0 0.0
    %2080 = vmatpush1.msra.mxu0 0.0
    %2081 = vmatprep.subr.mxu0 0.0
    %2082 = vmatpush1.msra.mxu0 0.0
    %2083 = vmatprep.subr.mxu0 0.0
    %2084 = vmatpush1.msra.mxu0 0.0
    %2085 = vmatprep.subr.mxu0 0.0
    %2086 = vmatpush1.msra.mxu0 0.0
    %2087 = vmatprep.subr.mxu0 0.0
    %2088 = vmatpush1.msra.mxu0 0.0
    %2089 = vmatprep.subr.mxu0 0.0
    %2090 = vmatpush1.msra.mxu0 0.0
    %2091 = vmatprep.subr.mxu0 0.0
    %2092 = vmatpush1.msra.mxu0 0.0
    %2093 = vmatprep.subr.mxu0 0.0
    %2094 = vmatpush1.msra.mxu0 0.0
    %2095 = vmatprep.subr.mxu0 0.0
    %2096 = vmatpush1.msra.mxu0 0.0
    %2097 = vmatprep.subr.mxu0 0.0
    %2098 = vmatpush1.msra.mxu0 0.0
    %2099 = vmatprep.subr.mxu0 0.0
    %2100 = vmatpush1.msra.mxu0 0.0
    %2101 = vmatprep.subr.mxu0 0.0
    %2102 = vmatpush1.msra.mxu0 0.0
    %2103 = vmatprep.subr.mxu0 0.0
    %2104 = vmatpush1.msra.mxu0 0.0
    %2105 = vmatprep.subr.mxu0 0.0
    %2106 = vmatpush1.msra.mxu0 0.0
    %2107 = vmatprep.subr.mxu0 0.0
    %2108 = vmatpush1.msra.mxu0 0.0
    %2109 = vmatprep.subr.mxu0 0.0
    %2110 = vmatpush1.msra.mxu0 0.0
    %2111 = vmatprep.subr.mxu0 0.0
    %2112 = vmatpush1.msra.mxu0 0.0
    %2113 = vmatprep.subr.mxu0 0.0
    %2114 = vmatpush1.msra.mxu0 0.0
    %2115 = vmatprep.subr.mxu0 0.0
    %2116 = vmatpush1.msra.mxu0 0.0
    %2117 = vmatprep.subr.mxu0 0.0
    %2118 = vmatpush1.msra.mxu0 0.0
    %2119 = vmatprep.subr.mxu0 0.0
    %2120 = vmatpush1.msra.mxu0 0.0
    %2121 = vmatprep.subr.mxu0 0.0
    %2122 = vmatpush1.msra.mxu0 0.0
    %2123 = vmatprep.subr.mxu0 0.0
    %2124 = vmatpush1.msra.mxu0 0.0
    %2125 = vmatprep.subr.mxu0 0.0
    %2126 = vmatpush1.msra.mxu0 0.0
    %2127 = vmatprep.subr.mxu0 0.0
    %2128 = vmatpush1.msra.mxu0 0.0
    %2129 = vmatprep.subr.mxu0 0.0
    %2130 = vmatpush1.msra.mxu0 0.0
    %2131 = vmatprep.mubr.f32.mxu0 0.0
    %2132 = vmatmul.mubr.f32.gmra.mrb[0].mxu0 %v1994
    %v2133 = vpop.f32.mrb[0].mxu0
    %v2134 = vadd.f32 0.0, %v2133
    %v2135 = vpop.f32.mrb[0].mxu0
    %v2136 = vadd.f32 0.0, %v2135
    %2137 = vdwg.mxu0
    %2138 = vmatprep.subr.mxu0 %v503
    %2139 = vmatpush1.msra.mxu0 %v502
    %2140 = vmatprep.subr.mxu0 %v555
    %2141 = vmatpush1.msra.mxu0 %v552
    %2142 = vmatprep.subr.mxu0 0.0
    %2143 = vmatpush1.msra.mxu0 0.0
    %2144 = vmatprep.subr.mxu0 0.0
    %2145 = vmatpush1.msra.mxu0 0.0
    %2146 = vmatprep.subr.mxu0 0.0
    %2147 = vmatpush1.msra.mxu0 0.0
    %2148 = vmatprep.subr.mxu0 0.0
    %2149 = vmatpush1.msra.mxu0 0.0
    %2150 = vmatprep.subr.mxu0 0.0
    %2151 = vmatpush1.msra.mxu0 0.0
    %2152 = vmatprep.subr.mxu0 0.0
    %2153 = vmatpush1.msra.mxu0 0.0
    %2154 = vmatprep.subr.mxu0 0.0
    %2155 = vmatpush1.msra.mxu0 0.0
    %2156 = vmatprep.subr.mxu0 0.0
    %2157 = vmatpush1.msra.mxu0 0.0
    %2158 = vmatprep.subr.mxu0 0.0
    %2159 = vmatpush1.msra.mxu0 0.0
    %2160 = vmatprep.subr.mxu0 0.0
    %2161 = vmatpush1.msra.mxu0 0.0
    %2162 = vmatprep.subr.mxu0 0.0
    %2163 = vmatpush1.msra.mxu0 0.0
    %2164 = vmatprep.subr.mxu0 0.0
    %2165 = vmatpush1.msra.mxu0 0.0
    %2166 = vmatprep.subr.mxu0 0.0
    %2167 = vmatpush1.msra.mxu0 0.0
    %2168 = vmatprep.subr.mxu0 0.0
    %2169 = vmatpush1.msra.mxu0 0.0
    %2170 = vmatprep.subr.mxu0 0.0
    %2171 = vmatpush1.msra.mxu0 0.0
    %2172 = vmatprep.subr.mxu0 0.0
    %2173 = vmatpush1.msra.mxu0 0.0
    %2174 = vmatprep.subr.mxu0 0.0
    %2175 = vmatpush1.msra.mxu0 0.0
    %2176 = vmatprep.subr.mxu0 0.0
    %2177 = vmatpush1.msra.mxu0 0.0
    %2178 = vmatprep.subr.mxu0 0.0
    %2179 = vmatpush1.msra.mxu0 0.0
    %2180 = vmatprep.subr.mxu0 0.0
    %2181 = vmatpush1.msra.mxu0 0.0
    %2182 = vmatprep.subr.mxu0 0.0
    %2183 = vmatpush1.msra.mxu0 0.0
    %2184 = vmatprep.subr.mxu0 0.0
    %2185 = vmatpush1.msra.mxu0 0.0
    %2186 = vmatprep.subr.mxu0 0.0
    %2187 = vmatpush1.msra.mxu0 0.0
    %2188 = vmatprep.subr.mxu0 0.0
    %2189 = vmatpush1.msra.mxu0 0.0
    %2190 = vmatprep.subr.mxu0 0.0
    %2191 = vmatpush1.msra.mxu0 0.0
    %2192 = vmatprep.subr.mxu0 0.0
    %2193 = vmatpush1.msra.mxu0 0.0
    %2194 = vmatprep.subr.mxu0 0.0
    %2195 = vmatpush1.msra.mxu0 0.0
    %2196 = vmatprep.subr.mxu0 0.0
    %2197 = vmatpush1.msra.mxu0 0.0
    %2198 = vmatprep.subr.mxu0 0.0
    %2199 = vmatpush1.msra.mxu0 0.0
    %2200 = vmatprep.subr.mxu0 0.0
    %2201 = vmatpush1.msra.mxu0 0.0
    %2202 = vmatprep.mubr.f32.mxu0 0.0
    %2203 = vmatmul.mubr.f32.gmra.mrb[0].mxu0 %v1994
    %v2204 = vpop.f32.mrb[0].mxu0
    %v2205 = vadd.f32 0.0, %v2204
    %v2206 = vpop.f32.mrb[0].mxu0
    %v2207 = vadd.f32 0.0, %v2206
    %2208 = vdwg.mxu0
    %2209 = vmatprep.subr.mxu0 %v505
    %2210 = vmatpush1.msra.mxu0 %v504
    %2211 = vmatprep.subr.mxu0 %v561
    %2212 = vmatpush1.msra.mxu0 %v558
    %2213 = vmatprep.subr.mxu0 0.0
    %2214 = vmatpush1.msra.mxu0 0.0
    %2215 = vmatprep.subr.mxu0 0.0
    %2216 = vmatpush1.msra.mxu0 0.0
    %2217 = vmatprep.subr.mxu0 0.0
    %2218 = vmatpush1.msra.mxu0 0.0
    %2219 = vmatprep.subr.mxu0 0.0
    %2220 = vmatpush1.msra.mxu0 0.0
    %2221 = vmatprep.subr.mxu0 0.0
    %2222 = vmatpush1.msra.mxu0 0.0
    %2223 = vmatprep.subr.mxu0 0.0
    %2224 = vmatpush1.msra.mxu0 0.0
    %2225 = vmatprep.subr.mxu0 0.0
    %2226 = vmatpush1.msra.mxu0 0.0
    %2227 = vmatprep.subr.mxu0 0.0
    %2228 = vmatpush1.msra.mxu0 0.0
    %2229 = vmatprep.subr.mxu0 0.0
    %2230 = vmatpush1.msra.mxu0 0.0
    %2231 = vmatprep.subr.mxu0 0.0
    %2232 = vmatpush1.msra.mxu0 0.0
    %2233 = vmatprep.subr.mxu0 0.0
    %2234 = vmatpush1.msra.mxu0 0.0
    %2235 = vmatprep.subr.mxu0 0.0
    %2236 = vmatpush1.msra.mxu0 0.0
    %2237 = vmatprep.subr.mxu0 0.0
    %2238 = vmatpush1.msra.mxu0 0.0
    %2239 = vmatprep.subr.mxu0 0.0
    %2240 = vmatpush1.msra.mxu0 0.0
    %2241 = vmatprep.subr.mxu0 0.0
    %2242 = vmatpush1.msra.mxu0 0.0
    %2243 = vmatprep.subr.mxu0 0.0
    %2244 = vmatpush1.msra.mxu0 0.0
    %2245 = vmatprep.subr.mxu0 0.0
    %2246 = vmatpush1.msra.mxu0 0.0
    %2247 = vmatprep.subr.mxu0 0.0
    %2248 = vmatpush1.msra.mxu0 0.0
    %2249 = vmatprep.subr.mxu0 0.0
    %2250 = vmatpush1.msra.mxu0 0.0
    %2251 = vmatprep.subr.mxu0 0.0
    %2252 = vmatpush1.msra.mxu0 0.0
    %2253 = vmatprep.subr.mxu0 0.0
    %2254 = vmatpush1.msra.mxu0 0.0
    %2255 = vmatprep.subr.mxu0 0.0
    %2256 = vmatpush1.msra.mxu0 0.0
    %2257 = vmatprep.subr.mxu0 0.0
    %2258 = vmatpush1.msra.mxu0 0.0
    %2259 = vmatprep.subr.mxu0 0.0
    %2260 = vmatpush1.msra.mxu0 0.0
    %2261 = vmatprep.subr.mxu0 0.0
    %2262 = vmatpush1.msra.mxu0 0.0
    %2263 = vmatprep.subr.mxu0 0.0
    %2264 = vmatpush1.msra.mxu0 0.0
    %2265 = vmatprep.subr.mxu0 0.0
    %2266 = vmatpush1.msra.mxu0 0.0
    %2267 = vmatprep.subr.mxu0 0.0
    %2268 = vmatpush1.msra.mxu0 0.0
    %2269 = vmatprep.subr.mxu0 0.0
    %2270 = vmatpush1.msra.mxu0 0.0
    %2271 = vmatprep.subr.mxu0 0.0
    %2272 = vmatpush1.msra.mxu0 0.0
    %2273 = vmatprep.mubr.f32.mxu0 0.0
    %2274 = vmatmul.mubr.f32.gmra.mrb[0].mxu0 %v1994
    %v2275 = vpop.f32.mrb[0].mxu0
    %v2276 = vadd.f32 0.0, %v2275
    %v2277 = vpop.f32.mrb[0].mxu0
    %v2278 = vadd.f32 0.0, %v2277
    %2279 = vdwg.mxu0
    %2280 = vmatprep.subr.mxu0 %v507
    %2281 = vmatpush1.msra.mxu0 %v506
    %2282 = vmatprep.subr.mxu0 %v567
    %2283 = vmatpush1.msra.mxu0 %v564
    %2284 = vmatprep.subr.mxu0 0.0
    %2285 = vmatpush1.msra.mxu0 0.0
    %2286 = vmatprep.subr.mxu0 0.0
    %2287 = vmatpush1.msra.mxu0 0.0
    %2288 = vmatprep.subr.mxu0 0.0
    %2289 = vmatpush1.msra.mxu0 0.0
    %2290 = vmatprep.subr.mxu0 0.0
    %2291 = vmatpush1.msra.mxu0 0.0
    %2292 = vmatprep.subr.mxu0 0.0
    %2293 = vmatpush1.msra.mxu0 0.0
    %2294 = vmatprep.subr.mxu0 0.0
    %2295 = vmatpush1.msra.mxu0 0.0
    %2296 = vmatprep.subr.mxu0 0.0
    %2297 = vmatpush1.msra.mxu0 0.0
    %2298 = vmatprep.subr.mxu0 0.0
    %2299 = vmatpush1.msra.mxu0 0.0
    %2300 = vmatprep.subr.mxu0 0.0
    %2301 = vmatpush1.msra.mxu0 0.0
    %2302 = vmatprep.subr.mxu0 0.0
    %2303 = vmatpush1.msra.mxu0 0.0
    %2304 = vmatprep.subr.mxu0 0.0
    %2305 = vmatpush1.msra.mxu0 0.0
    %2306 = vmatprep.subr.mxu0 0.0
    %2307 = vmatpush1.msra.mxu0 0.0
    %2308 = vmatprep.subr.mxu0 0.0
    %2309 = vmatpush1.msra.mxu0 0.0
    %2310 = vmatprep.subr.mxu0 0.0
    %2311 = vmatpush1.msra.mxu0 0.0
    %2312 = vmatprep.subr.mxu0 0.0
    %2313 = vmatpush1.msra.mxu0 0.0
    %2314 = vmatprep.subr.mxu0 0.0
    %2315 = vmatpush1.msra.mxu0 0.0
    %2316 = vmatprep.subr.mxu0 0.0
    %2317 = vmatpush1.msra.mxu0 0.0
    %2318 = vmatprep.subr.mxu0 0.0
    %2319 = vmatpush1.msra.mxu0 0.0
    %2320 = vmatprep.subr.mxu0 0.0
    %2321 = vmatpush1.msra.mxu0 0.0
    %2322 = vmatprep.subr.mxu0 0.0
    %2323 = vmatpush1.msra.mxu0 0.0
    %2324 = vmatprep.subr.mxu0 0.0
    %2325 = vmatpush1.msra.mxu0 0.0
    %2326 = vmatprep.subr.mxu0 0.0
    %2327 = vmatpush1.msra.mxu0 0.0
    %2328 = vmatprep.subr.mxu0 0.0
    %2329 = vmatpush1.msra.mxu0 0.0
    %2330 = vmatprep.subr.mxu0 0.0
    %2331 = vmatpush1.msra.mxu0 0.0
    %2332 = vmatprep.subr.mxu0 0.0
    %2333 = vmatpush1.msra.mxu0 0.0
    %2334 = vmatprep.subr.mxu0 0.0
    %2335 = vmatpush1.msra.mxu0 0.0
    %2336 = vmatprep.subr.mxu0 0.0
    %2337 = vmatpush1.msra.mxu0 0.0
    %2338 = vmatprep.subr.mxu0 0.0
    %2339 = vmatpush1.msra.mxu0 0.0
    %2340 = vmatprep.subr.mxu0 0.0
    %2341 = vmatpush1.msra.mxu0 0.0
    %2342 = vmatprep.subr.mxu0 0.0
    %2343 = vmatpush1.msra.mxu0 0.0
    %2344 = vmatprep.mubr.f32.mxu0 0.0
    %2345 = vmatmul.mubr.f32.gmra.mrb[0].mxu0 %v1994
    %v2346 = vpop.f32.mrb[0].mxu0
    %v2347 = vadd.f32 0.0, %v2346
    %v2348 = vpop.f32.mrb[0].mxu0
    %v2349 = vadd.f32 0.0, %v2348
    %2350 = vdwg.mxu0
    %2351 = vmatprep.subr.mxu0 %v509
    %2352 = vmatpush1.msra.mxu0 %v508
    %2353 = vmatprep.subr.mxu0 %v573
    %2354 = vmatpush1.msra.mxu0 %v570
    %2355 = vmatprep.subr.mxu0 0.0
    %2356 = vmatpush1.msra.mxu0 0.0
    %2357 = vmatprep.subr.mxu0 0.0
    %2358 = vmatpush1.msra.mxu0 0.0
    %2359 = vmatprep.subr.mxu0 0.0
    %2360 = vmatpush1.msra.mxu0 0.0
    %2361 = vmatprep.subr.mxu0 0.0
    %2362 = vmatpush1.msra.mxu0 0.0
    %2363 = vmatprep.subr.mxu0 0.0
    %2364 = vmatpush1.msra.mxu0 0.0
    %2365 = vmatprep.subr.mxu0 0.0
    %2366 = vmatpush1.msra.mxu0 0.0
    %2367 = vmatprep.subr.mxu0 0.0
    %2368 = vmatpush1.msra.mxu0 0.0
    %2369 = vmatprep.subr.mxu0 0.0
    %2370 = vmatpush1.msra.mxu0 0.0
    %2371 = vmatprep.subr.mxu0 0.0
    %2372 = vmatpush1.msra.mxu0 0.0
    %2373 = vmatprep.subr.mxu0 0.0
    %2374 = vmatpush1.msra.mxu0 0.0
    %2375 = vmatprep.subr.mxu0 0.0
    %2376 = vmatpush1.msra.mxu0 0.0
    %2377 = vmatprep.subr.mxu0 0.0
    %2378 = vmatpush1.msra.mxu0 0.0
    %2379 = vmatprep.subr.mxu0 0.0
    %2380 = vmatpush1.msra.mxu0 0.0
    %2381 = vmatprep.subr.mxu0 0.0
    %2382 = vmatpush1.msra.mxu0 0.0
    %2383 = vmatprep.subr.mxu0 0.0
    %2384 = vmatpush1.msra.mxu0 0.0
    %2385 = vmatprep.subr.mxu0 0.0
    %2386 = vmatpush1.msra.mxu0 0.0
    %2387 = vmatprep.subr.mxu0 0.0
    %2388 = vmatpush1.msra.mxu0 0.0
    %2389 = vmatprep.subr.mxu0 0.0
    %2390 = vmatpush1.msra.mxu0 0.0
    %2391 = vmatprep.subr.mxu0 0.0
    %2392 = vmatpush1.msra.mxu0 0.0
    %2393 = vmatprep.subr.mxu0 0.0
    %2394 = vmatpush1.msra.mxu0 0.0
    %2395 = vmatprep.subr.mxu0 0.0
    %2396 = vmatpush1.msra.mxu0 0.0
    %2397 = vmatprep.subr.mxu0 0.0
    %2398 = vmatpush1.msra.mxu0 0.0
    %2399 = vmatprep.subr.mxu0 0.0
    %2400 = vmatpush1.msra.mxu0 0.0
    %2401 = vmatprep.subr.mxu0 0.0
    %2402 = vmatpush1.msra.mxu0 0.0
    %2403 = vmatprep.subr.mxu0 0.0
    %2404 = vmatpush1.msra.mxu0 0.0
    %2405 = vmatprep.subr.mxu0 0.0
    %2406 = vmatpush1.msra.mxu0 0.0
    %2407 = vmatprep.subr.mxu0 0.0
    %2408 = vmatpush1.msra.mxu0 0.0
    %2409 = vmatprep.subr.mxu0 0.0
    %2410 = vmatpush1.msra.mxu0 0.0
    %2411 = vmatprep.subr.mxu0 0.0
    %2412 = vmatpush1.msra.mxu0 0.0
    %2413 = vmatprep.subr.mxu0 0.0
    %2414 = vmatpush1.msra.mxu0 0.0
    %2415 = vmatprep.mubr.f32.mxu0 0.0
    %2416 = vmatmul.mubr.f32.gmra.mrb[0].mxu0 %v1994
    %v2417 = vpop.f32.mrb[0].mxu0
    %v2418 = vadd.f32 0.0, %v2417
    %v2419 = vpop.f32.mrb[0].mxu0
    %v2420 = vadd.f32 0.0, %v2419
    %2421 = vdwg.mxu0
    %2422 = vmatprep.subr.mxu0 %v511
    %2423 = vmatpush1.msra.mxu0 %v510
    %2424 = vmatprep.subr.mxu0 %v579
    %2425 = vmatpush1.msra.mxu0 %v576
    %2426 = vmatprep.subr.mxu0 0.0
    %2427 = vmatpush1.msra.mxu0 0.0
    %2428 = vmatprep.subr.mxu0 0.0
    %2429 = vmatpush1.msra.mxu0 0.0
    %2430 = vmatprep.subr.mxu0 0.0
    %2431 = vmatpush1.msra.mxu0 0.0
    %2432 = vmatprep.subr.mxu0 0.0
    %2433 = vmatpush1.msra.mxu0 0.0
    %2434 = vmatprep.subr.mxu0 0.0
    %2435 = vmatpush1.msra.mxu0 0.0
    %2436 = vmatprep.subr.mxu0 0.0
    %2437 = vmatpush1.msra.mxu0 0.0
    %2438 = vmatprep.subr.mxu0 0.0
    %2439 = vmatpush1.msra.mxu0 0.0
    %2440 = vmatprep.subr.mxu0 0.0
    %2441 = vmatpush1.msra.mxu0 0.0
    %2442 = vmatprep.subr.mxu0 0.0
    %2443 = vmatpush1.msra.mxu0 0.0
    %2444 = vmatprep.subr.mxu0 0.0
    %2445 = vmatpush1.msra.mxu0 0.0
    %2446 = vmatprep.subr.mxu0 0.0
    %2447 = vmatpush1.msra.mxu0 0.0
    %2448 = vmatprep.subr.mxu0 0.0
    %2449 = vmatpush1.msra.mxu0 0.0
    %2450 = vmatprep.subr.mxu0 0.0
    %2451 = vmatpush1.msra.mxu0 0.0
    %2452 = vmatprep.subr.mxu0 0.0
    %2453 = vmatpush1.msra.mxu0 0.0
    %2454 = vmatprep.subr.mxu0 0.0
    %2455 = vmatpush1.msra.mxu0 0.0
    %2456 = vmatprep.subr.mxu0 0.0
    %2457 = vmatpush1.msra.mxu0 0.0
    %2458 = vmatprep.subr.mxu0 0.0
    %2459 = vmatpush1.msra.mxu0 0.0
    %2460 = vmatprep.subr.mxu0 0.0
    %2461 = vmatpush1.msra.mxu0 0.0
    %2462 = vmatprep.subr.mxu0 0.0
    %2463 = vmatpush1.msra.mxu0 0.0
    %2464 = vmatprep.subr.mxu0 0.0
    %2465 = vmatpush1.msra.mxu0 0.0
    %2466 = vmatprep.subr.mxu0 0.0
    %2467 = vmatpush1.msra.mxu0 0.0
    %2468 = vmatprep.subr.mxu0 0.0
    %2469 = vmatpush1.msra.mxu0 0.0
    %2470 = vmatprep.subr.mxu0 0.0
    %2471 = vmatpush1.msra.mxu0 0.0
    %2472 = vmatprep.subr.mxu0 0.0
    %2473 = vmatpush1.msra.mxu0 0.0
    %2474 = vmatprep.subr.mxu0 0.0
    %2475 = vmatpush1.msra.mxu0 0.0
    %2476 = vmatprep.subr.mxu0 0.0
    %2477 = vmatpush1.msra.mxu0 0.0
    %2478 = vmatprep.subr.mxu0 0.0
    %2479 = vmatpush1.msra.mxu0 0.0
    %2480 = vmatprep.subr.mxu0 0.0
    %2481 = vmatpush1.msra.mxu0 0.0
    %2482 = vmatprep.subr.mxu0 0.0
    %2483 = vmatpush1.msra.mxu0 0.0
    %2484 = vmatprep.subr.mxu0 0.0
    %2485 = vmatpush1.msra.mxu0 0.0
    %2486 = vmatprep.mubr.f32.mxu0 0.0
    %2487 = vmatmul.mubr.f32.gmra.mrb[0].mxu0 %v1994
    %v2488 = vpop.f32.mrb[0].mxu0
    %v2489 = vadd.f32 0.0, %v2488
    %v2490 = vpop.f32.mrb[0].mxu0
    %v2491 = vadd.f32 0.0, %v2490
    %2492 = vdwg.mxu0
    %2493 = vmatprep.subr.mxu0 %v513
    %2494 = vmatpush1.msra.mxu0 %v512
    %2495 = vmatprep.subr.mxu0 %v585
    %2496 = vmatpush1.msra.mxu0 %v582
    %2497 = vmatprep.subr.mxu0 0.0
    %2498 = vmatpush1.msra.mxu0 0.0
    %2499 = vmatprep.subr.mxu0 0.0
    %2500 = vmatpush1.msra.mxu0 0.0
    %2501 = vmatprep.subr.mxu0 0.0
    %2502 = vmatpush1.msra.mxu0 0.0
    %2503 = vmatprep.subr.mxu0 0.0
    %2504 = vmatpush1.msra.mxu0 0.0
    %2505 = vmatprep.subr.mxu0 0.0
    %2506 = vmatpush1.msra.mxu0 0.0
    %2507 = vmatprep.subr.mxu0 0.0
    %2508 = vmatpush1.msra.mxu0 0.0
    %2509 = vmatprep.subr.mxu0 0.0
    %2510 = vmatpush1.msra.mxu0 0.0
    %2511 = vmatprep.subr.mxu0 0.0
    %2512 = vmatpush1.msra.mxu0 0.0
    %2513 = vmatprep.subr.mxu0 0.0
    %2514 = vmatpush1.msra.mxu0 0.0
    %2515 = vmatprep.subr.mxu0 0.0
    %2516 = vmatpush1.msra.mxu0 0.0
    %2517 = vmatprep.subr.mxu0 0.0
    %2518 = vmatpush1.msra.mxu0 0.0
    %2519 = vmatprep.subr.mxu0 0.0
    %2520 = vmatpush1.msra.mxu0 0.0
    %2521 = vmatprep.subr.mxu0 0.0
    %2522 = vmatpush1.msra.mxu0 0.0
    %2523 = vmatprep.subr.mxu0 0.0
    %2524 = vmatpush1.msra.mxu0 0.0
    %2525 = vmatprep.subr.mxu0 0.0
    %2526 = vmatpush1.msra.mxu0 0.0
    %2527 = vmatprep.subr.mxu0 0.0
    %2528 = vmatpush1.msra.mxu0 0.0
    %2529 = vmatprep.subr.mxu0 0.0
    %2530 = vmatpush1.msra.mxu0 0.0
    %2531 = vmatprep.subr.mxu0 0.0
    %2532 = vmatpush1.msra.mxu0 0.0
    %2533 = vmatprep.subr.mxu0 0.0
    %2534 = vmatpush1.msra.mxu0 0.0
    %2535 = vmatprep.subr.mxu0 0.0
    %2536 = vmatpush1.msra.mxu0 0.0
    %2537 = vmatprep.subr.mxu0 0.0
    %2538 = vmatpush1.msra.mxu0 0.0
    %2539 = vmatprep.subr.mxu0 0.0
    %2540 = vmatpush1.msra.mxu0 0.0
    %2541 = vmatprep.subr.mxu0 0.0
    %2542 = vmatpush1.msra.mxu0 0.0
    %2543 = vmatprep.subr.mxu0 0.0
    %2544 = vmatpush1.msra.mxu0 0.0
    %2545 = vmatprep.subr.mxu0 0.0
    %2546 = vmatpush1.msra.mxu0 0.0
    %2547 = vmatprep.subr.mxu0 0.0
    %2548 = vmatpush1.msra.mxu0 0.0
    %2549 = vmatprep.subr.mxu0 0.0
    %2550 = vmatpush1.msra.mxu0 0.0
    %2551 = vmatprep.subr.mxu0 0.0
    %2552 = vmatpush1.msra.mxu0 0.0
    %2553 = vmatprep.subr.mxu0 0.0
    %2554 = vmatpush1.msra.mxu0 0.0
    %2555 = vmatprep.subr.mxu0 0.0
    %2556 = vmatpush1.msra.mxu0 0.0
    %2557 = vmatprep.mubr.f32.mxu0 0.0
    %2558 = vmatmul.mubr.f32.gmra.mrb[0].mxu0 %v1994
    %v2559 = vpop.f32.mrb[0].mxu0
    %v2560 = vadd.f32 0.0, %v2559
    %v2561 = vpop.f32.mrb[0].mxu0
    %v2562 = vadd.f32 0.0, %v2561
    %2563 = vdwg.mxu0
    %2564 = vmatprep.subr.mxu0 %v515
    %2565 = vmatpush1.msra.mxu0 %v514
    %2566 = vmatprep.subr.mxu0 %v591
    %2567 = vmatpush1.msra.mxu0 %v588
    %2568 = vmatprep.subr.mxu0 0.0
    %2569 = vmatpush1.msra.mxu0 0.0
    %2570 = vmatprep.subr.mxu0 0.0
    %2571 = vmatpush1.msra.mxu0 0.0
    %2572 = vmatprep.subr.mxu0 0.0
    %2573 = vmatpush1.msra.mxu0 0.0
    %2574 = vmatprep.subr.mxu0 0.0
    %2575 = vmatpush1.msra.mxu0 0.0
    %2576 = vmatprep.subr.mxu0 0.0
    %2577 = vmatpush1.msra.mxu0 0.0
    %2578 = vmatprep.subr.mxu0 0.0
    %2579 = vmatpush1.msra.mxu0 0.0
    %2580 = vmatprep.subr.mxu0 0.0
    %2581 = vmatpush1.msra.mxu0 0.0
    %2582 = vmatprep.subr.mxu0 0.0
    %2583 = vmatpush1.msra.mxu0 0.0
    %2584 = vmatprep.subr.mxu0 0.0
    %2585 = vmatpush1.msra.mxu0 0.0
    %2586 = vmatprep.subr.mxu0 0.0
    %2587 = vmatpush1.msra.mxu0 0.0
    %2588 = vmatprep.subr.mxu0 0.0
    %2589 = vmatpush1.msra.mxu0 0.0
    %2590 = vmatprep.subr.mxu0 0.0
    %2591 = vmatpush1.msra.mxu0 0.0
    %2592 = vmatprep.subr.mxu0 0.0
    %2593 = vmatpush1.msra.mxu0 0.0
    %2594 = vmatprep.subr.mxu0 0.0
    %2595 = vmatpush1.msra.mxu0 0.0
    %2596 = vmatprep.subr.mxu0 0.0
    %2597 = vmatpush1.msra.mxu0 0.0
    %2598 = vmatprep.subr.mxu0 0.0
    %2599 = vmatpush1.msra.mxu0 0.0
    %2600 = vmatprep.subr.mxu0 0.0
    %2601 = vmatpush1.msra.mxu0 0.0
    %2602 = vmatprep.subr.mxu0 0.0
    %2603 = vmatpush1.msra.mxu0 0.0
    %2604 = vmatprep.subr.mxu0 0.0
    %2605 = vmatpush1.msra.mxu0 0.0
    %2606 = vmatprep.subr.mxu0 0.0
    %2607 = vmatpush1.msra.mxu0 0.0
    %2608 = vmatprep.subr.mxu0 0.0
    %2609 = vmatpush1.msra.mxu0 0.0
    %2610 = vmatprep.subr.mxu0 0.0
    %2611 = vmatpush1.msra.mxu0 0.0
    %2612 = vmatprep.subr.mxu0 0.0
    %2613 = vmatpush1.msra.mxu0 0.0
    %2614 = vmatprep.subr.mxu0 0.0
    %2615 = vmatpush1.msra.mxu0 0.0
    %2616 = vmatprep.subr.mxu0 0.0
    %2617 = vmatpush1.msra.mxu0 0.0
    %2618 = vmatprep.subr.mxu0 0.0
    %2619 = vmatpush1.msra.mxu0 0.0
    %2620 = vmatprep.subr.mxu0 0.0
    %2621 = vmatpush1.msra.mxu0 0.0
    %2622 = vmatprep.subr.mxu0 0.0
    %2623 = vmatpush1.msra.mxu0 0.0
    %2624 = vmatprep.subr.mxu0 0.0
    %2625 = vmatpush1.msra.mxu0 0.0
    %2626 = vmatprep.subr.mxu0 0.0
    %2627 = vmatpush1.msra.mxu0 0.0
    %2628 = vmatprep.mubr.f32.mxu0 0.0
    %2629 = vmatmul.mubr.f32.gmra.mrb[0].mxu0 %v1994
    %v2630 = vpop.f32.mrb[0].mxu0
    %v2631 = vadd.f32 0.0, %v2630
    %v2632 = vpop.f32.mrb[0].mxu0
    %v2633 = vadd.f32 0.0, %v2632
    %2634 = vdwg.mxu0
    %2644 = vrot.lane.b32.xlu0 %v2063, 126
    %v2645 = vpop.permute.xlu0 %2644
    %2646 = vrot.lane.b32.xlu0 %v2065, 126
    %v2647 = vpop.permute.xlu0 %2646
    %2648 = vrot.lane.b32.xlu0 %v2134, 126
    %v2649 = vpop.permute.xlu0 %2648
    %2650 = vrot.lane.b32.xlu0 %v2136, 126
    %v2651 = vpop.permute.xlu0 %2650
    %2652 = vrot.lane.b32.xlu0 %v2205, 126
    %v2653 = vpop.permute.xlu0 %2652
    %2654 = vrot.lane.b32.xlu0 %v2207, 126
    %v2655 = vpop.permute.xlu0 %2654
    %2656 = vrot.lane.b32.xlu0 %v2276, 126
    %v2657 = vpop.permute.xlu0 %2656
    %2658 = vrot.lane.b32.xlu0 %v2278, 126
    %v2659 = vpop.permute.xlu0 %2658
    %2660 = vrot.lane.b32.xlu0 %v2347, 126
    %v2661 = vpop.permute.xlu0 %2660
    %vm2662 = vcmask 1031168
    %v2663 = vsel %vm2662, %v2645, %v2647
    %v2664 = vsel %vm2662, %v2647, %v2649
    %v2665 = vsel %vm2662, %v2649, %v2651
    %v2666 = vsel %vm2662, %v2651, %v2653
    %v2667 = vsel %vm2662, %v2653, %v2655
    %v2668 = vsel %vm2662, %v2655, %v2657
    %v2669 = vsel %vm2662, %v2657, %v2659
    %v2670 = vsel %vm2662, %v2659, %v2661
    %v2679 = vadd.f32 %v1933, %v2663
    %v2680 = vadd.f32 %v1934, %v2664
    %v2681 = vadd.f32 %v1935, %v2665
    %v2682 = vadd.f32 %v1936, %v2666
    %v2683 = vadd.f32 %v1937, %v2667
    %v2684 = vadd.f32 %v1938, %v2668
    %v2685 = vadd.f32 %v1939, %v2669
    %v2686 = vadd.f32 %v1940, %v2670
    %2696 = vrot.lane.b32.xlu0 %v2349, 126
    %v2697 = vpop.permute.xlu0 %2696
    %2698 = vrot.lane.b32.xlu0 %v2418, 126
    %v2699 = vpop.permute.xlu0 %2698
    %2700 = vrot.lane.b32.xlu0 %v2420, 126
    %v2701 = vpop.permute.xlu0 %2700
    %2702 = vrot.lane.b32.xlu0 %v2489, 126
    %v2703 = vpop.permute.xlu0 %2702
    %2704 = vrot.lane.b32.xlu0 %v2491, 126
    %v2705 = vpop.permute.xlu0 %2704
    %2706 = vrot.lane.b32.xlu0 %v2560, 126
    %v2707 = vpop.permute.xlu0 %2706
    %2708 = vrot.lane.b32.xlu0 %v2562, 126
    %v2709 = vpop.permute.xlu0 %2708
    %2710 = vrot.lane.b32.xlu0 %v2631, 126
    %v2711 = vpop.permute.xlu0 %2710
    %2712 = vrot.lane.b32.xlu0 %v2633, 126
    %v2713 = vpop.permute.xlu0 %2712
    %v2714 = vsel %vm2662, %v2697, %v2699
    %v2715 = vsel %vm2662, %v2699, %v2701
    %v2716 = vsel %vm2662, %v2701, %v2703
    %v2717 = vsel %vm2662, %v2703, %v2705
    %v2718 = vsel %vm2662, %v2705, %v2707
    %v2719 = vsel %vm2662, %v2707, %v2709
    %v2720 = vsel %vm2662, %v2709, %v2711
    %v2721 = vsel %vm2662, %v2711, %v2713
    %v2730 = vadd.f32 %v1984, %v2714
    %v2731 = vadd.f32 %v1985, %v2715
    %v2732 = vadd.f32 %v1986, %v2716
    %v2733 = vadd.f32 %v1987, %v2717
    %v2734 = vadd.f32 %v1988, %v2718
    %v2735 = vadd.f32 %v1989, %v2719
    %v2736 = vadd.f32 %v1990, %v2720
    %v2737 = vadd.f32 %v1991, %v2721
    %2738 = vrot.lane.b32.xlu0 %v497, 83
    %v2739 = vpop.permute.xlu0 %2738
    %v2740 = vsel %vm534, %v2739, 0
    %2742 = vmatprep.subr.mxu0 %v499
    %2743 = vmatpush1.msra.mxu0 %v498
    %2744 = vmatprep.subr.mxu0 %v543
    %2745 = vmatpush1.msra.mxu0 %v540
    %2746 = vmatprep.subr.mxu0 0.0
    %2747 = vmatpush1.msra.mxu0 0.0
    %2748 = vmatprep.subr.mxu0 0.0
    %2749 = vmatpush1.msra.mxu0 0.0
    %2750 = vmatprep.subr.mxu0 0.0
    %2751 = vmatpush1.msra.mxu0 0.0
    %2752 = vmatprep.subr.mxu0 0.0
    %2753 = vmatpush1.msra.mxu0 0.0
    %2754 = vmatprep.subr.mxu0 0.0
    %2755 = vmatpush1.msra.mxu0 0.0
    %2756 = vmatprep.subr.mxu0 0.0
    %2757 = vmatpush1.msra.mxu0 0.0
    %2758 = vmatprep.subr.mxu0 0.0
    %2759 = vmatpush1.msra.mxu0 0.0
    %2760 = vmatprep.subr.mxu0 0.0
    %2761 = vmatpush1.msra.mxu0 0.0
    %2762 = vmatprep.subr.mxu0 0.0
    %2763 = vmatpush1.msra.mxu0 0.0
    %2764 = vmatprep.subr.mxu0 0.0
    %2765 = vmatpush1.msra.mxu0 0.0
    %2766 = vmatprep.subr.mxu0 0.0
    %2767 = vmatpush1.msra.mxu0 0.0
    %2768 = vmatprep.subr.mxu0 0.0
    %2769 = vmatpush1.msra.mxu0 0.0
    %2770 = vmatprep.subr.mxu0 0.0
    %2771 = vmatpush1.msra.mxu0 0.0
    %2772 = vmatprep.subr.mxu0 0.0
    %2773 = vmatpush1.msra.mxu0 0.0
    %2774 = vmatprep.subr.mxu0 0.0
    %2775 = vmatpush1.msra.mxu0 0.0
    %2776 = vmatprep.subr.mxu0 0.0
    %2777 = vmatpush1.msra.mxu0 0.0
    %2778 = vmatprep.subr.mxu0 0.0
    %2779 = vmatpush1.msra.mxu0 0.0
    %2780 = vmatprep.subr.mxu0 0.0
    %2781 = vmatpush1.msra.mxu0 0.0
    %2782 = vmatprep.subr.mxu0 0.0
    %2783 = vmatpush1.msra.mxu0 0.0
    %2784 = vmatprep.subr.mxu0 0.0
    %2785 = vmatpush1.msra.mxu0 0.0
    %2786 = vmatprep.subr.mxu0 0.0
    %2787 = vmatpush1.msra.mxu0 0.0
    %2788 = vmatprep.subr.mxu0 0.0
    %2789 = vmatpush1.msra.mxu0 0.0
    %2790 = vmatprep.subr.mxu0 0.0
    %2791 = vmatpush1.msra.mxu0 0.0
    %2792 = vmatprep.subr.mxu0 0.0
    %2793 = vmatpush1.msra.mxu0 0.0
    %2794 = vmatprep.subr.mxu0 0.0
    %2795 = vmatpush1.msra.mxu0 0.0
    %2796 = vmatprep.subr.mxu0 0.0
    %2797 = vmatpush1.msra.mxu0 0.0
    %2798 = vmatprep.subr.mxu0 0.0
    %2799 = vmatpush1.msra.mxu0 0.0
    %2800 = vmatprep.subr.mxu0 0.0
    %2801 = vmatpush1.msra.mxu0 0.0
    %2802 = vmatprep.subr.mxu0 0.0
    %2803 = vmatpush1.msra.mxu0 0.0
    %2804 = vmatprep.subr.mxu0 0.0
    %2805 = vmatpush1.msra.mxu0 0.0
    %2806 = vmatprep.mubr.f32.mxu0 0.0
    %2807 = vmatmul.mubr.f32.gmra.mrb[0].mxu0 %v2740
    %v2808 = vpop.f32.mrb[0].mxu0
    %v2809 = vadd.f32 0.0, %v2808
    %v2810 = vpop.f32.mrb[0].mxu0
    %v2811 = vadd.f32 0.0, %v2810
    %2812 = vdwg.mxu0
    %2813 = vmatprep.subr.mxu0 %v501
    %2814 = vmatpush1.msra.mxu0 %v500
    %2815 = vmatprep.subr.mxu0 %v549
    %2816 = vmatpush1.msra.mxu0 %v546
    %2817 = vmatprep.subr.mxu0 0.0
    %2818 = vmatpush1.msra.mxu0 0.0
    %2819 = vmatprep.subr.mxu0 0.0
    %2820 = vmatpush1.msra.mxu0 0.0
    %2821 = vmatprep.subr.mxu0 0.0
    %2822 = vmatpush1.msra.mxu0 0.0
    %2823 = vmatprep.subr.mxu0 0.0
    %2824 = vmatpush1.msra.mxu0 0.0
    %2825 = vmatprep.subr.mxu0 0.0
    %2826 = vmatpush1.msra.mxu0 0.0
    %2827 = vmatprep.subr.mxu0 0.0
    %2828 = vmatpush1.msra.mxu0 0.0
    %2829 = vmatprep.subr.mxu0 0.0
    %2830 = vmatpush1.msra.mxu0 0.0
    %2831 = vmatprep.subr.mxu0 0.0
    %2832 = vmatpush1.msra.mxu0 0.0
    %2833 = vmatprep.subr.mxu0 0.0
    %2834 = vmatpush1.msra.mxu0 0.0
    %2835 = vmatprep.subr.mxu0 0.0
    %2836 = vmatpush1.msra.mxu0 0.0
    %2837 = vmatprep.subr.mxu0 0.0
    %2838 = vmatpush1.msra.mxu0 0.0
    %2839 = vmatprep.subr.mxu0 0.0
    %2840 = vmatpush1.msra.mxu0 0.0
    %2841 = vmatprep.subr.mxu0 0.0
    %2842 = vmatpush1.msra.mxu0 0.0
    %2843 = vmatprep.subr.mxu0 0.0
    %2844 = vmatpush1.msra.mxu0 0.0
    %2845 = vmatprep.subr.mxu0 0.0
    %2846 = vmatpush1.msra.mxu0 0.0
    %2847 = vmatprep.subr.mxu0 0.0
    %2848 = vmatpush1.msra.mxu0 0.0
    %2849 = vmatprep.subr.mxu0 0.0
    %2850 = vmatpush1.msra.mxu0 0.0
    %2851 = vmatprep.subr.mxu0 0.0
    %2852 = vmatpush1.msra.mxu0 0.0
    %2853 = vmatprep.subr.mxu0 0.0
    %2854 = vmatpush1.msra.mxu0 0.0
    %2855 = vmatprep.subr.mxu0 0.0
    %2856 = vmatpush1.msra.mxu0 0.0
    %2857 = vmatprep.subr.mxu0 0.0
    %2858 = vmatpush1.msra.mxu0 0.0
    %2859 = vmatprep.subr.mxu0 0.0
    %2860 = vmatpush1.msra.mxu0 0.0
    %2861 = vmatprep.subr.mxu0 0.0
    %2862 = vmatpush1.msra.mxu0 0.0
    %2863 = vmatprep.subr.mxu0 0.0
    %2864 = vmatpush1.msra.mxu0 0.0
    %2865 = vmatprep.subr.mxu0 0.0
    %2866 = vmatpush1.msra.mxu0 0.0
    %2867 = vmatprep.subr.mxu0 0.0
    %2868 = vmatpush1.msra.mxu0 0.0
    %2869 = vmatprep.subr.mxu0 0.0
    %2870 = vmatpush1.msra.mxu0 0.0
    %2871 = vmatprep.subr.mxu0 0.0
    %2872 = vmatpush1.msra.mxu0 0.0
    %2873 = vmatprep.subr.mxu0 0.0
    %2874 = vmatpush1.msra.mxu0 0.0
    %2875 = vmatprep.subr.mxu0 0.0
    %2876 = vmatpush1.msra.mxu0 0.0
    %2877 = vmatprep.mubr.f32.mxu0 0.0
    %2878 = vmatmul.mubr.f32.gmra.mrb[0].mxu0 %v2740
    %v2879 = vpop.f32.mrb[0].mxu0
    %v2880 = vadd.f32 0.0, %v2879
    %v2881 = vpop.f32.mrb[0].mxu0
    %v2882 = vadd.f32 0.0, %v2881
    %2883 = vdwg.mxu0
    %2884 = vmatprep.subr.mxu0 %v503
    %2885 = vmatpush1.msra.mxu0 %v502
    %2886 = vmatprep.subr.mxu0 %v555
    %2887 = vmatpush1.msra.mxu0 %v552
    %2888 = vmatprep.subr.mxu0 0.0
    %2889 = vmatpush1.msra.mxu0 0.0
    %2890 = vmatprep.subr.mxu0 0.0
    %2891 = vmatpush1.msra.mxu0 0.0
    %2892 = vmatprep.subr.mxu0 0.0
    %2893 = vmatpush1.msra.mxu0 0.0
    %2894 = vmatprep.subr.mxu0 0.0
    %2895 = vmatpush1.msra.mxu0 0.0
    %2896 = vmatprep.subr.mxu0 0.0
    %2897 = vmatpush1.msra.mxu0 0.0
    %2898 = vmatprep.subr.mxu0 0.0
    %2899 = vmatpush1.msra.mxu0 0.0
    %2900 = vmatprep.subr.mxu0 0.0
    %2901 = vmatpush1.msra.mxu0 0.0
    %2902 = vmatprep.subr.mxu0 0.0
    %2903 = vmatpush1.msra.mxu0 0.0
    %2904 = vmatprep.subr.mxu0 0.0
    %2905 = vmatpush1.msra.mxu0 0.0
    %2906 = vmatprep.subr.mxu0 0.0
    %2907 = vmatpush1.msra.mxu0 0.0
    %2908 = vmatprep.subr.mxu0 0.0
    %2909 = vmatpush1.msra.mxu0 0.0
    %2910 = vmatprep.subr.mxu0 0.0
    %2911 = vmatpush1.msra.mxu0 0.0
    %2912 = vmatprep.subr.mxu0 0.0
    %2913 = vmatpush1.msra.mxu0 0.0
    %2914 = vmatprep.subr.mxu0 0.0
    %2915 = vmatpush1.msra.mxu0 0.0
    %2916 = vmatprep.subr.mxu0 0.0
    %2917 = vmatpush1.msra.mxu0 0.0
    %2918 = vmatprep.subr.mxu0 0.0
    %2919 = vmatpush1.msra.mxu0 0.0
    %2920 = vmatprep.subr.mxu0 0.0
    %2921 = vmatpush1.msra.mxu0 0.0
    %2922 = vmatprep.subr.mxu0 0.0
    %2923 = vmatpush1.msra.mxu0 0.0
    %2924 = vmatprep.subr.mxu0 0.0
    %2925 = vmatpush1.msra.mxu0 0.0
    %2926 = vmatprep.subr.mxu0 0.0
    %2927 = vmatpush1.msra.mxu0 0.0
    %2928 = vmatprep.subr.mxu0 0.0
    %2929 = vmatpush1.msra.mxu0 0.0
    %2930 = vmatprep.subr.mxu0 0.0
    %2931 = vmatpush1.msra.mxu0 0.0
    %2932 = vmatprep.subr.mxu0 0.0
    %2933 = vmatpush1.msra.mxu0 0.0
    %2934 = vmatprep.subr.mxu0 0.0
    %2935 = vmatpush1.msra.mxu0 0.0
    %2936 = vmatprep.subr.mxu0 0.0
    %2937 = vmatpush1.msra.mxu0 0.0
    %2938 = vmatprep.subr.mxu0 0.0
    %2939 = vmatpush1.msra.mxu0 0.0
    %2940 = vmatprep.subr.mxu0 0.0
    %2941 = vmatpush1.msra.mxu0 0.0
    %2942 = vmatprep.subr.mxu0 0.0
    %2943 = vmatpush1.msra.mxu0 0.0
    %2944 = vmatprep.subr.mxu0 0.0
    %2945 = vmatpush1.msra.mxu0 0.0
    %2946 = vmatprep.subr.mxu0 0.0
    %2947 = vmatpush1.msra.mxu0 0.0
    %2948 = vmatprep.mubr.f32.mxu0 0.0
    %2949 = vmatmul.mubr.f32.gmra.mrb[0].mxu0 %v2740
    %v2950 = vpop.f32.mrb[0].mxu0
    %v2951 = vadd.f32 0.0, %v2950
    %v2952 = vpop.f32.mrb[0].mxu0
    %v2953 = vadd.f32 0.0, %v2952
    %2954 = vdwg.mxu0
    %2955 = vmatprep.subr.mxu0 %v505
    %2956 = vmatpush1.msra.mxu0 %v504
    %2957 = vmatprep.subr.mxu0 %v561
    %2958 = vmatpush1.msra.mxu0 %v558
    %2959 = vmatprep.subr.mxu0 0.0
    %2960 = vmatpush1.msra.mxu0 0.0
    %2961 = vmatprep.subr.mxu0 0.0
    %2962 = vmatpush1.msra.mxu0 0.0
    %2963 = vmatprep.subr.mxu0 0.0
    %2964 = vmatpush1.msra.mxu0 0.0
    %2965 = vmatprep.subr.mxu0 0.0
    %2966 = vmatpush1.msra.mxu0 0.0
    %2967 = vmatprep.subr.mxu0 0.0
    %2968 = vmatpush1.msra.mxu0 0.0
    %2969 = vmatprep.subr.mxu0 0.0
    %2970 = vmatpush1.msra.mxu0 0.0
    %2971 = vmatprep.subr.mxu0 0.0
    %2972 = vmatpush1.msra.mxu0 0.0
    %2973 = vmatprep.subr.mxu0 0.0
    %2974 = vmatpush1.msra.mxu0 0.0
    %2975 = vmatprep.subr.mxu0 0.0
    %2976 = vmatpush1.msra.mxu0 0.0
    %2977 = vmatprep.subr.mxu0 0.0
    %2978 = vmatpush1.msra.mxu0 0.0
    %2979 = vmatprep.subr.mxu0 0.0
    %2980 = vmatpush1.msra.mxu0 0.0
    %2981 = vmatprep.subr.mxu0 0.0
    %2982 = vmatpush1.msra.mxu0 0.0
    %2983 = vmatprep.subr.mxu0 0.0
    %2984 = vmatpush1.msra.mxu0 0.0
    %2985 = vmatprep.subr.mxu0 0.0
    %2986 = vmatpush1.msra.mxu0 0.0
    %2987 = vmatprep.subr.mxu0 0.0
    %2988 = vmatpush1.msra.mxu0 0.0
    %2989 = vmatprep.subr.mxu0 0.0
    %2990 = vmatpush1.msra.mxu0 0.0
    %2991 = vmatprep.subr.mxu0 0.0
    %2992 = vmatpush1.msra.mxu0 0.0
    %2993 = vmatprep.subr.mxu0 0.0
    %2994 = vmatpush1.msra.mxu0 0.0
    %2995 = vmatprep.subr.mxu0 0.0
    %2996 = vmatpush1.msra.mxu0 0.0
    %2997 = vmatprep.subr.mxu0 0.0
    %2998 = vmatpush1.msra.mxu0 0.0
    %2999 = vmatprep.subr.mxu0 0.0
    %3000 = vmatpush1.msra.mxu0 0.0
    %3001 = vmatprep.subr.mxu0 0.0
    %3002 = vmatpush1.msra.mxu0 0.0
    %3003 = vmatprep.subr.mxu0 0.0
    %3004 = vmatpush1.msra.mxu0 0.0
    %3005 = vmatprep.subr.mxu0 0.0
    %3006 = vmatpush1.msra.mxu0 0.0
    %3007 = vmatprep.subr.mxu0 0.0
    %3008 = vmatpush1.msra.mxu0 0.0
    %3009 = vmatprep.subr.mxu0 0.0
    %3010 = vmatpush1.msra.mxu0 0.0
    %3011 = vmatprep.subr.mxu0 0.0
    %3012 = vmatpush1.msra.mxu0 0.0
    %3013 = vmatprep.subr.mxu0 0.0
    %3014 = vmatpush1.msra.mxu0 0.0
    %3015 = vmatprep.subr.mxu0 0.0
    %3016 = vmatpush1.msra.mxu0 0.0
    %3017 = vmatprep.subr.mxu0 0.0
    %3018 = vmatpush1.msra.mxu0 0.0
    %3019 = vmatprep.mubr.f32.mxu0 0.0
    %3020 = vmatmul.mubr.f32.gmra.mrb[0].mxu0 %v2740
    %v3021 = vpop.f32.mrb[0].mxu0
    %v3022 = vadd.f32 0.0, %v3021
    %v3023 = vpop.f32.mrb[0].mxu0
    %v3024 = vadd.f32 0.0, %v3023
    %3025 = vdwg.mxu0
    %3026 = vmatprep.subr.mxu0 %v507
    %3027 = vmatpush1.msra.mxu0 %v506
    %3028 = vmatprep.subr.mxu0 %v567
    %3029 = vmatpush1.msra.mxu0 %v564
    %3030 = vmatprep.subr.mxu0 0.0
    %3031 = vmatpush1.msra.mxu0 0.0
    %3032 = vmatprep.subr.mxu0 0.0
    %3033 = vmatpush1.msra.mxu0 0.0
    %3034 = vmatprep.subr.mxu0 0.0
    %3035 = vmatpush1.msra.mxu0 0.0
    %3036 = vmatprep.subr.mxu0 0.0
    %3037 = vmatpush1.msra.mxu0 0.0
    %3038 = vmatprep.subr.mxu0 0.0
    %3039 = vmatpush1.msra.mxu0 0.0
    %3040 = vmatprep.subr.mxu0 0.0
    %3041 = vmatpush1.msra.mxu0 0.0
    %3042 = vmatprep.subr.mxu0 0.0
    %3043 = vmatpush1.msra.mxu0 0.0
    %3044 = vmatprep.subr.mxu0 0.0
    %3045 = vmatpush1.msra.mxu0 0.0
    %3046 = vmatprep.subr.mxu0 0.0
    %3047 = vmatpush1.msra.mxu0 0.0
    %3048 = vmatprep.subr.mxu0 0.0
    %3049 = vmatpush1.msra.mxu0 0.0
    %3050 = vmatprep.subr.mxu0 0.0
    %3051 = vmatpush1.msra.mxu0 0.0
    %3052 = vmatprep.subr.mxu0 0.0
    %3053 = vmatpush1.msra.mxu0 0.0
    %3054 = vmatprep.subr.mxu0 0.0
    %3055 = vmatpush1.msra.mxu0 0.0
    %3056 = vmatprep.subr.mxu0 0.0
    %3057 = vmatpush1.msra.mxu0 0.0
    %3058 = vmatprep.subr.mxu0 0.0
    %3059 = vmatpush1.msra.mxu0 0.0
    %3060 = vmatprep.subr.mxu0 0.0
    %3061 = vmatpush1.msra.mxu0 0.0
    %3062 = vmatprep.subr.mxu0 0.0
    %3063 = vmatpush1.msra.mxu0 0.0
    %3064 = vmatprep.subr.mxu0 0.0
    %3065 = vmatpush1.msra.mxu0 0.0
    %3066 = vmatprep.subr.mxu0 0.0
    %3067 = vmatpush1.msra.mxu0 0.0
    %3068 = vmatprep.subr.mxu0 0.0
    %3069 = vmatpush1.msra.mxu0 0.0
    %3070 = vmatprep.subr.mxu0 0.0
    %3071 = vmatpush1.msra.mxu0 0.0
    %3072 = vmatprep.subr.mxu0 0.0
    %3073 = vmatpush1.msra.mxu0 0.0
    %3074 = vmatprep.subr.mxu0 0.0
    %3075 = vmatpush1.msra.mxu0 0.0
    %3076 = vmatprep.subr.mxu0 0.0
    %3077 = vmatpush1.msra.mxu0 0.0
    %3078 = vmatprep.subr.mxu0 0.0
    %3079 = vmatpush1.msra.mxu0 0.0
    %3080 = vmatprep.subr.mxu0 0.0
    %3081 = vmatpush1.msra.mxu0 0.0
    %3082 = vmatprep.subr.mxu0 0.0
    %3083 = vmatpush1.msra.mxu0 0.0
    %3084 = vmatprep.subr.mxu0 0.0
    %3085 = vmatpush1.msra.mxu0 0.0
    %3086 = vmatprep.subr.mxu0 0.0
    %3087 = vmatpush1.msra.mxu0 0.0
    %3088 = vmatprep.subr.mxu0 0.0
    %3089 = vmatpush1.msra.mxu0 0.0
    %3090 = vmatprep.mubr.f32.mxu0 0.0
    %3091 = vmatmul.mubr.f32.gmra.mrb[0].mxu0 %v2740
    %v3092 = vpop.f32.mrb[0].mxu0
    %v3093 = vadd.f32 0.0, %v3092
    %v3094 = vpop.f32.mrb[0].mxu0
    %v3095 = vadd.f32 0.0, %v3094
    %3096 = vdwg.mxu0
    %3097 = vmatprep.subr.mxu0 %v509
    %3098 = vmatpush1.msra.mxu0 %v508
    %3099 = vmatprep.subr.mxu0 %v573
    %3100 = vmatpush1.msra.mxu0 %v570
    %3101 = vmatprep.subr.mxu0 0.0
    %3102 = vmatpush1.msra.mxu0 0.0
    %3103 = vmatprep.subr.mxu0 0.0
    %3104 = vmatpush1.msra.mxu0 0.0
    %3105 = vmatprep.subr.mxu0 0.0
    %3106 = vmatpush1.msra.mxu0 0.0
    %3107 = vmatprep.subr.mxu0 0.0
    %3108 = vmatpush1.msra.mxu0 0.0
    %3109 = vmatprep.subr.mxu0 0.0
    %3110 = vmatpush1.msra.mxu0 0.0
    %3111 = vmatprep.subr.mxu0 0.0
    %3112 = vmatpush1.msra.mxu0 0.0
    %3113 = vmatprep.subr.mxu0 0.0
    %3114 = vmatpush1.msra.mxu0 0.0
    %3115 = vmatprep.subr.mxu0 0.0
    %3116 = vmatpush1.msra.mxu0 0.0
    %3117 = vmatprep.subr.mxu0 0.0
    %3118 = vmatpush1.msra.mxu0 0.0
    %3119 = vmatprep.subr.mxu0 0.0
    %3120 = vmatpush1.msra.mxu0 0.0
    %3121 = vmatprep.subr.mxu0 0.0
    %3122 = vmatpush1.msra.mxu0 0.0
    %3123 = vmatprep.subr.mxu0 0.0
    %3124 = vmatpush1.msra.mxu0 0.0
    %3125 = vmatprep.subr.mxu0 0.0
    %3126 = vmatpush1.msra.mxu0 0.0
    %3127 = vmatprep.subr.mxu0 0.0
    %3128 = vmatpush1.msra.mxu0 0.0
    %3129 = vmatprep.subr.mxu0 0.0
    %3130 = vmatpush1.msra.mxu0 0.0
    %3131 = vmatprep.subr.mxu0 0.0
    %3132 = vmatpush1.msra.mxu0 0.0
    %3133 = vmatprep.subr.mxu0 0.0
    %3134 = vmatpush1.msra.mxu0 0.0
    %3135 = vmatprep.subr.mxu0 0.0
    %3136 = vmatpush1.msra.mxu0 0.0
    %3137 = vmatprep.subr.mxu0 0.0
    %3138 = vmatpush1.msra.mxu0 0.0
    %3139 = vmatprep.subr.mxu0 0.0
    %3140 = vmatpush1.msra.mxu0 0.0
    %3141 = vmatprep.subr.mxu0 0.0
    %3142 = vmatpush1.msra.mxu0 0.0
    %3143 = vmatprep.subr.mxu0 0.0
    %3144 = vmatpush1.msra.mxu0 0.0
    %3145 = vmatprep.subr.mxu0 0.0
    %3146 = vmatpush1.msra.mxu0 0.0
    %3147 = vmatprep.subr.mxu0 0.0
    %3148 = vmatpush1.msra.mxu0 0.0
    %3149 = vmatprep.subr.mxu0 0.0
    %3150 = vmatpush1.msra.mxu0 0.0
    %3151 = vmatprep.subr.mxu0 0.0
    %3152 = vmatpush1.msra.mxu0 0.0
    %3153 = vmatprep.subr.mxu0 0.0
    %3154 = vmatpush1.msra.mxu0 0.0
    %3155 = vmatprep.subr.mxu0 0.0
    %3156 = vmatpush1.msra.mxu0 0.0
    %3157 = vmatprep.subr.mxu0 0.0
    %3158 = vmatpush1.msra.mxu0 0.0
    %3159 = vmatprep.subr.mxu0 0.0
    %3160 = vmatpush1.msra.mxu0 0.0
    %3161 = vmatprep.mubr.f32.mxu0 0.0
    %3162 = vmatmul.mubr.f32.gmra.mrb[0].mxu0 %v2740
    %v3163 = vpop.f32.mrb[0].mxu0
    %v3164 = vadd.f32 0.0, %v3163
    %v3165 = vpop.f32.mrb[0].mxu0
    %v3166 = vadd.f32 0.0, %v3165
    %3167 = vdwg.mxu0
    %3168 = vmatprep.subr.mxu0 %v511
    %3169 = vmatpush1.msra.mxu0 %v510
    %3170 = vmatprep.subr.mxu0 %v579
    %3171 = vmatpush1.msra.mxu0 %v576
    %3172 = vmatprep.subr.mxu0 0.0
    %3173 = vmatpush1.msra.mxu0 0.0
    %3174 = vmatprep.subr.mxu0 0.0
    %3175 = vmatpush1.msra.mxu0 0.0
    %3176 = vmatprep.subr.mxu0 0.0
    %3177 = vmatpush1.msra.mxu0 0.0
    %3178 = vmatprep.subr.mxu0 0.0
    %3179 = vmatpush1.msra.mxu0 0.0
    %3180 = vmatprep.subr.mxu0 0.0
    %3181 = vmatpush1.msra.mxu0 0.0
    %3182 = vmatprep.subr.mxu0 0.0
    %3183 = vmatpush1.msra.mxu0 0.0
    %3184 = vmatprep.subr.mxu0 0.0
    %3185 = vmatpush1.msra.mxu0 0.0
    %3186 = vmatprep.subr.mxu0 0.0
    %3187 = vmatpush1.msra.mxu0 0.0
    %3188 = vmatprep.subr.mxu0 0.0
    %3189 = vmatpush1.msra.mxu0 0.0
    %3190 = vmatprep.subr.mxu0 0.0
    %3191 = vmatpush1.msra.mxu0 0.0
    %3192 = vmatprep.subr.mxu0 0.0
    %3193 = vmatpush1.msra.mxu0 0.0
    %3194 = vmatprep.subr.mxu0 0.0
    %3195 = vmatpush1.msra.mxu0 0.0
    %3196 = vmatprep.subr.mxu0 0.0
    %3197 = vmatpush1.msra.mxu0 0.0
    %3198 = vmatprep.subr.mxu0 0.0
    %3199 = vmatpush1.msra.mxu0 0.0
    %3200 = vmatprep.subr.mxu0 0.0
    %3201 = vmatpush1.msra.mxu0 0.0
    %3202 = vmatprep.subr.mxu0 0.0
    %3203 = vmatpush1.msra.mxu0 0.0
    %3204 = vmatprep.subr.mxu0 0.0
    %3205 = vmatpush1.msra.mxu0 0.0
    %3206 = vmatprep.subr.mxu0 0.0
    %3207 = vmatpush1.msra.mxu0 0.0
    %3208 = vmatprep.subr.mxu0 0.0
    %3209 = vmatpush1.msra.mxu0 0.0
    %3210 = vmatprep.subr.mxu0 0.0
    %3211 = vmatpush1.msra.mxu0 0.0
    %3212 = vmatprep.subr.mxu0 0.0
    %3213 = vmatpush1.msra.mxu0 0.0
    %3214 = vmatprep.subr.mxu0 0.0
    %3215 = vmatpush1.msra.mxu0 0.0
    %3216 = vmatprep.subr.mxu0 0.0
    %3217 = vmatpush1.msra.mxu0 0.0
    %3218 = vmatprep.subr.mxu0 0.0
    %3219 = vmatpush1.msra.mxu0 0.0
    %3220 = vmatprep.subr.mxu0 0.0
    %3221 = vmatpush1.msra.mxu0 0.0
    %3222 = vmatprep.subr.mxu0 0.0
    %3223 = vmatpush1.msra.mxu0 0.0
    %3224 = vmatprep.subr.mxu0 0.0
    %3225 = vmatpush1.msra.mxu0 0.0
    %3226 = vmatprep.subr.mxu0 0.0
    %3227 = vmatpush1.msra.mxu0 0.0
    %3228 = vmatprep.subr.mxu0 0.0
    %3229 = vmatpush1.msra.mxu0 0.0
    %3230 = vmatprep.subr.mxu0 0.0
    %3231 = vmatpush1.msra.mxu0 0.0
    %3232 = vmatprep.mubr.f32.mxu0 0.0
    %3233 = vmatmul.mubr.f32.gmra.mrb[0].mxu0 %v2740
    %v3234 = vpop.f32.mrb[0].mxu0
    %v3235 = vadd.f32 0.0, %v3234
    %v3236 = vpop.f32.mrb[0].mxu0
    %v3237 = vadd.f32 0.0, %v3236
    %3238 = vdwg.mxu0
    %3239 = vmatprep.subr.mxu0 %v513
    %3240 = vmatpush1.msra.mxu0 %v512
    %3241 = vmatprep.subr.mxu0 %v585
    %3242 = vmatpush1.msra.mxu0 %v582
    %3243 = vmatprep.subr.mxu0 0.0
    %3244 = vmatpush1.msra.mxu0 0.0
    %3245 = vmatprep.subr.mxu0 0.0
    %3246 = vmatpush1.msra.mxu0 0.0
    %3247 = vmatprep.subr.mxu0 0.0
    %3248 = vmatpush1.msra.mxu0 0.0
    %3249 = vmatprep.subr.mxu0 0.0
    %3250 = vmatpush1.msra.mxu0 0.0
    %3251 = vmatprep.subr.mxu0 0.0
    %3252 = vmatpush1.msra.mxu0 0.0
    %3253 = vmatprep.subr.mxu0 0.0
    %3254 = vmatpush1.msra.mxu0 0.0
    %3255 = vmatprep.subr.mxu0 0.0
    %3256 = vmatpush1.msra.mxu0 0.0
    %3257 = vmatprep.subr.mxu0 0.0
    %3258 = vmatpush1.msra.mxu0 0.0
    %3259 = vmatprep.subr.mxu0 0.0
    %3260 = vmatpush1.msra.mxu0 0.0
    %3261 = vmatprep.subr.mxu0 0.0
    %3262 = vmatpush1.msra.mxu0 0.0
    %3263 = vmatprep.subr.mxu0 0.0
    %3264 = vmatpush1.msra.mxu0 0.0
    %3265 = vmatprep.subr.mxu0 0.0
    %3266 = vmatpush1.msra.mxu0 0.0
    %3267 = vmatprep.subr.mxu0 0.0
    %3268 = vmatpush1.msra.mxu0 0.0
    %3269 = vmatprep.subr.mxu0 0.0
    %3270 = vmatpush1.msra.mxu0 0.0
    %3271 = vmatprep.subr.mxu0 0.0
    %3272 = vmatpush1.msra.mxu0 0.0
    %3273 = vmatprep.subr.mxu0 0.0
    %3274 = vmatpush1.msra.mxu0 0.0
    %3275 = vmatprep.subr.mxu0 0.0
    %3276 = vmatpush1.msra.mxu0 0.0
    %3277 = vmatprep.subr.mxu0 0.0
    %3278 = vmatpush1.msra.mxu0 0.0
    %3279 = vmatprep.subr.mxu0 0.0
    %3280 = vmatpush1.msra.mxu0 0.0
    %3281 = vmatprep.subr.mxu0 0.0
    %3282 = vmatpush1.msra.mxu0 0.0
    %3283 = vmatprep.subr.mxu0 0.0
    %3284 = vmatpush1.msra.mxu0 0.0
    %3285 = vmatprep.subr.mxu0 0.0
    %3286 = vmatpush1.msra.mxu0 0.0
    %3287 = vmatprep.subr.mxu0 0.0
    %3288 = vmatpush1.msra.mxu0 0.0
    %3289 = vmatprep.subr.mxu0 0.0
    %3290 = vmatpush1.msra.mxu0 0.0
    %3291 = vmatprep.subr.mxu0 0.0
    %3292 = vmatpush1.msra.mxu0 0.0
    %3293 = vmatprep.subr.mxu0 0.0
    %3294 = vmatpush1.msra.mxu0 0.0
    %3295 = vmatprep.subr.mxu0 0.0
    %3296 = vmatpush1.msra.mxu0 0.0
    %3297 = vmatprep.subr.mxu0 0.0
    %3298 = vmatpush1.msra.mxu0 0.0
    %3299 = vmatprep.subr.mxu0 0.0
    %3300 = vmatpush1.msra.mxu0 0.0
    %3301 = vmatprep.subr.mxu0 0.0
    %3302 = vmatpush1.msra.mxu0 0.0
    %3303 = vmatprep.mubr.f32.mxu0 0.0
    %3304 = vmatmul.mubr.f32.gmra.mrb[0].mxu0 %v2740
    %v3305 = vpop.f32.mrb[0].mxu0
    %v3306 = vadd.f32 0.0, %v3305
    %v3307 = vpop.f32.mrb[0].mxu0
    %v3308 = vadd.f32 0.0, %v3307
    %3309 = vdwg.mxu0
    %3310 = vmatprep.subr.mxu0 %v515
    %3311 = vmatpush1.msra.mxu0 %v514
    %3312 = vmatprep.subr.mxu0 %v591
    %3313 = vmatpush1.msra.mxu0 %v588
    %3314 = vmatprep.subr.mxu0 0.0
    %3315 = vmatpush1.msra.mxu0 0.0
    %3316 = vmatprep.subr.mxu0 0.0
    %3317 = vmatpush1.msra.mxu0 0.0
    %3318 = vmatprep.subr.mxu0 0.0
    %3319 = vmatpush1.msra.mxu0 0.0
    %3320 = vmatprep.subr.mxu0 0.0
    %3321 = vmatpush1.msra.mxu0 0.0
    %3322 = vmatprep.subr.mxu0 0.0
    %3323 = vmatpush1.msra.mxu0 0.0
    %3324 = vmatprep.subr.mxu0 0.0
    %3325 = vmatpush1.msra.mxu0 0.0
    %3326 = vmatprep.subr.mxu0 0.0
    %3327 = vmatpush1.msra.mxu0 0.0
    %3328 = vmatprep.subr.mxu0 0.0
    %3329 = vmatpush1.msra.mxu0 0.0
    %3330 = vmatprep.subr.mxu0 0.0
    %3331 = vmatpush1.msra.mxu0 0.0
    %3332 = vmatprep.subr.mxu0 0.0
    %3333 = vmatpush1.msra.mxu0 0.0
    %3334 = vmatprep.subr.mxu0 0.0
    %3335 = vmatpush1.msra.mxu0 0.0
    %3336 = vmatprep.subr.mxu0 0.0
    %3337 = vmatpush1.msra.mxu0 0.0
    %3338 = vmatprep.subr.mxu0 0.0
    %3339 = vmatpush1.msra.mxu0 0.0
    %3340 = vmatprep.subr.mxu0 0.0
    %3341 = vmatpush1.msra.mxu0 0.0
    %3342 = vmatprep.subr.mxu0 0.0
    %3343 = vmatpush1.msra.mxu0 0.0
    %3344 = vmatprep.subr.mxu0 0.0
    %3345 = vmatpush1.msra.mxu0 0.0
    %3346 = vmatprep.subr.mxu0 0.0
    %3347 = vmatpush1.msra.mxu0 0.0
    %3348 = vmatprep.subr.mxu0 0.0
    %3349 = vmatpush1.msra.mxu0 0.0
    %3350 = vmatprep.subr.mxu0 0.0
    %3351 = vmatpush1.msra.mxu0 0.0
    %3352 = vmatprep.subr.mxu0 0.0
    %3353 = vmatpush1.msra.mxu0 0.0
    %3354 = vmatprep.subr.mxu0 0.0
    %3355 = vmatpush1.msra.mxu0 0.0
    %3356 = vmatprep.subr.mxu0 0.0
    %3357 = vmatpush1.msra.mxu0 0.0
    %3358 = vmatprep.subr.mxu0 0.0
    %3359 = vmatpush1.msra.mxu0 0.0
    %3360 = vmatprep.subr.mxu0 0.0
    %3361 = vmatpush1.msra.mxu0 0.0
    %3362 = vmatprep.subr.mxu0 0.0
    %3363 = vmatpush1.msra.mxu0 0.0
    %3364 = vmatprep.subr.mxu0 0.0
    %3365 = vmatpush1.msra.mxu0 0.0
    %3366 = vmatprep.subr.mxu0 0.0
    %3367 = vmatpush1.msra.mxu0 0.0
    %3368 = vmatprep.subr.mxu0 0.0
    %3369 = vmatpush1.msra.mxu0 0.0
    %3370 = vmatprep.subr.mxu0 0.0
    %3371 = vmatpush1.msra.mxu0 0.0
    %3372 = vmatprep.subr.mxu0 0.0
    %3373 = vmatpush1.msra.mxu0 0.0
    %3374 = vmatprep.mubr.f32.mxu0 0.0
    %3375 = vmatmul.mubr.f32.gmra.mrb[0].mxu0 %v2740
    %v3376 = vpop.f32.mrb[0].mxu0
    %v3377 = vadd.f32 0.0, %v3376
    %v3378 = vpop.f32.mrb[0].mxu0
    %v3379 = vadd.f32 0.0, %v3378
    %3380 = vdwg.mxu0
    %3390 = vrot.lane.b32.xlu0 %v2809, 125
    %v3391 = vpop.permute.xlu0 %3390
    %3392 = vrot.lane.b32.xlu0 %v2811, 125
    %v3393 = vpop.permute.xlu0 %3392
    %3394 = vrot.lane.b32.xlu0 %v2880, 125
    %v3395 = vpop.permute.xlu0 %3394
    %3396 = vrot.lane.b32.xlu0 %v2882, 125
    %v3397 = vpop.permute.xlu0 %3396
    %3398 = vrot.lane.b32.xlu0 %v2951, 125
    %v3399 = vpop.permute.xlu0 %3398
    %3400 = vrot.lane.b32.xlu0 %v2953, 125
    %v3401 = vpop.permute.xlu0 %3400
    %3402 = vrot.lane.b32.xlu0 %v3022, 125
    %v3403 = vpop.permute.xlu0 %3402
    %3404 = vrot.lane.b32.xlu0 %v3024, 125
    %v3405 = vpop.permute.xlu0 %3404
    %3406 = vrot.lane.b32.xlu0 %v3093, 125
    %v3407 = vpop.permute.xlu0 %3406
    %vm3408 = vcmask 1022976
    %v3409 = vsel %vm3408, %v3391, %v3393
    %v3410 = vsel %vm3408, %v3393, %v3395
    %v3411 = vsel %vm3408, %v3395, %v3397
    %v3412 = vsel %vm3408, %v3397, %v3399
    %v3413 = vsel %vm3408, %v3399, %v3401
    %v3414 = vsel %vm3408, %v3401, %v3403
    %v3415 = vsel %vm3408, %v3403, %v3405
    %v3416 = vsel %vm3408, %v3405, %v3407
    %v3425 = vadd.f32 %v2679, %v3409
    %v3426 = vadd.f32 %v2680, %v3410
    %v3427 = vadd.f32 %v2681, %v3411
    %v3428 = vadd.f32 %v2682, %v3412
    %v3429 = vadd.f32 %v2683, %v3413
    %v3430 = vadd.f32 %v2684, %v3414
    %v3431 = vadd.f32 %v2685, %v3415
    %v3432 = vadd.f32 %v2686, %v3416
    %3442 = vrot.lane.b32.xlu0 %v3095, 125
    %v3443 = vpop.permute.xlu0 %3442
    %3444 = vrot.lane.b32.xlu0 %v3164, 125
    %v3445 = vpop.permute.xlu0 %3444
    %3446 = vrot.lane.b32.xlu0 %v3166, 125
    %v3447 = vpop.permute.xlu0 %3446
    %3448 = vrot.lane.b32.xlu0 %v3235, 125
    %v3449 = vpop.permute.xlu0 %3448
    %3450 = vrot.lane.b32.xlu0 %v3237, 125
    %v3451 = vpop.permute.xlu0 %3450
    %3452 = vrot.lane.b32.xlu0 %v3306, 125
    %v3453 = vpop.permute.xlu0 %3452
    %3454 = vrot.lane.b32.xlu0 %v3308, 125
    %v3455 = vpop.permute.xlu0 %3454
    %3456 = vrot.lane.b32.xlu0 %v3377, 125
    %v3457 = vpop.permute.xlu0 %3456
    %3458 = vrot.lane.b32.xlu0 %v3379, 125
    %v3459 = vpop.permute.xlu0 %3458
    %v3460 = vsel %vm3408, %v3443, %v3445
    %v3461 = vsel %vm3408, %v3445, %v3447
    %v3462 = vsel %vm3408, %v3447, %v3449
    %v3463 = vsel %vm3408, %v3449, %v3451
    %v3464 = vsel %vm3408, %v3451, %v3453
    %v3465 = vsel %vm3408, %v3453, %v3455
    %v3466 = vsel %vm3408, %v3455, %v3457
    %v3467 = vsel %vm3408, %v3457, %v3459
    %v3476 = vadd.f32 %v2730, %v3460
    %v3477 = vadd.f32 %v2731, %v3461
    %v3478 = vadd.f32 %v2732, %v3462
    %v3479 = vadd.f32 %v2733, %v3463
    %v3480 = vadd.f32 %v2734, %v3464
    %v3481 = vadd.f32 %v2735, %v3465
    %v3482 = vadd.f32 %v2736, %v3466
    %v3483 = vadd.f32 %v2737, %v3467
    %3484 = vrot.lane.b32.xlu0 %v497, 68
    %v3485 = vpop.permute.xlu0 %3484
    %v3486 = vsel %vm534, %v3485, 0
    %3488 = vmatprep.subr.mxu0 %v499
    %3489 = vmatpush1.msra.mxu0 %v498
    %3490 = vmatprep.subr.mxu0 %v543
    %3491 = vmatpush1.msra.mxu0 %v540
    %3492 = vmatprep.subr.mxu0 0.0
    %3493 = vmatpush1.msra.mxu0 0.0
    %3494 = vmatprep.subr.mxu0 0.0
    %3495 = vmatpush1.msra.mxu0 0.0
    %3496 = vmatprep.subr.mxu0 0.0
    %3497 = vmatpush1.msra.mxu0 0.0
    %3498 = vmatprep.subr.mxu0 0.0
    %3499 = vmatpush1.msra.mxu0 0.0
    %3500 = vmatprep.subr.mxu0 0.0
    %3501 = vmatpush1.msra.mxu0 0.0
    %3502 = vmatprep.subr.mxu0 0.0
    %3503 = vmatpush1.msra.mxu0 0.0
    %3504 = vmatprep.subr.mxu0 0.0
    %3505 = vmatpush1.msra.mxu0 0.0
    %3506 = vmatprep.subr.mxu0 0.0
    %3507 = vmatpush1.msra.mxu0 0.0
    %3508 = vmatprep.subr.mxu0 0.0
    %3509 = vmatpush1.msra.mxu0 0.0
    %3510 = vmatprep.subr.mxu0 0.0
    %3511 = vmatpush1.msra.mxu0 0.0
    %3512 = vmatprep.subr.mxu0 0.0
    %3513 = vmatpush1.msra.mxu0 0.0
    %3514 = vmatprep.subr.mxu0 0.0
    %3515 = vmatpush1.msra.mxu0 0.0
    %3516 = vmatprep.subr.mxu0 0.0
    %3517 = vmatpush1.msra.mxu0 0.0
    %3518 = vmatprep.subr.mxu0 0.0
    %3519 = vmatpush1.msra.mxu0 0.0
    %3520 = vmatprep.subr.mxu0 0.0
    %3521 = vmatpush1.msra.mxu0 0.0
    %3522 = vmatprep.subr.mxu0 0.0
    %3523 = vmatpush1.msra.mxu0 0.0
    %3524 = vmatprep.subr.mxu0 0.0
    %3525 = vmatpush1.msra.mxu0 0.0
    %3526 = vmatprep.subr.mxu0 0.0
    %3527 = vmatpush1.msra.mxu0 0.0
    %3528 = vmatprep.subr.mxu0 0.0
    %3529 = vmatpush1.msra.mxu0 0.0
    %3530 = vmatprep.subr.mxu0 0.0
    %3531 = vmatpush1.msra.mxu0 0.0
    %3532 = vmatprep.subr.mxu0 0.0
    %3533 = vmatpush1.msra.mxu0 0.0
    %3534 = vmatprep.subr.mxu0 0.0
    %3535 = vmatpush1.msra.mxu0 0.0
    %3536 = vmatprep.subr.mxu0 0.0
    %3537 = vmatpush1.msra.mxu0 0.0
    %3538 = vmatprep.subr.mxu0 0.0
    %3539 = vmatpush1.msra.mxu0 0.0
    %3540 = vmatprep.subr.mxu0 0.0
    %3541 = vmatpush1.msra.mxu0 0.0
    %3542 = vmatprep.subr.mxu0 0.0
    %3543 = vmatpush1.msra.mxu0 0.0
    %3544 = vmatprep.subr.mxu0 0.0
    %3545 = vmatpush1.msra.mxu0 0.0
    %3546 = vmatprep.subr.mxu0 0.0
    %3547 = vmatpush1.msra.mxu0 0.0
    %3548 = vmatprep.subr.mxu0 0.0
    %3549 = vmatpush1.msra.mxu0 0.0
    %3550 = vmatprep.subr.mxu0 0.0
    %3551 = vmatpush1.msra.mxu0 0.0
    %3552 = vmatprep.mubr.f32.mxu0 0.0
    %3553 = vmatmul.mubr.f32.gmra.mrb[0].mxu0 %v3486
    %v3554 = vpop.f32.mrb[0].mxu0
    %v3555 = vadd.f32 0.0, %v3554
    %v3556 = vpop.f32.mrb[0].mxu0
    %v3557 = vadd.f32 0.0, %v3556
    %3558 = vdwg.mxu0
    %3559 = vmatprep.subr.mxu0 %v501
    %3560 = vmatpush1.msra.mxu0 %v500
    %3561 = vmatprep.subr.mxu0 %v549
    %3562 = vmatpush1.msra.mxu0 %v546
    %3563 = vmatprep.subr.mxu0 0.0
    %3564 = vmatpush1.msra.mxu0 0.0
    %3565 = vmatprep.subr.mxu0 0.0
    %3566 = vmatpush1.msra.mxu0 0.0
    %3567 = vmatprep.subr.mxu0 0.0
    %3568 = vmatpush1.msra.mxu0 0.0
    %3569 = vmatprep.subr.mxu0 0.0
    %3570 = vmatpush1.msra.mxu0 0.0
    %3571 = vmatprep.subr.mxu0 0.0
    %3572 = vmatpush1.msra.mxu0 0.0
    %3573 = vmatprep.subr.mxu0 0.0
    %3574 = vmatpush1.msra.mxu0 0.0
    %3575 = vmatprep.subr.mxu0 0.0
    %3576 = vmatpush1.msra.mxu0 0.0
    %3577 = vmatprep.subr.mxu0 0.0
    %3578 = vmatpush1.msra.mxu0 0.0
    %3579 = vmatprep.subr.mxu0 0.0
    %3580 = vmatpush1.msra.mxu0 0.0
    %3581 = vmatprep.subr.mxu0 0.0
    %3582 = vmatpush1.msra.mxu0 0.0
    %3583 = vmatprep.subr.mxu0 0.0
    %3584 = vmatpush1.msra.mxu0 0.0
    %3585 = vmatprep.subr.mxu0 0.0
    %3586 = vmatpush1.msra.mxu0 0.0
    %3587 = vmatprep.subr.mxu0 0.0
    %3588 = vmatpush1.msra.mxu0 0.0
    %3589 = vmatprep.subr.mxu0 0.0
    %3590 = vmatpush1.msra.mxu0 0.0
    %3591 = vmatprep.subr.mxu0 0.0
    %3592 = vmatpush1.msra.mxu0 0.0
    %3593 = vmatprep.subr.mxu0 0.0
    %3594 = vmatpush1.msra.mxu0 0.0
    %3595 = vmatprep.subr.mxu0 0.0
    %3596 = vmatpush1.msra.mxu0 0.0
    %3597 = vmatprep.subr.mxu0 0.0
    %3598 = vmatpush1.msra.mxu0 0.0
    %3599 = vmatprep.subr.mxu0 0.0
    %3600 = vmatpush1.msra.mxu0 0.0
    %3601 = vmatprep.subr.mxu0 0.0
    %3602 = vmatpush1.msra.mxu0 0.0
    %3603 = vmatprep.subr.mxu0 0.0
    %3604 = vmatpush1.msra.mxu0 0.0
    %3605 = vmatprep.subr.mxu0 0.0
    %3606 = vmatpush1.msra.mxu0 0.0
    %3607 = vmatprep.subr.mxu0 0.0
    %3608 = vmatpush1.msra.mxu0 0.0
    %3609 = vmatprep.subr.mxu0 0.0
    %3610 = vmatpush1.msra.mxu0 0.0
    %3611 = vmatprep.subr.mxu0 0.0
    %3612 = vmatpush1.msra.mxu0 0.0
    %3613 = vmatprep.subr.mxu0 0.0
    %3614 = vmatpush1.msra.mxu0 0.0
    %3615 = vmatprep.subr.mxu0 0.0
    %3616 = vmatpush1.msra.mxu0 0.0
    %3617 = vmatprep.subr.mxu0 0.0
    %3618 = vmatpush1.msra.mxu0 0.0
    %3619 = vmatprep.subr.mxu0 0.0
    %3620 = vmatpush1.msra.mxu0 0.0
    %3621 = vmatprep.subr.mxu0 0.0
    %3622 = vmatpush1.msra.mxu0 0.0
    %3623 = vmatprep.mubr.f32.mxu0 0.0
    %3624 = vmatmul.mubr.f32.gmra.mrb[0].mxu0 %v3486
    %v3625 = vpop.f32.mrb[0].mxu0
    %v3626 = vadd.f32 0.0, %v3625
    %v3627 = vpop.f32.mrb[0].mxu0
    %v3628 = vadd.f32 0.0, %v3627
    %3629 = vdwg.mxu0
    %3630 = vmatprep.subr.mxu0 %v503
    %3631 = vmatpush1.msra.mxu0 %v502
    %3632 = vmatprep.subr.mxu0 %v555
    %3633 = vmatpush1.msra.mxu0 %v552
    %3634 = vmatprep.subr.mxu0 0.0
    %3635 = vmatpush1.msra.mxu0 0.0
    %3636 = vmatprep.subr.mxu0 0.0
    %3637 = vmatpush1.msra.mxu0 0.0
    %3638 = vmatprep.subr.mxu0 0.0
    %3639 = vmatpush1.msra.mxu0 0.0
    %3640 = vmatprep.subr.mxu0 0.0
    %3641 = vmatpush1.msra.mxu0 0.0
    %3642 = vmatprep.subr.mxu0 0.0
    %3643 = vmatpush1.msra.mxu0 0.0
    %3644 = vmatprep.subr.mxu0 0.0
    %3645 = vmatpush1.msra.mxu0 0.0
    %3646 = vmatprep.subr.mxu0 0.0
    %3647 = vmatpush1.msra.mxu0 0.0
    %3648 = vmatprep.subr.mxu0 0.0
    %3649 = vmatpush1.msra.mxu0 0.0
    %3650 = vmatprep.subr.mxu0 0.0
    %3651 = vmatpush1.msra.mxu0 0.0
    %3652 = vmatprep.subr.mxu0 0.0
    %3653 = vmatpush1.msra.mxu0 0.0
    %3654 = vmatprep.subr.mxu0 0.0
    %3655 = vmatpush1.msra.mxu0 0.0
    %3656 = vmatprep.subr.mxu0 0.0
    %3657 = vmatpush1.msra.mxu0 0.0
    %3658 = vmatprep.subr.mxu0 0.0
    %3659 = vmatpush1.msra.mxu0 0.0
    %3660 = vmatprep.subr.mxu0 0.0
    %3661 = vmatpush1.msra.mxu0 0.0
    %3662 = vmatprep.subr.mxu0 0.0
    %3663 = vmatpush1.msra.mxu0 0.0
    %3664 = vmatprep.subr.mxu0 0.0
    %3665 = vmatpush1.msra.mxu0 0.0
    %3666 = vmatprep.subr.mxu0 0.0
    %3667 = vmatpush1.msra.mxu0 0.0
    %3668 = vmatprep.subr.mxu0 0.0
    %3669 = vmatpush1.msra.mxu0 0.0
    %3670 = vmatprep.subr.mxu0 0.0
    %3671 = vmatpush1.msra.mxu0 0.0
    %3672 = vmatprep.subr.mxu0 0.0
    %3673 = vmatpush1.msra.mxu0 0.0
    %3674 = vmatprep.subr.mxu0 0.0
    %3675 = vmatpush1.msra.mxu0 0.0
    %3676 = vmatprep.subr.mxu0 0.0
    %3677 = vmatpush1.msra.mxu0 0.0
    %3678 = vmatprep.subr.mxu0 0.0
    %3679 = vmatpush1.msra.mxu0 0.0
    %3680 = vmatprep.subr.mxu0 0.0
    %3681 = vmatpush1.msra.mxu0 0.0
    %3682 = vmatprep.subr.mxu0 0.0
    %3683 = vmatpush1.msra.mxu0 0.0
    %3684 = vmatprep.subr.mxu0 0.0
    %3685 = vmatpush1.msra.mxu0 0.0
    %3686 = vmatprep.subr.mxu0 0.0
    %3687 = vmatpush1.msra.mxu0 0.0
    %3688 = vmatprep.subr.mxu0 0.0
    %3689 = vmatpush1.msra.mxu0 0.0
    %3690 = vmatprep.subr.mxu0 0.0
    %3691 = vmatpush1.msra.mxu0 0.0
    %3692 = vmatprep.subr.mxu0 0.0
    %3693 = vmatpush1.msra.mxu0 0.0
    %3694 = vmatprep.mubr.f32.mxu0 0.0
    %3695 = vmatmul.mubr.f32.gmra.mrb[0].mxu0 %v3486
    %v3696 = vpop.f32.mrb[0].mxu0
    %v3697 = vadd.f32 0.0, %v3696
    %v3698 = vpop.f32.mrb[0].mxu0
    %v3699 = vadd.f32 0.0, %v3698
    %3700 = vdwg.mxu0
    %3701 = vmatprep.subr.mxu0 %v505
    %3702 = vmatpush1.msra.mxu0 %v504
    %3703 = vmatprep.subr.mxu0 %v561
    %3704 = vmatpush1.msra.mxu0 %v558
    %3705 = vmatprep.subr.mxu0 0.0
    %3706 = vmatpush1.msra.mxu0 0.0
    %3707 = vmatprep.subr.mxu0 0.0
    %3708 = vmatpush1.msra.mxu0 0.0
    %3709 = vmatprep.subr.mxu0 0.0
    %3710 = vmatpush1.msra.mxu0 0.0
    %3711 = vmatprep.subr.mxu0 0.0
    %3712 = vmatpush1.msra.mxu0 0.0
    %3713 = vmatprep.subr.mxu0 0.0
    %3714 = vmatpush1.msra.mxu0 0.0
    %3715 = vmatprep.subr.mxu0 0.0
    %3716 = vmatpush1.msra.mxu0 0.0
    %3717 = vmatprep.subr.mxu0 0.0
    %3718 = vmatpush1.msra.mxu0 0.0
    %3719 = vmatprep.subr.mxu0 0.0
    %3720 = vmatpush1.msra.mxu0 0.0
    %3721 = vmatprep.subr.mxu0 0.0
    %3722 = vmatpush1.msra.mxu0 0.0
    %3723 = vmatprep.subr.mxu0 0.0
    %3724 = vmatpush1.msra.mxu0 0.0
    %3725 = vmatprep.subr.mxu0 0.0
    %3726 = vmatpush1.msra.mxu0 0.0
    %3727 = vmatprep.subr.mxu0 0.0
    %3728 = vmatpush1.msra.mxu0 0.0
    %3729 = vmatprep.subr.mxu0 0.0
    %3730 = vmatpush1.msra.mxu0 0.0
    %3731 = vmatprep.subr.mxu0 0.0
    %3732 = vmatpush1.msra.mxu0 0.0
    %3733 = vmatprep.subr.mxu0 0.0
    %3734 = vmatpush1.msra.mxu0 0.0
    %3735 = vmatprep.subr.mxu0 0.0
    %3736 = vmatpush1.msra.mxu0 0.0
    %3737 = vmatprep.subr.mxu0 0.0
    %3738 = vmatpush1.msra.mxu0 0.0
    %3739 = vmatprep.subr.mxu0 0.0
    %3740 = vmatpush1.msra.mxu0 0.0
    %3741 = vmatprep.subr.mxu0 0.0
    %3742 = vmatpush1.msra.mxu0 0.0
    %3743 = vmatprep.subr.mxu0 0.0
    %3744 = vmatpush1.msra.mxu0 0.0
    %3745 = vmatprep.subr.mxu0 0.0
    %3746 = vmatpush1.msra.mxu0 0.0
    %3747 = vmatprep.subr.mxu0 0.0
    %3748 = vmatpush1.msra.mxu0 0.0
    %3749 = vmatprep.subr.mxu0 0.0
    %3750 = vmatpush1.msra.mxu0 0.0
    %3751 = vmatprep.subr.mxu0 0.0
    %3752 = vmatpush1.msra.mxu0 0.0
    %3753 = vmatprep.subr.mxu0 0.0
    %3754 = vmatpush1.msra.mxu0 0.0
    %3755 = vmatprep.subr.mxu0 0.0
    %3756 = vmatpush1.msra.mxu0 0.0
    %3757 = vmatprep.subr.mxu0 0.0
    %3758 = vmatpush1.msra.mxu0 0.0
    %3759 = vmatprep.subr.mxu0 0.0
    %3760 = vmatpush1.msra.mxu0 0.0
    %3761 = vmatprep.subr.mxu0 0.0
    %3762 = vmatpush1.msra.mxu0 0.0
    %3763 = vmatprep.subr.mxu0 0.0
    %3764 = vmatpush1.msra.mxu0 0.0
    %3765 = vmatprep.mubr.f32.mxu0 0.0
    %3766 = vmatmul.mubr.f32.gmra.mrb[0].mxu0 %v3486
    %v3767 = vpop.f32.mrb[0].mxu0
    %v3768 = vadd.f32 0.0, %v3767
    %v3769 = vpop.f32.mrb[0].mxu0
    %v3770 = vadd.f32 0.0, %v3769
    %3771 = vdwg.mxu0
    %3772 = vmatprep.subr.mxu0 %v507
    %3773 = vmatpush1.msra.mxu0 %v506
    %3774 = vmatprep.subr.mxu0 %v567
    %3775 = vmatpush1.msra.mxu0 %v564
    %3776 = vmatprep.subr.mxu0 0.0
    %3777 = vmatpush1.msra.mxu0 0.0
    %3778 = vmatprep.subr.mxu0 0.0
    %3779 = vmatpush1.msra.mxu0 0.0
    %3780 = vmatprep.subr.mxu0 0.0
    %3781 = vmatpush1.msra.mxu0 0.0
    %3782 = vmatprep.subr.mxu0 0.0
    %3783 = vmatpush1.msra.mxu0 0.0
    %3784 = vmatprep.subr.mxu0 0.0
    %3785 = vmatpush1.msra.mxu0 0.0
    %3786 = vmatprep.subr.mxu0 0.0
    %3787 = vmatpush1.msra.mxu0 0.0
    %3788 = vmatprep.subr.mxu0 0.0
    %3789 = vmatpush1.msra.mxu0 0.0
    %3790 = vmatprep.subr.mxu0 0.0
    %3791 = vmatpush1.msra.mxu0 0.0
    %3792 = vmatprep.subr.mxu0 0.0
    %3793 = vmatpush1.msra.mxu0 0.0
    %3794 = vmatprep.subr.mxu0 0.0
    %3795 = vmatpush1.msra.mxu0 0.0
    %3796 = vmatprep.subr.mxu0 0.0
    %3797 = vmatpush1.msra.mxu0 0.0
    %3798 = vmatprep.subr.mxu0 0.0
    %3799 = vmatpush1.msra.mxu0 0.0
    %3800 = vmatprep.subr.mxu0 0.0
    %3801 = vmatpush1.msra.mxu0 0.0
    %3802 = vmatprep.subr.mxu0 0.0
    %3803 = vmatpush1.msra.mxu0 0.0
    %3804 = vmatprep.subr.mxu0 0.0
    %3805 = vmatpush1.msra.mxu0 0.0
    %3806 = vmatprep.subr.mxu0 0.0
    %3807 = vmatpush1.msra.mxu0 0.0
    %3808 = vmatprep.subr.mxu0 0.0
    %3809 = vmatpush1.msra.mxu0 0.0
    %3810 = vmatprep.subr.mxu0 0.0
    %3811 = vmatpush1.msra.mxu0 0.0
    %3812 = vmatprep.subr.mxu0 0.0
    %3813 = vmatpush1.msra.mxu0 0.0
    %3814 = vmatprep.subr.mxu0 0.0
    %3815 = vmatpush1.msra.mxu0 0.0
    %3816 = vmatprep.subr.mxu0 0.0
    %3817 = vmatpush1.msra.mxu0 0.0
    %3818 = vmatprep.subr.mxu0 0.0
    %3819 = vmatpush1.msra.mxu0 0.0
    %3820 = vmatprep.subr.mxu0 0.0
    %3821 = vmatpush1.msra.mxu0 0.0
    %3822 = vmatprep.subr.mxu0 0.0
    %3823 = vmatpush1.msra.mxu0 0.0
    %3824 = vmatprep.subr.mxu0 0.0
    %3825 = vmatpush1.msra.mxu0 0.0
    %3826 = vmatprep.subr.mxu0 0.0
    %3827 = vmatpush1.msra.mxu0 0.0
    %3828 = vmatprep.subr.mxu0 0.0
    %3829 = vmatpush1.msra.mxu0 0.0
    %3830 = vmatprep.subr.mxu0 0.0
    %3831 = vmatpush1.msra.mxu0 0.0
    %3832 = vmatprep.subr.mxu0 0.0
    %3833 = vmatpush1.msra.mxu0 0.0
    %3834 = vmatprep.subr.mxu0 0.0
    %3835 = vmatpush1.msra.mxu0 0.0
    %3836 = vmatprep.mubr.f32.mxu0 0.0
    %3837 = vmatmul.mubr.f32.gmra.mrb[0].mxu0 %v3486
    %v3838 = vpop.f32.mrb[0].mxu0
    %v3839 = vadd.f32 0.0, %v3838
    %v3840 = vpop.f32.mrb[0].mxu0
    %v3841 = vadd.f32 0.0, %v3840
    %3842 = vdwg.mxu0
    %3843 = vmatprep.subr.mxu0 %v509
    %3844 = vmatpush1.msra.mxu0 %v508
    %3845 = vmatprep.subr.mxu0 %v573
    %3846 = vmatpush1.msra.mxu0 %v570
    %3847 = vmatprep.subr.mxu0 0.0
    %3848 = vmatpush1.msra.mxu0 0.0
    %3849 = vmatprep.subr.mxu0 0.0
    %3850 = vmatpush1.msra.mxu0 0.0
    %3851 = vmatprep.subr.mxu0 0.0
    %3852 = vmatpush1.msra.mxu0 0.0
    %3853 = vmatprep.subr.mxu0 0.0
    %3854 = vmatpush1.msra.mxu0 0.0
    %3855 = vmatprep.subr.mxu0 0.0
    %3856 = vmatpush1.msra.mxu0 0.0
    %3857 = vmatprep.subr.mxu0 0.0
    %3858 = vmatpush1.msra.mxu0 0.0
    %3859 = vmatprep.subr.mxu0 0.0
    %3860 = vmatpush1.msra.mxu0 0.0
    %3861 = vmatprep.subr.mxu0 0.0
    %3862 = vmatpush1.msra.mxu0 0.0
    %3863 = vmatprep.subr.mxu0 0.0
    %3864 = vmatpush1.msra.mxu0 0.0
    %3865 = vmatprep.subr.mxu0 0.0
    %3866 = vmatpush1.msra.mxu0 0.0
    %3867 = vmatprep.subr.mxu0 0.0
    %3868 = vmatpush1.msra.mxu0 0.0
    %3869 = vmatprep.subr.mxu0 0.0
    %3870 = vmatpush1.msra.mxu0 0.0
    %3871 = vmatprep.subr.mxu0 0.0
    %3872 = vmatpush1.msra.mxu0 0.0
    %3873 = vmatprep.subr.mxu0 0.0
    %3874 = vmatpush1.msra.mxu0 0.0
    %3875 = vmatprep.subr.mxu0 0.0
    %3876 = vmatpush1.msra.mxu0 0.0
    %3877 = vmatprep.subr.mxu0 0.0
    %3878 = vmatpush1.msra.mxu0 0.0
    %3879 = vmatprep.subr.mxu0 0.0
    %3880 = vmatpush1.msra.mxu0 0.0
    %3881 = vmatprep.subr.mxu0 0.0
    %3882 = vmatpush1.msra.mxu0 0.0
    %3883 = vmatprep.subr.mxu0 0.0
    %3884 = vmatpush1.msra.mxu0 0.0
    %3885 = vmatprep.subr.mxu0 0.0
    %3886 = vmatpush1.msra.mxu0 0.0
    %3887 = vmatprep.subr.mxu0 0.0
    %3888 = vmatpush1.msra.mxu0 0.0
    %3889 = vmatprep.subr.mxu0 0.0
    %3890 = vmatpush1.msra.mxu0 0.0
    %3891 = vmatprep.subr.mxu0 0.0
    %3892 = vmatpush1.msra.mxu0 0.0
    %3893 = vmatprep.subr.mxu0 0.0
    %3894 = vmatpush1.msra.mxu0 0.0
    %3895 = vmatprep.subr.mxu0 0.0
    %3896 = vmatpush1.msra.mxu0 0.0
    %3897 = vmatprep.subr.mxu0 0.0
    %3898 = vmatpush1.msra.mxu0 0.0
    %3899 = vmatprep.subr.mxu0 0.0
    %3900 = vmatpush1.msra.mxu0 0.0
    %3901 = vmatprep.subr.mxu0 0.0
    %3902 = vmatpush1.msra.mxu0 0.0
    %3903 = vmatprep.subr.mxu0 0.0
    %3904 = vmatpush1.msra.mxu0 0.0
    %3905 = vmatprep.subr.mxu0 0.0
    %3906 = vmatpush1.msra.mxu0 0.0
    %3907 = vmatprep.mubr.f32.mxu0 0.0
    %3908 = vmatmul.mubr.f32.gmra.mrb[0].mxu0 %v3486
    %v3909 = vpop.f32.mrb[0].mxu0
    %v3910 = vadd.f32 0.0, %v3909
    %v3911 = vpop.f32.mrb[0].mxu0
    %v3912 = vadd.f32 0.0, %v3911
    %3913 = vdwg.mxu0
    %3914 = vmatprep.subr.mxu0 %v511
    %3915 = vmatpush1.msra.mxu0 %v510
    %3916 = vmatprep.subr.mxu0 %v579
    %3917 = vmatpush1.msra.mxu0 %v576
    %3918 = vmatprep.subr.mxu0 0.0
    %3919 = vmatpush1.msra.mxu0 0.0
    %3920 = vmatprep.subr.mxu0 0.0
    %3921 = vmatpush1.msra.mxu0 0.0
    %3922 = vmatprep.subr.mxu0 0.0
    %3923 = vmatpush1.msra.mxu0 0.0
    %3924 = vmatprep.subr.mxu0 0.0
    %3925 = vmatpush1.msra.mxu0 0.0
    %3926 = vmatprep.subr.mxu0 0.0
    %3927 = vmatpush1.msra.mxu0 0.0
    %3928 = vmatprep.subr.mxu0 0.0
    %3929 = vmatpush1.msra.mxu0 0.0
    %3930 = vmatprep.subr.mxu0 0.0
    %3931 = vmatpush1.msra.mxu0 0.0
    %3932 = vmatprep.subr.mxu0 0.0
    %3933 = vmatpush1.msra.mxu0 0.0
    %3934 = vmatprep.subr.mxu0 0.0
    %3935 = vmatpush1.msra.mxu0 0.0
    %3936 = vmatprep.subr.mxu0 0.0
    %3937 = vmatpush1.msra.mxu0 0.0
    %3938 = vmatprep.subr.mxu0 0.0
    %3939 = vmatpush1.msra.mxu0 0.0
    %3940 = vmatprep.subr.mxu0 0.0
    %3941 = vmatpush1.msra.mxu0 0.0
    %3942 = vmatprep.subr.mxu0 0.0
    %3943 = vmatpush1.msra.mxu0 0.0
    %3944 = vmatprep.subr.mxu0 0.0
    %3945 = vmatpush1.msra.mxu0 0.0
    %3946 = vmatprep.subr.mxu0 0.0
    %3947 = vmatpush1.msra.mxu0 0.0
    %3948 = vmatprep.subr.mxu0 0.0
    %3949 = vmatpush1.msra.mxu0 0.0
    %3950 = vmatprep.subr.mxu0 0.0
    %3951 = vmatpush1.msra.mxu0 0.0
    %3952 = vmatprep.subr.mxu0 0.0
    %3953 = vmatpush1.msra.mxu0 0.0
    %3954 = vmatprep.subr.mxu0 0.0
    %3955 = vmatpush1.msra.mxu0 0.0
    %3956 = vmatprep.subr.mxu0 0.0
    %3957 = vmatpush1.msra.mxu0 0.0
    %3958 = vmatprep.subr.mxu0 0.0
    %3959 = vmatpush1.msra.mxu0 0.0
    %3960 = vmatprep.subr.mxu0 0.0
    %3961 = vmatpush1.msra.mxu0 0.0
    %3962 = vmatprep.subr.mxu0 0.0
    %3963 = vmatpush1.msra.mxu0 0.0
    %3964 = vmatprep.subr.mxu0 0.0
    %3965 = vmatpush1.msra.mxu0 0.0
    %3966 = vmatprep.subr.mxu0 0.0
    %3967 = vmatpush1.msra.mxu0 0.0
    %3968 = vmatprep.subr.mxu0 0.0
    %3969 = vmatpush1.msra.mxu0 0.0
    %3970 = vmatprep.subr.mxu0 0.0
    %3971 = vmatpush1.msra.mxu0 0.0
    %3972 = vmatprep.subr.mxu0 0.0
    %3973 = vmatpush1.msra.mxu0 0.0
    %3974 = vmatprep.subr.mxu0 0.0
    %3975 = vmatpush1.msra.mxu0 0.0
    %3976 = vmatprep.subr.mxu0 0.0
    %3977 = vmatpush1.msra.mxu0 0.0
    %3978 = vmatprep.mubr.f32.mxu0 0.0
    %3979 = vmatmul.mubr.f32.gmra.mrb[0].mxu0 %v3486
    %v3980 = vpop.f32.mrb[0].mxu0
    %v3981 = vadd.f32 0.0, %v3980
    %v3982 = vpop.f32.mrb[0].mxu0
    %v3983 = vadd.f32 0.0, %v3982
    %3984 = vdwg.mxu0
    %3985 = vmatprep.subr.mxu0 %v513
    %3986 = vmatpush1.msra.mxu0 %v512
    %3987 = vmatprep.subr.mxu0 %v585
    %3988 = vmatpush1.msra.mxu0 %v582
    %3989 = vmatprep.subr.mxu0 0.0
    %3990 = vmatpush1.msra.mxu0 0.0
    %3991 = vmatprep.subr.mxu0 0.0
    %3992 = vmatpush1.msra.mxu0 0.0
    %3993 = vmatprep.subr.mxu0 0.0
    %3994 = vmatpush1.msra.mxu0 0.0
    %3995 = vmatprep.subr.mxu0 0.0
    %3996 = vmatpush1.msra.mxu0 0.0
    %3997 = vmatprep.subr.mxu0 0.0
    %3998 = vmatpush1.msra.mxu0 0.0
    %3999 = vmatprep.subr.mxu0 0.0
    %4000 = vmatpush1.msra.mxu0 0.0
    %4001 = vmatprep.subr.mxu0 0.0
    %4002 = vmatpush1.msra.mxu0 0.0
    %4003 = vmatprep.subr.mxu0 0.0
    %4004 = vmatpush1.msra.mxu0 0.0
    %4005 = vmatprep.subr.mxu0 0.0
    %4006 = vmatpush1.msra.mxu0 0.0
    %4007 = vmatprep.subr.mxu0 0.0
    %4008 = vmatpush1.msra.mxu0 0.0
    %4009 = vmatprep.subr.mxu0 0.0
    %4010 = vmatpush1.msra.mxu0 0.0
    %4011 = vmatprep.subr.mxu0 0.0
    %4012 = vmatpush1.msra.mxu0 0.0
    %4013 = vmatprep.subr.mxu0 0.0
    %4014 = vmatpush1.msra.mxu0 0.0
    %4015 = vmatprep.subr.mxu0 0.0
    %4016 = vmatpush1.msra.mxu0 0.0
    %4017 = vmatprep.subr.mxu0 0.0
    %4018 = vmatpush1.msra.mxu0 0.0
    %4019 = vmatprep.subr.mxu0 0.0
    %4020 = vmatpush1.msra.mxu0 0.0
    %4021 = vmatprep.subr.mxu0 0.0
    %4022 = vmatpush1.msra.mxu0 0.0
    %4023 = vmatprep.subr.mxu0 0.0
    %4024 = vmatpush1.msra.mxu0 0.0
    %4025 = vmatprep.subr.mxu0 0.0
    %4026 = vmatpush1.msra.mxu0 0.0
    %4027 = vmatprep.subr.mxu0 0.0
    %4028 = vmatpush1.msra.mxu0 0.0
    %4029 = vmatprep.subr.mxu0 0.0
    %4030 = vmatpush1.msra.mxu0 0.0
    %4031 = vmatprep.subr.mxu0 0.0
    %4032 = vmatpush1.msra.mxu0 0.0
    %4033 = vmatprep.subr.mxu0 0.0
    %4034 = vmatpush1.msra.mxu0 0.0
    %4035 = vmatprep.subr.mxu0 0.0
    %4036 = vmatpush1.msra.mxu0 0.0
    %4037 = vmatprep.subr.mxu0 0.0
    %4038 = vmatpush1.msra.mxu0 0.0
    %4039 = vmatprep.subr.mxu0 0.0
    %4040 = vmatpush1.msra.mxu0 0.0
    %4041 = vmatprep.subr.mxu0 0.0
    %4042 = vmatpush1.msra.mxu0 0.0
    %4043 = vmatprep.subr.mxu0 0.0
    %4044 = vmatpush1.msra.mxu0 0.0
    %4045 = vmatprep.subr.mxu0 0.0
    %4046 = vmatpush1.msra.mxu0 0.0
    %4047 = vmatprep.subr.mxu0 0.0
    %4048 = vmatpush1.msra.mxu0 0.0
    %4049 = vmatprep.mubr.f32.mxu0 0.0
    %4050 = vmatmul.mubr.f32.gmra.mrb[0].mxu0 %v3486
    %v4051 = vpop.f32.mrb[0].mxu0
    %v4052 = vadd.f32 0.0, %v4051
    %v4053 = vpop.f32.mrb[0].mxu0
    %v4054 = vadd.f32 0.0, %v4053
    %4055 = vdwg.mxu0
    %4056 = vmatprep.subr.mxu0 %v515
    %4057 = vmatpush1.msra.mxu0 %v514
    %4058 = vmatprep.subr.mxu0 %v591
    %4059 = vmatpush1.msra.mxu0 %v588
    %4060 = vmatprep.subr.mxu0 0.0
    %4061 = vmatpush1.msra.mxu0 0.0
    %4062 = vmatprep.subr.mxu0 0.0
    %4063 = vmatpush1.msra.mxu0 0.0
    %4064 = vmatprep.subr.mxu0 0.0
    %4065 = vmatpush1.msra.mxu0 0.0
    %4066 = vmatprep.subr.mxu0 0.0
    %4067 = vmatpush1.msra.mxu0 0.0
    %4068 = vmatprep.subr.mxu0 0.0
    %4069 = vmatpush1.msra.mxu0 0.0
    %4070 = vmatprep.subr.mxu0 0.0
    %4071 = vmatpush1.msra.mxu0 0.0
    %4072 = vmatprep.subr.mxu0 0.0
    %4073 = vmatpush1.msra.mxu0 0.0
    %4074 = vmatprep.subr.mxu0 0.0
    %4075 = vmatpush1.msra.mxu0 0.0
    %4076 = vmatprep.subr.mxu0 0.0
    %4077 = vmatpush1.msra.mxu0 0.0
    %4078 = vmatprep.subr.mxu0 0.0
    %4079 = vmatpush1.msra.mxu0 0.0
    %4080 = vmatprep.subr.mxu0 0.0
    %4081 = vmatpush1.msra.mxu0 0.0
    %4082 = vmatprep.subr.mxu0 0.0
    %4083 = vmatpush1.msra.mxu0 0.0
    %4084 = vmatprep.subr.mxu0 0.0
    %4085 = vmatpush1.msra.mxu0 0.0
    %4086 = vmatprep.subr.mxu0 0.0
    %4087 = vmatpush1.msra.mxu0 0.0
    %4088 = vmatprep.subr.mxu0 0.0
    %4089 = vmatpush1.msra.mxu0 0.0
    %4090 = vmatprep.subr.mxu0 0.0
    %4091 = vmatpush1.msra.mxu0 0.0
    %4092 = vmatprep.subr.mxu0 0.0
    %4093 = vmatpush1.msra.mxu0 0.0
    %4094 = vmatprep.subr.mxu0 0.0
    %4095 = vmatpush1.msra.mxu0 0.0
    %4096 = vmatprep.subr.mxu0 0.0
    %4097 = vmatpush1.msra.mxu0 0.0
    %4098 = vmatprep.subr.mxu0 0.0
    %4099 = vmatpush1.msra.mxu0 0.0
    %4100 = vmatprep.subr.mxu0 0.0
    %4101 = vmatpush1.msra.mxu0 0.0
    %4102 = vmatprep.subr.mxu0 0.0
    %4103 = vmatpush1.msra.mxu0 0.0
    %4104 = vmatprep.subr.mxu0 0.0
    %4105 = vmatpush1.msra.mxu0 0.0
    %4106 = vmatprep.subr.mxu0 0.0
    %4107 = vmatpush1.msra.mxu0 0.0
    %4108 = vmatprep.subr.mxu0 0.0
    %4109 = vmatpush1.msra.mxu0 0.0
    %4110 = vmatprep.subr.mxu0 0.0
    %4111 = vmatpush1.msra.mxu0 0.0
    %4112 = vmatprep.subr.mxu0 0.0
    %4113 = vmatpush1.msra.mxu0 0.0
    %4114 = vmatprep.subr.mxu0 0.0
    %4115 = vmatpush1.msra.mxu0 0.0
    %4116 = vmatprep.subr.mxu0 0.0
    %4117 = vmatpush1.msra.mxu0 0.0
    %4118 = vmatprep.subr.mxu0 0.0
    %4119 = vmatpush1.msra.mxu0 0.0
    %4120 = vmatprep.mubr.f32.mxu0 0.0
    %4121 = vmatmul.mubr.f32.gmra.mrb[0].mxu0 %v3486
    %v4122 = vpop.f32.mrb[0].mxu0
    %v4123 = vadd.f32 0.0, %v4122
    %v4124 = vpop.f32.mrb[0].mxu0
    %v4125 = vadd.f32 0.0, %v4124
    %4126 = vdwg.mxu0
    %4136 = vrot.lane.b32.xlu0 %v3555, 124
    %v4137 = vpop.permute.xlu0 %4136
    %4138 = vrot.lane.b32.xlu0 %v3557, 124
    %v4139 = vpop.permute.xlu0 %4138
    %4140 = vrot.lane.b32.xlu0 %v3626, 124
    %v4141 = vpop.permute.xlu0 %4140
    %4142 = vrot.lane.b32.xlu0 %v3628, 124
    %v4143 = vpop.permute.xlu0 %4142
    %4144 = vrot.lane.b32.xlu0 %v3697, 124
    %v4145 = vpop.permute.xlu0 %4144
    %4146 = vrot.lane.b32.xlu0 %v3699, 124
    %v4147 = vpop.permute.xlu0 %4146
    %4148 = vrot.lane.b32.xlu0 %v3768, 124
    %v4149 = vpop.permute.xlu0 %4148
    %4150 = vrot.lane.b32.xlu0 %v3770, 124
    %v4151 = vpop.permute.xlu0 %4150
    %4152 = vrot.lane.b32.xlu0 %v3839, 124
    %v4153 = vpop.permute.xlu0 %4152
    %vm4154 = vcmask 1014784
    %v4155 = vsel %vm4154, %v4137, %v4139
    %v4156 = vsel %vm4154, %v4139, %v4141
    %v4157 = vsel %vm4154, %v4141, %v4143
    %v4158 = vsel %vm4154, %v4143, %v4145
    %v4159 = vsel %vm4154, %v4145, %v4147
    %v4160 = vsel %vm4154, %v4147, %v4149
    %v4161 = vsel %vm4154, %v4149, %v4151
    %v4162 = vsel %vm4154, %v4151, %v4153
    %v4171 = vadd.f32 %v3425, %v4155
    %v4172 = vadd.f32 %v3426, %v4156
    %v4173 = vadd.f32 %v3427, %v4157
    %v4174 = vadd.f32 %v3428, %v4158
    %v4175 = vadd.f32 %v3429, %v4159
    %v4176 = vadd.f32 %v3430, %v4160
    %v4177 = vadd.f32 %v3431, %v4161
    %v4178 = vadd.f32 %v3432, %v4162
    %4188 = vrot.lane.b32.xlu0 %v3841, 124
    %v4189 = vpop.permute.xlu0 %4188
    %4190 = vrot.lane.b32.xlu0 %v3910, 124
    %v4191 = vpop.permute.xlu0 %4190
    %4192 = vrot.lane.b32.xlu0 %v3912, 124
    %v4193 = vpop.permute.xlu0 %4192
    %4194 = vrot.lane.b32.xlu0 %v3981, 124
    %v4195 = vpop.permute.xlu0 %4194
    %4196 = vrot.lane.b32.xlu0 %v3983, 124
    %v4197 = vpop.permute.xlu0 %4196
    %4198 = vrot.lane.b32.xlu0 %v4052, 124
    %v4199 = vpop.permute.xlu0 %4198
    %4200 = vrot.lane.b32.xlu0 %v4054, 124
    %v4201 = vpop.permute.xlu0 %4200
    %4202 = vrot.lane.b32.xlu0 %v4123, 124
    %v4203 = vpop.permute.xlu0 %4202
    %4204 = vrot.lane.b32.xlu0 %v4125, 124
    %v4205 = vpop.permute.xlu0 %4204
    %v4206 = vsel %vm4154, %v4189, %v4191
    %v4207 = vsel %vm4154, %v4191, %v4193
    %v4208 = vsel %vm4154, %v4193, %v4195
    %v4209 = vsel %vm4154, %v4195, %v4197
    %v4210 = vsel %vm4154, %v4197, %v4199
    %v4211 = vsel %vm4154, %v4199, %v4201
    %v4212 = vsel %vm4154, %v4201, %v4203
    %v4213 = vsel %vm4154, %v4203, %v4205
    %v4222 = vadd.f32 %v3476, %v4206
    %v4223 = vadd.f32 %v3477, %v4207
    %v4224 = vadd.f32 %v3478, %v4208
    %v4225 = vadd.f32 %v3479, %v4209
    %v4226 = vadd.f32 %v3480, %v4210
    %v4227 = vadd.f32 %v3481, %v4211
    %v4228 = vadd.f32 %v3482, %v4212
    %v4229 = vadd.f32 %v3483, %v4213
    %v4230 = vld [vmem:[%s2] sm:$0x3f]
    %4232 = vset.pattern.permute.xlu0 0
    %4233 = vperm.xlu0 %4232, %v4230
    %v4234 = vpop.permute.xlu0 %4233
    %v4236 = vadd.f32 %v4171, %v4234
    %v4237 = vadd.f32 %v4172, %v4234
    %v4238 = vadd.f32 %v4173, %v4234
    %v4239 = vadd.f32 %v4174, %v4234
    %v4240 = vadd.f32 %v4175, %v4234
    %v4241 = vadd.f32 %v4176, %v4234
    %v4242 = vadd.f32 %v4177, %v4234
    %v4243 = vadd.f32 %v4178, %v4234
    %v4244 = vmax.f32 %v4236, 0.0
    %v4245 = vmax.f32 %v4237, 0.0
    %v4246 = vmax.f32 %v4238, 0.0
    %v4247 = vmax.f32 %v4239, 0.0
    %v4248 = vmax.f32 %v4240, 0.0
    %v4249 = vmax.f32 %v4241, 0.0
    %v4250 = vmax.f32 %v4242, 0.0
    %v4251 = vmax.f32 %v4243, 0.0
    %v4252 = vadd.f32 %v4222, %v4234
    %v4253 = vadd.f32 %v4223, %v4234
    %v4254 = vadd.f32 %v4224, %v4234
    %v4255 = vadd.f32 %v4225, %v4234
    %v4256 = vadd.f32 %v4226, %v4234
    %v4257 = vadd.f32 %v4227, %v4234
    %v4258 = vadd.f32 %v4228, %v4234
    %v4259 = vadd.f32 %v4229, %v4234
    %v4260 = vmax.f32 %v4252, 0.0
    %v4261 = vmax.f32 %v4253, 0.0
    %v4262 = vmax.f32 %v4254, 0.0
    %v4263 = vmax.f32 %v4255, 0.0
    %v4264 = vmax.f32 %v4256, 0.0
    %v4265 = vmax.f32 %v4257, 0.0
    %v4266 = vmax.f32 %v4258, 0.0
    %v4267 = vmax.f32 %v4259, 0.0
    %4276 = vrot.lane.b32.xlu0 %v4244, 127
    %v4277 = vpop.permute.xlu0 %4276
    %4278 = vrot.lane.b32.xlu0 %v4245, 127
    %v4279 = vpop.permute.xlu0 %4278
    %4280 = vrot.lane.b32.xlu0 %v4246, 127
    %v4281 = vpop.permute.xlu0 %4280
    %4282 = vrot.lane.b32.xlu0 %v4247, 127
    %v4283 = vpop.permute.xlu0 %4282
    %4284 = vrot.lane.b32.xlu0 %v4248, 127
    %v4285 = vpop.permute.xlu0 %4284
    %4286 = vrot.lane.b32.xlu0 %v4249, 127
    %v4287 = vpop.permute.xlu0 %4286
    %4288 = vrot.lane.b32.xlu0 %v4250, 127
    %v4289 = vpop.permute.xlu0 %4288
    %4290 = vrot.lane.b32.xlu0 %v4251, 127
    %v4291 = vpop.permute.xlu0 %4290
    %v4292 = vsel %vm1916, %v4277, %v4279
    %v4293 = vsel %vm1916, %v4279, %v4281
    %v4294 = vsel %vm1916, %v4281, %v4283
    %v4295 = vsel %vm1916, %v4283, %v4285
    %v4296 = vsel %vm1916, %v4285, %v4287
    %v4297 = vsel %vm1916, %v4287, %v4289
    %v4298 = vsel %vm1916, %v4289, %v4291
    %v4307 = vmax.f32 %v4244, %v4292
    %v4308 = vmax.f32 %v4245, %v4293
    %v4309 = vmax.f32 %v4246, %v4294
    %v4310 = vmax.f32 %v4247, %v4295
    %v4311 = vmax.f32 %v4248, %v4296
    %v4312 = vmax.f32 %v4249, %v4297
    %v4313 = vmax.f32 %v4250, %v4298
    %v4314 = vmax.f32 %v4251, %v4291
    %4323 = vrot.lane.b32.xlu0 %v4307, 96
    %v4324 = vpop.permute.xlu0 %4323
    %4325 = vrot.lane.b32.xlu0 %v4308, 96
    %v4326 = vpop.permute.xlu0 %4325
    %4327 = vrot.lane.b32.xlu0 %v4309, 96
    %v4328 = vpop.permute.xlu0 %4327
    %4329 = vrot.lane.b32.xlu0 %v4310, 96
    %v4330 = vpop.permute.xlu0 %4329
    %4331 = vrot.lane.b32.xlu0 %v4311, 96
    %v4332 = vpop.permute.xlu0 %4331
    %4333 = vrot.lane.b32.xlu0 %v4312, 96
    %v4334 = vpop.permute.xlu0 %4333
    %4335 = vrot.lane.b32.xlu0 %v4313, 96
    %v4336 = vpop.permute.xlu0 %4335
    %4337 = vrot.lane.b32.xlu0 %v4314, 96
    %v4338 = vpop.permute.xlu0 %4337
    %v4339 = vsel %vm101, %v4324, %v4326
    %v4340 = vsel %vm101, %v4326, %v4328
    %v4341 = vsel %vm101, %v4328, %v4330
    %v4342 = vsel %vm101, %v4330, %v4332
    %v4343 = vsel %vm101, %v4332, %v4334
    %v4344 = vsel %vm101, %v4334, %v4336
    %v4345 = vsel %vm101, %v4336, %v4338
    %v4354 = vmax.f32 %v4307, %v4339
    %v4355 = vmax.f32 %v4308, %v4340
    %v4356 = vmax.f32 %v4309, %v4341
    %v4357 = vmax.f32 %v4310, %v4342
    %v4358 = vmax.f32 %v4311, %v4343
    %v4359 = vmax.f32 %v4312, %v4344
    %v4360 = vmax.f32 %v4313, %v4345
    %v4361 = vmax.f32 %v4314, %v4338
    %4370 = vrot.lane.b32.xlu0 %v4260, 127
    %v4371 = vpop.permute.xlu0 %4370
    %4372 = vrot.lane.b32.xlu0 %v4261, 127
    %v4373 = vpop.permute.xlu0 %4372
    %4374 = vrot.lane.b32.xlu0 %v4262, 127
    %v4375 = vpop.permute.xlu0 %4374
    %4376 = vrot.lane.b32.xlu0 %v4263, 127
    %v4377 = vpop.permute.xlu0 %4376
    %4378 = vrot.lane.b32.xlu0 %v4264, 127
    %v4379 = vpop.permute.xlu0 %4378
    %4380 = vrot.lane.b32.xlu0 %v4265, 127
    %v4381 = vpop.permute.xlu0 %4380
    %4382 = vrot.lane.b32.xlu0 %v4266, 127
    %v4383 = vpop.permute.xlu0 %4382
    %4384 = vrot.lane.b32.xlu0 %v4267, 127
    %v4385 = vpop.permute.xlu0 %4384
    %v4386 = vsel %vm1916, %v4371, %v4373
    %v4387 = vsel %vm1916, %v4373, %v4375
    %v4388 = vsel %vm1916, %v4375, %v4377
    %v4389 = vsel %vm1916, %v4377, %v4379
    %v4390 = vsel %vm1916, %v4379, %v4381
    %v4391 = vsel %vm1916, %v4381, %v4383
    %v4392 = vsel %vm1916, %v4383, %v4385
    %v4401 = vmax.f32 %v4260, %v4386
    %v4402 = vmax.f32 %v4261, %v4387
    %v4403 = vmax.f32 %v4262, %v4388
    %v4404 = vmax.f32 %v4263, %v4389
    %v4405 = vmax.f32 %v4264, %v4390
    %v4406 = vmax.f32 %v4265, %v4391
    %v4407 = vmax.f32 %v4266, %v4392
    %v4408 = vmax.f32 %v4267, %v4385
    %4417 = vrot.lane.b32.xlu0 %v4401, 96
    %v4418 = vpop.permute.xlu0 %4417
    %4419 = vrot.lane.b32.xlu0 %v4402, 96
    %v4420 = vpop.permute.xlu0 %4419
    %4421 = vrot.lane.b32.xlu0 %v4403, 96
    %v4422 = vpop.permute.xlu0 %4421
    %4423 = vrot.lane.b32.xlu0 %v4404, 96
    %v4424 = vpop.permute.xlu0 %4423
    %4425 = vrot.lane.b32.xlu0 %v4405, 96
    %v4426 = vpop.permute.xlu0 %4425
    %4427 = vrot.lane.b32.xlu0 %v4406, 96
    %v4428 = vpop.permute.xlu0 %4427
    %4429 = vrot.lane.b32.xlu0 %v4407, 96
    %v4430 = vpop.permute.xlu0 %4429
    %4431 = vrot.lane.b32.xlu0 %v4408, 96
    %v4432 = vpop.permute.xlu0 %4431
    %v4433 = vsel %vm101, %v4418, %v4420
    %v4434 = vsel %vm101, %v4420, %v4422
    %v4435 = vsel %vm101, %v4422, %v4424
    %v4436 = vsel %vm101, %v4424, %v4426
    %v4437 = vsel %vm101, %v4426, %v4428
    %v4438 = vsel %vm101, %v4428, %v4430
    %v4439 = vsel %vm101, %v4430, %v4432
    %v4448 = vmax.f32 %v4401, %v4433
    %v4449 = vmax.f32 %v4402, %v4434
    %v4450 = vmax.f32 %v4403, %v4435
    %v4451 = vmax.f32 %v4404, %v4436
    %v4452 = vmax.f32 %v4405, %v4437
    %v4453 = vmax.f32 %v4406, %v4438
    %v4454 = vmax.f32 %v4407, %v4439
    %v4455 = vmax.f32 %v4408, %v4432
    %4456 = vst [vmem:[#allocation3] sm:$0xff] 0.0
    %4457 = vst [vmem:[#allocation3 + $0x8] sm:$0xff] 0.0
    %4458 = vst [vmem:[#allocation3 + $0x10] sm:$0xff] 0.0
    %4459 = vst [vmem:[#allocation3 + $0x18] sm:$0xff] 0.0
    %4460 = vst [vmem:[#allocation3 + $0x20] sm:$0xff] 0.0
    %4461 = vst [vmem:[#allocation3 + $0x28] sm:$0xff] 0.0
    %4462 = vst [vmem:[#allocation3 + $0x30] sm:$0xff] 0.0
    %4463 = vst [vmem:[#allocation3 + $0x38] sm:$0xff] 0.0
    %4464 = vst [vmem:[#allocation3 + $0x40] sm:$0xff] 0.0
    %4465 = vst [vmem:[#allocation3 + $0x48] sm:$0xff] 0.0
    %4466 = vst [vmem:[#allocation3 + $0x50] sm:$0xff] 0.0
    %4467 = vst [vmem:[#allocation3 + $0x58] sm:$0xff] 0.0
    %4468 = vst [vmem:[#allocation3 + $0x60] sm:$0xff] 0.0
    %4469 = vst [vmem:[#allocation3 + $0x68] sm:$0xff] 0.0
    %4470 = vst [vmem:[#allocation3 + $0x70] sm:$0xff] 0.0
    %4471 = vst [vmem:[#allocation3 + $0x78] sm:$0xff] 0.0
    %4472 = vst [vmem:[#allocation3 + $0x80] sm:$0xff] 0.0
    %4473 = vst [vmem:[#allocation3 + $0x88] sm:$0xff] 0.0
    %4474 = vst [vmem:[#allocation3 + $0x90] sm:$0xff] 0.0
    %4475 = vst [vmem:[#allocation3 + $0x98] sm:$0xff] 0.0
    %4476 = vst [vmem:[#allocation3 + $0xa0] sm:$0xff] 0.0
    %4477 = vst [vmem:[#allocation3 + $0xa8] sm:$0xff] 0.0
    %4478 = vst [vmem:[#allocation3 + $0xb0] sm:$0xff] 0.0
    %4479 = vst [vmem:[#allocation3 + $0xb8] sm:$0xff] 0.0
    %4480 = vst [vmem:[#allocation3 + $0xc0] sm:$0xff] 0.0
    %4481 = vst [vmem:[#allocation3 + $0xc8] sm:$0xff] 0.0
    %4482 = vst [vmem:[#allocation3 + $0xd0] sm:$0xff] 0.0
    %4483 = vst [vmem:[#allocation3 + $0xd8] sm:$0xff] 0.0
    %4484 = vst [vmem:[#allocation3 + $0xe0] sm:$0xff] 0.0
    %4485 = vst [vmem:[#allocation3 + $0xe8] sm:$0xff] 0.0
    %4486 = vst [vmem:[#allocation3 + $0xf0] sm:$0xff] 0.0
    %4487 = vst [vmem:[#allocation3 + $0xf8] sm:$0xff] 0.0
    %4488 = vst [vmem:[#allocation3 + $0x100] sm:$0xff] 0.0
    %4489 = vst [vmem:[#allocation3 + $0x108] sm:$0xff] 0.0
    %4490 = vst [vmem:[#allocation3 + $0x110] sm:$0xff] 0.0
    %4491 = vst [vmem:[#allocation3 + $0x118] sm:$0xff] 0.0
    %4492 = vst [vmem:[#allocation3 + $0x120] sm:$0x3f] 0.0
    %4493 = vst [vmem:[#allocation3 + $0x128] sm:$0x3f] 0.0
    %4494 = vst [vmem:[#allocation3 + $0x130] sm:$0x3f] 0.0
    %4495 = vst [vmem:[#allocation3 + $0x138] sm:$0x3f] 0.0
    %4496 = vst [vmem:[#allocation3 + $0x140] sm:$0x3f] 0.0
    %4497 = vst [vmem:[#allocation3 + $0x148] sm:$0x3f] 0.0
    %4498 = vst [vmem:[#allocation3 + $0x150] sm:$0x3f] 0.0
    %4499 = vst [vmem:[#allocation3 + $0x158] sm:$0x3f] 0.0
    %4500 = vst [vmem:[#allocation3 + $0x160] sm:$0x3f] 0.0
    %4501 = vst [vmem:[#allocation3 + $0x168] sm:$0x3f] 0.0
    %4502 = vst [vmem:[#allocation3 + $0x170] sm:$0x3f] 0.0
    %4503 = vst [vmem:[#allocation3 + $0x178] sm:$0x3f] 0.0
    %4504 = vst [vmem:[#allocation3] sm:$0x3f] %v4354
    %4505 = vst [vmem:[#allocation3 + $0x8] sm:$0x3f] %v4355
    %4506 = vst [vmem:[#allocation3 + $0x10] sm:$0x3f] %v4356
    %4507 = vst [vmem:[#allocation3 + $0x18] sm:$0x3f] %v4357
    %4508 = vst [vmem:[#allocation3 + $0x20] sm:$0x3f] %v4358
    %vm4509 = vcmask 62464
    %4510 = vst.msk [vmem:[#allocation3 + $0x28] sm:$0x3f] %vm4509, %v4359
    %v4517 = vrot.slane %v4354, 2
    %v4518 = vrot.slane %v4355, 2
    %v4519 = vrot.slane %v4356, 2
    %v4520 = vrot.slane %v4357, 2
    %v4521 = vrot.slane %v4358, 2
    %v4522 = vrot.slane %v4359, 2
    %4523 = vrot.lane.b32.xlu0 %v4517, 64
    %v4524 = vpop.permute.xlu0 %4523
    %4525 = vrot.lane.b32.xlu0 %v4518, 64
    %v4526 = vpop.permute.xlu0 %4525
    %4527 = vrot.lane.b32.xlu0 %v4519, 64
    %v4528 = vpop.permute.xlu0 %4527
    %4529 = vrot.lane.b32.xlu0 %v4520, 64
    %v4530 = vpop.permute.xlu0 %4529
    %4531 = vrot.lane.b32.xlu0 %v4521, 64
    %v4532 = vpop.permute.xlu0 %4531
    %4533 = vrot.lane.b32.xlu0 %v4522, 64
    %v4534 = vpop.permute.xlu0 %4533
    %v4535 = vsel %vm159, %v4524, %v4526
    %v4536 = vsel %vm159, %v4526, %v4528
    %v4537 = vsel %vm159, %v4528, %v4530
    %v4538 = vsel %vm159, %v4530, %v4532
    %v4539 = vsel %vm159, %v4532, %v4534
    %4546 = vst [vmem:[#allocation3] sm:$0xc0] %v4535
    %4547 = vst [vmem:[#allocation3 + $0x8] sm:$0xc0] %v4536
    %4548 = vst [vmem:[#allocation3 + $0x10] sm:$0xc0] %v4537
    %4549 = vst [vmem:[#allocation3 + $0x18] sm:$0xc0] %v4538
    %4550 = vst [vmem:[#allocation3 + $0x20] sm:$0xc0] %v4539
    %vm4551 = vcmask 64518
    %4552 = vst.msk [vmem:[#allocation3 + $0x28] sm:$0xc0] %vm4551, %v4534
    %4553 = vst [vmem:[#allocation3 + $0x60] sm:$0xf] %v4535
    %4554 = vst [vmem:[#allocation3 + $0x68] sm:$0xf] %v4536
    %4555 = vst [vmem:[#allocation3 + $0x70] sm:$0xf] %v4537
    %4556 = vst [vmem:[#allocation3 + $0x78] sm:$0xf] %v4538
    %4557 = vst [vmem:[#allocation3 + $0x80] sm:$0xf] %v4539
    %vm4558 = vcmask 60416
    %4559 = vst.msk [vmem:[#allocation3 + $0x88] sm:$0xf] %vm4558, %v4534
    %v4561 = vrot.slane %v4355, 4
    %v4562 = vrot.slane %v4356, 4
    %v4563 = vrot.slane %v4357, 4
    %v4564 = vrot.slane %v4358, 4
    %v4565 = vrot.slane %v4359, 4
    %v4566 = vrot.slane %v4360, 4
    %4573 = vst [vmem:[#allocation3 + $0x60] sm:$0xf0] %v4561
    %4574 = vst [vmem:[#allocation3 + $0x68] sm:$0xf0] %v4562
    %4575 = vst [vmem:[#allocation3 + $0x70] sm:$0xf0] %v4563
    %4576 = vst [vmem:[#allocation3 + $0x78] sm:$0xf0] %v4564
    %4577 = vst [vmem:[#allocation3 + $0x80] sm:$0xf0] %v4565
    %vm4578 = vcmask 64516
    %4579 = vst.msk [vmem:[#allocation3 + $0x88] sm:$0xf0] %vm4578, %v4566
    %4580 = vst [vmem:[#allocation3 + $0xc0] sm:$0x3] %v4561
    %4581 = vst [vmem:[#allocation3 + $0xc8] sm:$0x3] %v4562
    %4582 = vst [vmem:[#allocation3 + $0xd0] sm:$0x3] %v4563
    %4583 = vst [vmem:[#allocation3 + $0xd8] sm:$0x3] %v4564
    %4584 = vst [vmem:[#allocation3 + $0xe0] sm:$0x3] %v4565
    %vm4585 = vcmask 58368
    %4586 = vst.msk [vmem:[#allocation3 + $0xe8] sm:$0x3] %vm4585, %v4566
    %v4587 = vrot.slane %v4355, 6
    %v4588 = vrot.slane %v4356, 6
    %v4589 = vrot.slane %v4357, 6
    %v4590 = vrot.slane %v4358, 6
    %v4591 = vrot.slane %v4359, 6
    %v4592 = vrot.slane %v4360, 6
    %4593 = vrot.lane.b32.xlu0 %v4587, 64
    %v4594 = vpop.permute.xlu0 %4593
    %4595 = vrot.lane.b32.xlu0 %v4588, 64
    %v4596 = vpop.permute.xlu0 %4595
    %4597 = vrot.lane.b32.xlu0 %v4589, 64
    %v4598 = vpop.permute.xlu0 %4597
    %4599 = vrot.lane.b32.xlu0 %v4590, 64
    %v4600 = vpop.permute.xlu0 %4599
    %4601 = vrot.lane.b32.xlu0 %v4591, 64
    %v4602 = vpop.permute.xlu0 %4601
    %4603 = vrot.lane.b32.xlu0 %v4592, 64
    %v4604 = vpop.permute.xlu0 %4603
    %v4605 = vsel %vm159, %v4594, %v4596
    %v4606 = vsel %vm159, %v4596, %v4598
    %v4607 = vsel %vm159, %v4598, %v4600
    %v4608 = vsel %vm159, %v4600, %v4602
    %v4609 = vsel %vm159, %v4602, %v4604
    %4616 = vst [vmem:[#allocation3 + $0xc0] sm:$0xfc] %v4605
    %4617 = vst [vmem:[#allocation3 + $0xc8] sm:$0xfc] %v4606
    %4618 = vst [vmem:[#allocation3 + $0xd0] sm:$0xfc] %v4607
    %4619 = vst [vmem:[#allocation3 + $0xd8] sm:$0xfc] %v4608
    %4620 = vst [vmem:[#allocation3 + $0xe0] sm:$0xfc] %v4609
    %vm4621 = vcmask 64514
    %4622 = vst.msk [vmem:[#allocation3 + $0xe8] sm:$0xfc] %vm4621, %v4604
    %4623 = vst [vmem:[#allocation3 + $0x120] sm:$0x3f] %v4356
    %4624 = vst [vmem:[#allocation3 + $0x128] sm:$0x3f] %v4357
    %4625 = vst [vmem:[#allocation3 + $0x130] sm:$0x3f] %v4358
    %4626 = vst [vmem:[#allocation3 + $0x138] sm:$0x3f] %v4359
    %4627 = vst [vmem:[#allocation3 + $0x140] sm:$0x3f] %v4360
    %4628 = vst.msk [vmem:[#allocation3 + $0x148] sm:$0x3f] %vm4509, %v4361
    %4629 = vst [vmem:[#allocation3 + $0x30] sm:$0x3f] %v4448
    %4630 = vst [vmem:[#allocation3 + $0x38] sm:$0x3f] %v4449
    %4631 = vst [vmem:[#allocation3 + $0x40] sm:$0x3f] %v4450
    %4632 = vst [vmem:[#allocation3 + $0x48] sm:$0x3f] %v4451
    %4633 = vst [vmem:[#allocation3 + $0x50] sm:$0x3f] %v4452
    %4634 = vst.msk [vmem:[#allocation3 + $0x58] sm:$0x3f] %vm4509, %v4453
    %v4641 = vrot.slane %v4448, 2
    %v4642 = vrot.slane %v4449, 2
    %v4643 = vrot.slane %v4450, 2
    %v4644 = vrot.slane %v4451, 2
    %v4645 = vrot.slane %v4452, 2
    %v4646 = vrot.slane %v4453, 2
    %4647 = vrot.lane.b32.xlu0 %v4641, 64
    %v4648 = vpop.permute.xlu0 %4647
    %4649 = vrot.lane.b32.xlu0 %v4642, 64
    %v4650 = vpop.permute.xlu0 %4649
    %4651 = vrot.lane.b32.xlu0 %v4643, 64
    %v4652 = vpop.permute.xlu0 %4651
    %4653 = vrot.lane.b32.xlu0 %v4644, 64
    %v4654 = vpop.permute.xlu0 %4653
    %4655 = vrot.lane.b32.xlu0 %v4645, 64
    %v4656 = vpop.permute.xlu0 %4655
    %4657 = vrot.lane.b32.xlu0 %v4646, 64
    %v4658 = vpop.permute.xlu0 %4657
    %v4659 = vsel %vm159, %v4648, %v4650
    %v4660 = vsel %vm159, %v4650, %v4652
    %v4661 = vsel %vm159, %v4652, %v4654
    %v4662 = vsel %vm159, %v4654, %v4656
    %v4663 = vsel %vm159, %v4656, %v4658
    %4670 = vst [vmem:[#allocation3 + $0x30] sm:$0xc0] %v4659
    %4671 = vst [vmem:[#allocation3 + $0x38] sm:$0xc0] %v4660
    %4672 = vst [vmem:[#allocation3 + $0x40] sm:$0xc0] %v4661
    %4673 = vst [vmem:[#allocation3 + $0x48] sm:$0xc0] %v4662
    %4674 = vst [vmem:[#allocation3 + $0x50] sm:$0xc0] %v4663
    %4675 = vst.msk [vmem:[#allocation3 + $0x58] sm:$0xc0] %vm4551, %v4658
    %4676 = vst [vmem:[#allocation3 + $0x90] sm:$0xf] %v4659
    %4677 = vst [vmem:[#allocation3 + $0x98] sm:$0xf] %v4660
    %4678 = vst [vmem:[#allocation3 + $0xa0] sm:$0xf] %v4661
    %4679 = vst [vmem:[#allocation3 + $0xa8] sm:$0xf] %v4662
    %4680 = vst [vmem:[#allocation3 + $0xb0] sm:$0xf] %v4663
    %4681 = vst.msk [vmem:[#allocation3 + $0xb8] sm:$0xf] %vm4558, %v4658
    %v4683 = vrot.slane %v4449, 4
    %v4684 = vrot.slane %v4450, 4
    %v4685 = vrot.slane %v4451, 4
    %v4686 = vrot.slane %v4452, 4
    %v4687 = vrot.slane %v4453, 4
    %v4688 = vrot.slane %v4454, 4
    %4695 = vst [vmem:[#allocation3 + $0x90] sm:$0xf0] %v4683
    %4696 = vst [vmem:[#allocation3 + $0x98] sm:$0xf0] %v4684
    %4697 = vst [vmem:[#allocation3 + $0xa0] sm:$0xf0] %v4685
    %4698 = vst [vmem:[#allocation3 + $0xa8] sm:$0xf0] %v4686
    %4699 = vst [vmem:[#allocation3 + $0xb0] sm:$0xf0] %v4687
    %4700 = vst.msk [vmem:[#allocation3 + $0xb8] sm:$0xf0] %vm4578, %v4688
    %4701 = vst [vmem:[#allocation3 + $0xf0] sm:$0x3] %v4683
    %4702 = vst [vmem:[#allocation3 + $0xf8] sm:$0x3] %v4684
    %4703 = vst [vmem:[#allocation3 + $0x100] sm:$0x3] %v4685
    %4704 = vst [vmem:[#allocation3 + $0x108] sm:$0x3] %v4686
    %4705 = vst [vmem:[#allocation3 + $0x110] sm:$0x3] %v4687
    %4706 = vst.msk [vmem:[#allocation3 + $0x118] sm:$0x3] %vm4585, %v4688
    %v4707 = vrot.slane %v4449, 6
    %v4708 = vrot.slane %v4450, 6
    %v4709 = vrot.slane %v4451, 6
    %v4710 = vrot.slane %v4452, 6
    %v4711 = vrot.slane %v4453, 6
    %v4712 = vrot.slane %v4454, 6
    %4713 = vrot.lane.b32.xlu0 %v4707, 64
    %v4714 = vpop.permute.xlu0 %4713
    %4715 = vrot.lane.b32.xlu0 %v4708, 64
    %v4716 = vpop.permute.xlu0 %4715
    %4717 = vrot.lane.b32.xlu0 %v4709, 64
    %v4718 = vpop.permute.xlu0 %4717
    %4719 = vrot.lane.b32.xlu0 %v4710, 64
    %v4720 = vpop.permute.xlu0 %4719
    %4721 = vrot.lane.b32.xlu0 %v4711, 64
    %v4722 = vpop.permute.xlu0 %4721
    %4723 = vrot.lane.b32.xlu0 %v4712, 64
    %v4724 = vpop.permute.xlu0 %4723
    %v4725 = vsel %vm159, %v4714, %v4716
    %v4726 = vsel %vm159, %v4716, %v4718
    %v4727 = vsel %vm159, %v4718, %v4720
    %v4728 = vsel %vm159, %v4720, %v4722
    %v4729 = vsel %vm159, %v4722, %v4724
    %4736 = vst [vmem:[#allocation3 + $0xf0] sm:$0xfc] %v4725
    %4737 = vst [vmem:[#allocation3 + $0xf8] sm:$0xfc] %v4726
    %4738 = vst [vmem:[#allocation3 + $0x100] sm:$0xfc] %v4727
    %4739 = vst [vmem:[#allocation3 + $0x108] sm:$0xfc] %v4728
    %4740 = vst [vmem:[#allocation3 + $0x110] sm:$0xfc] %v4729
    %4741 = vst.msk [vmem:[#allocation3 + $0x118] sm:$0xfc] %vm4621, %v4724
    %4742 = vst [vmem:[#allocation3 + $0x150] sm:$0x3f] %v4450
    %4743 = vst [vmem:[#allocation3 + $0x158] sm:$0x3f] %v4451
    %4744 = vst [vmem:[#allocation3 + $0x160] sm:$0x3f] %v4452
    %4745 = vst [vmem:[#allocation3 + $0x168] sm:$0x3f] %v4453
    %4746 = vst [vmem:[#allocation3 + $0x170] sm:$0x3f] %v4454
    %4747 = vst.msk [vmem:[#allocation3 + $0x178] sm:$0x3f] %vm4509, %v4455
    %v4748 = vld [vmem:[%s3] sm:$0xff]
    %v4749 = vld [vmem:[%s3 + $0x10] sm:$0xff]
    %v4750 = vld [vmem:[#allocation3] sm:$0xff]
    %v4751 = vld [vmem:[#allocation3 + $0x8] sm:$0xff]
    %v4752 = vld [vmem:[#allocation3 + $0x10] sm:$0xff]
    %v4753 = vld [vmem:[#allocation3 + $0x18] sm:$0xff]
    %v4754 = vld [vmem:[#allocation3 + $0x20] sm:$0xff]
    %v4755 = vld [vmem:[#allocation3 + $0x28] sm:$0xff]
    %v4756 = vld [vmem:[#allocation3 + $0x30] sm:$0xff]
    %v4757 = vld [vmem:[#allocation3 + $0x38] sm:$0xff]
    %v4758 = vld [vmem:[#allocation3 + $0x40] sm:$0xff]
    %v4759 = vld [vmem:[#allocation3 + $0x48] sm:$0xff]
    %v4760 = vld [vmem:[#allocation3 + $0x50] sm:$0xff]
    %v4761 = vld [vmem:[#allocation3 + $0x58] sm:$0xff]
    %v4762 = vld [vmem:[#allocation3 + $0x60] sm:$0xff]
    %v4763 = vld [vmem:[#allocation3 + $0x68] sm:$0xff]
    %v4764 = vld [vmem:[#allocation3 + $0x70] sm:$0xff]
    %v4765 = vld [vmem:[#allocation3 + $0x78] sm:$0xff]
    %v4766 = vld [vmem:[#allocation3 + $0x80] sm:$0xff]
    %v4767 = vld [vmem:[#allocation3 + $0x88] sm:$0xff]
    %v4768 = vld [vmem:[#allocation3 + $0x90] sm:$0xff]
    %v4769 = vld [vmem:[#allocation3 + $0x98] sm:$0xff]
    %v4770 = vld [vmem:[#allocation3 + $0xa0] sm:$0xff]
    %v4771 = vld [vmem:[#allocation3 + $0xa8] sm:$0xff]
    %v4772 = vld [vmem:[#allocation3 + $0xb0] sm:$0xff]
    %v4773 = vld [vmem:[#allocation3 + $0xb8] sm:$0xff]
    %v4774 = vld [vmem:[#allocation3 + $0xc0] sm:$0xff]
    %v4775 = vld [vmem:[#allocation3 + $0xc8] sm:$0xff]
    %v4776 = vld [vmem:[#allocation3 + $0xd0] sm:$0xff]
    %v4777 = vld [vmem:[#allocation3 + $0xd8] sm:$0xff]
    %v4778 = vld [vmem:[#allocation3 + $0xe0] sm:$0xff]
    %v4779 = vld [vmem:[#allocation3 + $0xe8] sm:$0xff]
    %v4780 = vld [vmem:[#allocation3 + $0xf0] sm:$0xff]
    %v4781 = vld [vmem:[#allocation3 + $0xf8] sm:$0xff]
    %v4782 = vld [vmem:[#allocation3 + $0x100] sm:$0xff]
    %v4783 = vld [vmem:[#allocation3 + $0x108] sm:$0xff]
    %v4784 = vld [vmem:[#allocation3 + $0x110] sm:$0xff]
    %v4785 = vld [vmem:[#allocation3 + $0x118] sm:$0xff]
    %v4786 = vld [vmem:[#allocation3 + $0x120] sm:$0x3f]
    %v4787 = vld [vmem:[#allocation3 + $0x128] sm:$0x3f]
    %v4788 = vld [vmem:[#allocation3 + $0x130] sm:$0x3f]
    %v4789 = vld [vmem:[#allocation3 + $0x138] sm:$0x3f]
    %v4790 = vld [vmem:[#allocation3 + $0x140] sm:$0x3f]
    %v4791 = vld [vmem:[#allocation3 + $0x148] sm:$0x3f]
    %v4792 = vld [vmem:[#allocation3 + $0x150] sm:$0x3f]
    %v4793 = vld [vmem:[#allocation3 + $0x158] sm:$0x3f]
    %v4794 = vld [vmem:[#allocation3 + $0x160] sm:$0x3f]
    %v4795 = vld [vmem:[#allocation3 + $0x168] sm:$0x3f]
    %v4796 = vld [vmem:[#allocation3 + $0x170] sm:$0x3f]
    %v4797 = vld [vmem:[#allocation3 + $0x178] sm:$0x3f]
    %vm4798 = vcmask 244736
    %v4800 = vsel %vm4798, %v4748, 0
    %v4803 = vsel %vm4798, %v4749, 0
    %vm4805 = vcmask 1045504
    %v4807 = vsel %vm4805, %v4786, 0
    %v4810 = vsel %vm4805, %v4787, 0
    %v4813 = vsel %vm4805, %v4788, 0
    %v4816 = vsel %vm4805, %v4789, 0
    %v4819 = vsel %vm4805, %v4790, 0
    %v4822 = vsel %vm4805, %v4791, 0
    %v4825 = vsel %vm4805, %v4792, 0
    %v4828 = vsel %vm4805, %v4793, 0
    %v4831 = vsel %vm4805, %v4794, 0
    %v4834 = vsel %vm4805, %v4795, 0
    %v4837 = vsel %vm4805, %v4796, 0
    %v4840 = vsel %vm4805, %v4797, 0
    %4842 = vmatprep.subr.mxu0 %v4751
    %4843 = vmatpush1.msra.mxu0 %v4750
    %4844 = vmatprep.subr.mxu0 %v4763
    %4845 = vmatpush1.msra.mxu0 %v4762
    %4846 = vmatprep.subr.mxu0 %v4775
    %4847 = vmatpush1.msra.mxu0 %v4774
    %4848 = vmatprep.subr.mxu0 %v4810
    %4849 = vmatpush1.msra.mxu0 %v4807
    %4850 = vmatprep.subr.mxu0 0.0
    %4851 = vmatpush1.msra.mxu0 0.0
    %4852 = vmatprep.subr.mxu0 0.0
    %4853 = vmatpush1.msra.mxu0 0.0
    %4854 = vmatprep.subr.mxu0 0.0
    %4855 = vmatpush1.msra.mxu0 0.0
    %4856 = vmatprep.subr.mxu0 0.0
    %4857 = vmatpush1.msra.mxu0 0.0
    %4858 = vmatprep.subr.mxu0 0.0
    %4859 = vmatpush1.msra.mxu0 0.0
    %4860 = vmatprep.subr.mxu0 0.0
    %4861 = vmatpush1.msra.mxu0 0.0
    %4862 = vmatprep.subr.mxu0 0.0
    %4863 = vmatpush1.msra.mxu0 0.0
    %4864 = vmatprep.subr.mxu0 0.0
    %4865 = vmatpush1.msra.mxu0 0.0
    %4866 = vmatprep.subr.mxu0 0.0
    %4867 = vmatpush1.msra.mxu0 0.0
    %4868 = vmatprep.subr.mxu0 0.0
    %4869 = vmatpush1.msra.mxu0 0.0
    %4870 = vmatprep.subr.mxu0 0.0
    %4871 = vmatpush1.msra.mxu0 0.0
    %4872 = vmatprep.subr.mxu0 0.0
    %4873 = vmatpush1.msra.mxu0 0.0
    %4874 = vmatprep.subr.mxu0 0.0
    %4875 = vmatpush1.msra.mxu0 0.0
    %4876 = vmatprep.subr.mxu0 0.0
    %4877 = vmatpush1.msra.mxu0 0.0
    %4878 = vmatprep.subr.mxu0 0.0
    %4879 = vmatpush1.msra.mxu0 0.0
    %4880 = vmatprep.subr.mxu0 0.0
    %4881 = vmatpush1.msra.mxu0 0.0
    %4882 = vmatprep.subr.mxu0 0.0
    %4883 = vmatpush1.msra.mxu0 0.0
    %4884 = vmatprep.subr.mxu0 0.0
    %4885 = vmatpush1.msra.mxu0 0.0
    %4886 = vmatprep.subr.mxu0 0.0
    %4887 = vmatpush1.msra.mxu0 0.0
    %4888 = vmatprep.subr.mxu0 0.0
    %4889 = vmatpush1.msra.mxu0 0.0
    %4890 = vmatprep.subr.mxu0 0.0
    %4891 = vmatpush1.msra.mxu0 0.0
    %4892 = vmatprep.subr.mxu0 0.0
    %4893 = vmatpush1.msra.mxu0 0.0
    %4894 = vmatprep.subr.mxu0 0.0
    %4895 = vmatpush1.msra.mxu0 0.0
    %4896 = vmatprep.subr.mxu0 0.0
    %4897 = vmatpush1.msra.mxu0 0.0
    %4898 = vmatprep.subr.mxu0 0.0
    %4899 = vmatpush1.msra.mxu0 0.0
    %4900 = vmatprep.subr.mxu0 0.0
    %4901 = vmatpush1.msra.mxu0 0.0
    %4902 = vmatprep.subr.mxu0 0.0
    %4903 = vmatpush1.msra.mxu0 0.0
    %4904 = vmatprep.subr.mxu0 0.0
    %4905 = vmatpush1.msra.mxu0 0.0
    %4906 = vmatprep.mubr.f32.mxu0 0.0
    %4907 = vmatmul.mubr.f32.gmra.mrb[0].mxu0 %v4800
    %v4908 = vpop.f32.mrb[0].mxu0
    %v4909 = vadd.f32 0.0, %v4908
    %v4910 = vpop.f32.mrb[0].mxu0
    %v4911 = vadd.f32 0.0, %v4910
    %4912 = vmatprep.mubr.f32.mxu0 0.0
    %4913 = vmatmul.mubr.f32.gmra.mrb[0].mxu0 %v4803
    %v4914 = vpop.f32.mrb[0].mxu0
    %v4915 = vadd.f32 0.0, %v4914
    %v4916 = vpop.f32.mrb[0].mxu0
    %v4917 = vadd.f32 0.0, %v4916
    %4918 = vdwg.mxu0
    %4919 = vmatprep.subr.mxu0 %v4753
    %4920 = vmatpush1.msra.mxu0 %v4752
    %4921 = vmatprep.subr.mxu0 %v4765
    %4922 = vmatpush1.msra.mxu0 %v4764
    %4923 = vmatprep.subr.mxu0 %v4777
    %4924 = vmatpush1.msra.mxu0 %v4776
    %4925 = vmatprep.subr.mxu0 %v4816
    %4926 = vmatpush1.msra.mxu0 %v4813
    %4927 = vmatprep.subr.mxu0 0.0
    %4928 = vmatpush1.msra.mxu0 0.0
    %4929 = vmatprep.subr.mxu0 0.0
    %4930 = vmatpush1.msra.mxu0 0.0
    %4931 = vmatprep.subr.mxu0 0.0
    %4932 = vmatpush1.msra.mxu0 0.0
    %4933 = vmatprep.subr.mxu0 0.0
    %4934 = vmatpush1.msra.mxu0 0.0
    %4935 = vmatprep.subr.mxu0 0.0
    %4936 = vmatpush1.msra.mxu0 0.0
    %4937 = vmatprep.subr.mxu0 0.0
    %4938 = vmatpush1.msra.mxu0 0.0
    %4939 = vmatprep.subr.mxu0 0.0
    %4940 = vmatpush1.msra.mxu0 0.0
    %4941 = vmatprep.subr.mxu0 0.0
    %4942 = vmatpush1.msra.mxu0 0.0
    %4943 = vmatprep.subr.mxu0 0.0
    %4944 = vmatpush1.msra.mxu0 0.0
    %4945 = vmatprep.subr.mxu0 0.0
    %4946 = vmatpush1.msra.mxu0 0.0
    %4947 = vmatprep.subr.mxu0 0.0
    %4948 = vmatpush1.msra.mxu0 0.0
    %4949 = vmatprep.subr.mxu0 0.0
    %4950 = vmatpush1.msra.mxu0 0.0
    %4951 = vmatprep.subr.mxu0 0.0
    %4952 = vmatpush1.msra.mxu0 0.0
    %4953 = vmatprep.subr.mxu0 0.0
    %4954 = vmatpush1.msra.mxu0 0.0
    %4955 = vmatprep.subr.mxu0 0.0
    %4956 = vmatpush1.msra.mxu0 0.0
    %4957 = vmatprep.subr.mxu0 0.0
    %4958 = vmatpush1.msra.mxu0 0.0
    %4959 = vmatprep.subr.mxu0 0.0
    %4960 = vmatpush1.msra.mxu0 0.0
    %4961 = vmatprep.subr.mxu0 0.0
    %4962 = vmatpush1.msra.mxu0 0.0
    %4963 = vmatprep.subr.mxu0 0.0
    %4964 = vmatpush1.msra.mxu0 0.0
    %4965 = vmatprep.subr.mxu0 0.0
    %4966 = vmatpush1.msra.mxu0 0.0
    %4967 = vmatprep.subr.mxu0 0.0
    %4968 = vmatpush1.msra.mxu0 0.0
    %4969 = vmatprep.subr.mxu0 0.0
    %4970 = vmatpush1.msra.mxu0 0.0
    %4971 = vmatprep.subr.mxu0 0.0
    %4972 = vmatpush1.msra.mxu0 0.0
    %4973 = vmatprep.subr.mxu0 0.0
    %4974 = vmatpush1.msra.mxu0 0.0
    %4975 = vmatprep.subr.mxu0 0.0
    %4976 = vmatpush1.msra.mxu0 0.0
    %4977 = vmatprep.subr.mxu0 0.0
    %4978 = vmatpush1.msra.mxu0 0.0
    %4979 = vmatprep.subr.mxu0 0.0
    %4980 = vmatpush1.msra.mxu0 0.0
    %4981 = vmatprep.subr.mxu0 0.0
    %4982 = vmatpush1.msra.mxu0 0.0
    %4983 = vmatprep.mubr.f32.mxu0 0.0
    %4984 = vmatmul.mubr.f32.gmra.mrb[0].mxu0 %v4800
    %v4985 = vpop.f32.mrb[0].mxu0
    %v4986 = vadd.f32 0.0, %v4985
    %v4987 = vpop.f32.mrb[0].mxu0
    %v4988 = vadd.f32 0.0, %v4987
    %4989 = vmatprep.mubr.f32.mxu0 0.0
    %4990 = vmatmul.mubr.f32.gmra.mrb[0].mxu0 %v4803
    %v4991 = vpop.f32.mrb[0].mxu0
    %v4992 = vadd.f32 0.0, %v4991
    %v4993 = vpop.f32.mrb[0].mxu0
    %v4994 = vadd.f32 0.0, %v4993
    %4995 = vdwg.mxu0
    %4996 = vmatprep.subr.mxu0 %v4755
    %4997 = vmatpush1.msra.mxu0 %v4754
    %4998 = vmatprep.subr.mxu0 %v4767
    %4999 = vmatpush1.msra.mxu0 %v4766
    %5000 = vmatprep.subr.mxu0 %v4779
    %5001 = vmatpush1.msra.mxu0 %v4778
    %5002 = vmatprep.subr.mxu0 %v4822
    %5003 = vmatpush1.msra.mxu0 %v4819
    %5004 = vmatprep.subr.mxu0 0.0
    %5005 = vmatpush1.msra.mxu0 0.0
    %5006 = vmatprep.subr.mxu0 0.0
    %5007 = vmatpush1.msra.mxu0 0.0
    %5008 = vmatprep.subr.mxu0 0.0
    %5009 = vmatpush1.msra.mxu0 0.0
    %5010 = vmatprep.subr.mxu0 0.0
    %5011 = vmatpush1.msra.mxu0 0.0
    %5012 = vmatprep.subr.mxu0 0.0
    %5013 = vmatpush1.msra.mxu0 0.0
    %5014 = vmatprep.subr.mxu0 0.0
    %5015 = vmatpush1.msra.mxu0 0.0
    %5016 = vmatprep.subr.mxu0 0.0
    %5017 = vmatpush1.msra.mxu0 0.0
    %5018 = vmatprep.subr.mxu0 0.0
    %5019 = vmatpush1.msra.mxu0 0.0
    %5020 = vmatprep.subr.mxu0 0.0
    %5021 = vmatpush1.msra.mxu0 0.0
    %5022 = vmatprep.subr.mxu0 0.0
    %5023 = vmatpush1.msra.mxu0 0.0
    %5024 = vmatprep.subr.mxu0 0.0
    %5025 = vmatpush1.msra.mxu0 0.0
    %5026 = vmatprep.subr.mxu0 0.0
    %5027 = vmatpush1.msra.mxu0 0.0
    %5028 = vmatprep.subr.mxu0 0.0
    %5029 = vmatpush1.msra.mxu0 0.0
    %5030 = vmatprep.subr.mxu0 0.0
    %5031 = vmatpush1.msra.mxu0 0.0
    %5032 = vmatprep.subr.mxu0 0.0
    %5033 = vmatpush1.msra.mxu0 0.0
    %5034 = vmatprep.subr.mxu0 0.0
    %5035 = vmatpush1.msra.mxu0 0.0
    %5036 = vmatprep.subr.mxu0 0.0
    %5037 = vmatpush1.msra.mxu0 0.0
    %5038 = vmatprep.subr.mxu0 0.0
    %5039 = vmatpush1.msra.mxu0 0.0
    %5040 = vmatprep.subr.mxu0 0.0
    %5041 = vmatpush1.msra.mxu0 0.0
    %5042 = vmatprep.subr.mxu0 0.0
    %5043 = vmatpush1.msra.mxu0 0.0
    %5044 = vmatprep.subr.mxu0 0.0
    %5045 = vmatpush1.msra.mxu0 0.0
    %5046 = vmatprep.subr.mxu0 0.0
    %5047 = vmatpush1.msra.mxu0 0.0
    %5048 = vmatprep.subr.mxu0 0.0
    %5049 = vmatpush1.msra.mxu0 0.0
    %5050 = vmatprep.subr.mxu0 0.0
    %5051 = vmatpush1.msra.mxu0 0.0
    %5052 = vmatprep.subr.mxu0 0.0
    %5053 = vmatpush1.msra.mxu0 0.0
    %5054 = vmatprep.subr.mxu0 0.0
    %5055 = vmatpush1.msra.mxu0 0.0
    %5056 = vmatprep.subr.mxu0 0.0
    %5057 = vmatpush1.msra.mxu0 0.0
    %5058 = vmatprep.subr.mxu0 0.0
    %5059 = vmatpush1.msra.mxu0 0.0
    %5060 = vmatprep.mubr.f32.mxu0 0.0
    %5061 = vmatmul.mubr.f32.gmra.mrb[0].mxu0 %v4800
    %v5062 = vpop.f32.mrb[0].mxu0
    %v5063 = vadd.f32 0.0, %v5062
    %v5064 = vpop.f32.mrb[0].mxu0
    %5065 = vmatprep.mubr.f32.mxu0 0.0
    %5066 = vmatmul.mubr.f32.gmra.mrb[0].mxu0 %v4803
    %v5067 = vpop.f32.mrb[0].mxu0
    %v5068 = vadd.f32 0.0, %v5067
    %v5069 = vpop.f32.mrb[0].mxu0
    %5070 = vdwg.mxu0
    %5071 = vmatprep.subr.mxu0 %v4757
    %5072 = vmatpush1.msra.mxu0 %v4756
    %5073 = vmatprep.subr.mxu0 %v4769
    %5074 = vmatpush1.msra.mxu0 %v4768
    %5075 = vmatprep.subr.mxu0 %v4781
    %5076 = vmatpush1.msra.mxu0 %v4780
    %5077 = vmatprep.subr.mxu0 %v4828
    %5078 = vmatpush1.msra.mxu0 %v4825
    %5079 = vmatprep.subr.mxu0 0.0
    %5080 = vmatpush1.msra.mxu0 0.0
    %5081 = vmatprep.subr.mxu0 0.0
    %5082 = vmatpush1.msra.mxu0 0.0
    %5083 = vmatprep.subr.mxu0 0.0
    %5084 = vmatpush1.msra.mxu0 0.0
    %5085 = vmatprep.subr.mxu0 0.0
    %5086 = vmatpush1.msra.mxu0 0.0
    %5087 = vmatprep.subr.mxu0 0.0
    %5088 = vmatpush1.msra.mxu0 0.0
    %5089 = vmatprep.subr.mxu0 0.0
    %5090 = vmatpush1.msra.mxu0 0.0
    %5091 = vmatprep.subr.mxu0 0.0
    %5092 = vmatpush1.msra.mxu0 0.0
    %5093 = vmatprep.subr.mxu0 0.0
    %5094 = vmatpush1.msra.mxu0 0.0
    %5095 = vmatprep.subr.mxu0 0.0
    %5096 = vmatpush1.msra.mxu0 0.0
    %5097 = vmatprep.subr.mxu0 0.0
    %5098 = vmatpush1.msra.mxu0 0.0
    %5099 = vmatprep.subr.mxu0 0.0
    %5100 = vmatpush1.msra.mxu0 0.0
    %5101 = vmatprep.subr.mxu0 0.0
    %5102 = vmatpush1.msra.mxu0 0.0
    %5103 = vmatprep.subr.mxu0 0.0
    %5104 = vmatpush1.msra.mxu0 0.0
    %5105 = vmatprep.subr.mxu0 0.0
    %5106 = vmatpush1.msra.mxu0 0.0
    %5107 = vmatprep.subr.mxu0 0.0
    %5108 = vmatpush1.msra.mxu0 0.0
    %5109 = vmatprep.subr.mxu0 0.0
    %5110 = vmatpush1.msra.mxu0 0.0
    %5111 = vmatprep.subr.mxu0 0.0
    %5112 = vmatpush1.msra.mxu0 0.0
    %5113 = vmatprep.subr.mxu0 0.0
    %5114 = vmatpush1.msra.mxu0 0.0
    %5115 = vmatprep.subr.mxu0 0.0
    %5116 = vmatpush1.msra.mxu0 0.0
    %5117 = vmatprep.subr.mxu0 0.0
    %5118 = vmatpush1.msra.mxu0 0.0
    %5119 = vmatprep.subr.mxu0 0.0
    %5120 = vmatpush1.msra.mxu0 0.0
    %5121 = vmatprep.subr.mxu0 0.0
    %5122 = vmatpush1.msra.mxu0 0.0
    %5123 = vmatprep.subr.mxu0 0.0
    %5124 = vmatpush1.msra.mxu0 0.0
    %5125 = vmatprep.subr.mxu0 0.0
    %5126 = vmatpush1.msra.mxu0 0.0
    %5127 = vmatprep.subr.mxu0 0.0
    %5128 = vmatpush1.msra.mxu0 0.0
    %5129 = vmatprep.subr.mxu0 0.0
    %5130 = vmatpush1.msra.mxu0 0.0
    %5131 = vmatprep.subr.mxu0 0.0
    %5132 = vmatpush1.msra.mxu0 0.0
    %5133 = vmatprep.subr.mxu0 0.0
    %5134 = vmatpush1.msra.mxu0 0.0
    %5135 = vmatprep.mubr.f32.mxu0 0.0
    %5136 = vmatmul.mubr.f32.gmra.mrb[0].mxu0 %v4800
    %v5137 = vpop.f32.mrb[0].mxu0
    %v5138 = vadd.f32 0.0, %v5137
    %v5139 = vpop.f32.mrb[0].mxu0
    %v5140 = vadd.f32 0.0, %v5139
    %5141 = vmatprep.mubr.f32.mxu0 0.0
    %5142 = vmatmul.mubr.f32.gmra.mrb[0].mxu0 %v4803
    %v5143 = vpop.f32.mrb[0].mxu0
    %v5144 = vadd.f32 0.0, %v5143
    %v5145 = vpop.f32.mrb[0].mxu0
    %v5146 = vadd.f32 0.0, %v5145
    %5147 = vdwg.mxu0
    %5148 = vmatprep.subr.mxu0 %v4759
    %5149 = vmatpush1.msra.mxu0 %v4758
    %5150 = vmatprep.subr.mxu0 %v4771
    %5151 = vmatpush1.msra.mxu0 %v4770
    %5152 = vmatprep.subr.mxu0 %v4783
    %5153 = vmatpush1.msra.mxu0 %v4782
    %5154 = vmatprep.subr.mxu0 %v4834
    %5155 = vmatpush1.msra.mxu0 %v4831
    %5156 = vmatprep.subr.mxu0 0.0
    %5157 = vmatpush1.msra.mxu0 0.0
    %5158 = vmatprep.subr.mxu0 0.0
    %5159 = vmatpush1.msra.mxu0 0.0
    %5160 = vmatprep.subr.mxu0 0.0
    %5161 = vmatpush1.msra.mxu0 0.0
    %5162 = vmatprep.subr.mxu0 0.0
    %5163 = vmatpush1.msra.mxu0 0.0
    %5164 = vmatprep.subr.mxu0 0.0
    %5165 = vmatpush1.msra.mxu0 0.0
    %5166 = vmatprep.subr.mxu0 0.0
    %5167 = vmatpush1.msra.mxu0 0.0
    %5168 = vmatprep.subr.mxu0 0.0
    %5169 = vmatpush1.msra.mxu0 0.0
    %5170 = vmatprep.subr.mxu0 0.0
    %5171 = vmatpush1.msra.mxu0 0.0
    %5172 = vmatprep.subr.mxu0 0.0
    %5173 = vmatpush1.msra.mxu0 0.0
    %5174 = vmatprep.subr.mxu0 0.0
    %5175 = vmatpush1.msra.mxu0 0.0
    %5176 = vmatprep.subr.mxu0 0.0
    %5177 = vmatpush1.msra.mxu0 0.0
    %5178 = vmatprep.subr.mxu0 0.0
    %5179 = vmatpush1.msra.mxu0 0.0
    %5180 = vmatprep.subr.mxu0 0.0
    %5181 = vmatpush1.msra.mxu0 0.0
    %5182 = vmatprep.subr.mxu0 0.0
    %5183 = vmatpush1.msra.mxu0 0.0
    %5184 = vmatprep.subr.mxu0 0.0
    %5185 = vmatpush1.msra.mxu0 0.0
    %5186 = vmatprep.subr.mxu0 0.0
    %5187 = vmatpush1.msra.mxu0 0.0
    %5188 = vmatprep.subr.mxu0 0.0
    %5189 = vmatpush1.msra.mxu0 0.0
    %5190 = vmatprep.subr.mxu0 0.0
    %5191 = vmatpush1.msra.mxu0 0.0
    %5192 = vmatprep.subr.mxu0 0.0
    %5193 = vmatpush1.msra.mxu0 0.0
    %5194 = vmatprep.subr.mxu0 0.0
    %5195 = vmatpush1.msra.mxu0 0.0
    %5196 = vmatprep.subr.mxu0 0.0
    %5197 = vmatpush1.msra.mxu0 0.0
    %5198 = vmatprep.subr.mxu0 0.0
    %5199 = vmatpush1.msra.mxu0 0.0
    %5200 = vmatprep.subr.mxu0 0.0
    %5201 = vmatpush1.msra.mxu0 0.0
    %5202 = vmatprep.subr.mxu0 0.0
    %5203 = vmatpush1.msra.mxu0 0.0
    %5204 = vmatprep.subr.mxu0 0.0
    %5205 = vmatpush1.msra.mxu0 0.0
    %5206 = vmatprep.subr.mxu0 0.0
    %5207 = vmatpush1.msra.mxu0 0.0
    %5208 = vmatprep.subr.mxu0 0.0
    %5209 = vmatpush1.msra.mxu0 0.0
    %5210 = vmatprep.subr.mxu0 0.0
    %5211 = vmatpush1.msra.mxu0 0.0
    %5212 = vmatprep.mubr.f32.mxu0 0.0
    %5213 = vmatmul.mubr.f32.gmra.mrb[0].mxu0 %v4800
    %v5214 = vpop.f32.mrb[0].mxu0
    %v5215 = vadd.f32 0.0, %v5214
    %v5216 = vpop.f32.mrb[0].mxu0
    %v5217 = vadd.f32 0.0, %v5216
    %5218 = vmatprep.mubr.f32.mxu0 0.0
    %5219 = vmatmul.mubr.f32.gmra.mrb[0].mxu0 %v4803
    %v5220 = vpop.f32.mrb[0].mxu0
    %v5221 = vadd.f32 0.0, %v5220
    %v5222 = vpop.f32.mrb[0].mxu0
    %v5223 = vadd.f32 0.0, %v5222
    %5224 = vdwg.mxu0
    %5225 = vmatprep.subr.mxu0 %v4761
    %5226 = vmatpush1.msra.mxu0 %v4760
    %5227 = vmatprep.subr.mxu0 %v4773
    %5228 = vmatpush1.msra.mxu0 %v4772
    %5229 = vmatprep.subr.mxu0 %v4785
    %5230 = vmatpush1.msra.mxu0 %v4784
    %5231 = vmatprep.subr.mxu0 %v4840
    %5232 = vmatpush1.msra.mxu0 %v4837
    %5233 = vmatprep.subr.mxu0 0.0
    %5234 = vmatpush1.msra.mxu0 0.0
    %5235 = vmatprep.subr.mxu0 0.0
    %5236 = vmatpush1.msra.mxu0 0.0
    %5237 = vmatprep.subr.mxu0 0.0
    %5238 = vmatpush1.msra.mxu0 0.0
    %5239 = vmatprep.subr.mxu0 0.0
    %5240 = vmatpush1.msra.mxu0 0.0
    %5241 = vmatprep.subr.mxu0 0.0
    %5242 = vmatpush1.msra.mxu0 0.0
    %5243 = vmatprep.subr.mxu0 0.0
    %5244 = vmatpush1.msra.mxu0 0.0
    %5245 = vmatprep.subr.mxu0 0.0
    %5246 = vmatpush1.msra.mxu0 0.0
    %5247 = vmatprep.subr.mxu0 0.0
    %5248 = vmatpush1.msra.mxu0 0.0
    %5249 = vmatprep.subr.mxu0 0.0
    %5250 = vmatpush1.msra.mxu0 0.0
    %5251 = vmatprep.subr.mxu0 0.0
    %5252 = vmatpush1.msra.mxu0 0.0
    %5253 = vmatprep.subr.mxu0 0.0
    %5254 = vmatpush1.msra.mxu0 0.0
    %5255 = vmatprep.subr.mxu0 0.0
    %5256 = vmatpush1.msra.mxu0 0.0
    %5257 = vmatprep.subr.mxu0 0.0
    %5258 = vmatpush1.msra.mxu0 0.0
    %5259 = vmatprep.subr.mxu0 0.0
    %5260 = vmatpush1.msra.mxu0 0.0
    %5261 = vmatprep.subr.mxu0 0.0
    %5262 = vmatpush1.msra.mxu0 0.0
    %5263 = vmatprep.subr.mxu0 0.0
    %5264 = vmatpush1.msra.mxu0 0.0
    %5265 = vmatprep.subr.mxu0 0.0
    %5266 = vmatpush1.msra.mxu0 0.0
    %5267 = vmatprep.subr.mxu0 0.0
    %5268 = vmatpush1.msra.mxu0 0.0
    %5269 = vmatprep.subr.mxu0 0.0
    %5270 = vmatpush1.msra.mxu0 0.0
    %5271 = vmatprep.subr.mxu0 0.0
    %5272 = vmatpush1.msra.mxu0 0.0
    %5273 = vmatprep.subr.mxu0 0.0
    %5274 = vmatpush1.msra.mxu0 0.0
    %5275 = vmatprep.subr.mxu0 0.0
    %5276 = vmatpush1.msra.mxu0 0.0
    %5277 = vmatprep.subr.mxu0 0.0
    %5278 = vmatpush1.msra.mxu0 0.0
    %5279 = vmatprep.subr.mxu0 0.0
    %5280 = vmatpush1.msra.mxu0 0.0
    %5281 = vmatprep.subr.mxu0 0.0
    %5282 = vmatpush1.msra.mxu0 0.0
    %5283 = vmatprep.subr.mxu0 0.0
    %5284 = vmatpush1.msra.mxu0 0.0
    %5285 = vmatprep.subr.mxu0 0.0
    %5286 = vmatpush1.msra.mxu0 0.0
    %5287 = vmatprep.subr.mxu0 0.0
    %5288 = vmatpush1.msra.mxu0 0.0
    %5289 = vmatprep.mubr.f32.mxu0 0.0
    %5290 = vmatmul.mubr.f32.gmra.mrb[0].mxu0 %v4800
    %v5291 = vpop.f32.mrb[0].mxu0
    %v5292 = vadd.f32 0.0, %v5291
    %v5293 = vpop.f32.mrb[0].mxu0
    %5294 = vmatprep.mubr.f32.mxu0 0.0
    %5295 = vmatmul.mubr.f32.gmra.mrb[0].mxu0 %v4803
    %v5296 = vpop.f32.mrb[0].mxu0
    %v5297 = vadd.f32 0.0, %v5296
    %v5298 = vpop.f32.mrb[0].mxu0
    %5299 = vdwg.mxu0
    %v5300 = vadd.f32 %v4909, 0.0
    %v5301 = vadd.f32 %v4911, 0.0
    %v5302 = vadd.f32 %v4986, 0.0
    %v5303 = vadd.f32 %v4988, 0.0
    %v5304 = vadd.f32 %v5063, 0.0
    %v5305 = vadd.f32 %v4915, 0.0
    %v5306 = vadd.f32 %v4917, 0.0
    %v5307 = vadd.f32 %v4992, 0.0
    %v5308 = vadd.f32 %v4994, 0.0
    %v5309 = vadd.f32 %v5068, 0.0
    %v5310 = vadd.f32 %v5138, 0.0
    %v5311 = vadd.f32 %v5140, 0.0
    %v5312 = vadd.f32 %v5215, 0.0
    %v5313 = vadd.f32 %v5217, 0.0
    %v5314 = vadd.f32 %v5292, 0.0
    %v5315 = vadd.f32 %v5144, 0.0
    %v5316 = vadd.f32 %v5146, 0.0
    %v5317 = vadd.f32 %v5221, 0.0
    %v5318 = vadd.f32 %v5223, 0.0
    %v5319 = vadd.f32 %v5297, 0.0
    %5320 = vrot.lane.b32.xlu0 %v4748, 98
    %v5321 = vpop.permute.xlu0 %5320
    %5322 = vrot.lane.b32.xlu0 %v4749, 98
    %v5323 = vpop.permute.xlu0 %5322
    %v5324 = vsel %vm4798, %v5321, 0
    %v5326 = vsel %vm4798, %v5323, 0
    %5328 = vmatprep.subr.mxu0 %v4751
    %5329 = vmatpush1.msra.mxu0 %v4750
    %5330 = vmatprep.subr.mxu0 %v4763
    %5331 = vmatpush1.msra.mxu0 %v4762
    %5332 = vmatprep.subr.mxu0 %v4775
    %5333 = vmatpush1.msra.mxu0 %v4774
    %5334 = vmatprep.subr.mxu0 %v4810
    %5335 = vmatpush1.msra.mxu0 %v4807
    %5336 = vmatprep.subr.mxu0 0.0
    %5337 = vmatpush1.msra.mxu0 0.0
    %5338 = vmatprep.subr.mxu0 0.0
    %5339 = vmatpush1.msra.mxu0 0.0
    %5340 = vmatprep.subr.mxu0 0.0
    %5341 = vmatpush1.msra.mxu0 0.0
    %5342 = vmatprep.subr.mxu0 0.0
    %5343 = vmatpush1.msra.mxu0 0.0
    %5344 = vmatprep.subr.mxu0 0.0
    %5345 = vmatpush1.msra.mxu0 0.0
    %5346 = vmatprep.subr.mxu0 0.0
    %5347 = vmatpush1.msra.mxu0 0.0
    %5348 = vmatprep.subr.mxu0 0.0
    %5349 = vmatpush1.msra.mxu0 0.0
    %5350 = vmatprep.subr.mxu0 0.0
    %5351 = vmatpush1.msra.mxu0 0.0
    %5352 = vmatprep.subr.mxu0 0.0
    %5353 = vmatpush1.msra.mxu0 0.0
    %5354 = vmatprep.subr.mxu0 0.0
    %5355 = vmatpush1.msra.mxu0 0.0
    %5356 = vmatprep.subr.mxu0 0.0
    %5357 = vmatpush1.msra.mxu0 0.0
    %5358 = vmatprep.subr.mxu0 0.0
    %5359 = vmatpush1.msra.mxu0 0.0
    %5360 = vmatprep.subr.mxu0 0.0
    %5361 = vmatpush1.msra.mxu0 0.0
    %5362 = vmatprep.subr.mxu0 0.0
    %5363 = vmatpush1.msra.mxu0 0.0
    %5364 = vmatprep.subr.mxu0 0.0
    %5365 = vmatpush1.msra.mxu0 0.0
    %5366 = vmatprep.subr.mxu0 0.0
    %5367 = vmatpush1.msra.mxu0 0.0
    %5368 = vmatprep.subr.mxu0 0.0
    %5369 = vmatpush1.msra.mxu0 0.0
    %5370 = vmatprep.subr.mxu0 0.0
    %5371 = vmatpush1.msra.mxu0 0.0
    %5372 = vmatprep.subr.mxu0 0.0
    %5373 = vmatpush1.msra.mxu0 0.0
    %5374 = vmatprep.subr.mxu0 0.0
    %5375 = vmatpush1.msra.mxu0 0.0
    %5376 = vmatprep.subr.mxu0 0.0
    %5377 = vmatpush1.msra.mxu0 0.0
    %5378 = vmatprep.subr.mxu0 0.0
    %5379 = vmatpush1.msra.mxu0 0.0
    %5380 = vmatprep.subr.mxu0 0.0
    %5381 = vmatpush1.msra.mxu0 0.0
    %5382 = vmatprep.subr.mxu0 0.0
    %5383 = vmatpush1.msra.mxu0 0.0
    %5384 = vmatprep.subr.mxu0 0.0
    %5385 = vmatpush1.msra.mxu0 0.0
    %5386 = vmatprep.subr.mxu0 0.0
    %5387 = vmatpush1.msra.mxu0 0.0
    %5388 = vmatprep.subr.mxu0 0.0
    %5389 = vmatpush1.msra.mxu0 0.0
    %5390 = vmatprep.subr.mxu0 0.0
    %5391 = vmatpush1.msra.mxu0 0.0
    %5392 = vmatprep.mubr.f32.mxu0 0.0
    %5393 = vmatmul.mubr.f32.gmra.mrb[0].mxu0 %v5324
    %v5394 = vpop.f32.mrb[0].mxu0
    %v5395 = vadd.f32 0.0, %v5394
    %v5396 = vpop.f32.mrb[0].mxu0
    %v5397 = vadd.f32 0.0, %v5396
    %5398 = vmatprep.mubr.f32.mxu0 0.0
    %5399 = vmatmul.mubr.f32.gmra.mrb[0].mxu0 %v5326
    %v5400 = vpop.f32.mrb[0].mxu0
    %v5401 = vadd.f32 0.0, %v5400
    %v5402 = vpop.f32.mrb[0].mxu0
    %v5403 = vadd.f32 0.0, %v5402
    %5404 = vdwg.mxu0
    %5405 = vmatprep.subr.mxu0 %v4753
    %5406 = vmatpush1.msra.mxu0 %v4752
    %5407 = vmatprep.subr.mxu0 %v4765
    %5408 = vmatpush1.msra.mxu0 %v4764
    %5409 = vmatprep.subr.mxu0 %v4777
    %5410 = vmatpush1.msra.mxu0 %v4776
    %5411 = vmatprep.subr.mxu0 %v4816
    %5412 = vmatpush1.msra.mxu0 %v4813
    %5413 = vmatprep.subr.mxu0 0.0
    %5414 = vmatpush1.msra.mxu0 0.0
    %5415 = vmatprep.subr.mxu0 0.0
    %5416 = vmatpush1.msra.mxu0 0.0
    %5417 = vmatprep.subr.mxu0 0.0
    %5418 = vmatpush1.msra.mxu0 0.0
    %5419 = vmatprep.subr.mxu0 0.0
    %5420 = vmatpush1.msra.mxu0 0.0
    %5421 = vmatprep.subr.mxu0 0.0
    %5422 = vmatpush1.msra.mxu0 0.0
    %5423 = vmatprep.subr.mxu0 0.0
    %5424 = vmatpush1.msra.mxu0 0.0
    %5425 = vmatprep.subr.mxu0 0.0
    %5426 = vmatpush1.msra.mxu0 0.0
    %5427 = vmatprep.subr.mxu0 0.0
    %5428 = vmatpush1.msra.mxu0 0.0
    %5429 = vmatprep.subr.mxu0 0.0
    %5430 = vmatpush1.msra.mxu0 0.0
    %5431 = vmatprep.subr.mxu0 0.0
    %5432 = vmatpush1.msra.mxu0 0.0
    %5433 = vmatprep.subr.mxu0 0.0
    %5434 = vmatpush1.msra.mxu0 0.0
    %5435 = vmatprep.subr.mxu0 0.0
    %5436 = vmatpush1.msra.mxu0 0.0
    %5437 = vmatprep.subr.mxu0 0.0
    %5438 = vmatpush1.msra.mxu0 0.0
    %5439 = vmatprep.subr.mxu0 0.0
    %5440 = vmatpush1.msra.mxu0 0.0
    %5441 = vmatprep.subr.mxu0 0.0
    %5442 = vmatpush1.msra.mxu0 0.0
    %5443 = vmatprep.subr.mxu0 0.0
    %5444 = vmatpush1.msra.mxu0 0.0
    %5445 = vmatprep.subr.mxu0 0.0
    %5446 = vmatpush1.msra.mxu0 0.0
    %5447 = vmatprep.subr.mxu0 0.0
    %5448 = vmatpush1.msra.mxu0 0.0
    %5449 = vmatprep.subr.mxu0 0.0
    %5450 = vmatpush1.msra.mxu0 0.0
    %5451 = vmatprep.subr.mxu0 0.0
    %5452 = vmatpush1.msra.mxu0 0.0
    %5453 = vmatprep.subr.mxu0 0.0
    %5454 = vmatpush1.msra.mxu0 0.0
    %5455 = vmatprep.subr.mxu0 0.0
    %5456 = vmatpush1.msra.mxu0 0.0
    %5457 = vmatprep.subr.mxu0 0.0
    %5458 = vmatpush1.msra.mxu0 0.0
    %5459 = vmatprep.subr.mxu0 0.0
    %5460 = vmatpush1.msra.mxu0 0.0
    %5461 = vmatprep.subr.mxu0 0.0
    %5462 = vmatpush1.msra.mxu0 0.0
    %5463 = vmatprep.subr.mxu0 0.0
    %5464 = vmatpush1.msra.mxu0 0.0
    %5465 = vmatprep.subr.mxu0 0.0
    %5466 = vmatpush1.msra.mxu0 0.0
    %5467 = vmatprep.subr.mxu0 0.0
    %5468 = vmatpush1.msra.mxu0 0.0
    %5469 = vmatprep.mubr.f32.mxu0 0.0
    %5470 = vmatmul.mubr.f32.gmra.mrb[0].mxu0 %v5324
    %v5471 = vpop.f32.mrb[0].mxu0
    %v5472 = vadd.f32 0.0, %v5471
    %v5473 = vpop.f32.mrb[0].mxu0
    %v5474 = vadd.f32 0.0, %v5473
    %5475 = vmatprep.mubr.f32.mxu0 0.0
    %5476 = vmatmul.mubr.f32.gmra.mrb[0].mxu0 %v5326
    %v5477 = vpop.f32.mrb[0].mxu0
    %v5478 = vadd.f32 0.0, %v5477
    %v5479 = vpop.f32.mrb[0].mxu0
    %v5480 = vadd.f32 0.0, %v5479
    %5481 = vdwg.mxu0
    %5482 = vmatprep.subr.mxu0 %v4755
    %5483 = vmatpush1.msra.mxu0 %v4754
    %5484 = vmatprep.subr.mxu0 %v4767
    %5485 = vmatpush1.msra.mxu0 %v4766
    %5486 = vmatprep.subr.mxu0 %v4779
    %5487 = vmatpush1.msra.mxu0 %v4778
    %5488 = vmatprep.subr.mxu0 %v4822
    %5489 = vmatpush1.msra.mxu0 %v4819
    %5490 = vmatprep.subr.mxu0 0.0
    %5491 = vmatpush1.msra.mxu0 0.0
    %5492 = vmatprep.subr.mxu0 0.0
    %5493 = vmatpush1.msra.mxu0 0.0
    %5494 = vmatprep.subr.mxu0 0.0
    %5495 = vmatpush1.msra.mxu0 0.0
    %5496 = vmatprep.subr.mxu0 0.0
    %5497 = vmatpush1.msra.mxu0 0.0
    %5498 = vmatprep.subr.mxu0 0.0
    %5499 = vmatpush1.msra.mxu0 0.0
    %5500 = vmatprep.subr.mxu0 0.0
    %5501 = vmatpush1.msra.mxu0 0.0
    %5502 = vmatprep.subr.mxu0 0.0
    %5503 = vmatpush1.msra.mxu0 0.0
    %5504 = vmatprep.subr.mxu0 0.0
    %5505 = vmatpush1.msra.mxu0 0.0
    %5506 = vmatprep.subr.mxu0 0.0
    %5507 = vmatpush1.msra.mxu0 0.0
    %5508 = vmatprep.subr.mxu0 0.0
    %5509 = vmatpush1.msra.mxu0 0.0
    %5510 = vmatprep.subr.mxu0 0.0
    %5511 = vmatpush1.msra.mxu0 0.0
    %5512 = vmatprep.subr.mxu0 0.0
    %5513 = vmatpush1.msra.mxu0 0.0
    %5514 = vmatprep.subr.mxu0 0.0
    %5515 = vmatpush1.msra.mxu0 0.0
    %5516 = vmatprep.subr.mxu0 0.0
    %5517 = vmatpush1.msra.mxu0 0.0
    %5518 = vmatprep.subr.mxu0 0.0
    %5519 = vmatpush1.msra.mxu0 0.0
    %5520 = vmatprep.subr.mxu0 0.0
    %5521 = vmatpush1.msra.mxu0 0.0
    %5522 = vmatprep.subr.mxu0 0.0
    %5523 = vmatpush1.msra.mxu0 0.0
    %5524 = vmatprep.subr.mxu0 0.0
    %5525 = vmatpush1.msra.mxu0 0.0
    %5526 = vmatprep.subr.mxu0 0.0
    %5527 = vmatpush1.msra.mxu0 0.0
    %5528 = vmatprep.subr.mxu0 0.0
    %5529 = vmatpush1.msra.mxu0 0.0
    %5530 = vmatprep.subr.mxu0 0.0
    %5531 = vmatpush1.msra.mxu0 0.0
    %5532 = vmatprep.subr.mxu0 0.0
    %5533 = vmatpush1.msra.mxu0 0.0
    %5534 = vmatprep.subr.mxu0 0.0
    %5535 = vmatpush1.msra.mxu0 0.0
    %5536 = vmatprep.subr.mxu0 0.0
    %5537 = vmatpush1.msra.mxu0 0.0
    %5538 = vmatprep.subr.mxu0 0.0
    %5539 = vmatpush1.msra.mxu0 0.0
    %5540 = vmatprep.subr.mxu0 0.0
    %5541 = vmatpush1.msra.mxu0 0.0
    %5542 = vmatprep.subr.mxu0 0.0
    %5543 = vmatpush1.msra.mxu0 0.0
    %5544 = vmatprep.subr.mxu0 0.0
    %5545 = vmatpush1.msra.mxu0 0.0
    %5546 = vmatprep.mubr.f32.mxu0 0.0
    %5547 = vmatmul.mubr.f32.gmra.mrb[0].mxu0 %v5324
    %v5548 = vpop.f32.mrb[0].mxu0
    %v5549 = vadd.f32 0.0, %v5548
    %v5550 = vpop.f32.mrb[0].mxu0
    %v5551 = vadd.f32 0.0, %v5550
    %5552 = vmatprep.mubr.f32.mxu0 0.0
    %5553 = vmatmul.mubr.f32.gmra.mrb[0].mxu0 %v5326
    %v5554 = vpop.f32.mrb[0].mxu0
    %v5555 = vadd.f32 0.0, %v5554
    %v5556 = vpop.f32.mrb[0].mxu0
    %v5557 = vadd.f32 0.0, %v5556
    %5558 = vdwg.mxu0
    %5559 = vmatprep.subr.mxu0 %v4757
    %5560 = vmatpush1.msra.mxu0 %v4756
    %5561 = vmatprep.subr.mxu0 %v4769
    %5562 = vmatpush1.msra.mxu0 %v4768
    %5563 = vmatprep.subr.mxu0 %v4781
    %5564 = vmatpush1.msra.mxu0 %v4780
    %5565 = vmatprep.subr.mxu0 %v4828
    %5566 = vmatpush1.msra.mxu0 %v4825
    %5567 = vmatprep.subr.mxu0 0.0
    %5568 = vmatpush1.msra.mxu0 0.0
    %5569 = vmatprep.subr.mxu0 0.0
    %5570 = vmatpush1.msra.mxu0 0.0
    %5571 = vmatprep.subr.mxu0 0.0
    %5572 = vmatpush1.msra.mxu0 0.0
    %5573 = vmatprep.subr.mxu0 0.0
    %5574 = vmatpush1.msra.mxu0 0.0
    %5575 = vmatprep.subr.mxu0 0.0
    %5576 = vmatpush1.msra.mxu0 0.0
    %5577 = vmatprep.subr.mxu0 0.0
    %5578 = vmatpush1.msra.mxu0 0.0
    %5579 = vmatprep.subr.mxu0 0.0
    %5580 = vmatpush1.msra.mxu0 0.0
    %5581 = vmatprep.subr.mxu0 0.0
    %5582 = vmatpush1.msra.mxu0 0.0
    %5583 = vmatprep.subr.mxu0 0.0
    %5584 = vmatpush1.msra.mxu0 0.0
    %5585 = vmatprep.subr.mxu0 0.0
    %5586 = vmatpush1.msra.mxu0 0.0
    %5587 = vmatprep.subr.mxu0 0.0
    %5588 = vmatpush1.msra.mxu0 0.0
    %5589 = vmatprep.subr.mxu0 0.0
    %5590 = vmatpush1.msra.mxu0 0.0
    %5591 = vmatprep.subr.mxu0 0.0
    %5592 = vmatpush1.msra.mxu0 0.0
    %5593 = vmatprep.subr.mxu0 0.0
    %5594 = vmatpush1.msra.mxu0 0.0
    %5595 = vmatprep.subr.mxu0 0.0
    %5596 = vmatpush1.msra.mxu0 0.0
    %5597 = vmatprep.subr.mxu0 0.0
    %5598 = vmatpush1.msra.mxu0 0.0
    %5599 = vmatprep.subr.mxu0 0.0
    %5600 = vmatpush1.msra.mxu0 0.0
    %5601 = vmatprep.subr.mxu0 0.0
    %5602 = vmatpush1.msra.mxu0 0.0
    %5603 = vmatprep.subr.mxu0 0.0
    %5604 = vmatpush1.msra.mxu0 0.0
    %5605 = vmatprep.subr.mxu0 0.0
    %5606 = vmatpush1.msra.mxu0 0.0
    %5607 = vmatprep.subr.mxu0 0.0
    %5608 = vmatpush1.msra.mxu0 0.0
    %5609 = vmatprep.subr.mxu0 0.0
    %5610 = vmatpush1.msra.mxu0 0.0
    %5611 = vmatprep.subr.mxu0 0.0
    %5612 = vmatpush1.msra.mxu0 0.0
    %5613 = vmatprep.subr.mxu0 0.0
    %5614 = vmatpush1.msra.mxu0 0.0
    %5615 = vmatprep.subr.mxu0 0.0
    %5616 = vmatpush1.msra.mxu0 0.0
    %5617 = vmatprep.subr.mxu0 0.0
    %5618 = vmatpush1.msra.mxu0 0.0
    %5619 = vmatprep.subr.mxu0 0.0
    %5620 = vmatpush1.msra.mxu0 0.0
    %5621 = vmatprep.subr.mxu0 0.0
    %5622 = vmatpush1.msra.mxu0 0.0
    %5623 = vmatprep.mubr.f32.mxu0 0.0
    %5624 = vmatmul.mubr.f32.gmra.mrb[0].mxu0 %v5324
    %v5625 = vpop.f32.mrb[0].mxu0
    %v5626 = vadd.f32 0.0, %v5625
    %v5627 = vpop.f32.mrb[0].mxu0
    %v5628 = vadd.f32 0.0, %v5627
    %5629 = vmatprep.mubr.f32.mxu0 0.0
    %5630 = vmatmul.mubr.f32.gmra.mrb[0].mxu0 %v5326
    %v5631 = vpop.f32.mrb[0].mxu0
    %v5632 = vadd.f32 0.0, %v5631
    %v5633 = vpop.f32.mrb[0].mxu0
    %v5634 = vadd.f32 0.0, %v5633
    %5635 = vdwg.mxu0
    %5636 = vmatprep.subr.mxu0 %v4759
    %5637 = vmatpush1.msra.mxu0 %v4758
    %5638 = vmatprep.subr.mxu0 %v4771
    %5639 = vmatpush1.msra.mxu0 %v4770
    %5640 = vmatprep.subr.mxu0 %v4783
    %5641 = vmatpush1.msra.mxu0 %v4782
    %5642 = vmatprep.subr.mxu0 %v4834
    %5643 = vmatpush1.msra.mxu0 %v4831
    %5644 = vmatprep.subr.mxu0 0.0
    %5645 = vmatpush1.msra.mxu0 0.0
    %5646 = vmatprep.subr.mxu0 0.0
    %5647 = vmatpush1.msra.mxu0 0.0
    %5648 = vmatprep.subr.mxu0 0.0
    %5649 = vmatpush1.msra.mxu0 0.0
    %5650 = vmatprep.subr.mxu0 0.0
    %5651 = vmatpush1.msra.mxu0 0.0
    %5652 = vmatprep.subr.mxu0 0.0
    %5653 = vmatpush1.msra.mxu0 0.0
    %5654 = vmatprep.subr.mxu0 0.0
    %5655 = vmatpush1.msra.mxu0 0.0
    %5656 = vmatprep.subr.mxu0 0.0
    %5657 = vmatpush1.msra.mxu0 0.0
    %5658 = vmatprep.subr.mxu0 0.0
    %5659 = vmatpush1.msra.mxu0 0.0
    %5660 = vmatprep.subr.mxu0 0.0
    %5661 = vmatpush1.msra.mxu0 0.0
    %5662 = vmatprep.subr.mxu0 0.0
    %5663 = vmatpush1.msra.mxu0 0.0
    %5664 = vmatprep.subr.mxu0 0.0
    %5665 = vmatpush1.msra.mxu0 0.0
    %5666 = vmatprep.subr.mxu0 0.0
    %5667 = vmatpush1.msra.mxu0 0.0
    %5668 = vmatprep.subr.mxu0 0.0
    %5669 = vmatpush1.msra.mxu0 0.0
    %5670 = vmatprep.subr.mxu0 0.0
    %5671 = vmatpush1.msra.mxu0 0.0
    %5672 = vmatprep.subr.mxu0 0.0
    %5673 = vmatpush1.msra.mxu0 0.0
    %5674 = vmatprep.subr.mxu0 0.0
    %5675 = vmatpush1.msra.mxu0 0.0
    %5676 = vmatprep.subr.mxu0 0.0
    %5677 = vmatpush1.msra.mxu0 0.0
    %5678 = vmatprep.subr.mxu0 0.0
    %5679 = vmatpush1.msra.mxu0 0.0
    %5680 = vmatprep.subr.mxu0 0.0
    %5681 = vmatpush1.msra.mxu0 0.0
    %5682 = vmatprep.subr.mxu0 0.0
    %5683 = vmatpush1.msra.mxu0 0.0
    %5684 = vmatprep.subr.mxu0 0.0
    %5685 = vmatpush1.msra.mxu0 0.0
    %5686 = vmatprep.subr.mxu0 0.0
    %5687 = vmatpush1.msra.mxu0 0.0
    %5688 = vmatprep.subr.mxu0 0.0
    %5689 = vmatpush1.msra.mxu0 0.0
    %5690 = vmatprep.subr.mxu0 0.0
    %5691 = vmatpush1.msra.mxu0 0.0
    %5692 = vmatprep.subr.mxu0 0.0
    %5693 = vmatpush1.msra.mxu0 0.0
    %5694 = vmatprep.subr.mxu0 0.0
    %5695 = vmatpush1.msra.mxu0 0.0
    %5696 = vmatprep.subr.mxu0 0.0
    %5697 = vmatpush1.msra.mxu0 0.0
    %5698 = vmatprep.subr.mxu0 0.0
    %5699 = vmatpush1.msra.mxu0 0.0
    %5700 = vmatprep.mubr.f32.mxu0 0.0
    %5701 = vmatmul.mubr.f32.gmra.mrb[0].mxu0 %v5324
    %v5702 = vpop.f32.mrb[0].mxu0
    %v5703 = vadd.f32 0.0, %v5702
    %v5704 = vpop.f32.mrb[0].mxu0
    %v5705 = vadd.f32 0.0, %v5704
    %5706 = vmatprep.mubr.f32.mxu0 0.0
    %5707 = vmatmul.mubr.f32.gmra.mrb[0].mxu0 %v5326
    %v5708 = vpop.f32.mrb[0].mxu0
    %v5709 = vadd.f32 0.0, %v5708
    %v5710 = vpop.f32.mrb[0].mxu0
    %v5711 = vadd.f32 0.0, %v5710
    %5712 = vdwg.mxu0
    %5713 = vmatprep.subr.mxu0 %v4761
    %5714 = vmatpush1.msra.mxu0 %v4760
    %5715 = vmatprep.subr.mxu0 %v4773
    %5716 = vmatpush1.msra.mxu0 %v4772
    %5717 = vmatprep.subr.mxu0 %v4785
    %5718 = vmatpush1.msra.mxu0 %v4784
    %5719 = vmatprep.subr.mxu0 %v4840
    %5720 = vmatpush1.msra.mxu0 %v4837
    %5721 = vmatprep.subr.mxu0 0.0
    %5722 = vmatpush1.msra.mxu0 0.0
    %5723 = vmatprep.subr.mxu0 0.0
    %5724 = vmatpush1.msra.mxu0 0.0
    %5725 = vmatprep.subr.mxu0 0.0
    %5726 = vmatpush1.msra.mxu0 0.0
    %5727 = vmatprep.subr.mxu0 0.0
    %5728 = vmatpush1.msra.mxu0 0.0
    %5729 = vmatprep.subr.mxu0 0.0
    %5730 = vmatpush1.msra.mxu0 0.0
    %5731 = vmatprep.subr.mxu0 0.0
    %5732 = vmatpush1.msra.mxu0 0.0
    %5733 = vmatprep.subr.mxu0 0.0
    %5734 = vmatpush1.msra.mxu0 0.0
    %5735 = vmatprep.subr.mxu0 0.0
    %5736 = vmatpush1.msra.mxu0 0.0
    %5737 = vmatprep.subr.mxu0 0.0
    %5738 = vmatpush1.msra.mxu0 0.0
    %5739 = vmatprep.subr.mxu0 0.0
    %5740 = vmatpush1.msra.mxu0 0.0
    %5741 = vmatprep.subr.mxu0 0.0
    %5742 = vmatpush1.msra.mxu0 0.0
    %5743 = vmatprep.subr.mxu0 0.0
    %5744 = vmatpush1.msra.mxu0 0.0
    %5745 = vmatprep.subr.mxu0 0.0
    %5746 = vmatpush1.msra.mxu0 0.0
    %5747 = vmatprep.subr.mxu0 0.0
    %5748 = vmatpush1.msra.mxu0 0.0
    %5749 = vmatprep.subr.mxu0 0.0
    %5750 = vmatpush1.msra.mxu0 0.0
    %5751 = vmatprep.subr.mxu0 0.0
    %5752 = vmatpush1.msra.mxu0 0.0
    %5753 = vmatprep.subr.mxu0 0.0
    %5754 = vmatpush1.msra.mxu0 0.0
    %5755 = vmatprep.subr.mxu0 0.0
    %5756 = vmatpush1.msra.mxu0 0.0
    %5757 = vmatprep.subr.mxu0 0.0
    %5758 = vmatpush1.msra.mxu0 0.0
    %5759 = vmatprep.subr.mxu0 0.0
    %5760 = vmatpush1.msra.mxu0 0.0
    %5761 = vmatprep.subr.mxu0 0.0
    %5762 = vmatpush1.msra.mxu0 0.0
    %5763 = vmatprep.subr.mxu0 0.0
    %5764 = vmatpush1.msra.mxu0 0.0
    %5765 = vmatprep.subr.mxu0 0.0
    %5766 = vmatpush1.msra.mxu0 0.0
    %5767 = vmatprep.subr.mxu0 0.0
    %5768 = vmatpush1.msra.mxu0 0.0
    %5769 = vmatprep.subr.mxu0 0.0
    %5770 = vmatpush1.msra.mxu0 0.0
    %5771 = vmatprep.subr.mxu0 0.0
    %5772 = vmatpush1.msra.mxu0 0.0
    %5773 = vmatprep.subr.mxu0 0.0
    %5774 = vmatpush1.msra.mxu0 0.0
    %5775 = vmatprep.subr.mxu0 0.0
    %5776 = vmatpush1.msra.mxu0 0.0
    %5777 = vmatprep.mubr.f32.mxu0 0.0
    %5778 = vmatmul.mubr.f32.gmra.mrb[0].mxu0 %v5324
    %v5779 = vpop.f32.mrb[0].mxu0
    %v5780 = vadd.f32 0.0, %v5779
    %v5781 = vpop.f32.mrb[0].mxu0
    %v5782 = vadd.f32 0.0, %v5781
    %5783 = vmatprep.mubr.f32.mxu0 0.0
    %5784 = vmatmul.mubr.f32.gmra.mrb[0].mxu0 %v5326
    %v5785 = vpop.f32.mrb[0].mxu0
    %v5786 = vadd.f32 0.0, %v5785
    %v5787 = vpop.f32.mrb[0].mxu0
    %v5788 = vadd.f32 0.0, %v5787
    %5789 = vdwg.mxu0
    %5802 = vrot.lane.b32.xlu0 %v5395, 126
    %v5803 = vpop.permute.xlu0 %5802
    %5804 = vrot.lane.b32.xlu0 %v5397, 126
    %v5805 = vpop.permute.xlu0 %5804
    %5806 = vrot.lane.b32.xlu0 %v5472, 126
    %v5807 = vpop.permute.xlu0 %5806
    %5808 = vrot.lane.b32.xlu0 %v5474, 126
    %v5809 = vpop.permute.xlu0 %5808
    %5810 = vrot.lane.b32.xlu0 %v5549, 126
    %v5811 = vpop.permute.xlu0 %5810
    %5812 = vrot.lane.b32.xlu0 %v5551, 126
    %v5813 = vpop.permute.xlu0 %5812
    %5814 = vrot.lane.b32.xlu0 %v5401, 126
    %v5815 = vpop.permute.xlu0 %5814
    %5816 = vrot.lane.b32.xlu0 %v5403, 126
    %v5817 = vpop.permute.xlu0 %5816
    %5818 = vrot.lane.b32.xlu0 %v5478, 126
    %v5819 = vpop.permute.xlu0 %5818
    %5820 = vrot.lane.b32.xlu0 %v5480, 126
    %v5821 = vpop.permute.xlu0 %5820
    %5822 = vrot.lane.b32.xlu0 %v5555, 126
    %v5823 = vpop.permute.xlu0 %5822
    %5824 = vrot.lane.b32.xlu0 %v5557, 126
    %v5825 = vpop.permute.xlu0 %5824
    %v5826 = vsel %vm2662, %v5803, %v5805
    %v5827 = vsel %vm2662, %v5805, %v5807
    %v5828 = vsel %vm2662, %v5807, %v5809
    %v5829 = vsel %vm2662, %v5809, %v5811
    %v5830 = vsel %vm2662, %v5811, %v5813
    %v5831 = vsel %vm2662, %v5815, %v5817
    %v5832 = vsel %vm2662, %v5817, %v5819
    %v5833 = vsel %vm2662, %v5819, %v5821
    %v5834 = vsel %vm2662, %v5821, %v5823
    %v5835 = vsel %vm2662, %v5823, %v5825
    %v5846 = vadd.f32 %v5300, %v5826
    %v5847 = vadd.f32 %v5301, %v5827
    %v5848 = vadd.f32 %v5302, %v5828
    %v5849 = vadd.f32 %v5303, %v5829
    %v5850 = vadd.f32 %v5304, %v5830
    %v5851 = vadd.f32 %v5305, %v5831
    %v5852 = vadd.f32 %v5306, %v5832
    %v5853 = vadd.f32 %v5307, %v5833
    %v5854 = vadd.f32 %v5308, %v5834
    %v5855 = vadd.f32 %v5309, %v5835
    %5868 = vrot.lane.b32.xlu0 %v5626, 126
    %v5869 = vpop.permute.xlu0 %5868
    %5870 = vrot.lane.b32.xlu0 %v5628, 126
    %v5871 = vpop.permute.xlu0 %5870
    %5872 = vrot.lane.b32.xlu0 %v5703, 126
    %v5873 = vpop.permute.xlu0 %5872
    %5874 = vrot.lane.b32.xlu0 %v5705, 126
    %v5875 = vpop.permute.xlu0 %5874
    %5876 = vrot.lane.b32.xlu0 %v5780, 126
    %v5877 = vpop.permute.xlu0 %5876
    %5878 = vrot.lane.b32.xlu0 %v5782, 126
    %v5879 = vpop.permute.xlu0 %5878
    %5880 = vrot.lane.b32.xlu0 %v5632, 126
    %v5881 = vpop.permute.xlu0 %5880
    %5882 = vrot.lane.b32.xlu0 %v5634, 126
    %v5883 = vpop.permute.xlu0 %5882
    %5884 = vrot.lane.b32.xlu0 %v5709, 126
    %v5885 = vpop.permute.xlu0 %5884
    %5886 = vrot.lane.b32.xlu0 %v5711, 126
    %v5887 = vpop.permute.xlu0 %5886
    %5888 = vrot.lane.b32.xlu0 %v5786, 126
    %v5889 = vpop.permute.xlu0 %5888
    %5890 = vrot.lane.b32.xlu0 %v5788, 126
    %v5891 = vpop.permute.xlu0 %5890
    %v5892 = vsel %vm2662, %v5869, %v5871
    %v5893 = vsel %vm2662, %v5871, %v5873
    %v5894 = vsel %vm2662, %v5873, %v5875
    %v5895 = vsel %vm2662, %v5875, %v5877
    %v5896 = vsel %vm2662, %v5877, %v5879
    %v5897 = vsel %vm2662, %v5881, %v5883
    %v5898 = vsel %vm2662, %v5883, %v5885
    %v5899 = vsel %vm2662, %v5885, %v5887
    %v5900 = vsel %vm2662, %v5887, %v5889
    %v5901 = vsel %vm2662, %v5889, %v5891
    %v5912 = vadd.f32 %v5310, %v5892
    %v5913 = vadd.f32 %v5311, %v5893
    %v5914 = vadd.f32 %v5312, %v5894
    %v5915 = vadd.f32 %v5313, %v5895
    %v5916 = vadd.f32 %v5314, %v5896
    %v5917 = vadd.f32 %v5315, %v5897
    %v5918 = vadd.f32 %v5316, %v5898
    %v5919 = vadd.f32 %v5317, %v5899
    %v5920 = vadd.f32 %v5318, %v5900
    %v5921 = vadd.f32 %v5319, %v5901
    %5922 = vrot.lane.b32.xlu0 %v4748, 68
    %v5923 = vpop.permute.xlu0 %5922
    %5924 = vrot.lane.b32.xlu0 %v4749, 68
    %v5925 = vpop.permute.xlu0 %5924
    %v5926 = vsel %vm4798, %v5923, 0
    %v5928 = vsel %vm4798, %v5925, 0
    %5930 = vmatprep.subr.mxu0 %v4751
    %5931 = vmatpush1.msra.mxu0 %v4750
    %5932 = vmatprep.subr.mxu0 %v4763
    %5933 = vmatpush1.msra.mxu0 %v4762
    %5934 = vmatprep.subr.mxu0 %v4775
    %5935 = vmatpush1.msra.mxu0 %v4774
    %5936 = vmatprep.subr.mxu0 %v4810
    %5937 = vmatpush1.msra.mxu0 %v4807
    %5938 = vmatprep.subr.mxu0 0.0
    %5939 = vmatpush1.msra.mxu0 0.0
    %5940 = vmatprep.subr.mxu0 0.0
    %5941 = vmatpush1.msra.mxu0 0.0
    %5942 = vmatprep.subr.mxu0 0.0
    %5943 = vmatpush1.msra.mxu0 0.0
    %5944 = vmatprep.subr.mxu0 0.0
    %5945 = vmatpush1.msra.mxu0 0.0
    %5946 = vmatprep.subr.mxu0 0.0
    %5947 = vmatpush1.msra.mxu0 0.0
    %5948 = vmatprep.subr.mxu0 0.0
    %5949 = vmatpush1.msra.mxu0 0.0
    %5950 = vmatprep.subr.mxu0 0.0
    %5951 = vmatpush1.msra.mxu0 0.0
    %5952 = vmatprep.subr.mxu0 0.0
    %5953 = vmatpush1.msra.mxu0 0.0
    %5954 = vmatprep.subr.mxu0 0.0
    %5955 = vmatpush1.msra.mxu0 0.0
    %5956 = vmatprep.subr.mxu0 0.0
    %5957 = vmatpush1.msra.mxu0 0.0
    %5958 = vmatprep.subr.mxu0 0.0
    %5959 = vmatpush1.msra.mxu0 0.0
    %5960 = vmatprep.subr.mxu0 0.0
    %5961 = vmatpush1.msra.mxu0 0.0
    %5962 = vmatprep.subr.mxu0 0.0
    %5963 = vmatpush1.msra.mxu0 0.0
    %5964 = vmatprep.subr.mxu0 0.0
    %5965 = vmatpush1.msra.mxu0 0.0
    %5966 = vmatprep.subr.mxu0 0.0
    %5967 = vmatpush1.msra.mxu0 0.0
    %5968 = vmatprep.subr.mxu0 0.0
    %5969 = vmatpush1.msra.mxu0 0.0
    %5970 = vmatprep.subr.mxu0 0.0
    %5971 = vmatpush1.msra.mxu0 0.0
    %5972 = vmatprep.subr.mxu0 0.0
    %5973 = vmatpush1.msra.mxu0 0.0
    %5974 = vmatprep.subr.mxu0 0.0
    %5975 = vmatpush1.msra.mxu0 0.0
    %5976 = vmatprep.subr.mxu0 0.0
    %5977 = vmatpush1.msra.mxu0 0.0
    %5978 = vmatprep.subr.mxu0 0.0
    %5979 = vmatpush1.msra.mxu0 0.0
    %5980 = vmatprep.subr.mxu0 0.0
    %5981 = vmatpush1.msra.mxu0 0.0
    %5982 = vmatprep.subr.mxu0 0.0
    %5983 = vmatpush1.msra.mxu0 0.0
    %5984 = vmatprep.subr.mxu0 0.0
    %5985 = vmatpush1.msra.mxu0 0.0
    %5986 = vmatprep.subr.mxu0 0.0
    %5987 = vmatpush1.msra.mxu0 0.0
    %5988 = vmatprep.subr.mxu0 0.0
    %5989 = vmatpush1.msra.mxu0 0.0
    %5990 = vmatprep.subr.mxu0 0.0
    %5991 = vmatpush1.msra.mxu0 0.0
    %5992 = vmatprep.subr.mxu0 0.0
    %5993 = vmatpush1.msra.mxu0 0.0
    %5994 = vmatprep.mubr.f32.mxu0 0.0
    %5995 = vmatmul.mubr.f32.gmra.mrb[0].mxu0 %v5926
    %v5996 = vpop.f32.mrb[0].mxu0
    %v5997 = vadd.f32 0.0, %v5996
    %v5998 = vpop.f32.mrb[0].mxu0
    %v5999 = vadd.f32 0.0, %v5998
    %6000 = vmatprep.mubr.f32.mxu0 0.0
    %6001 = vmatmul.mubr.f32.gmra.mrb[0].mxu0 %v5928
    %v6002 = vpop.f32.mrb[0].mxu0
    %v6003 = vadd.f32 0.0, %v6002
    %v6004 = vpop.f32.mrb[0].mxu0
    %v6005 = vadd.f32 0.0, %v6004
    %6006 = vdwg.mxu0
    %6007 = vmatprep.subr.mxu0 %v4753
    %6008 = vmatpush1.msra.mxu0 %v4752
    %6009 = vmatprep.subr.mxu0 %v4765
    %6010 = vmatpush1.msra.mxu0 %v4764
    %6011 = vmatprep.subr.mxu0 %v4777
    %6012 = vmatpush1.msra.mxu0 %v4776
    %6013 = vmatprep.subr.mxu0 %v4816
    %6014 = vmatpush1.msra.mxu0 %v4813
    %6015 = vmatprep.subr.mxu0 0.0
    %6016 = vmatpush1.msra.mxu0 0.0
    %6017 = vmatprep.subr.mxu0 0.0
    %6018 = vmatpush1.msra.mxu0 0.0
    %6019 = vmatprep.subr.mxu0 0.0
    %6020 = vmatpush1.msra.mxu0 0.0
    %6021 = vmatprep.subr.mxu0 0.0
    %6022 = vmatpush1.msra.mxu0 0.0
    %6023 = vmatprep.subr.mxu0 0.0
    %6024 = vmatpush1.msra.mxu0 0.0
    %6025 = vmatprep.subr.mxu0 0.0
    %6026 = vmatpush1.msra.mxu0 0.0
    %6027 = vmatprep.subr.mxu0 0.0
    %6028 = vmatpush1.msra.mxu0 0.0
    %6029 = vmatprep.subr.mxu0 0.0
    %6030 = vmatpush1.msra.mxu0 0.0
    %6031 = vmatprep.subr.mxu0 0.0
    %6032 = vmatpush1.msra.mxu0 0.0
    %6033 = vmatprep.subr.mxu0 0.0
    %6034 = vmatpush1.msra.mxu0 0.0
    %6035 = vmatprep.subr.mxu0 0.0
    %6036 = vmatpush1.msra.mxu0 0.0
    %6037 = vmatprep.subr.mxu0 0.0
    %6038 = vmatpush1.msra.mxu0 0.0
    %6039 = vmatprep.subr.mxu0 0.0
    %6040 = vmatpush1.msra.mxu0 0.0
    %6041 = vmatprep.subr.mxu0 0.0
    %6042 = vmatpush1.msra.mxu0 0.0
    %6043 = vmatprep.subr.mxu0 0.0
    %6044 = vmatpush1.msra.mxu0 0.0
    %6045 = vmatprep.subr.mxu0 0.0
    %6046 = vmatpush1.msra.mxu0 0.0
    %6047 = vmatprep.subr.mxu0 0.0
    %6048 = vmatpush1.msra.mxu0 0.0
    %6049 = vmatprep.subr.mxu0 0.0
    %6050 = vmatpush1.msra.mxu0 0.0
    %6051 = vmatprep.subr.mxu0 0.0
    %6052 = vmatpush1.msra.mxu0 0.0
    %6053 = vmatprep.subr.mxu0 0.0
    %6054 = vmatpush1.msra.mxu0 0.0
    %6055 = vmatprep.subr.mxu0 0.0
    %6056 = vmatpush1.msra.mxu0 0.0
    %6057 = vmatprep.subr.mxu0 0.0
    %6058 = vmatpush1.msra.mxu0 0.0
    %6059 = vmatprep.subr.mxu0 0.0
    %6060 = vmatpush1.msra.mxu0 0.0
    %6061 = vmatprep.subr.mxu0 0.0
    %6062 = vmatpush1.msra.mxu0 0.0
    %6063 = vmatprep.subr.mxu0 0.0
    %6064 = vmatpush1.msra.mxu0 0.0
    %6065 = vmatprep.subr.mxu0 0.0
    %6066 = vmatpush1.msra.mxu0 0.0
    %6067 = vmatprep.subr.mxu0 0.0
    %6068 = vmatpush1.msra.mxu0 0.0
    %6069 = vmatprep.subr.mxu0 0.0
    %6070 = vmatpush1.msra.mxu0 0.0
    %6071 = vmatprep.mubr.f32.mxu0 0.0
    %6072 = vmatmul.mubr.f32.gmra.mrb[0].mxu0 %v5926
    %v6073 = vpop.f32.mrb[0].mxu0
    %v6074 = vadd.f32 0.0, %v6073
    %v6075 = vpop.f32.mrb[0].mxu0
    %v6076 = vadd.f32 0.0, %v6075
    %6077 = vmatprep.mubr.f32.mxu0 0.0
    %6078 = vmatmul.mubr.f32.gmra.mrb[0].mxu0 %v5928
    %v6079 = vpop.f32.mrb[0].mxu0
    %v6080 = vadd.f32 0.0, %v6079
    %v6081 = vpop.f32.mrb[0].mxu0
    %v6082 = vadd.f32 0.0, %v6081
    %6083 = vdwg.mxu0
    %6084 = vmatprep.subr.mxu0 %v4755
    %6085 = vmatpush1.msra.mxu0 %v4754
    %6086 = vmatprep.subr.mxu0 %v4767
    %6087 = vmatpush1.msra.mxu0 %v4766
    %6088 = vmatprep.subr.mxu0 %v4779
    %6089 = vmatpush1.msra.mxu0 %v4778
    %6090 = vmatprep.subr.mxu0 %v4822
    %6091 = vmatpush1.msra.mxu0 %v4819
    %6092 = vmatprep.subr.mxu0 0.0
    %6093 = vmatpush1.msra.mxu0 0.0
    %6094 = vmatprep.subr.mxu0 0.0
    %6095 = vmatpush1.msra.mxu0 0.0
    %6096 = vmatprep.subr.mxu0 0.0
    %6097 = vmatpush1.msra.mxu0 0.0
    %6098 = vmatprep.subr.mxu0 0.0
    %6099 = vmatpush1.msra.mxu0 0.0
    %6100 = vmatprep.subr.mxu0 0.0
    %6101 = vmatpush1.msra.mxu0 0.0
    %6102 = vmatprep.subr.mxu0 0.0
    %6103 = vmatpush1.msra.mxu0 0.0
    %6104 = vmatprep.subr.mxu0 0.0
    %6105 = vmatpush1.msra.mxu0 0.0
    %6106 = vmatprep.subr.mxu0 0.0
    %6107 = vmatpush1.msra.mxu0 0.0
    %6108 = vmatprep.subr.mxu0 0.0
    %6109 = vmatpush1.msra.mxu0 0.0
    %6110 = vmatprep.subr.mxu0 0.0
    %6111 = vmatpush1.msra.mxu0 0.0
    %6112 = vmatprep.subr.mxu0 0.0
    %6113 = vmatpush1.msra.mxu0 0.0
    %6114 = vmatprep.subr.mxu0 0.0
    %6115 = vmatpush1.msra.mxu0 0.0
    %6116 = vmatprep.subr.mxu0 0.0
    %6117 = vmatpush1.msra.mxu0 0.0
    %6118 = vmatprep.subr.mxu0 0.0
    %6119 = vmatpush1.msra.mxu0 0.0
    %6120 = vmatprep.subr.mxu0 0.0
    %6121 = vmatpush1.msra.mxu0 0.0
    %6122 = vmatprep.subr.mxu0 0.0
    %6123 = vmatpush1.msra.mxu0 0.0
    %6124 = vmatprep.subr.mxu0 0.0
    %6125 = vmatpush1.msra.mxu0 0.0
    %6126 = vmatprep.subr.mxu0 0.0
    %6127 = vmatpush1.msra.mxu0 0.0
    %6128 = vmatprep.subr.mxu0 0.0
    %6129 = vmatpush1.msra.mxu0 0.0
    %6130 = vmatprep.subr.mxu0 0.0
    %6131 = vmatpush1.msra.mxu0 0.0
    %6132 = vmatprep.subr.mxu0 0.0
    %6133 = vmatpush1.msra.mxu0 0.0
    %6134 = vmatprep.subr.mxu0 0.0
    %6135 = vmatpush1.msra.mxu0 0.0
    %6136 = vmatprep.subr.mxu0 0.0
    %6137 = vmatpush1.msra.mxu0 0.0
    %6138 = vmatprep.subr.mxu0 0.0
    %6139 = vmatpush1.msra.mxu0 0.0
    %6140 = vmatprep.subr.mxu0 0.0
    %6141 = vmatpush1.msra.mxu0 0.0
    %6142 = vmatprep.subr.mxu0 0.0
    %6143 = vmatpush1.msra.mxu0 0.0
    %6144 = vmatprep.subr.mxu0 0.0
    %6145 = vmatpush1.msra.mxu0 0.0
    %6146 = vmatprep.subr.mxu0 0.0
    %6147 = vmatpush1.msra.mxu0 0.0
    %6148 = vmatprep.mubr.f32.mxu0 0.0
    %6149 = vmatmul.mubr.f32.gmra.mrb[0].mxu0 %v5926
    %v6150 = vpop.f32.mrb[0].mxu0
    %v6151 = vadd.f32 0.0, %v6150
    %v6152 = vpop.f32.mrb[0].mxu0
    %v6153 = vadd.f32 0.0, %v6152
    %6154 = vmatprep.mubr.f32.mxu0 0.0
    %6155 = vmatmul.mubr.f32.gmra.mrb[0].mxu0 %v5928
    %v6156 = vpop.f32.mrb[0].mxu0
    %v6157 = vadd.f32 0.0, %v6156
    %v6158 = vpop.f32.mrb[0].mxu0
    %v6159 = vadd.f32 0.0, %v6158
    %6160 = vdwg.mxu0
    %6161 = vmatprep.subr.mxu0 %v4757
    %6162 = vmatpush1.msra.mxu0 %v4756
    %6163 = vmatprep.subr.mxu0 %v4769
    %6164 = vmatpush1.msra.mxu0 %v4768
    %6165 = vmatprep.subr.mxu0 %v4781
    %6166 = vmatpush1.msra.mxu0 %v4780
    %6167 = vmatprep.subr.mxu0 %v4828
    %6168 = vmatpush1.msra.mxu0 %v4825
    %6169 = vmatprep.subr.mxu0 0.0
    %6170 = vmatpush1.msra.mxu0 0.0
    %6171 = vmatprep.subr.mxu0 0.0
    %6172 = vmatpush1.msra.mxu0 0.0
    %6173 = vmatprep.subr.mxu0 0.0
    %6174 = vmatpush1.msra.mxu0 0.0
    %6175 = vmatprep.subr.mxu0 0.0
    %6176 = vmatpush1.msra.mxu0 0.0
    %6177 = vmatprep.subr.mxu0 0.0
    %6178 = vmatpush1.msra.mxu0 0.0
    %6179 = vmatprep.subr.mxu0 0.0
    %6180 = vmatpush1.msra.mxu0 0.0
    %6181 = vmatprep.subr.mxu0 0.0
    %6182 = vmatpush1.msra.mxu0 0.0
    %6183 = vmatprep.subr.mxu0 0.0
    %6184 = vmatpush1.msra.mxu0 0.0
    %6185 = vmatprep.subr.mxu0 0.0
    %6186 = vmatpush1.msra.mxu0 0.0
    %6187 = vmatprep.subr.mxu0 0.0
    %6188 = vmatpush1.msra.mxu0 0.0
    %6189 = vmatprep.subr.mxu0 0.0
    %6190 = vmatpush1.msra.mxu0 0.0
    %6191 = vmatprep.subr.mxu0 0.0
    %6192 = vmatpush1.msra.mxu0 0.0
    %6193 = vmatprep.subr.mxu0 0.0
    %6194 = vmatpush1.msra.mxu0 0.0
    %6195 = vmatprep.subr.mxu0 0.0
    %6196 = vmatpush1.msra.mxu0 0.0
    %6197 = vmatprep.subr.mxu0 0.0
    %6198 = vmatpush1.msra.mxu0 0.0
    %6199 = vmatprep.subr.mxu0 0.0
    %6200 = vmatpush1.msra.mxu0 0.0
    %6201 = vmatprep.subr.mxu0 0.0
    %6202 = vmatpush1.msra.mxu0 0.0
    %6203 = vmatprep.subr.mxu0 0.0
    %6204 = vmatpush1.msra.mxu0 0.0
    %6205 = vmatprep.subr.mxu0 0.0
    %6206 = vmatpush1.msra.mxu0 0.0
    %6207 = vmatprep.subr.mxu0 0.0
    %6208 = vmatpush1.msra.mxu0 0.0
    %6209 = vmatprep.subr.mxu0 0.0
    %6210 = vmatpush1.msra.mxu0 0.0
    %6211 = vmatprep.subr.mxu0 0.0
    %6212 = vmatpush1.msra.mxu0 0.0
    %6213 = vmatprep.subr.mxu0 0.0
    %6214 = vmatpush1.msra.mxu0 0.0
    %6215 = vmatprep.subr.mxu0 0.0
    %6216 = vmatpush1.msra.mxu0 0.0
    %6217 = vmatprep.subr.mxu0 0.0
    %6218 = vmatpush1.msra.mxu0 0.0
    %6219 = vmatprep.subr.mxu0 0.0
    %6220 = vmatpush1.msra.mxu0 0.0
    %6221 = vmatprep.subr.mxu0 0.0
    %6222 = vmatpush1.msra.mxu0 0.0
    %6223 = vmatprep.subr.mxu0 0.0
    %6224 = vmatpush1.msra.mxu0 0.0
    %6225 = vmatprep.mubr.f32.mxu0 0.0
    %6226 = vmatmul.mubr.f32.gmra.mrb[0].mxu0 %v5926
    %v6227 = vpop.f32.mrb[0].mxu0
    %v6228 = vadd.f32 0.0, %v6227
    %v6229 = vpop.f32.mrb[0].mxu0
    %v6230 = vadd.f32 0.0, %v6229
    %6231 = vmatprep.mubr.f32.mxu0 0.0
    %6232 = vmatmul.mubr.f32.gmra.mrb[0].mxu0 %v5928
    %v6233 = vpop.f32.mrb[0].mxu0
    %v6234 = vadd.f32 0.0, %v6233
    %v6235 = vpop.f32.mrb[0].mxu0
    %v6236 = vadd.f32 0.0, %v6235
    %6237 = vdwg.mxu0
    %6238 = vmatprep.subr.mxu0 %v4759
    %6239 = vmatpush1.msra.mxu0 %v4758
    %6240 = vmatprep.subr.mxu0 %v4771
    %6241 = vmatpush1.msra.mxu0 %v4770
    %6242 = vmatprep.subr.mxu0 %v4783
    %6243 = vmatpush1.msra.mxu0 %v4782
    %6244 = vmatprep.subr.mxu0 %v4834
    %6245 = vmatpush1.msra.mxu0 %v4831
    %6246 = vmatprep.subr.mxu0 0.0
    %6247 = vmatpush1.msra.mxu0 0.0
    %6248 = vmatprep.subr.mxu0 0.0
    %6249 = vmatpush1.msra.mxu0 0.0
    %6250 = vmatprep.subr.mxu0 0.0
    %6251 = vmatpush1.msra.mxu0 0.0
    %6252 = vmatprep.subr.mxu0 0.0
    %6253 = vmatpush1.msra.mxu0 0.0
    %6254 = vmatprep.subr.mxu0 0.0
    %6255 = vmatpush1.msra.mxu0 0.0
    %6256 = vmatprep.subr.mxu0 0.0
    %6257 = vmatpush1.msra.mxu0 0.0
    %6258 = vmatprep.subr.mxu0 0.0
    %6259 = vmatpush1.msra.mxu0 0.0
    %6260 = vmatprep.subr.mxu0 0.0
    %6261 = vmatpush1.msra.mxu0 0.0
    %6262 = vmatprep.subr.mxu0 0.0
    %6263 = vmatpush1.msra.mxu0 0.0
    %6264 = vmatprep.subr.mxu0 0.0
    %6265 = vmatpush1.msra.mxu0 0.0
    %6266 = vmatprep.subr.mxu0 0.0
    %6267 = vmatpush1.msra.mxu0 0.0
    %6268 = vmatprep.subr.mxu0 0.0
    %6269 = vmatpush1.msra.mxu0 0.0
    %6270 = vmatprep.subr.mxu0 0.0
    %6271 = vmatpush1.msra.mxu0 0.0
    %6272 = vmatprep.subr.mxu0 0.0
    %6273 = vmatpush1.msra.mxu0 0.0
    %6274 = vmatprep.subr.mxu0 0.0
    %6275 = vmatpush1.msra.mxu0 0.0
    %6276 = vmatprep.subr.mxu0 0.0
    %6277 = vmatpush1.msra.mxu0 0.0
    %6278 = vmatprep.subr.mxu0 0.0
    %6279 = vmatpush1.msra.mxu0 0.0
    %6280 = vmatprep.subr.mxu0 0.0
    %6281 = vmatpush1.msra.mxu0 0.0
    %6282 = vmatprep.subr.mxu0 0.0
    %6283 = vmatpush1.msra.mxu0 0.0
    %6284 = vmatprep.subr.mxu0 0.0
    %6285 = vmatpush1.msra.mxu0 0.0
    %6286 = vmatprep.subr.mxu0 0.0
    %6287 = vmatpush1.msra.mxu0 0.0
    %6288 = vmatprep.subr.mxu0 0.0
    %6289 = vmatpush1.msra.mxu0 0.0
    %6290 = vmatprep.subr.mxu0 0.0
    %6291 = vmatpush1.msra.mxu0 0.0
    %6292 = vmatprep.subr.mxu0 0.0
    %6293 = vmatpush1.msra.mxu0 0.0
    %6294 = vmatprep.subr.mxu0 0.0
    %6295 = vmatpush1.msra.mxu0 0.0
    %6296 = vmatprep.subr.mxu0 0.0
    %6297 = vmatpush1.msra.mxu0 0.0
    %6298 = vmatprep.subr.mxu0 0.0
    %6299 = vmatpush1.msra.mxu0 0.0
    %6300 = vmatprep.subr.mxu0 0.0
    %6301 = vmatpush1.msra.mxu0 0.0
    %6302 = vmatprep.mubr.f32.mxu0 0.0
    %6303 = vmatmul.mubr.f32.gmra.mrb[0].mxu0 %v5926
    %v6304 = vpop.f32.mrb[0].mxu0
    %v6305 = vadd.f32 0.0, %v6304
    %v6306 = vpop.f32.mrb[0].mxu0
    %v6307 = vadd.f32 0.0, %v6306
    %6308 = vmatprep.mubr.f32.mxu0 0.0
    %6309 = vmatmul.mubr.f32.gmra.mrb[0].mxu0 %v5928
    %v6310 = vpop.f32.mrb[0].mxu0
    %v6311 = vadd.f32 0.0, %v6310
    %v6312 = vpop.f32.mrb[0].mxu0
    %v6313 = vadd.f32 0.0, %v6312
    %6314 = vdwg.mxu0
    %6315 = vmatprep.subr.mxu0 %v4761
    %6316 = vmatpush1.msra.mxu0 %v4760
    %6317 = vmatprep.subr.mxu0 %v4773
    %6318 = vmatpush1.msra.mxu0 %v4772
    %6319 = vmatprep.subr.mxu0 %v4785
    %6320 = vmatpush1.msra.mxu0 %v4784
    %6321 = vmatprep.subr.mxu0 %v4840
    %6322 = vmatpush1.msra.mxu0 %v4837
    %6323 = vmatprep.subr.mxu0 0.0
    %6324 = vmatpush1.msra.mxu0 0.0
    %6325 = vmatprep.subr.mxu0 0.0
    %6326 = vmatpush1.msra.mxu0 0.0
    %6327 = vmatprep.subr.mxu0 0.0
    %6328 = vmatpush1.msra.mxu0 0.0
    %6329 = vmatprep.subr.mxu0 0.0
    %6330 = vmatpush1.msra.mxu0 0.0
    %6331 = vmatprep.subr.mxu0 0.0
    %6332 = vmatpush1.msra.mxu0 0.0
    %6333 = vmatprep.subr.mxu0 0.0
    %6334 = vmatpush1.msra.mxu0 0.0
    %6335 = vmatprep.subr.mxu0 0.0
    %6336 = vmatpush1.msra.mxu0 0.0
    %6337 = vmatprep.subr.mxu0 0.0
    %6338 = vmatpush1.msra.mxu0 0.0
    %6339 = vmatprep.subr.mxu0 0.0
    %6340 = vmatpush1.msra.mxu0 0.0
    %6341 = vmatprep.subr.mxu0 0.0
    %6342 = vmatpush1.msra.mxu0 0.0
    %6343 = vmatprep.subr.mxu0 0.0
    %6344 = vmatpush1.msra.mxu0 0.0
    %6345 = vmatprep.subr.mxu0 0.0
    %6346 = vmatpush1.msra.mxu0 0.0
    %6347 = vmatprep.subr.mxu0 0.0
    %6348 = vmatpush1.msra.mxu0 0.0
    %6349 = vmatprep.subr.mxu0 0.0
    %6350 = vmatpush1.msra.mxu0 0.0
    %6351 = vmatprep.subr.mxu0 0.0
    %6352 = vmatpush1.msra.mxu0 0.0
    %6353 = vmatprep.subr.mxu0 0.0
    %6354 = vmatpush1.msra.mxu0 0.0
    %6355 = vmatprep.subr.mxu0 0.0
    %6356 = vmatpush1.msra.mxu0 0.0
    %6357 = vmatprep.subr.mxu0 0.0
    %6358 = vmatpush1.msra.mxu0 0.0
    %6359 = vmatprep.subr.mxu0 0.0
    %6360 = vmatpush1.msra.mxu0 0.0
    %6361 = vmatprep.subr.mxu0 0.0
    %6362 = vmatpush1.msra.mxu0 0.0
    %6363 = vmatprep.subr.mxu0 0.0
    %6364 = vmatpush1.msra.mxu0 0.0
    %6365 = vmatprep.subr.mxu0 0.0
    %6366 = vmatpush1.msra.mxu0 0.0
    %6367 = vmatprep.subr.mxu0 0.0
    %6368 = vmatpush1.msra.mxu0 0.0
    %6369 = vmatprep.subr.mxu0 0.0
    %6370 = vmatpush1.msra.mxu0 0.0
    %6371 = vmatprep.subr.mxu0 0.0
    %6372 = vmatpush1.msra.mxu0 0.0
    %6373 = vmatprep.subr.mxu0 0.0
    %6374 = vmatpush1.msra.mxu0 0.0
    %6375 = vmatprep.subr.mxu0 0.0
    %6376 = vmatpush1.msra.mxu0 0.0
    %6377 = vmatprep.subr.mxu0 0.0
    %6378 = vmatpush1.msra.mxu0 0.0
    %6379 = vmatprep.mubr.f32.mxu0 0.0
    %6380 = vmatmul.mubr.f32.gmra.mrb[0].mxu0 %v5926
    %v6381 = vpop.f32.mrb[0].mxu0
    %v6382 = vadd.f32 0.0, %v6381
    %v6383 = vpop.f32.mrb[0].mxu0
    %v6384 = vadd.f32 0.0, %v6383
    %6385 = vmatprep.mubr.f32.mxu0 0.0
    %6386 = vmatmul.mubr.f32.gmra.mrb[0].mxu0 %v5928
    %v6387 = vpop.f32.mrb[0].mxu0
    %v6388 = vadd.f32 0.0, %v6387
    %v6389 = vpop.f32.mrb[0].mxu0
    %v6390 = vadd.f32 0.0, %v6389
    %6391 = vdwg.mxu0
    %6404 = vrot.lane.b32.xlu0 %v5997, 124
    %v6405 = vpop.permute.xlu0 %6404
    %6406 = vrot.lane.b32.xlu0 %v5999, 124
    %v6407 = vpop.permute.xlu0 %6406
    %6408 = vrot.lane.b32.xlu0 %v6074, 124
    %v6409 = vpop.permute.xlu0 %6408
    %6410 = vrot.lane.b32.xlu0 %v6076, 124
    %v6411 = vpop.permute.xlu0 %6410
    %6412 = vrot.lane.b32.xlu0 %v6151, 124
    %v6413 = vpop.permute.xlu0 %6412
    %6414 = vrot.lane.b32.xlu0 %v6153, 124
    %v6415 = vpop.permute.xlu0 %6414
    %6416 = vrot.lane.b32.xlu0 %v6003, 124
    %v6417 = vpop.permute.xlu0 %6416
    %6418 = vrot.lane.b32.xlu0 %v6005, 124
    %v6419 = vpop.permute.xlu0 %6418
    %6420 = vrot.lane.b32.xlu0 %v6080, 124
    %v6421 = vpop.permute.xlu0 %6420
    %6422 = vrot.lane.b32.xlu0 %v6082, 124
    %v6423 = vpop.permute.xlu0 %6422
    %6424 = vrot.lane.b32.xlu0 %v6157, 124
    %v6425 = vpop.permute.xlu0 %6424
    %6426 = vrot.lane.b32.xlu0 %v6159, 124
    %v6427 = vpop.permute.xlu0 %6426
    %v6428 = vsel %vm4154, %v6405, %v6407
    %v6429 = vsel %vm4154, %v6407, %v6409
    %v6430 = vsel %vm4154, %v6409, %v6411
    %v6431 = vsel %vm4154, %v6411, %v6413
    %v6432 = vsel %vm4154, %v6413, %v6415
    %v6433 = vsel %vm4154, %v6417, %v6419
    %v6434 = vsel %vm4154, %v6419, %v6421
    %v6435 = vsel %vm4154, %v6421, %v6423
    %v6436 = vsel %vm4154, %v6423, %v6425
    %v6437 = vsel %vm4154, %v6425, %v6427
    %v6448 = vadd.f32 %v5846, %v6428
    %v6449 = vadd.f32 %v5847, %v6429
    %v6450 = vadd.f32 %v5848, %v6430
    %v6451 = vadd.f32 %v5849, %v6431
    %v6452 = vadd.f32 %v5850, %v6432
    %v6453 = vadd.f32 %v5851, %v6433
    %v6454 = vadd.f32 %v5852, %v6434
    %v6455 = vadd.f32 %v5853, %v6435
    %v6456 = vadd.f32 %v5854, %v6436
    %v6457 = vadd.f32 %v5855, %v6437
    %6470 = vrot.lane.b32.xlu0 %v6228, 124
    %v6471 = vpop.permute.xlu0 %6470
    %6472 = vrot.lane.b32.xlu0 %v6230, 124
    %v6473 = vpop.permute.xlu0 %6472
    %6474 = vrot.lane.b32.xlu0 %v6305, 124
    %v6475 = vpop.permute.xlu0 %6474
    %6476 = vrot.lane.b32.xlu0 %v6307, 124
    %v6477 = vpop.permute.xlu0 %6476
    %6478 = vrot.lane.b32.xlu0 %v6382, 124
    %v6479 = vpop.permute.xlu0 %6478
    %6480 = vrot.lane.b32.xlu0 %v6384, 124
    %v6481 = vpop.permute.xlu0 %6480
    %6482 = vrot.lane.b32.xlu0 %v6234, 124
    %v6483 = vpop.permute.xlu0 %6482
    %6484 = vrot.lane.b32.xlu0 %v6236, 124
    %v6485 = vpop.permute.xlu0 %6484
    %6486 = vrot.lane.b32.xlu0 %v6311, 124
    %v6487 = vpop.permute.xlu0 %6486
    %6488 = vrot.lane.b32.xlu0 %v6313, 124
    %v6489 = vpop.permute.xlu0 %6488
    %6490 = vrot.lane.b32.xlu0 %v6388, 124
    %v6491 = vpop.permute.xlu0 %6490
    %6492 = vrot.lane.b32.xlu0 %v6390, 124
    %v6493 = vpop.permute.xlu0 %6492
    %v6494 = vsel %vm4154, %v6471, %v6473
    %v6495 = vsel %vm4154, %v6473, %v6475
    %v6496 = vsel %vm4154, %v6475, %v6477
    %v6497 = vsel %vm4154, %v6477, %v6479
    %v6498 = vsel %vm4154, %v6479, %v6481
    %v6499 = vsel %vm4154, %v6483, %v6485
    %v6500 = vsel %vm4154, %v6485, %v6487
    %v6501 = vsel %vm4154, %v6487, %v6489
    %v6502 = vsel %vm4154, %v6489, %v6491
    %v6503 = vsel %vm4154, %v6491, %v6493
    %v6514 = vadd.f32 %v5912, %v6494
    %v6515 = vadd.f32 %v5913, %v6495
    %v6516 = vadd.f32 %v5914, %v6496
    %v6517 = vadd.f32 %v5915, %v6497
    %v6518 = vadd.f32 %v5916, %v6498
    %v6519 = vadd.f32 %v5917, %v6499
    %v6520 = vadd.f32 %v5918, %v6500
    %v6521 = vadd.f32 %v5919, %v6501
    %v6522 = vadd.f32 %v5920, %v6502
    %v6523 = vadd.f32 %v5921, %v6503
    %6524 = vrot.lane.b32.xlu0 %v4748, 38
    %v6525 = vpop.permute.xlu0 %6524
    %6526 = vrot.lane.b32.xlu0 %v4749, 38
    %v6527 = vpop.permute.xlu0 %6526
    %v6528 = vsel %vm4798, %v6525, 0
    %v6530 = vsel %vm4798, %v6527, 0
    %6532 = vmatprep.subr.mxu0 %v4751
    %6533 = vmatpush1.msra.mxu0 %v4750
    %6534 = vmatprep.subr.mxu0 %v4763
    %6535 = vmatpush1.msra.mxu0 %v4762
    %6536 = vmatprep.subr.mxu0 %v4775
    %6537 = vmatpush1.msra.mxu0 %v4774
    %6538 = vmatprep.subr.mxu0 %v4810
    %6539 = vmatpush1.msra.mxu0 %v4807
    %6540 = vmatprep.subr.mxu0 0.0
    %6541 = vmatpush1.msra.mxu0 0.0
    %6542 = vmatprep.subr.mxu0 0.0
    %6543 = vmatpush1.msra.mxu0 0.0
    %6544 = vmatprep.subr.mxu0 0.0
    %6545 = vmatpush1.msra.mxu0 0.0
    %6546 = vmatprep.subr.mxu0 0.0
    %6547 = vmatpush1.msra.mxu0 0.0
    %6548 = vmatprep.subr.mxu0 0.0
    %6549 = vmatpush1.msra.mxu0 0.0
    %6550 = vmatprep.subr.mxu0 0.0
    %6551 = vmatpush1.msra.mxu0 0.0
    %6552 = vmatprep.subr.mxu0 0.0
    %6553 = vmatpush1.msra.mxu0 0.0
    %6554 = vmatprep.subr.mxu0 0.0
    %6555 = vmatpush1.msra.mxu0 0.0
    %6556 = vmatprep.subr.mxu0 0.0
    %6557 = vmatpush1.msra.mxu0 0.0
    %6558 = vmatprep.subr.mxu0 0.0
    %6559 = vmatpush1.msra.mxu0 0.0
    %6560 = vmatprep.subr.mxu0 0.0
    %6561 = vmatpush1.msra.mxu0 0.0
    %6562 = vmatprep.subr.mxu0 0.0
    %6563 = vmatpush1.msra.mxu0 0.0
    %6564 = vmatprep.subr.mxu0 0.0
    %6565 = vmatpush1.msra.mxu0 0.0
    %6566 = vmatprep.subr.mxu0 0.0
    %6567 = vmatpush1.msra.mxu0 0.0
    %6568 = vmatprep.subr.mxu0 0.0
    %6569 = vmatpush1.msra.mxu0 0.0
    %6570 = vmatprep.subr.mxu0 0.0
    %6571 = vmatpush1.msra.mxu0 0.0
    %6572 = vmatprep.subr.mxu0 0.0
    %6573 = vmatpush1.msra.mxu0 0.0
    %6574 = vmatprep.subr.mxu0 0.0
    %6575 = vmatpush1.msra.mxu0 0.0
    %6576 = vmatprep.subr.mxu0 0.0
    %6577 = vmatpush1.msra.mxu0 0.0
    %6578 = vmatprep.subr.mxu0 0.0
    %6579 = vmatpush1.msra.mxu0 0.0
    %6580 = vmatprep.subr.mxu0 0.0
    %6581 = vmatpush1.msra.mxu0 0.0
    %6582 = vmatprep.subr.mxu0 0.0
    %6583 = vmatpush1.msra.mxu0 0.0
    %6584 = vmatprep.subr.mxu0 0.0
    %6585 = vmatpush1.msra.mxu0 0.0
    %6586 = vmatprep.subr.mxu0 0.0
    %6587 = vmatpush1.msra.mxu0 0.0
    %6588 = vmatprep.subr.mxu0 0.0
    %6589 = vmatpush1.msra.mxu0 0.0
    %6590 = vmatprep.subr.mxu0 0.0
    %6591 = vmatpush1.msra.mxu0 0.0
    %6592 = vmatprep.subr.mxu0 0.0
    %6593 = vmatpush1.msra.mxu0 0.0
    %6594 = vmatprep.subr.mxu0 0.0
    %6595 = vmatpush1.msra.mxu0 0.0
    %6596 = vmatprep.mubr.f32.mxu0 0.0
    %6597 = vmatmul.mubr.f32.gmra.mrb[0].mxu0 %v6528
    %v6598 = vpop.f32.mrb[0].mxu0
    %v6599 = vadd.f32 0.0, %v6598
    %v6600 = vpop.f32.mrb[0].mxu0
    %v6601 = vadd.f32 0.0, %v6600
    %6602 = vmatprep.mubr.f32.mxu0 0.0
    %6603 = vmatmul.mubr.f32.gmra.mrb[0].mxu0 %v6530
    %v6604 = vpop.f32.mrb[0].mxu0
    %v6605 = vadd.f32 0.0, %v6604
    %v6606 = vpop.f32.mrb[0].mxu0
    %v6607 = vadd.f32 0.0, %v6606
    %6608 = vdwg.mxu0
    %6609 = vmatprep.subr.mxu0 %v4753
    %6610 = vmatpush1.msra.mxu0 %v4752
    %6611 = vmatprep.subr.mxu0 %v4765
    %6612 = vmatpush1.msra.mxu0 %v4764
    %6613 = vmatprep.subr.mxu0 %v4777
    %6614 = vmatpush1.msra.mxu0 %v4776
    %6615 = vmatprep.subr.mxu0 %v4816
    %6616 = vmatpush1.msra.mxu0 %v4813
    %6617 = vmatprep.subr.mxu0 0.0
    %6618 = vmatpush1.msra.mxu0 0.0
    %6619 = vmatprep.subr.mxu0 0.0
    %6620 = vmatpush1.msra.mxu0 0.0
    %6621 = vmatprep.subr.mxu0 0.0
    %6622 = vmatpush1.msra.mxu0 0.0
    %6623 = vmatprep.subr.mxu0 0.0
    %6624 = vmatpush1.msra.mxu0 0.0
    %6625 = vmatprep.subr.mxu0 0.0
    %6626 = vmatpush1.msra.mxu0 0.0
    %6627 = vmatprep.subr.mxu0 0.0
    %6628 = vmatpush1.msra.mxu0 0.0
    %6629 = vmatprep.subr.mxu0 0.0
    %6630 = vmatpush1.msra.mxu0 0.0
    %6631 = vmatprep.subr.mxu0 0.0
    %6632 = vmatpush1.msra.mxu0 0.0
    %6633 = vmatprep.subr.mxu0 0.0
    %6634 = vmatpush1.msra.mxu0 0.0
    %6635 = vmatprep.subr.mxu0 0.0
    %6636 = vmatpush1.msra.mxu0 0.0
    %6637 = vmatprep.subr.mxu0 0.0
    %6638 = vmatpush1.msra.mxu0 0.0
    %6639 = vmatprep.subr.mxu0 0.0
    %6640 = vmatpush1.msra.mxu0 0.0
    %6641 = vmatprep.subr.mxu0 0.0
    %6642 = vmatpush1.msra.mxu0 0.0
    %6643 = vmatprep.subr.mxu0 0.0
    %6644 = vmatpush1.msra.mxu0 0.0
    %6645 = vmatprep.subr.mxu0 0.0
    %6646 = vmatpush1.msra.mxu0 0.0
    %6647 = vmatprep.subr.mxu0 0.0
    %6648 = vmatpush1.msra.mxu0 0.0
    %6649 = vmatprep.subr.mxu0 0.0
    %6650 = vmatpush1.msra.mxu0 0.0
    %6651 = vmatprep.subr.mxu0 0.0
    %6652 = vmatpush1.msra.mxu0 0.0
    %6653 = vmatprep.subr.mxu0 0.0
    %6654 = vmatpush1.msra.mxu0 0.0
    %6655 = vmatprep.subr.mxu0 0.0
    %6656 = vmatpush1.msra.mxu0 0.0
    %6657 = vmatprep.subr.mxu0 0.0
    %6658 = vmatpush1.msra.mxu0 0.0
    %6659 = vmatprep.subr.mxu0 0.0
    %6660 = vmatpush1.msra.mxu0 0.0
    %6661 = vmatprep.subr.mxu0 0.0
    %6662 = vmatpush1.msra.mxu0 0.0
    %6663 = vmatprep.subr.mxu0 0.0
    %6664 = vmatpush1.msra.mxu0 0.0
    %6665 = vmatprep.subr.mxu0 0.0
    %6666 = vmatpush1.msra.mxu0 0.0
    %6667 = vmatprep.subr.mxu0 0.0
    %6668 = vmatpush1.msra.mxu0 0.0
    %6669 = vmatprep.subr.mxu0 0.0
    %6670 = vmatpush1.msra.mxu0 0.0
    %6671 = vmatprep.subr.mxu0 0.0
    %6672 = vmatpush1.msra.mxu0 0.0
    %6673 = vmatprep.mubr.f32.mxu0 0.0
    %6674 = vmatmul.mubr.f32.gmra.mrb[0].mxu0 %v6528
    %v6675 = vpop.f32.mrb[0].mxu0
    %v6676 = vadd.f32 0.0, %v6675
    %v6677 = vpop.f32.mrb[0].mxu0
    %v6678 = vadd.f32 0.0, %v6677
    %6679 = vmatprep.mubr.f32.mxu0 0.0
    %6680 = vmatmul.mubr.f32.gmra.mrb[0].mxu0 %v6530
    %v6681 = vpop.f32.mrb[0].mxu0
    %v6682 = vadd.f32 0.0, %v6681
    %v6683 = vpop.f32.mrb[0].mxu0
    %v6684 = vadd.f32 0.0, %v6683
    %6685 = vdwg.mxu0
    %6686 = vmatprep.subr.mxu0 %v4755
    %6687 = vmatpush1.msra.mxu0 %v4754
    %6688 = vmatprep.subr.mxu0 %v4767
    %6689 = vmatpush1.msra.mxu0 %v4766
    %6690 = vmatprep.subr.mxu0 %v4779
    %6691 = vmatpush1.msra.mxu0 %v4778
    %6692 = vmatprep.subr.mxu0 %v4822
    %6693 = vmatpush1.msra.mxu0 %v4819
    %6694 = vmatprep.subr.mxu0 0.0
    %6695 = vmatpush1.msra.mxu0 0.0
    %6696 = vmatprep.subr.mxu0 0.0
    %6697 = vmatpush1.msra.mxu0 0.0
    %6698 = vmatprep.subr.mxu0 0.0
    %6699 = vmatpush1.msra.mxu0 0.0
    %6700 = vmatprep.subr.mxu0 0.0
    %6701 = vmatpush1.msra.mxu0 0.0
    %6702 = vmatprep.subr.mxu0 0.0
    %6703 = vmatpush1.msra.mxu0 0.0
    %6704 = vmatprep.subr.mxu0 0.0
    %6705 = vmatpush1.msra.mxu0 0.0
    %6706 = vmatprep.subr.mxu0 0.0
    %6707 = vmatpush1.msra.mxu0 0.0
    %6708 = vmatprep.subr.mxu0 0.0
    %6709 = vmatpush1.msra.mxu0 0.0
    %6710 = vmatprep.subr.mxu0 0.0
    %6711 = vmatpush1.msra.mxu0 0.0
    %6712 = vmatprep.subr.mxu0 0.0
    %6713 = vmatpush1.msra.mxu0 0.0
    %6714 = vmatprep.subr.mxu0 0.0
    %6715 = vmatpush1.msra.mxu0 0.0
    %6716 = vmatprep.subr.mxu0 0.0
    %6717 = vmatpush1.msra.mxu0 0.0
    %6718 = vmatprep.subr.mxu0 0.0
    %6719 = vmatpush1.msra.mxu0 0.0
    %6720 = vmatprep.subr.mxu0 0.0
    %6721 = vmatpush1.msra.mxu0 0.0
    %6722 = vmatprep.subr.mxu0 0.0
    %6723 = vmatpush1.msra.mxu0 0.0
    %6724 = vmatprep.subr.mxu0 0.0
    %6725 = vmatpush1.msra.mxu0 0.0
    %6726 = vmatprep.subr.mxu0 0.0
    %6727 = vmatpush1.msra.mxu0 0.0
    %6728 = vmatprep.subr.mxu0 0.0
    %6729 = vmatpush1.msra.mxu0 0.0
    %6730 = vmatprep.subr.mxu0 0.0
    %6731 = vmatpush1.msra.mxu0 0.0
    %6732 = vmatprep.subr.mxu0 0.0
    %6733 = vmatpush1.msra.mxu0 0.0
    %6734 = vmatprep.subr.mxu0 0.0
    %6735 = vmatpush1.msra.mxu0 0.0
    %6736 = vmatprep.subr.mxu0 0.0
    %6737 = vmatpush1.msra.mxu0 0.0
    %6738 = vmatprep.subr.mxu0 0.0
    %6739 = vmatpush1.msra.mxu0 0.0
    %6740 = vmatprep.subr.mxu0 0.0
    %6741 = vmatpush1.msra.mxu0 0.0
    %6742 = vmatprep.subr.mxu0 0.0
    %6743 = vmatpush1.msra.mxu0 0.0
    %6744 = vmatprep.subr.mxu0 0.0
    %6745 = vmatpush1.msra.mxu0 0.0
    %6746 = vmatprep.subr.mxu0 0.0
    %6747 = vmatpush1.msra.mxu0 0.0
    %6748 = vmatprep.subr.mxu0 0.0
    %6749 = vmatpush1.msra.mxu0 0.0
    %6750 = vmatprep.mubr.f32.mxu0 0.0
    %6751 = vmatmul.mubr.f32.gmra.mrb[0].mxu0 %v6528
    %v6752 = vpop.f32.mrb[0].mxu0
    %v6753 = vadd.f32 0.0, %v6752
    %v6754 = vpop.f32.mrb[0].mxu0
    %v6755 = vadd.f32 0.0, %v6754
    %6756 = vmatprep.mubr.f32.mxu0 0.0
    %6757 = vmatmul.mubr.f32.gmra.mrb[0].mxu0 %v6530
    %v6758 = vpop.f32.mrb[0].mxu0
    %v6759 = vadd.f32 0.0, %v6758
    %v6760 = vpop.f32.mrb[0].mxu0
    %v6761 = vadd.f32 0.0, %v6760
    %6762 = vdwg.mxu0
    %6763 = vmatprep.subr.mxu0 %v4757
    %6764 = vmatpush1.msra.mxu0 %v4756
    %6765 = vmatprep.subr.mxu0 %v4769
    %6766 = vmatpush1.msra.mxu0 %v4768
    %6767 = vmatprep.subr.mxu0 %v4781
    %6768 = vmatpush1.msra.mxu0 %v4780
    %6769 = vmatprep.subr.mxu0 %v4828
    %6770 = vmatpush1.msra.mxu0 %v4825
    %6771 = vmatprep.subr.mxu0 0.0
    %6772 = vmatpush1.msra.mxu0 0.0
    %6773 = vmatprep.subr.mxu0 0.0
    %6774 = vmatpush1.msra.mxu0 0.0
    %6775 = vmatprep.subr.mxu0 0.0
    %6776 = vmatpush1.msra.mxu0 0.0
    %6777 = vmatprep.subr.mxu0 0.0
    %6778 = vmatpush1.msra.mxu0 0.0
    %6779 = vmatprep.subr.mxu0 0.0
    %6780 = vmatpush1.msra.mxu0 0.0
    %6781 = vmatprep.subr.mxu0 0.0
    %6782 = vmatpush1.msra.mxu0 0.0
    %6783 = vmatprep.subr.mxu0 0.0
    %6784 = vmatpush1.msra.mxu0 0.0
    %6785 = vmatprep.subr.mxu0 0.0
    %6786 = vmatpush1.msra.mxu0 0.0
    %6787 = vmatprep.subr.mxu0 0.0
    %6788 = vmatpush1.msra.mxu0 0.0
    %6789 = vmatprep.subr.mxu0 0.0
    %6790 = vmatpush1.msra.mxu0 0.0
    %6791 = vmatprep.subr.mxu0 0.0
    %6792 = vmatpush1.msra.mxu0 0.0
    %6793 = vmatprep.subr.mxu0 0.0
    %6794 = vmatpush1.msra.mxu0 0.0
    %6795 = vmatprep.subr.mxu0 0.0
    %6796 = vmatpush1.msra.mxu0 0.0
    %6797 = vmatprep.subr.mxu0 0.0
    %6798 = vmatpush1.msra.mxu0 0.0
    %6799 = vmatprep.subr.mxu0 0.0
    %6800 = vmatpush1.msra.mxu0 0.0
    %6801 = vmatprep.subr.mxu0 0.0
    %6802 = vmatpush1.msra.mxu0 0.0
    %6803 = vmatprep.subr.mxu0 0.0
    %6804 = vmatpush1.msra.mxu0 0.0
    %6805 = vmatprep.subr.mxu0 0.0
    %6806 = vmatpush1.msra.mxu0 0.0
    %6807 = vmatprep.subr.mxu0 0.0
    %6808 = vmatpush1.msra.mxu0 0.0
    %6809 = vmatprep.subr.mxu0 0.0
    %6810 = vmatpush1.msra.mxu0 0.0
    %6811 = vmatprep.subr.mxu0 0.0
    %6812 = vmatpush1.msra.mxu0 0.0
    %6813 = vmatprep.subr.mxu0 0.0
    %6814 = vmatpush1.msra.mxu0 0.0
    %6815 = vmatprep.subr.mxu0 0.0
    %6816 = vmatpush1.msra.mxu0 0.0
    %6817 = vmatprep.subr.mxu0 0.0
    %6818 = vmatpush1.msra.mxu0 0.0
    %6819 = vmatprep.subr.mxu0 0.0
    %6820 = vmatpush1.msra.mxu0 0.0
    %6821 = vmatprep.subr.mxu0 0.0
    %6822 = vmatpush1.msra.mxu0 0.0
    %6823 = vmatprep.subr.mxu0 0.0
    %6824 = vmatpush1.msra.mxu0 0.0
    %6825 = vmatprep.subr.mxu0 0.0
    %6826 = vmatpush1.msra.mxu0 0.0
    %6827 = vmatprep.mubr.f32.mxu0 0.0
    %6828 = vmatmul.mubr.f32.gmra.mrb[0].mxu0 %v6528
    %v6829 = vpop.f32.mrb[0].mxu0
    %v6830 = vadd.f32 0.0, %v6829
    %v6831 = vpop.f32.mrb[0].mxu0
    %v6832 = vadd.f32 0.0, %v6831
    %6833 = vmatprep.mubr.f32.mxu0 0.0
    %6834 = vmatmul.mubr.f32.gmra.mrb[0].mxu0 %v6530
    %v6835 = vpop.f32.mrb[0].mxu0
    %v6836 = vadd.f32 0.0, %v6835
    %v6837 = vpop.f32.mrb[0].mxu0
    %v6838 = vadd.f32 0.0, %v6837
    %6839 = vdwg.mxu0
    %6840 = vmatprep.subr.mxu0 %v4759
    %6841 = vmatpush1.msra.mxu0 %v4758
    %6842 = vmatprep.subr.mxu0 %v4771
    %6843 = vmatpush1.msra.mxu0 %v4770
    %6844 = vmatprep.subr.mxu0 %v4783
    %6845 = vmatpush1.msra.mxu0 %v4782
    %6846 = vmatprep.subr.mxu0 %v4834
    %6847 = vmatpush1.msra.mxu0 %v4831
    %6848 = vmatprep.subr.mxu0 0.0
    %6849 = vmatpush1.msra.mxu0 0.0
    %6850 = vmatprep.subr.mxu0 0.0
    %6851 = vmatpush1.msra.mxu0 0.0
    %6852 = vmatprep.subr.mxu0 0.0
    %6853 = vmatpush1.msra.mxu0 0.0
    %6854 = vmatprep.subr.mxu0 0.0
    %6855 = vmatpush1.msra.mxu0 0.0
    %6856 = vmatprep.subr.mxu0 0.0
    %6857 = vmatpush1.msra.mxu0 0.0
    %6858 = vmatprep.subr.mxu0 0.0
    %6859 = vmatpush1.msra.mxu0 0.0
    %6860 = vmatprep.subr.mxu0 0.0
    %6861 = vmatpush1.msra.mxu0 0.0
    %6862 = vmatprep.subr.mxu0 0.0
    %6863 = vmatpush1.msra.mxu0 0.0
    %6864 = vmatprep.subr.mxu0 0.0
    %6865 = vmatpush1.msra.mxu0 0.0
    %6866 = vmatprep.subr.mxu0 0.0
    %6867 = vmatpush1.msra.mxu0 0.0
    %6868 = vmatprep.subr.mxu0 0.0
    %6869 = vmatpush1.msra.mxu0 0.0
    %6870 = vmatprep.subr.mxu0 0.0
    %6871 = vmatpush1.msra.mxu0 0.0
    %6872 = vmatprep.subr.mxu0 0.0
    %6873 = vmatpush1.msra.mxu0 0.0
    %6874 = vmatprep.subr.mxu0 0.0
    %6875 = vmatpush1.msra.mxu0 0.0
    %6876 = vmatprep.subr.mxu0 0.0
    %6877 = vmatpush1.msra.mxu0 0.0
    %6878 = vmatprep.subr.mxu0 0.0
    %6879 = vmatpush1.msra.mxu0 0.0
    %6880 = vmatprep.subr.mxu0 0.0
    %6881 = vmatpush1.msra.mxu0 0.0
    %6882 = vmatprep.subr.mxu0 0.0
    %6883 = vmatpush1.msra.mxu0 0.0
    %6884 = vmatprep.subr.mxu0 0.0
    %6885 = vmatpush1.msra.mxu0 0.0
    %6886 = vmatprep.subr.mxu0 0.0
    %6887 = vmatpush1.msra.mxu0 0.0
    %6888 = vmatprep.subr.mxu0 0.0
    %6889 = vmatpush1.msra.mxu0 0.0
    %6890 = vmatprep.subr.mxu0 0.0
    %6891 = vmatpush1.msra.mxu0 0.0
    %6892 = vmatprep.subr.mxu0 0.0
    %6893 = vmatpush1.msra.mxu0 0.0
    %6894 = vmatprep.subr.mxu0 0.0
    %6895 = vmatpush1.msra.mxu0 0.0
    %6896 = vmatprep.subr.mxu0 0.0
    %6897 = vmatpush1.msra.mxu0 0.0
    %6898 = vmatprep.subr.mxu0 0.0
    %6899 = vmatpush1.msra.mxu0 0.0
    %6900 = vmatprep.subr.mxu0 0.0
    %6901 = vmatpush1.msra.mxu0 0.0
    %6902 = vmatprep.subr.mxu0 0.0
    %6903 = vmatpush1.msra.mxu0 0.0
    %6904 = vmatprep.mubr.f32.mxu0 0.0
    %6905 = vmatmul.mubr.f32.gmra.mrb[0].mxu0 %v6528
    %v6906 = vpop.f32.mrb[0].mxu0
    %v6907 = vadd.f32 0.0, %v6906
    %v6908 = vpop.f32.mrb[0].mxu0
    %v6909 = vadd.f32 0.0, %v6908
    %6910 = vmatprep.mubr.f32.mxu0 0.0
    %6911 = vmatmul.mubr.f32.gmra.mrb[0].mxu0 %v6530
    %v6912 = vpop.f32.mrb[0].mxu0
    %v6913 = vadd.f32 0.0, %v6912
    %v6914 = vpop.f32.mrb[0].mxu0
    %v6915 = vadd.f32 0.0, %v6914
    %6916 = vdwg.mxu0
    %6917 = vmatprep.subr.mxu0 %v4761
    %6918 = vmatpush1.msra.mxu0 %v4760
    %6919 = vmatprep.subr.mxu0 %v4773
    %6920 = vmatpush1.msra.mxu0 %v4772
    %6921 = vmatprep.subr.mxu0 %v4785
    %6922 = vmatpush1.msra.mxu0 %v4784
    %6923 = vmatprep.subr.mxu0 %v4840
    %6924 = vmatpush1.msra.mxu0 %v4837
    %6925 = vmatprep.subr.mxu0 0.0
    %6926 = vmatpush1.msra.mxu0 0.0
    %6927 = vmatprep.subr.mxu0 0.0
    %6928 = vmatpush1.msra.mxu0 0.0
    %6929 = vmatprep.subr.mxu0 0.0
    %6930 = vmatpush1.msra.mxu0 0.0
    %6931 = vmatprep.subr.mxu0 0.0
    %6932 = vmatpush1.msra.mxu0 0.0
    %6933 = vmatprep.subr.mxu0 0.0
    %6934 = vmatpush1.msra.mxu0 0.0
    %6935 = vmatprep.subr.mxu0 0.0
    %6936 = vmatpush1.msra.mxu0 0.0
    %6937 = vmatprep.subr.mxu0 0.0
    %6938 = vmatpush1.msra.mxu0 0.0
    %6939 = vmatprep.subr.mxu0 0.0
    %6940 = vmatpush1.msra.mxu0 0.0
    %6941 = vmatprep.subr.mxu0 0.0
    %6942 = vmatpush1.msra.mxu0 0.0
    %6943 = vmatprep.subr.mxu0 0.0
    %6944 = vmatpush1.msra.mxu0 0.0
    %6945 = vmatprep.subr.mxu0 0.0
    %6946 = vmatpush1.msra.mxu0 0.0
    %6947 = vmatprep.subr.mxu0 0.0
    %6948 = vmatpush1.msra.mxu0 0.0
    %6949 = vmatprep.subr.mxu0 0.0
    %6950 = vmatpush1.msra.mxu0 0.0
    %6951 = vmatprep.subr.mxu0 0.0
    %6952 = vmatpush1.msra.mxu0 0.0
    %6953 = vmatprep.subr.mxu0 0.0
    %6954 = vmatpush1.msra.mxu0 0.0
    %6955 = vmatprep.subr.mxu0 0.0
    %6956 = vmatpush1.msra.mxu0 0.0
    %6957 = vmatprep.subr.mxu0 0.0
    %6958 = vmatpush1.msra.mxu0 0.0
    %6959 = vmatprep.subr.mxu0 0.0
    %6960 = vmatpush1.msra.mxu0 0.0
    %6961 = vmatprep.subr.mxu0 0.0
    %6962 = vmatpush1.msra.mxu0 0.0
    %6963 = vmatprep.subr.mxu0 0.0
    %6964 = vmatpush1.msra.mxu0 0.0
    %6965 = vmatprep.subr.mxu0 0.0
    %6966 = vmatpush1.msra.mxu0 0.0
    %6967 = vmatprep.subr.mxu0 0.0
    %6968 = vmatpush1.msra.mxu0 0.0
    %6969 = vmatprep.subr.mxu0 0.0
    %6970 = vmatpush1.msra.mxu0 0.0
    %6971 = vmatprep.subr.mxu0 0.0
    %6972 = vmatpush1.msra.mxu0 0.0
    %6973 = vmatprep.subr.mxu0 0.0
    %6974 = vmatpush1.msra.mxu0 0.0
    %6975 = vmatprep.subr.mxu0 0.0
    %6976 = vmatpush1.msra.mxu0 0.0
    %6977 = vmatprep.subr.mxu0 0.0
    %6978 = vmatpush1.msra.mxu0 0.0
    %6979 = vmatprep.subr.mxu0 0.0
    %6980 = vmatpush1.msra.mxu0 0.0
    %6981 = vmatprep.mubr.f32.mxu0 0.0
    %6982 = vmatmul.mubr.f32.gmra.mrb[0].mxu0 %v6528
    %v6983 = vpop.f32.mrb[0].mxu0
    %v6984 = vadd.f32 0.0, %v6983
    %v6985 = vpop.f32.mrb[0].mxu0
    %v6986 = vadd.f32 0.0, %v6985
    %6987 = vmatprep.mubr.f32.mxu0 0.0
    %6988 = vmatmul.mubr.f32.gmra.mrb[0].mxu0 %v6530
    %v6989 = vpop.f32.mrb[0].mxu0
    %v6990 = vadd.f32 0.0, %v6989
    %v6991 = vpop.f32.mrb[0].mxu0
    %v6992 = vadd.f32 0.0, %v6991
    %6993 = vdwg.mxu0
    %7006 = vrot.lane.b32.xlu0 %v6599, 122
    %v7007 = vpop.permute.xlu0 %7006
    %7008 = vrot.lane.b32.xlu0 %v6601, 122
    %v7009 = vpop.permute.xlu0 %7008
    %7010 = vrot.lane.b32.xlu0 %v6676, 122
    %v7011 = vpop.permute.xlu0 %7010
    %7012 = vrot.lane.b32.xlu0 %v6678, 122
    %v7013 = vpop.permute.xlu0 %7012
    %7014 = vrot.lane.b32.xlu0 %v6753, 122
    %v7015 = vpop.permute.xlu0 %7014
    %7016 = vrot.lane.b32.xlu0 %v6755, 122
    %v7017 = vpop.permute.xlu0 %7016
    %7018 = vrot.lane.b32.xlu0 %v6605, 122
    %v7019 = vpop.permute.xlu0 %7018
    %7020 = vrot.lane.b32.xlu0 %v6607, 122
    %v7021 = vpop.permute.xlu0 %7020
    %7022 = vrot.lane.b32.xlu0 %v6682, 122
    %v7023 = vpop.permute.xlu0 %7022
    %7024 = vrot.lane.b32.xlu0 %v6684, 122
    %v7025 = vpop.permute.xlu0 %7024
    %7026 = vrot.lane.b32.xlu0 %v6759, 122
    %v7027 = vpop.permute.xlu0 %7026
    %7028 = vrot.lane.b32.xlu0 %v6761, 122
    %v7029 = vpop.permute.xlu0 %7028
    %vm7030 = vcmask 998400
    %v7031 = vsel %vm7030, %v7007, %v7009
    %v7032 = vsel %vm7030, %v7009, %v7011
    %v7033 = vsel %vm7030, %v7011, %v7013
    %v7034 = vsel %vm7030, %v7013, %v7015
    %v7035 = vsel %vm7030, %v7015, %v7017
    %v7036 = vsel %vm7030, %v7019, %v7021
    %v7037 = vsel %vm7030, %v7021, %v7023
    %v7038 = vsel %vm7030, %v7023, %v7025
    %v7039 = vsel %vm7030, %v7025, %v7027
    %v7040 = vsel %vm7030, %v7027, %v7029
    %v7051 = vadd.f32 %v6448, %v7031
    %v7052 = vadd.f32 %v6449, %v7032
    %v7053 = vadd.f32 %v6450, %v7033
    %v7054 = vadd.f32 %v6451, %v7034
    %v7055 = vadd.f32 %v6452, %v7035
    %v7056 = vadd.f32 %v6453, %v7036
    %v7057 = vadd.f32 %v6454, %v7037
    %v7058 = vadd.f32 %v6455, %v7038
    %v7059 = vadd.f32 %v6456, %v7039
    %v7060 = vadd.f32 %v6457, %v7040
    %7073 = vrot.lane.b32.xlu0 %v6830, 122
    %v7074 = vpop.permute.xlu0 %7073
    %7075 = vrot.lane.b32.xlu0 %v6832, 122
    %v7076 = vpop.permute.xlu0 %7075
    %7077 = vrot.lane.b32.xlu0 %v6907, 122
    %v7078 = vpop.permute.xlu0 %7077
    %7079 = vrot.lane.b32.xlu0 %v6909, 122
    %v7080 = vpop.permute.xlu0 %7079
    %7081 = vrot.lane.b32.xlu0 %v6984, 122
    %v7082 = vpop.permute.xlu0 %7081
    %7083 = vrot.lane.b32.xlu0 %v6986, 122
    %v7084 = vpop.permute.xlu0 %7083
    %7085 = vrot.lane.b32.xlu0 %v6836, 122
    %v7086 = vpop.permute.xlu0 %7085
    %7087 = vrot.lane.b32.xlu0 %v6838, 122
    %v7088 = vpop.permute.xlu0 %7087
    %7089 = vrot.lane.b32.xlu0 %v6913, 122
    %v7090 = vpop.permute.xlu0 %7089
    %7091 = vrot.lane.b32.xlu0 %v6915, 122
    %v7092 = vpop.permute.xlu0 %7091
    %7093 = vrot.lane.b32.xlu0 %v6990, 122
    %v7094 = vpop.permute.xlu0 %7093
    %7095 = vrot.lane.b32.xlu0 %v6992, 122
    %v7096 = vpop.permute.xlu0 %7095
    %v7097 = vsel %vm7030, %v7074, %v7076
    %v7098 = vsel %vm7030, %v7076, %v7078
    %v7099 = vsel %vm7030, %v7078, %v7080
    %v7100 = vsel %vm7030, %v7080, %v7082
    %v7101 = vsel %vm7030, %v7082, %v7084
    %v7102 = vsel %vm7030, %v7086, %v7088
    %v7103 = vsel %vm7030, %v7088, %v7090
    %v7104 = vsel %vm7030, %v7090, %v7092
    %v7105 = vsel %vm7030, %v7092, %v7094
    %v7106 = vsel %vm7030, %v7094, %v7096
    %v7117 = vadd.f32 %v6514, %v7097
    %v7118 = vadd.f32 %v6515, %v7098
    %v7119 = vadd.f32 %v6516, %v7099
    %v7120 = vadd.f32 %v6517, %v7100
    %v7121 = vadd.f32 %v6518, %v7101
    %v7122 = vadd.f32 %v6519, %v7102
    %v7123 = vadd.f32 %v6520, %v7103
    %v7124 = vadd.f32 %v6521, %v7104
    %v7125 = vadd.f32 %v6522, %v7105
    %v7126 = vadd.f32 %v6523, %v7106
    %v7127 = vld [vmem:[%s3] sm:$0xff]
    %v7128 = vld [vmem:[%s3 + $0x8] sm:$0xff]
    %v7129 = vld [vmem:[%s3 + $0x10] sm:$0xff]
    %v7130 = vld [vmem:[%s3 + $0x18] sm:$0xff]
    %7135 = vrot.lane.b32.xlu0 %v7127, 8
    %v7136 = vpop.permute.xlu0 %7135
    %7137 = vrot.lane.b32.xlu0 %v7128, 8
    %v7138 = vpop.permute.xlu0 %7137
    %7139 = vrot.lane.b32.xlu0 %v7129, 8
    %v7140 = vpop.permute.xlu0 %7139
    %7141 = vrot.lane.b32.xlu0 %v7130, 8
    %v7142 = vpop.permute.xlu0 %7141
    %vm7143 = vcmask 64512
    %v7144 = vsel %vm7143, %v7136, %v7138
    %v7145 = vsel %vm7143, %v7140, %v7142
    %v7146 = vsel %vm4798, %v7144, 0
    %v7148 = vsel %vm4798, %v7145, 0
    %7150 = vmatprep.subr.mxu0 %v4751
    %7151 = vmatpush1.msra.mxu0 %v4750
    %7152 = vmatprep.subr.mxu0 %v4763
    %7153 = vmatpush1.msra.mxu0 %v4762
    %7154 = vmatprep.subr.mxu0 %v4775
    %7155 = vmatpush1.msra.mxu0 %v4774
    %7156 = vmatprep.subr.mxu0 %v4810
    %7157 = vmatpush1.msra.mxu0 %v4807
    %7158 = vmatprep.subr.mxu0 0.0
    %7159 = vmatpush1.msra.mxu0 0.0
    %7160 = vmatprep.subr.mxu0 0.0
    %7161 = vmatpush1.msra.mxu0 0.0
    %7162 = vmatprep.subr.mxu0 0.0
    %7163 = vmatpush1.msra.mxu0 0.0
    %7164 = vmatprep.subr.mxu0 0.0
    %7165 = vmatpush1.msra.mxu0 0.0
    %7166 = vmatprep.subr.mxu0 0.0
    %7167 = vmatpush1.msra.mxu0 0.0
    %7168 = vmatprep.subr.mxu0 0.0
    %7169 = vmatpush1.msra.mxu0 0.0
    %7170 = vmatprep.subr.mxu0 0.0
    %7171 = vmatpush1.msra.mxu0 0.0
    %7172 = vmatprep.subr.mxu0 0.0
    %7173 = vmatpush1.msra.mxu0 0.0
    %7174 = vmatprep.subr.mxu0 0.0
    %7175 = vmatpush1.msra.mxu0 0.0
    %7176 = vmatprep.subr.mxu0 0.0
    %7177 = vmatpush1.msra.mxu0 0.0
    %7178 = vmatprep.subr.mxu0 0.0
    %7179 = vmatpush1.msra.mxu0 0.0
    %7180 = vmatprep.subr.mxu0 0.0
    %7181 = vmatpush1.msra.mxu0 0.0
    %7182 = vmatprep.subr.mxu0 0.0
    %7183 = vmatpush1.msra.mxu0 0.0
    %7184 = vmatprep.subr.mxu0 0.0
    %7185 = vmatpush1.msra.mxu0 0.0
    %7186 = vmatprep.subr.mxu0 0.0
    %7187 = vmatpush1.msra.mxu0 0.0
    %7188 = vmatprep.subr.mxu0 0.0
    %7189 = vmatpush1.msra.mxu0 0.0
    %7190 = vmatprep.subr.mxu0 0.0
    %7191 = vmatpush1.msra.mxu0 0.0
    %7192 = vmatprep.subr.mxu0 0.0
    %7193 = vmatpush1.msra.mxu0 0.0
    %7194 = vmatprep.subr.mxu0 0.0
    %7195 = vmatpush1.msra.mxu0 0.0
    %7196 = vmatprep.subr.mxu0 0.0
    %7197 = vmatpush1.msra.mxu0 0.0
    %7198 = vmatprep.subr.mxu0 0.0
    %7199 = vmatpush1.msra.mxu0 0.0
    %7200 = vmatprep.subr.mxu0 0.0
    %7201 = vmatpush1.msra.mxu0 0.0
    %7202 = vmatprep.subr.mxu0 0.0
    %7203 = vmatpush1.msra.mxu0 0.0
    %7204 = vmatprep.subr.mxu0 0.0
    %7205 = vmatpush1.msra.mxu0 0.0
    %7206 = vmatprep.subr.mxu0 0.0
    %7207 = vmatpush1.msra.mxu0 0.0
    %7208 = vmatprep.subr.mxu0 0.0
    %7209 = vmatpush1.msra.mxu0 0.0
    %7210 = vmatprep.subr.mxu0 0.0
    %7211 = vmatpush1.msra.mxu0 0.0
    %7212 = vmatprep.subr.mxu0 0.0
    %7213 = vmatpush1.msra.mxu0 0.0
    %7214 = vmatprep.mubr.f32.mxu0 0.0
    %7215 = vmatmul.mubr.f32.gmra.mrb[0].mxu0 %v7146
    %v7216 = vpop.f32.mrb[0].mxu0
    %v7217 = vadd.f32 0.0, %v7216
    %v7218 = vpop.f32.mrb[0].mxu0
    %v7219 = vadd.f32 0.0, %v7218
    %7220 = vmatprep.mubr.f32.mxu0 0.0
    %7221 = vmatmul.mubr.f32.gmra.mrb[0].mxu0 %v7148
    %v7222 = vpop.f32.mrb[0].mxu0
    %v7223 = vadd.f32 0.0, %v7222
    %v7224 = vpop.f32.mrb[0].mxu0
    %v7225 = vadd.f32 0.0, %v7224
    %7226 = vdwg.mxu0
    %7227 = vmatprep.subr.mxu0 %v4753
    %7228 = vmatpush1.msra.mxu0 %v4752
    %7229 = vmatprep.subr.mxu0 %v4765
    %7230 = vmatpush1.msra.mxu0 %v4764
    %7231 = vmatprep.subr.mxu0 %v4777
    %7232 = vmatpush1.msra.mxu0 %v4776
    %7233 = vmatprep.subr.mxu0 %v4816
    %7234 = vmatpush1.msra.mxu0 %v4813
    %7235 = vmatprep.subr.mxu0 0.0
    %7236 = vmatpush1.msra.mxu0 0.0
    %7237 = vmatprep.subr.mxu0 0.0
    %7238 = vmatpush1.msra.mxu0 0.0
    %7239 = vmatprep.subr.mxu0 0.0
    %7240 = vmatpush1.msra.mxu0 0.0
    %7241 = vmatprep.subr.mxu0 0.0
    %7242 = vmatpush1.msra.mxu0 0.0
    %7243 = vmatprep.subr.mxu0 0.0
    %7244 = vmatpush1.msra.mxu0 0.0
    %7245 = vmatprep.subr.mxu0 0.0
    %7246 = vmatpush1.msra.mxu0 0.0
    %7247 = vmatprep.subr.mxu0 0.0
    %7248 = vmatpush1.msra.mxu0 0.0
    %7249 = vmatprep.subr.mxu0 0.0
    %7250 = vmatpush1.msra.mxu0 0.0
    %7251 = vmatprep.subr.mxu0 0.0
    %7252 = vmatpush1.msra.mxu0 0.0
    %7253 = vmatprep.subr.mxu0 0.0
    %7254 = vmatpush1.msra.mxu0 0.0
    %7255 = vmatprep.subr.mxu0 0.0
    %7256 = vmatpush1.msra.mxu0 0.0
    %7257 = vmatprep.subr.mxu0 0.0
    %7258 = vmatpush1.msra.mxu0 0.0
    %7259 = vmatprep.subr.mxu0 0.0
    %7260 = vmatpush1.msra.mxu0 0.0
    %7261 = vmatprep.subr.mxu0 0.0
    %7262 = vmatpush1.msra.mxu0 0.0
    %7263 = vmatprep.subr.mxu0 0.0
    %7264 = vmatpush1.msra.mxu0 0.0
    %7265 = vmatprep.subr.mxu0 0.0
    %7266 = vmatpush1.msra.mxu0 0.0
    %7267 = vmatprep.subr.mxu0 0.0
    %7268 = vmatpush1.msra.mxu0 0.0
    %7269 = vmatprep.subr.mxu0 0.0
    %7270 = vmatpush1.msra.mxu0 0.0
    %7271 = vmatprep.subr.mxu0 0.0
    %7272 = vmatpush1.msra.mxu0 0.0
    %7273 = vmatprep.subr.mxu0 0.0
    %7274 = vmatpush1.msra.mxu0 0.0
    %7275 = vmatprep.subr.mxu0 0.0
    %7276 = vmatpush1.msra.mxu0 0.0
    %7277 = vmatprep.subr.mxu0 0.0
    %7278 = vmatpush1.msra.mxu0 0.0
    %7279 = vmatprep.subr.mxu0 0.0
    %7280 = vmatpush1.msra.mxu0 0.0
    %7281 = vmatprep.subr.mxu0 0.0
    %7282 = vmatpush1.msra.mxu0 0.0
    %7283 = vmatprep.subr.mxu0 0.0
    %7284 = vmatpush1.msra.mxu0 0.0
    %7285 = vmatprep.subr.mxu0 0.0
    %7286 = vmatpush1.msra.mxu0 0.0
    %7287 = vmatprep.subr.mxu0 0.0
    %7288 = vmatpush1.msra.mxu0 0.0
    %7289 = vmatprep.subr.mxu0 0.0
    %7290 = vmatpush1.msra.mxu0 0.0
    %7291 = vmatprep.mubr.f32.mxu0 0.0
    %7292 = vmatmul.mubr.f32.gmra.mrb[0].mxu0 %v7146
    %v7293 = vpop.f32.mrb[0].mxu0
    %v7294 = vadd.f32 0.0, %v7293
    %v7295 = vpop.f32.mrb[0].mxu0
    %v7296 = vadd.f32 0.0, %v7295
    %7297 = vmatprep.mubr.f32.mxu0 0.0
    %7298 = vmatmul.mubr.f32.gmra.mrb[0].mxu0 %v7148
    %v7299 = vpop.f32.mrb[0].mxu0
    %v7300 = vadd.f32 0.0, %v7299
    %v7301 = vpop.f32.mrb[0].mxu0
    %v7302 = vadd.f32 0.0, %v7301
    %7303 = vdwg.mxu0
    %7304 = vmatprep.subr.mxu0 %v4755
    %7305 = vmatpush1.msra.mxu0 %v4754
    %7306 = vmatprep.subr.mxu0 %v4767
    %7307 = vmatpush1.msra.mxu0 %v4766
    %7308 = vmatprep.subr.mxu0 %v4779
    %7309 = vmatpush1.msra.mxu0 %v4778
    %7310 = vmatprep.subr.mxu0 %v4822
    %7311 = vmatpush1.msra.mxu0 %v4819
    %7312 = vmatprep.subr.mxu0 0.0
    %7313 = vmatpush1.msra.mxu0 0.0
    %7314 = vmatprep.subr.mxu0 0.0
    %7315 = vmatpush1.msra.mxu0 0.0
    %7316 = vmatprep.subr.mxu0 0.0
    %7317 = vmatpush1.msra.mxu0 0.0
    %7318 = vmatprep.subr.mxu0 0.0
    %7319 = vmatpush1.msra.mxu0 0.0
    %7320 = vmatprep.subr.mxu0 0.0
    %7321 = vmatpush1.msra.mxu0 0.0
    %7322 = vmatprep.subr.mxu0 0.0
    %7323 = vmatpush1.msra.mxu0 0.0
    %7324 = vmatprep.subr.mxu0 0.0
    %7325 = vmatpush1.msra.mxu0 0.0
    %7326 = vmatprep.subr.mxu0 0.0
    %7327 = vmatpush1.msra.mxu0 0.0
    %7328 = vmatprep.subr.mxu0 0.0
    %7329 = vmatpush1.msra.mxu0 0.0
    %7330 = vmatprep.subr.mxu0 0.0
    %7331 = vmatpush1.msra.mxu0 0.0
    %7332 = vmatprep.subr.mxu0 0.0
    %7333 = vmatpush1.msra.mxu0 0.0
    %7334 = vmatprep.subr.mxu0 0.0
    %7335 = vmatpush1.msra.mxu0 0.0
    %7336 = vmatprep.subr.mxu0 0.0
    %7337 = vmatpush1.msra.mxu0 0.0
    %7338 = vmatprep.subr.mxu0 0.0
    %7339 = vmatpush1.msra.mxu0 0.0
    %7340 = vmatprep.subr.mxu0 0.0
    %7341 = vmatpush1.msra.mxu0 0.0
    %7342 = vmatprep.subr.mxu0 0.0
    %7343 = vmatpush1.msra.mxu0 0.0
    %7344 = vmatprep.subr.mxu0 0.0
    %7345 = vmatpush1.msra.mxu0 0.0
    %7346 = vmatprep.subr.mxu0 0.0
    %7347 = vmatpush1.msra.mxu0 0.0
    %7348 = vmatprep.subr.mxu0 0.0
    %7349 = vmatpush1.msra.mxu0 0.0
    %7350 = vmatprep.subr.mxu0 0.0
    %7351 = vmatpush1.msra.mxu0 0.0
    %7352 = vmatprep.subr.mxu0 0.0
    %7353 = vmatpush1.msra.mxu0 0.0
    %7354 = vmatprep.subr.mxu0 0.0
    %7355 = vmatpush1.msra.mxu0 0.0
    %7356 = vmatprep.subr.mxu0 0.0
    %7357 = vmatpush1.msra.mxu0 0.0
    %7358 = vmatprep.subr.mxu0 0.0
    %7359 = vmatpush1.msra.mxu0 0.0
    %7360 = vmatprep.subr.mxu0 0.0
    %7361 = vmatpush1.msra.mxu0 0.0
    %7362 = vmatprep.subr.mxu0 0.0
    %7363 = vmatpush1.msra.mxu0 0.0
    %7364 = vmatprep.subr.mxu0 0.0
    %7365 = vmatpush1.msra.mxu0 0.0
    %7366 = vmatprep.subr.mxu0 0.0
    %7367 = vmatpush1.msra.mxu0 0.0
    %7368 = vmatprep.mubr.f32.mxu0 0.0
    %7369 = vmatmul.mubr.f32.gmra.mrb[0].mxu0 %v7146
    %v7370 = vpop.f32.mrb[0].mxu0
    %v7371 = vadd.f32 0.0, %v7370
    %v7372 = vpop.f32.mrb[0].mxu0
    %v7373 = vadd.f32 0.0, %v7372
    %7374 = vmatprep.mubr.f32.mxu0 0.0
    %7375 = vmatmul.mubr.f32.gmra.mrb[0].mxu0 %v7148
    %v7376 = vpop.f32.mrb[0].mxu0
    %v7377 = vadd.f32 0.0, %v7376
    %v7378 = vpop.f32.mrb[0].mxu0
    %v7379 = vadd.f32 0.0, %v7378
    %7380 = vdwg.mxu0
    %7381 = vmatprep.subr.mxu0 %v4757
    %7382 = vmatpush1.msra.mxu0 %v4756
    %7383 = vmatprep.subr.mxu0 %v4769
    %7384 = vmatpush1.msra.mxu0 %v4768
    %7385 = vmatprep.subr.mxu0 %v4781
    %7386 = vmatpush1.msra.mxu0 %v4780
    %7387 = vmatprep.subr.mxu0 %v4828
    %7388 = vmatpush1.msra.mxu0 %v4825
    %7389 = vmatprep.subr.mxu0 0.0
    %7390 = vmatpush1.msra.mxu0 0.0
    %7391 = vmatprep.subr.mxu0 0.0
    %7392 = vmatpush1.msra.mxu0 0.0
    %7393 = vmatprep.subr.mxu0 0.0
    %7394 = vmatpush1.msra.mxu0 0.0
    %7395 = vmatprep.subr.mxu0 0.0
    %7396 = vmatpush1.msra.mxu0 0.0
    %7397 = vmatprep.subr.mxu0 0.0
    %7398 = vmatpush1.msra.mxu0 0.0
    %7399 = vmatprep.subr.mxu0 0.0
    %7400 = vmatpush1.msra.mxu0 0.0
    %7401 = vmatprep.subr.mxu0 0.0
    %7402 = vmatpush1.msra.mxu0 0.0
    %7403 = vmatprep.subr.mxu0 0.0
    %7404 = vmatpush1.msra.mxu0 0.0
    %7405 = vmatprep.subr.mxu0 0.0
    %7406 = vmatpush1.msra.mxu0 0.0
    %7407 = vmatprep.subr.mxu0 0.0
    %7408 = vmatpush1.msra.mxu0 0.0
    %7409 = vmatprep.subr.mxu0 0.0
    %7410 = vmatpush1.msra.mxu0 0.0
    %7411 = vmatprep.subr.mxu0 0.0
    %7412 = vmatpush1.msra.mxu0 0.0
    %7413 = vmatprep.subr.mxu0 0.0
    %7414 = vmatpush1.msra.mxu0 0.0
    %7415 = vmatprep.subr.mxu0 0.0
    %7416 = vmatpush1.msra.mxu0 0.0
    %7417 = vmatprep.subr.mxu0 0.0
    %7418 = vmatpush1.msra.mxu0 0.0
    %7419 = vmatprep.subr.mxu0 0.0
    %7420 = vmatpush1.msra.mxu0 0.0
    %7421 = vmatprep.subr.mxu0 0.0
    %7422 = vmatpush1.msra.mxu0 0.0
    %7423 = vmatprep.subr.mxu0 0.0
    %7424 = vmatpush1.msra.mxu0 0.0
    %7425 = vmatprep.subr.mxu0 0.0
    %7426 = vmatpush1.msra.mxu0 0.0
    %7427 = vmatprep.subr.mxu0 0.0
    %7428 = vmatpush1.msra.mxu0 0.0
    %7429 = vmatprep.subr.mxu0 0.0
    %7430 = vmatpush1.msra.mxu0 0.0
    %7431 = vmatprep.subr.mxu0 0.0
    %7432 = vmatpush1.msra.mxu0 0.0
    %7433 = vmatprep.subr.mxu0 0.0
    %7434 = vmatpush1.msra.mxu0 0.0
    %7435 = vmatprep.subr.mxu0 0.0
    %7436 = vmatpush1.msra.mxu0 0.0
    %7437 = vmatprep.subr.mxu0 0.0
    %7438 = vmatpush1.msra.mxu0 0.0
    %7439 = vmatprep.subr.mxu0 0.0
    %7440 = vmatpush1.msra.mxu0 0.0
    %7441 = vmatprep.subr.mxu0 0.0
    %7442 = vmatpush1.msra.mxu0 0.0
    %7443 = vmatprep.subr.mxu0 0.0
    %7444 = vmatpush1.msra.mxu0 0.0
    %7445 = vmatprep.mubr.f32.mxu0 0.0
    %7446 = vmatmul.mubr.f32.gmra.mrb[0].mxu0 %v7146
    %v7447 = vpop.f32.mrb[0].mxu0
    %v7448 = vadd.f32 0.0, %v7447
    %v7449 = vpop.f32.mrb[0].mxu0
    %v7450 = vadd.f32 0.0, %v7449
    %7451 = vmatprep.mubr.f32.mxu0 0.0
    %7452 = vmatmul.mubr.f32.gmra.mrb[0].mxu0 %v7148
    %v7453 = vpop.f32.mrb[0].mxu0
    %v7454 = vadd.f32 0.0, %v7453
    %v7455 = vpop.f32.mrb[0].mxu0
    %v7456 = vadd.f32 0.0, %v7455
    %7457 = vdwg.mxu0
    %7458 = vmatprep.subr.mxu0 %v4759
    %7459 = vmatpush1.msra.mxu0 %v4758
    %7460 = vmatprep.subr.mxu0 %v4771
    %7461 = vmatpush1.msra.mxu0 %v4770
    %7462 = vmatprep.subr.mxu0 %v4783
    %7463 = vmatpush1.msra.mxu0 %v4782
    %7464 = vmatprep.subr.mxu0 %v4834
    %7465 = vmatpush1.msra.mxu0 %v4831
    %7466 = vmatprep.subr.mxu0 0.0
    %7467 = vmatpush1.msra.mxu0 0.0
    %7468 = vmatprep.subr.mxu0 0.0
    %7469 = vmatpush1.msra.mxu0 0.0
    %7470 = vmatprep.subr.mxu0 0.0
    %7471 = vmatpush1.msra.mxu0 0.0
    %7472 = vmatprep.subr.mxu0 0.0
    %7473 = vmatpush1.msra.mxu0 0.0
    %7474 = vmatprep.subr.mxu0 0.0
    %7475 = vmatpush1.msra.mxu0 0.0
    %7476 = vmatprep.subr.mxu0 0.0
    %7477 = vmatpush1.msra.mxu0 0.0
    %7478 = vmatprep.subr.mxu0 0.0
    %7479 = vmatpush1.msra.mxu0 0.0
    %7480 = vmatprep.subr.mxu0 0.0
    %7481 = vmatpush1.msra.mxu0 0.0
    %7482 = vmatprep.subr.mxu0 0.0
    %7483 = vmatpush1.msra.mxu0 0.0
    %7484 = vmatprep.subr.mxu0 0.0
    %7485 = vmatpush1.msra.mxu0 0.0
    %7486 = vmatprep.subr.mxu0 0.0
    %7487 = vmatpush1.msra.mxu0 0.0
    %7488 = vmatprep.subr.mxu0 0.0
    %7489 = vmatpush1.msra.mxu0 0.0
    %7490 = vmatprep.subr.mxu0 0.0
    %7491 = vmatpush1.msra.mxu0 0.0
    %7492 = vmatprep.subr.mxu0 0.0
    %7493 = vmatpush1.msra.mxu0 0.0
    %7494 = vmatprep.subr.mxu0 0.0
    %7495 = vmatpush1.msra.mxu0 0.0
    %7496 = vmatprep.subr.mxu0 0.0
    %7497 = vmatpush1.msra.mxu0 0.0
    %7498 = vmatprep.subr.mxu0 0.0
    %7499 = vmatpush1.msra.mxu0 0.0
    %7500 = vmatprep.subr.mxu0 0.0
    %7501 = vmatpush1.msra.mxu0 0.0
    %7502 = vmatprep.subr.mxu0 0.0
    %7503 = vmatpush1.msra.mxu0 0.0
    %7504 = vmatprep.subr.mxu0 0.0
    %7505 = vmatpush1.msra.mxu0 0.0
    %7506 = vmatprep.subr.mxu0 0.0
    %7507 = vmatpush1.msra.mxu0 0.0
    %7508 = vmatprep.subr.mxu0 0.0
    %7509 = vmatpush1.msra.mxu0 0.0
    %7510 = vmatprep.subr.mxu0 0.0
    %7511 = vmatpush1.msra.mxu0 0.0
    %7512 = vmatprep.subr.mxu0 0.0
    %7513 = vmatpush1.msra.mxu0 0.0
    %7514 = vmatprep.subr.mxu0 0.0
    %7515 = vmatpush1.msra.mxu0 0.0
    %7516 = vmatprep.subr.mxu0 0.0
    %7517 = vmatpush1.msra.mxu0 0.0
    %7518 = vmatprep.subr.mxu0 0.0
    %7519 = vmatpush1.msra.mxu0 0.0
    %7520 = vmatprep.subr.mxu0 0.0
    %7521 = vmatpush1.msra.mxu0 0.0
    %7522 = vmatprep.mubr.f32.mxu0 0.0
    %7523 = vmatmul.mubr.f32.gmra.mrb[0].mxu0 %v7146
    %v7524 = vpop.f32.mrb[0].mxu0
    %v7525 = vadd.f32 0.0, %v7524
    %v7526 = vpop.f32.mrb[0].mxu0
    %v7527 = vadd.f32 0.0, %v7526
    %7528 = vmatprep.mubr.f32.mxu0 0.0
    %7529 = vmatmul.mubr.f32.gmra.mrb[0].mxu0 %v7148
    %v7530 = vpop.f32.mrb[0].mxu0
    %v7531 = vadd.f32 0.0, %v7530
    %v7532 = vpop.f32.mrb[0].mxu0
    %v7533 = vadd.f32 0.0, %v7532
    %7534 = vdwg.mxu0
    %7535 = vmatprep.subr.mxu0 %v4761
    %7536 = vmatpush1.msra.mxu0 %v4760
    %7537 = vmatprep.subr.mxu0 %v4773
    %7538 = vmatpush1.msra.mxu0 %v4772
    %7539 = vmatprep.subr.mxu0 %v4785
    %7540 = vmatpush1.msra.mxu0 %v4784
    %7541 = vmatprep.subr.mxu0 %v4840
    %7542 = vmatpush1.msra.mxu0 %v4837
    %7543 = vmatprep.subr.mxu0 0.0
    %7544 = vmatpush1.msra.mxu0 0.0
    %7545 = vmatprep.subr.mxu0 0.0
    %7546 = vmatpush1.msra.mxu0 0.0
    %7547 = vmatprep.subr.mxu0 0.0
    %7548 = vmatpush1.msra.mxu0 0.0
    %7549 = vmatprep.subr.mxu0 0.0
    %7550 = vmatpush1.msra.mxu0 0.0
    %7551 = vmatprep.subr.mxu0 0.0
    %7552 = vmatpush1.msra.mxu0 0.0
    %7553 = vmatprep.subr.mxu0 0.0
    %7554 = vmatpush1.msra.mxu0 0.0
    %7555 = vmatprep.subr.mxu0 0.0
    %7556 = vmatpush1.msra.mxu0 0.0
    %7557 = vmatprep.subr.mxu0 0.0
    %7558 = vmatpush1.msra.mxu0 0.0
    %7559 = vmatprep.subr.mxu0 0.0
    %7560 = vmatpush1.msra.mxu0 0.0
    %7561 = vmatprep.subr.mxu0 0.0
    %7562 = vmatpush1.msra.mxu0 0.0
    %7563 = vmatprep.subr.mxu0 0.0
    %7564 = vmatpush1.msra.mxu0 0.0
    %7565 = vmatprep.subr.mxu0 0.0
    %7566 = vmatpush1.msra.mxu0 0.0
    %7567 = vmatprep.subr.mxu0 0.0
    %7568 = vmatpush1.msra.mxu0 0.0
    %7569 = vmatprep.subr.mxu0 0.0
    %7570 = vmatpush1.msra.mxu0 0.0
    %7571 = vmatprep.subr.mxu0 0.0
    %7572 = vmatpush1.msra.mxu0 0.0
    %7573 = vmatprep.subr.mxu0 0.0
    %7574 = vmatpush1.msra.mxu0 0.0
    %7575 = vmatprep.subr.mxu0 0.0
    %7576 = vmatpush1.msra.mxu0 0.0
    %7577 = vmatprep.subr.mxu0 0.0
    %7578 = vmatpush1.msra.mxu0 0.0
    %7579 = vmatprep.subr.mxu0 0.0
    %7580 = vmatpush1.msra.mxu0 0.0
    %7581 = vmatprep.subr.mxu0 0.0
    %7582 = vmatpush1.msra.mxu0 0.0
    %7583 = vmatprep.subr.mxu0 0.0
    %7584 = vmatpush1.msra.mxu0 0.0
    %7585 = vmatprep.subr.mxu0 0.0
    %7586 = vmatpush1.msra.mxu0 0.0
    %7587 = vmatprep.subr.mxu0 0.0
    %7588 = vmatpush1.msra.mxu0 0.0
    %7589 = vmatprep.subr.mxu0 0.0
    %7590 = vmatpush1.msra.mxu0 0.0
    %7591 = vmatprep.subr.mxu0 0.0
    %7592 = vmatpush1.msra.mxu0 0.0
    %7593 = vmatprep.subr.mxu0 0.0
    %7594 = vmatpush1.msra.mxu0 0.0
    %7595 = vmatprep.subr.mxu0 0.0
    %7596 = vmatpush1.msra.mxu0 0.0
    %7597 = vmatprep.subr.mxu0 0.0
    %7598 = vmatpush1.msra.mxu0 0.0
    %7599 = vmatprep.mubr.f32.mxu0 0.0
    %7600 = vmatmul.mubr.f32.gmra.mrb[0].mxu0 %v7146
    %v7601 = vpop.f32.mrb[0].mxu0
    %v7602 = vadd.f32 0.0, %v7601
    %v7603 = vpop.f32.mrb[0].mxu0
    %v7604 = vadd.f32 0.0, %v7603
    %7605 = vmatprep.mubr.f32.mxu0 0.0
    %7606 = vmatmul.mubr.f32.gmra.mrb[0].mxu0 %v7148
    %v7607 = vpop.f32.mrb[0].mxu0
    %v7608 = vadd.f32 0.0, %v7607
    %v7609 = vpop.f32.mrb[0].mxu0
    %v7610 = vadd.f32 0.0, %v7609
    %7611 = vdwg.mxu0
    %7624 = vrot.lane.b32.xlu0 %v7217, 120
    %v7625 = vpop.permute.xlu0 %7624
    %7626 = vrot.lane.b32.xlu0 %v7219, 120
    %v7627 = vpop.permute.xlu0 %7626
    %7628 = vrot.lane.b32.xlu0 %v7294, 120
    %v7629 = vpop.permute.xlu0 %7628
    %7630 = vrot.lane.b32.xlu0 %v7296, 120
    %v7631 = vpop.permute.xlu0 %7630
    %7632 = vrot.lane.b32.xlu0 %v7371, 120
    %v7633 = vpop.permute.xlu0 %7632
    %7634 = vrot.lane.b32.xlu0 %v7373, 120
    %v7635 = vpop.permute.xlu0 %7634
    %7636 = vrot.lane.b32.xlu0 %v7223, 120
    %v7637 = vpop.permute.xlu0 %7636
    %7638 = vrot.lane.b32.xlu0 %v7225, 120
    %v7639 = vpop.permute.xlu0 %7638
    %7640 = vrot.lane.b32.xlu0 %v7300, 120
    %v7641 = vpop.permute.xlu0 %7640
    %7642 = vrot.lane.b32.xlu0 %v7302, 120
    %v7643 = vpop.permute.xlu0 %7642
    %7644 = vrot.lane.b32.xlu0 %v7377, 120
    %v7645 = vpop.permute.xlu0 %7644
    %7646 = vrot.lane.b32.xlu0 %v7379, 120
    %v7647 = vpop.permute.xlu0 %7646
    %vm7648 = vcmask 982016
    %v7649 = vsel %vm7648, %v7625, %v7627
    %v7650 = vsel %vm7648, %v7627, %v7629
    %v7651 = vsel %vm7648, %v7629, %v7631
    %v7652 = vsel %vm7648, %v7631, %v7633
    %v7653 = vsel %vm7648, %v7633, %v7635
    %v7654 = vsel %vm7648, %v7637, %v7639
    %v7655 = vsel %vm7648, %v7639, %v7641
    %v7656 = vsel %vm7648, %v7641, %v7643
    %v7657 = vsel %vm7648, %v7643, %v7645
    %v7658 = vsel %vm7648, %v7645, %v7647
    %v7669 = vadd.f32 %v7051, %v7649
    %v7670 = vadd.f32 %v7052, %v7650
    %v7671 = vadd.f32 %v7053, %v7651
    %v7672 = vadd.f32 %v7054, %v7652
    %v7673 = vadd.f32 %v7055, %v7653
    %v7674 = vadd.f32 %v7056, %v7654
    %v7675 = vadd.f32 %v7057, %v7655
    %v7676 = vadd.f32 %v7058, %v7656
    %v7677 = vadd.f32 %v7059, %v7657
    %v7678 = vadd.f32 %v7060, %v7658
    %7691 = vrot.lane.b32.xlu0 %v7448, 120
    %v7692 = vpop.permute.xlu0 %7691
    %7693 = vrot.lane.b32.xlu0 %v7450, 120
    %v7694 = vpop.permute.xlu0 %7693
    %7695 = vrot.lane.b32.xlu0 %v7525, 120
    %v7696 = vpop.permute.xlu0 %7695
    %7697 = vrot.lane.b32.xlu0 %v7527, 120
    %v7698 = vpop.permute.xlu0 %7697
    %7699 = vrot.lane.b32.xlu0 %v7602, 120
    %v7700 = vpop.permute.xlu0 %7699
    %7701 = vrot.lane.b32.xlu0 %v7604, 120
    %v7702 = vpop.permute.xlu0 %7701
    %7703 = vrot.lane.b32.xlu0 %v7454, 120
    %v7704 = vpop.permute.xlu0 %7703
    %7705 = vrot.lane.b32.xlu0 %v7456, 120
    %v7706 = vpop.permute.xlu0 %7705
    %7707 = vrot.lane.b32.xlu0 %v7531, 120
    %v7708 = vpop.permute.xlu0 %7707
    %7709 = vrot.lane.b32.xlu0 %v7533, 120
    %v7710 = vpop.permute.xlu0 %7709
    %7711 = vrot.lane.b32.xlu0 %v7608, 120
    %v7712 = vpop.permute.xlu0 %7711
    %7713 = vrot.lane.b32.xlu0 %v7610, 120
    %v7714 = vpop.permute.xlu0 %7713
    %v7715 = vsel %vm7648, %v7692, %v7694
    %v7716 = vsel %vm7648, %v7694, %v7696
    %v7717 = vsel %vm7648, %v7696, %v7698
    %v7718 = vsel %vm7648, %v7698, %v7700
    %v7719 = vsel %vm7648, %v7700, %v7702
    %v7720 = vsel %vm7648, %v7704, %v7706
    %v7721 = vsel %vm7648, %v7706, %v7708
    %v7722 = vsel %vm7648, %v7708, %v7710
    %v7723 = vsel %vm7648, %v7710, %v7712
    %v7724 = vsel %vm7648, %v7712, %v7714
    %v7735 = vadd.f32 %v7117, %v7715
    %v7736 = vadd.f32 %v7118, %v7716
    %v7737 = vadd.f32 %v7119, %v7717
    %v7738 = vadd.f32 %v7120, %v7718
    %v7739 = vadd.f32 %v7121, %v7719
    %v7740 = vadd.f32 %v7122, %v7720
    %v7741 = vadd.f32 %v7123, %v7721
    %v7742 = vadd.f32 %v7124, %v7722
    %v7743 = vadd.f32 %v7125, %v7723
    %v7744 = vadd.f32 %v7126, %v7724
    %v7745 = vld [vmem:[%s4] sm:$0xff]
    %v7746 = vld [vmem:[%s4 + $0x8] sm:$0xff]
    %7748 = vset.pattern.permute.xlu0 0
    %7749 = vperm.xlu0 %7748, %v7745
    %v7750 = vpop.permute.xlu0 %7749
    %7753 = vset.pattern.permute.xlu0 0
    %7754 = vperm.xlu0 %7753, %v7746
    %v7755 = vpop.permute.xlu0 %7754
    %v7757 = vadd.f32 %v7669, %v7750
    %v7758 = vadd.f32 %v7670, %v7750
    %v7759 = vadd.f32 %v7671, %v7750
    %v7760 = vadd.f32 %v7672, %v7750
    %v7761 = vadd.f32 %v7673, %v7750
    %v7762 = vadd.f32 %v7674, %v7755
    %v7763 = vadd.f32 %v7675, %v7755
    %v7764 = vadd.f32 %v7676, %v7755
    %v7765 = vadd.f32 %v7677, %v7755
    %v7766 = vadd.f32 %v7678, %v7755
    %v7767 = vmax.f32 %v7757, 0.0
    %v7768 = vmax.f32 %v7758, 0.0
    %v7769 = vmax.f32 %v7759, 0.0
    %v7770 = vmax.f32 %v7760, 0.0
    %v7771 = vmax.f32 %v7761, 0.0
    %v7772 = vmax.f32 %v7762, 0.0
    %v7773 = vmax.f32 %v7763, 0.0
    %v7774 = vmax.f32 %v7764, 0.0
    %v7775 = vmax.f32 %v7765, 0.0
    %v7776 = vmax.f32 %v7766, 0.0
    %7787 = vrot.lane.b32.xlu0 %v7767, 126
    %v7788 = vpop.permute.xlu0 %7787
    %7789 = vrot.lane.b32.xlu0 %v7768, 126
    %v7790 = vpop.permute.xlu0 %7789
    %7791 = vrot.lane.b32.xlu0 %v7769, 126
    %v7792 = vpop.permute.xlu0 %7791
    %7793 = vrot.lane.b32.xlu0 %v7770, 126
    %v7794 = vpop.permute.xlu0 %7793
    %7795 = vrot.lane.b32.xlu0 %v7771, 126
    %v7796 = vpop.permute.xlu0 %7795
    %7797 = vrot.lane.b32.xlu0 %v7772, 126
    %v7798 = vpop.permute.xlu0 %7797
    %7799 = vrot.lane.b32.xlu0 %v7773, 126
    %v7800 = vpop.permute.xlu0 %7799
    %7801 = vrot.lane.b32.xlu0 %v7774, 126
    %v7802 = vpop.permute.xlu0 %7801
    %7803 = vrot.lane.b32.xlu0 %v7775, 126
    %v7804 = vpop.permute.xlu0 %7803
    %7805 = vrot.lane.b32.xlu0 %v7776, 126
    %v7806 = vpop.permute.xlu0 %7805
    %v7807 = vsel %vm2662, %v7788, %v7790
    %v7808 = vsel %vm2662, %v7790, %v7792
    %v7809 = vsel %vm2662, %v7792, %v7794
    %v7810 = vsel %vm2662, %v7794, %v7796
    %v7811 = vsel %vm2662, %v7798, %v7800
    %v7812 = vsel %vm2662, %v7800, %v7802
    %v7813 = vsel %vm2662, %v7802, %v7804
    %v7814 = vsel %vm2662, %v7804, %v7806
    %v7825 = vmax.f32 %v7767, %v7807
    %v7826 = vmax.f32 %v7768, %v7808
    %v7827 = vmax.f32 %v7769, %v7809
    %v7828 = vmax.f32 %v7770, %v7810
    %v7829 = vmax.f32 %v7771, %v7796
    %v7830 = vmax.f32 %v7772, %v7811
    %v7831 = vmax.f32 %v7773, %v7812
    %v7832 = vmax.f32 %v7774, %v7813
    %v7833 = vmax.f32 %v7775, %v7814
    %v7834 = vmax.f32 %v7776, %v7806
    %7845 = vrot.lane.b32.xlu0 %v7825, 64
    %v7846 = vpop.permute.xlu0 %7845
    %7847 = vrot.lane.b32.xlu0 %v7826, 64
    %v7848 = vpop.permute.xlu0 %7847
    %7849 = vrot.lane.b32.xlu0 %v7827, 64
    %v7850 = vpop.permute.xlu0 %7849
    %7851 = vrot.lane.b32.xlu0 %v7828, 64
    %v7852 = vpop.permute.xlu0 %7851
    %7853 = vrot.lane.b32.xlu0 %v7829, 64
    %v7854 = vpop.permute.xlu0 %7853
    %7855 = vrot.lane.b32.xlu0 %v7830, 64
    %v7856 = vpop.permute.xlu0 %7855
    %7857 = vrot.lane.b32.xlu0 %v7831, 64
    %v7858 = vpop.permute.xlu0 %7857
    %7859 = vrot.lane.b32.xlu0 %v7832, 64
    %v7860 = vpop.permute.xlu0 %7859
    %7861 = vrot.lane.b32.xlu0 %v7833, 64
    %v7862 = vpop.permute.xlu0 %7861
    %7863 = vrot.lane.b32.xlu0 %v7834, 64
    %v7864 = vpop.permute.xlu0 %7863
    %v7865 = vsel %vm159, %v7846, %v7848
    %v7866 = vsel %vm159, %v7848, %v7850
    %v7867 = vsel %vm159, %v7850, %v7852
    %v7868 = vsel %vm159, %v7852, %v7854
    %v7869 = vsel %vm159, %v7856, %v7858
    %v7870 = vsel %vm159, %v7858, %v7860
    %v7871 = vsel %vm159, %v7860, %v7862
    %v7872 = vsel %vm159, %v7862, %v7864
    %v7883 = vmax.f32 %v7825, %v7865
    %v7884 = vmax.f32 %v7826, %v7866
    %v7885 = vmax.f32 %v7827, %v7867
    %v7886 = vmax.f32 %v7828, %v7868
    %v7887 = vmax.f32 %v7829, %v7854
    %v7888 = vmax.f32 %v7830, %v7869
    %v7889 = vmax.f32 %v7831, %v7870
    %v7890 = vmax.f32 %v7832, %v7871
    %v7891 = vmax.f32 %v7833, %v7872
    %v7892 = vmax.f32 %v7834, %v7864
    %v7893 = vpack.c.bf16 %v7888, %v7883
    %v7894 = vpack.c.bf16 %v7889, %v7884
    %v7895 = vpack.c.bf16 %v7890, %v7885
    %v7896 = vpack.c.bf16 %v7891, %v7886
    %v7897 = vpack.c.bf16 %v7892, %v7887
    %v7898 = vld [vmem:[%s5] sm:$0xf]
    %v7899 = vld [vmem:[%s5 + $0x4] sm:$0xf]
    %v7900 = vld [vmem:[%s5 + $0x8] sm:$0xf]
    %v7901 = vld [vmem:[%s5 + $0xc] sm:$0xf]
    %v7902 = vld [vmem:[%s5 + $0x10] sm:$0xf]
    %v7903 = vld [vmem:[%s5 + $0x14] sm:$0xf]
    %v7904 = vld [vmem:[%s5 + $0x18] sm:$0xf]
    %v7905 = vld [vmem:[%s5 + $0x1c] sm:$0xf]
    %v7906 = vld [vmem:[%s5 + $0x20] sm:$0xf]
    %v7907 = vld [vmem:[%s5 + $0x24] sm:$0xf]
    %v7908 = vld [vmem:[%s5 + $0x28] sm:$0xf]
    %v7909 = vld [vmem:[%s5 + $0x2c] sm:$0xf]
    %v7910 = vld [vmem:[%s5 + $0x30] sm:$0xf]
    %v7911 = vld [vmem:[%s5 + $0x34] sm:$0xf]
    %v7912 = vld [vmem:[%s5 + $0x38] sm:$0xf]
    %v7913 = vld [vmem:[%s5 + $0x3c] sm:$0xf]
    %v7914 = vld [vmem:[%s5 + $0x40] sm:$0xf]
    %v7915 = vld [vmem:[%s5 + $0x44] sm:$0xf]
    %v7916 = vld [vmem:[%s5 + $0x48] sm:$0xf]
    %v7917 = vld [vmem:[%s5 + $0x4c] sm:$0xf]
    %v7918 = vld [vmem:[%s5 + $0x50] sm:$0xf]
    %v7919 = vld [vmem:[%s5 + $0x54] sm:$0xf]
    %v7920 = vld [vmem:[%s5 + $0x58] sm:$0xf]
    %v7921 = vld [vmem:[%s5 + $0x5c] sm:$0xf]
    %v7922 = vld [vmem:[%s5 + $0x60] sm:$0xf]
    %v7923 = vld [vmem:[%s5 + $0x64] sm:$0xf]
    %v7924 = vld [vmem:[%s5 + $0x68] sm:$0xf]
    %v7925 = vld [vmem:[%s5 + $0x6c] sm:$0xf]
    %v7926 = vld [vmem:[%s5 + $0x70] sm:$0xf]
    %v7927 = vld [vmem:[%s5 + $0x74] sm:$0xf]
    %v7928 = vld [vmem:[%s5 + $0x78] sm:$0xf]
    %v7929 = vld [vmem:[%s5 + $0x7c] sm:$0xf]
    %v7930 = vld [vmem:[%s5 + $0x80] sm:$0xf]
    %v7931 = vld [vmem:[%s5 + $0x84] sm:$0xf]
    %v7932 = vld [vmem:[%s5 + $0x88] sm:$0xf]
    %v7933 = vld [vmem:[%s5 + $0x8c] sm:$0xf]
    %v7934 = vld [vmem:[%s5 + $0x90] sm:$0xf]
    %v7935 = vld [vmem:[%s5 + $0x94] sm:$0xf]
    %v7936 = vld [vmem:[%s5 + $0x98] sm:$0xf]
    %v7937 = vld [vmem:[%s5 + $0x9c] sm:$0xf]
    %v7938 = vld [vmem:[%s5 + $0xa0] sm:$0xf]
    %v7939 = vld [vmem:[%s5 + $0xa4] sm:$0xf]
    %v7940 = vld [vmem:[%s5 + $0xa8] sm:$0xf]
    %v7941 = vld [vmem:[%s5 + $0xac] sm:$0xf]
    %v7942 = vld [vmem:[%s5 + $0xb0] sm:$0xf]
    %v7943 = vld [vmem:[%s5 + $0xb4] sm:$0xf]
    %v7944 = vld [vmem:[%s5 + $0xb8] sm:$0xf]
    %v7945 = vld [vmem:[%s5 + $0xbc] sm:$0xf]
    %v7946 = vld [vmem:[%s5 + $0xc0] sm:$0xf]
    %v7947 = vld [vmem:[%s5 + $0xc4] sm:$0xf]
    %v7948 = vld [vmem:[%s5 + $0xc8] sm:$0xf]
    %v7949 = vld [vmem:[%s5 + $0xcc] sm:$0xf]
    %v7950 = vld [vmem:[%s5 + $0xd0] sm:$0xf]
    %v7951 = vld [vmem:[%s5 + $0xd4] sm:$0xf]
    %v7952 = vld [vmem:[%s5 + $0xd8] sm:$0xf]
    %v7953 = vld [vmem:[%s5 + $0xdc] sm:$0xf]
    %v7954 = vld [vmem:[%s5 + $0xe0] sm:$0xf]
    %v7955 = vld [vmem:[%s5 + $0xe4] sm:$0xf]
    %v7956 = vld [vmem:[%s5 + $0xe8] sm:$0xf]
    %v7957 = vld [vmem:[%s5 + $0xec] sm:$0xf]
    %v7958 = vld [vmem:[%s5 + $0xf0] sm:$0xf]
    %v7959 = vld [vmem:[%s5 + $0xf4] sm:$0xf]
    %v7960 = vld [vmem:[%s5 + $0xf8] sm:$0xf]
    %v7961 = vld [vmem:[%s5 + $0xfc] sm:$0xf]
    %v7962 = vld [vmem:[%s5 + $0x100] sm:$0xf]
    %v7963 = vld [vmem:[%s5 + $0x104] sm:$0xf]
    %v7964 = vld [vmem:[%s5 + $0x108] sm:$0xf]
    %v7965 = vld [vmem:[%s5 + $0x10c] sm:$0xf]
    %v7966 = vld [vmem:[%s5 + $0x110] sm:$0xf]
    %v7967 = vld [vmem:[%s5 + $0x114] sm:$0xf]
    %v7968 = vld [vmem:[%s5 + $0x118] sm:$0xf]
    %v7969 = vld [vmem:[%s5 + $0x11c] sm:$0x7]
    %v8042 = vunpack.c.l.b16 %v7898
    %v8043 = vunpack.c.l.b16 %v7899
    %v8044 = vunpack.c.l.b16 %v7900
    %v8045 = vunpack.c.l.b16 %v7901
    %v8046 = vunpack.c.l.b16 %v7902
    %v8047 = vunpack.c.l.b16 %v7903
    %v8048 = vunpack.c.l.b16 %v7904
    %v8049 = vunpack.c.l.b16 %v7905
    %v8050 = vunpack.c.l.b16 %v7906
    %v8051 = vunpack.c.l.b16 %v7907
    %v8052 = vunpack.c.l.b16 %v7908
    %v8053 = vunpack.c.l.b16 %v7909
    %v8054 = vunpack.c.l.b16 %v7910
    %v8055 = vunpack.c.l.b16 %v7911
    %v8056 = vunpack.c.l.b16 %v7912
    %v8057 = vunpack.c.l.b16 %v7913
    %v8058 = vunpack.c.l.b16 %v7914
    %v8059 = vunpack.c.l.b16 %v7915
    %v8060 = vunpack.c.l.b16 %v7916
    %v8061 = vunpack.c.l.b16 %v7917
    %v8062 = vunpack.c.l.b16 %v7918
    %v8063 = vunpack.c.l.b16 %v7919
    %v8064 = vunpack.c.l.b16 %v7920
    %v8065 = vunpack.c.l.b16 %v7921
    %v8066 = vunpack.c.l.b16 %v7922
    %v8067 = vunpack.c.l.b16 %v7923
    %v8068 = vunpack.c.l.b16 %v7924
    %v8069 = vunpack.c.l.b16 %v7925
    %v8070 = vunpack.c.l.b16 %v7926
    %v8071 = vunpack.c.l.b16 %v7927
    %v8072 = vunpack.c.l.b16 %v7928
    %v8073 = vunpack.c.l.b16 %v7929
    %v8074 = vunpack.c.l.b16 %v7930
    %v8075 = vunpack.c.l.b16 %v7931
    %v8076 = vunpack.c.l.b16 %v7932
    %v8077 = vunpack.c.l.b16 %v7933
    %v8078 = vunpack.c.l.b16 %v7934
    %v8079 = vunpack.c.l.b16 %v7935
    %v8080 = vunpack.c.l.b16 %v7936
    %v8081 = vunpack.c.l.b16 %v7937
    %v8082 = vunpack.c.l.b16 %v7938
    %v8083 = vunpack.c.l.b16 %v7939
    %v8084 = vunpack.c.l.b16 %v7940
    %v8085 = vunpack.c.l.b16 %v7941
    %v8086 = vunpack.c.l.b16 %v7942
    %v8087 = vunpack.c.l.b16 %v7943
    %v8088 = vunpack.c.l.b16 %v7944
    %v8089 = vunpack.c.l.b16 %v7945
    %v8090 = vunpack.c.l.b16 %v7946
    %v8091 = vunpack.c.l.b16 %v7947
    %v8092 = vunpack.c.l.b16 %v7948
    %v8093 = vunpack.c.l.b16 %v7949
    %v8094 = vunpack.c.l.b16 %v7950
    %v8095 = vunpack.c.l.b16 %v7951
    %v8096 = vunpack.c.l.b16 %v7952
    %v8097 = vunpack.c.l.b16 %v7953
    %v8098 = vunpack.c.l.b16 %v7954
    %v8099 = vunpack.c.l.b16 %v7955
    %v8100 = vunpack.c.l.b16 %v7956
    %v8101 = vunpack.c.l.b16 %v7957
    %v8102 = vunpack.c.l.b16 %v7958
    %v8103 = vunpack.c.l.b16 %v7959
    %v8104 = vunpack.c.l.b16 %v7960
    %v8105 = vunpack.c.l.b16 %v7961
    %v8106 = vunpack.c.l.b16 %v7962
    %v8107 = vunpack.c.l.b16 %v7963
    %v8108 = vunpack.c.l.b16 %v7964
    %v8109 = vunpack.c.l.b16 %v7965
    %v8110 = vunpack.c.l.b16 %v7966
    %v8111 = vunpack.c.l.b16 %v7967
    %v8112 = vunpack.c.l.b16 %v7968
    %v8113 = vunpack.c.l.b16 %v7969
    %v8114 = vpack.c.b16 %v8043, %v8042
    %v8115 = vpack.c.b16 %v8045, %v8044
    %v8116 = vpack.c.b16 %v8047, %v8046
    %v8117 = vpack.c.b16 %v8049, %v8048
    %v8118 = vpack.c.b16 %v8051, %v8050
    %v8119 = vpack.c.b16 %v8053, %v8052
    %v8120 = vpack.c.b16 %v8055, %v8054
    %v8121 = vpack.c.b16 %v8057, %v8056
    %v8122 = vpack.c.b16 %v8059, %v8058
    %v8123 = vpack.c.b16 %v8061, %v8060
    %v8124 = vpack.c.b16 %v8063, %v8062
    %v8125 = vpack.c.b16 %v8065, %v8064
    %v8126 = vpack.c.b16 %v8067, %v8066
    %v8127 = vpack.c.b16 %v8069, %v8068
    %v8128 = vpack.c.b16 %v8071, %v8070
    %v8129 = vpack.c.b16 %v8073, %v8072
    %v8130 = vpack.c.b16 %v8075, %v8074
    %v8131 = vpack.c.b16 %v8077, %v8076
    %v8132 = vpack.c.b16 %v8079, %v8078
    %v8133 = vpack.c.b16 %v8081, %v8080
    %v8134 = vpack.c.b16 %v8083, %v8082
    %v8135 = vpack.c.b16 %v8085, %v8084
    %v8136 = vpack.c.b16 %v8087, %v8086
    %v8137 = vpack.c.b16 %v8089, %v8088
    %v8138 = vpack.c.b16 %v8091, %v8090
    %v8139 = vpack.c.b16 %v8093, %v8092
    %v8140 = vpack.c.b16 %v8095, %v8094
    %v8141 = vpack.c.b16 %v8097, %v8096
    %v8142 = vpack.c.b16 %v8099, %v8098
    %v8143 = vpack.c.b16 %v8101, %v8100
    %v8144 = vpack.c.b16 %v8103, %v8102
    %v8145 = vpack.c.b16 %v8105, %v8104
    %v8146 = vpack.c.b16 %v8107, %v8106
    %v8147 = vpack.c.b16 %v8109, %v8108
    %v8148 = vpack.c.b16 %v8111, %v8110
    %v8149 = vpack.c.b16 %v8113, %v8112
    %vm8185 = vcmask 506880
    %v8187 = vsel %vm8185, %v7897, 0
    %v8190 = vsel %vm538, %v8149, 0
    %8192 = vmatprep.subr.bf16.mxu0 0
    %8193 = vmatpush1.bf16.msra.mxu0 %v8114
    %8194 = vmatprep.subr.bf16.mxu0 0
    %8195 = vmatpush1.bf16.msra.mxu0 %v8115
    %8196 = vmatprep.subr.bf16.mxu0 0
    %8197 = vmatpush1.bf16.msra.mxu0 %v8116
    %8198 = vmatprep.subr.bf16.mxu0 0
    %8199 = vmatpush1.bf16.msra.mxu0 %v8117
    %8200 = vmatprep.subr.bf16.mxu0 0
    %8201 = vmatpush1.bf16.msra.mxu0 %v8118
    %8202 = vmatprep.subr.bf16.mxu0 0
    %8203 = vmatpush1.bf16.msra.mxu0 %v8119
    %8204 = vmatprep.subr.bf16.mxu0 0
    %8205 = vmatpush1.bf16.msra.mxu0 %v8120
    %8206 = vmatprep.subr.bf16.mxu0 0
    %8207 = vmatpush1.bf16.msra.mxu0 %v8121
    %8208 = vmatprep.subr.bf16.mxu0 0
    %8209 = vmatpush1.bf16.msra.mxu0 %v8122
    %8210 = vmatprep.subr.bf16.mxu0 0
    %8211 = vmatpush1.bf16.msra.mxu0 %v8123
    %8212 = vmatprep.subr.bf16.mxu0 0
    %8213 = vmatpush1.bf16.msra.mxu0 %v8124
    %8214 = vmatprep.subr.bf16.mxu0 0
    %8215 = vmatpush1.bf16.msra.mxu0 %v8125
    %8216 = vmatprep.subr.bf16.mxu0 0
    %8217 = vmatpush1.bf16.msra.mxu0 %v8126
    %8218 = vmatprep.subr.bf16.mxu0 0
    %8219 = vmatpush1.bf16.msra.mxu0 %v8127
    %8220 = vmatprep.subr.bf16.mxu0 0
    %8221 = vmatpush1.bf16.msra.mxu0 %v8128
    %8222 = vmatprep.subr.bf16.mxu0 0
    %8223 = vmatpush1.bf16.msra.mxu0 %v8129
    %8224 = vmatprep.mubr.bf16.mxu0 %v7894
    %8225 = vmatmul.mubr.bf16.gmra.mrb[0].mxu0 %v7893
    %v8226 = vpop.f32.mrb[0].mxu0
    %v8227 = vadd.f32 0.0, %v8226
    %v8228 = vpop.f32.mrb[0].mxu0
    %v8229 = vpop.f32.mrb[0].mxu0
    %v8230 = vadd.f32 0.0, %v8229
    %v8231 = vpop.f32.mrb[0].mxu0
    %8232 = vdwg.mxu0
    %8233 = vmatprep.subr.bf16.mxu0 0
    %8234 = vmatpush1.bf16.msra.mxu0 %v8130
    %8235 = vmatprep.subr.bf16.mxu0 0
    %8236 = vmatpush1.bf16.msra.mxu0 %v8131
    %8237 = vmatprep.subr.bf16.mxu0 0
    %8238 = vmatpush1.bf16.msra.mxu0 %v8132
    %8239 = vmatprep.subr.bf16.mxu0 0
    %8240 = vmatpush1.bf16.msra.mxu0 %v8133
    %8241 = vmatprep.subr.bf16.mxu0 0
    %8242 = vmatpush1.bf16.msra.mxu0 %v8134
    %8243 = vmatprep.subr.bf16.mxu0 0
    %8244 = vmatpush1.bf16.msra.mxu0 %v8135
    %8245 = vmatprep.subr.bf16.mxu0 0
    %8246 = vmatpush1.bf16.msra.mxu0 %v8136
    %8247 = vmatprep.subr.bf16.mxu0 0
    %8248 = vmatpush1.bf16.msra.mxu0 %v8137
    %8249 = vmatprep.subr.bf16.mxu0 0
    %8250 = vmatpush1.bf16.msra.mxu0 %v8138
    %8251 = vmatprep.subr.bf16.mxu0 0
    %8252 = vmatpush1.bf16.msra.mxu0 %v8139
    %8253 = vmatprep.subr.bf16.mxu0 0
    %8254 = vmatpush1.bf16.msra.mxu0 %v8140
    %8255 = vmatprep.subr.bf16.mxu0 0
    %8256 = vmatpush1.bf16.msra.mxu0 %v8141
    %8257 = vmatprep.subr.bf16.mxu0 0
    %8258 = vmatpush1.bf16.msra.mxu0 %v8142
    %8259 = vmatprep.subr.bf16.mxu0 0
    %8260 = vmatpush1.bf16.msra.mxu0 %v8143
    %8261 = vmatprep.subr.bf16.mxu0 0
    %8262 = vmatpush1.bf16.msra.mxu0 %v8144
    %8263 = vmatprep.subr.bf16.mxu0 0
    %8264 = vmatpush1.bf16.msra.mxu0 %v8145
    %8265 = vmatprep.mubr.bf16.mxu0 %v7896
    %8266 = vmatmul.mubr.bf16.gmra.mrb[0].mxu0 %v7895
    %v8267 = vpop.f32.mrb[0].mxu0
    %v8268 = vadd.f32 %v8227, %v8267
    %v8269 = vpop.f32.mrb[0].mxu0
    %v8270 = vpop.f32.mrb[0].mxu0
    %v8271 = vadd.f32 %v8230, %v8270
    %v8272 = vpop.f32.mrb[0].mxu0
    %8273 = vdwg.mxu0
    %8274 = vmatprep.subr.bf16.mxu0 0
    %8275 = vmatpush1.bf16.msra.mxu0 %v8146
    %8276 = vmatprep.subr.bf16.mxu0 0
    %8277 = vmatpush1.bf16.msra.mxu0 %v8147
    %8278 = vmatprep.subr.bf16.mxu0 0
    %8279 = vmatpush1.bf16.msra.mxu0 %v8148
    %8280 = vmatprep.subr.bf16.mxu0 0
    %8281 = vmatpush1.bf16.msra.mxu0 %v8190
    %8282 = vmatprep.subr.bf16.mxu0 0
    %8283 = vmatpush1.bf16.msra.mxu0 0
    %8284 = vmatprep.subr.bf16.mxu0 0
    %8285 = vmatpush1.bf16.msra.mxu0 0
    %8286 = vmatprep.subr.bf16.mxu0 0
    %8287 = vmatpush1.bf16.msra.mxu0 0
    %8288 = vmatprep.subr.bf16.mxu0 0
    %8289 = vmatpush1.bf16.msra.mxu0 0
    %8290 = vmatprep.subr.bf16.mxu0 0
    %8291 = vmatpush1.bf16.msra.mxu0 0
    %8292 = vmatprep.subr.bf16.mxu0 0
    %8293 = vmatpush1.bf16.msra.mxu0 0
    %8294 = vmatprep.subr.bf16.mxu0 0
    %8295 = vmatpush1.bf16.msra.mxu0 0
    %8296 = vmatprep.subr.bf16.mxu0 0
    %8297 = vmatpush1.bf16.msra.mxu0 0
    %8298 = vmatprep.subr.bf16.mxu0 0
    %8299 = vmatpush1.bf16.msra.mxu0 0
    %8300 = vmatprep.subr.bf16.mxu0 0
    %8301 = vmatpush1.bf16.msra.mxu0 0
    %8302 = vmatprep.subr.bf16.mxu0 0
    %8303 = vmatpush1.bf16.msra.mxu0 0
    %8304 = vmatprep.subr.bf16.mxu0 0
    %8305 = vmatpush1.bf16.msra.mxu0 0
    %8306 = vmatprep.mubr.bf16.mxu0 0
    %8307 = vmatmul.mubr.bf16.gmra.mrb[0].mxu0 %v8187
    %v8308 = vpop.f32.mrb[0].mxu0
    %v8309 = vadd.f32 %v8268, %v8308
    %v8310 = vpop.f32.mrb[0].mxu0
    %v8311 = vpop.f32.mrb[0].mxu0
    %v8312 = vadd.f32 %v8271, %v8311
    %v8313 = vpop.f32.mrb[0].mxu0
    %8314 = vdwg.mxu0
    %v8316 = vrot.slane %v8309, 1
    %8317 = vrot.lane.b32.xlu0 %v8316, 32
    %v8318 = vpop.permute.xlu0 %8317
    %v8320 = vrot.slane %v8309, 2
    %8321 = vrot.lane.b32.xlu0 %v8320, 64
    %v8322 = vpop.permute.xlu0 %8321
    %v8324 = vrot.slane %v8309, 3
    %8325 = vrot.lane.b32.xlu0 %v8324, 96
    %v8326 = vpop.permute.xlu0 %8325
    %v8328 = vrot.slane %v8309, 4
    %v8330 = vrot.slane %v8309, 5
    %8331 = vrot.lane.b32.xlu0 %v8330, 32
    %v8332 = vpop.permute.xlu0 %8331
    %v8334 = vrot.slane %v8309, 6
    %8335 = vrot.lane.b32.xlu0 %v8334, 64
    %v8336 = vpop.permute.xlu0 %8335
    %v8338 = vrot.slane %v8309, 7
    %8339 = vrot.lane.b32.xlu0 %v8338, 96
    %v8340 = vpop.permute.xlu0 %8339
    %v8343 = vrot.slane %v8312, 1
    %8344 = vrot.lane.b32.xlu0 %v8343, 32
    %v8345 = vpop.permute.xlu0 %8344
    %v8347 = vrot.slane %v8312, 2
    %8348 = vrot.lane.b32.xlu0 %v8347, 64
    %v8349 = vpop.permute.xlu0 %8348
    %v8351 = vrot.slane %v8312, 3
    %8352 = vrot.lane.b32.xlu0 %v8351, 96
    %v8353 = vpop.permute.xlu0 %8352
    %v8355 = vrot.slane %v8312, 4
    %v8357 = vrot.slane %v8312, 5
    %8358 = vrot.lane.b32.xlu0 %v8357, 32
    %v8359 = vpop.permute.xlu0 %8358
    %v8361 = vrot.slane %v8312, 6
    %8362 = vrot.lane.b32.xlu0 %v8361, 64
    %v8363 = vpop.permute.xlu0 %8362
    %v8365 = vrot.slane %v8312, 7
    %8366 = vrot.lane.b32.xlu0 %v8365, 96
    %v8367 = vpop.permute.xlu0 %8366
    %v8369 = vsel %vm226, %v8309, %v8318
    %v8370 = vsel %vm159, %v8369, %v8322
    %v8371 = vsel %vm101, %v8370, %v8326
    %v8372 = vsel %vm226, %v8328, %v8332
    %v8373 = vsel %vm159, %v8372, %v8336
    %v8374 = vsel %vm101, %v8373, %v8340
    %v8375 = vsel %vm226, %v8312, %v8345
    %v8376 = vsel %vm159, %v8375, %v8349
    %v8377 = vsel %vm101, %v8376, %v8353
    %v8378 = vsel %vm226, %v8355, %v8359
    %v8379 = vsel %vm159, %v8378, %v8363
    %v8380 = vsel %vm101, %v8379, %v8367
    %v8381 = vadd.f32 %v7735, %v7750
    %v8382 = vadd.f32 %v7736, %v7750
    %v8383 = vadd.f32 %v7737, %v7750
    %v8384 = vadd.f32 %v7738, %v7750
    %v8385 = vadd.f32 %v7739, %v7750
    %v8386 = vadd.f32 %v7740, %v7755
    %v8387 = vadd.f32 %v7741, %v7755
    %v8388 = vadd.f32 %v7742, %v7755
    %v8389 = vadd.f32 %v7743, %v7755
    %v8390 = vadd.f32 %v7744, %v7755
    %v8391 = vmax.f32 %v8381, 0.0
    %v8392 = vmax.f32 %v8382, 0.0
    %v8393 = vmax.f32 %v8383, 0.0
    %v8394 = vmax.f32 %v8384, 0.0
    %v8395 = vmax.f32 %v8385, 0.0
    %v8396 = vmax.f32 %v8386, 0.0
    %v8397 = vmax.f32 %v8387, 0.0
    %v8398 = vmax.f32 %v8388, 0.0
    %v8399 = vmax.f32 %v8389, 0.0
    %v8400 = vmax.f32 %v8390, 0.0
    %8411 = vrot.lane.b32.xlu0 %v8391, 126
    %v8412 = vpop.permute.xlu0 %8411
    %8413 = vrot.lane.b32.xlu0 %v8392, 126
    %v8414 = vpop.permute.xlu0 %8413
    %8415 = vrot.lane.b32.xlu0 %v8393, 126
    %v8416 = vpop.permute.xlu0 %8415
    %8417 = vrot.lane.b32.xlu0 %v8394, 126
    %v8418 = vpop.permute.xlu0 %8417
    %8419 = vrot.lane.b32.xlu0 %v8395, 126
    %v8420 = vpop.permute.xlu0 %8419
    %8421 = vrot.lane.b32.xlu0 %v8396, 126
    %v8422 = vpop.permute.xlu0 %8421
    %8423 = vrot.lane.b32.xlu0 %v8397, 126
    %v8424 = vpop.permute.xlu0 %8423
    %8425 = vrot.lane.b32.xlu0 %v8398, 126
    %v8426 = vpop.permute.xlu0 %8425
    %8427 = vrot.lane.b32.xlu0 %v8399, 126
    %v8428 = vpop.permute.xlu0 %8427
    %8429 = vrot.lane.b32.xlu0 %v8400, 126
    %v8430 = vpop.permute.xlu0 %8429
    %v8431 = vsel %vm2662, %v8412, %v8414
    %v8432 = vsel %vm2662, %v8414, %v8416
    %v8433 = vsel %vm2662, %v8416, %v8418
    %v8434 = vsel %vm2662, %v8418, %v8420
    %v8435 = vsel %vm2662, %v8422, %v8424
    %v8436 = vsel %vm2662, %v8424, %v8426
    %v8437 = vsel %vm2662, %v8426, %v8428
    %v8438 = vsel %vm2662, %v8428, %v8430
    %v8449 = vmax.f32 %v8391, %v8431
    %v8450 = vmax.f32 %v8392, %v8432
    %v8451 = vmax.f32 %v8393, %v8433
    %v8452 = vmax.f32 %v8394, %v8434
    %v8453 = vmax.f32 %v8395, %v8420
    %v8454 = vmax.f32 %v8396, %v8435
    %v8455 = vmax.f32 %v8397, %v8436
    %v8456 = vmax.f32 %v8398, %v8437
    %v8457 = vmax.f32 %v8399, %v8438
    %v8458 = vmax.f32 %v8400, %v8430
    %8469 = vrot.lane.b32.xlu0 %v8449, 64
    %v8470 = vpop.permute.xlu0 %8469
    %8471 = vrot.lane.b32.xlu0 %v8450, 64
    %v8472 = vpop.permute.xlu0 %8471
    %8473 = vrot.lane.b32.xlu0 %v8451, 64
    %v8474 = vpop.permute.xlu0 %8473
    %8475 = vrot.lane.b32.xlu0 %v8452, 64
    %v8476 = vpop.permute.xlu0 %8475
    %8477 = vrot.lane.b32.xlu0 %v8453, 64
    %v8478 = vpop.permute.xlu0 %8477
    %8479 = vrot.lane.b32.xlu0 %v8454, 64
    %v8480 = vpop.permute.xlu0 %8479
    %8481 = vrot.lane.b32.xlu0 %v8455, 64
    %v8482 = vpop.permute.xlu0 %8481
    %8483 = vrot.lane.b32.xlu0 %v8456, 64
    %v8484 = vpop.permute.xlu0 %8483
    %8485 = vrot.lane.b32.xlu0 %v8457, 64
    %v8486 = vpop.permute.xlu0 %8485
    %8487 = vrot.lane.b32.xlu0 %v8458, 64
    %v8488 = vpop.permute.xlu0 %8487
    %v8489 = vsel %vm159, %v8470, %v8472
    %v8490 = vsel %vm159, %v8472, %v8474
    %v8491 = vsel %vm159, %v8474, %v8476
    %v8492 = vsel %vm159, %v8476, %v8478
    %v8493 = vsel %vm159, %v8480, %v8482
    %v8494 = vsel %vm159, %v8482, %v8484
    %v8495 = vsel %vm159, %v8484, %v8486
    %v8496 = vsel %vm159, %v8486, %v8488
    %v8507 = vmax.f32 %v8449, %v8489
    %v8508 = vmax.f32 %v8450, %v8490
    %v8509 = vmax.f32 %v8451, %v8491
    %v8510 = vmax.f32 %v8452, %v8492
    %v8511 = vmax.f32 %v8453, %v8478
    %v8512 = vmax.f32 %v8454, %v8493
    %v8513 = vmax.f32 %v8455, %v8494
    %v8514 = vmax.f32 %v8456, %v8495
    %v8515 = vmax.f32 %v8457, %v8496
    %v8516 = vmax.f32 %v8458, %v8488
    %v8517 = vpack.c.bf16 %v8512, %v8507
    %v8518 = vpack.c.bf16 %v8513, %v8508
    %v8519 = vpack.c.bf16 %v8514, %v8509
    %v8520 = vpack.c.bf16 %v8515, %v8510
    %v8521 = vpack.c.bf16 %v8516, %v8511
    %v8523 = vsel %vm8185, %v8521, 0
    %8525 = vmatprep.subr.bf16.mxu0 0
    %8526 = vmatpush1.bf16.msra.mxu0 %v8114
    %8527 = vmatprep.subr.bf16.mxu0 0
    %8528 = vmatpush1.bf16.msra.mxu0 %v8115
    %8529 = vmatprep.subr.bf16.mxu0 0
    %8530 = vmatpush1.bf16.msra.mxu0 %v8116
    %8531 = vmatprep.subr.bf16.mxu0 0
    %8532 = vmatpush1.bf16.msra.mxu0 %v8117
    %8533 = vmatprep.subr.bf16.mxu0 0
    %8534 = vmatpush1.bf16.msra.mxu0 %v8118
    %8535 = vmatprep.subr.bf16.mxu0 0
    %8536 = vmatpush1.bf16.msra.mxu0 %v8119
    %8537 = vmatprep.subr.bf16.mxu0 0
    %8538 = vmatpush1.bf16.msra.mxu0 %v8120
    %8539 = vmatprep.subr.bf16.mxu0 0
    %8540 = vmatpush1.bf16.msra.mxu0 %v8121
    %8541 = vmatprep.subr.bf16.mxu0 0
    %8542 = vmatpush1.bf16.msra.mxu0 %v8122
    %8543 = vmatprep.subr.bf16.mxu0 0
    %8544 = vmatpush1.bf16.msra.mxu0 %v8123
    %8545 = vmatprep.subr.bf16.mxu0 0
    %8546 = vmatpush1.bf16.msra.mxu0 %v8124
    %8547 = vmatprep.subr.bf16.mxu0 0
    %8548 = vmatpush1.bf16.msra.mxu0 %v8125
    %8549 = vmatprep.subr.bf16.mxu0 0
    %8550 = vmatpush1.bf16.msra.mxu0 %v8126
    %8551 = vmatprep.subr.bf16.mxu0 0
    %8552 = vmatpush1.bf16.msra.mxu0 %v8127
    %8553 = vmatprep.subr.bf16.mxu0 0
    %8554 = vmatpush1.bf16.msra.mxu0 %v8128
    %8555 = vmatprep.subr.bf16.mxu0 0
    %8556 = vmatpush1.bf16.msra.mxu0 %v8129
    %8557 = vmatprep.mubr.bf16.mxu0 %v8518
    %8558 = vmatmul.mubr.bf16.gmra.mrb[0].mxu0 %v8517
    %v8559 = vpop.f32.mrb[0].mxu0
    %v8560 = vadd.f32 0.0, %v8559
    %v8561 = vpop.f32.mrb[0].mxu0
    %v8562 = vpop.f32.mrb[0].mxu0
    %v8563 = vadd.f32 0.0, %v8562
    %v8564 = vpop.f32.mrb[0].mxu0
    %8565 = vdwg.mxu0
    %8566 = vmatprep.subr.bf16.mxu0 0
    %8567 = vmatpush1.bf16.msra.mxu0 %v8130
    %8568 = vmatprep.subr.bf16.mxu0 0
    %8569 = vmatpush1.bf16.msra.mxu0 %v8131
    %8570 = vmatprep.subr.bf16.mxu0 0
    %8571 = vmatpush1.bf16.msra.mxu0 %v8132
    %8572 = vmatprep.subr.bf16.mxu0 0
    %8573 = vmatpush1.bf16.msra.mxu0 %v8133
    %8574 = vmatprep.subr.bf16.mxu0 0
    %8575 = vmatpush1.bf16.msra.mxu0 %v8134
    %8576 = vmatprep.subr.bf16.mxu0 0
    %8577 = vmatpush1.bf16.msra.mxu0 %v8135
    %8578 = vmatprep.subr.bf16.mxu0 0
    %8579 = vmatpush1.bf16.msra.mxu0 %v8136
    %8580 = vmatprep.subr.bf16.mxu0 0
    %8581 = vmatpush1.bf16.msra.mxu0 %v8137
    %8582 = vmatprep.subr.bf16.mxu0 0
    %8583 = vmatpush1.bf16.msra.mxu0 %v8138
    %8584 = vmatprep.subr.bf16.mxu0 0
    %8585 = vmatpush1.bf16.msra.mxu0 %v8139
    %8586 = vmatprep.subr.bf16.mxu0 0
    %8587 = vmatpush1.bf16.msra.mxu0 %v8140
    %8588 = vmatprep.subr.bf16.mxu0 0
    %8589 = vmatpush1.bf16.msra.mxu0 %v8141
    %8590 = vmatprep.subr.bf16.mxu0 0
    %8591 = vmatpush1.bf16.msra.mxu0 %v8142
    %8592 = vmatprep.subr.bf16.mxu0 0
    %8593 = vmatpush1.bf16.msra.mxu0 %v8143
    %8594 = vmatprep.subr.bf16.mxu0 0
    %8595 = vmatpush1.bf16.msra.mxu0 %v8144
    %8596 = vmatprep.subr.bf16.mxu0 0
    %8597 = vmatpush1.bf16.msra.mxu0 %v8145
    %8598 = vmatprep.mubr.bf16.mxu0 %v8520
    %8599 = vmatmul.mubr.bf16.gmra.mrb[0].mxu0 %v8519
    %v8600 = vpop.f32.mrb[0].mxu0
    %v8601 = vadd.f32 %v8560, %v8600
    %v8602 = vpop.f32.mrb[0].mxu0
    %v8603 = vpop.f32.mrb[0].mxu0
    %v8604 = vadd.f32 %v8563, %v8603
    %v8605 = vpop.f32.mrb[0].mxu0
    %8606 = vdwg.mxu0
    %8607 = vmatprep.subr.bf16.mxu0 0
    %8608 = vmatpush1.bf16.msra.mxu0 %v8146
    %8609 = vmatprep.subr.bf16.mxu0 0
    %8610 = vmatpush1.bf16.msra.mxu0 %v8147
    %8611 = vmatprep.subr.bf16.mxu0 0
    %8612 = vmatpush1.bf16.msra.mxu0 %v8148
    %8613 = vmatprep.subr.bf16.mxu0 0
    %8614 = vmatpush1.bf16.msra.mxu0 %v8190
    %8615 = vmatprep.subr.bf16.mxu0 0
    %8616 = vmatpush1.bf16.msra.mxu0 0
    %8617 = vmatprep.subr.bf16.mxu0 0
    %8618 = vmatpush1.bf16.msra.mxu0 0
    %8619 = vmatprep.subr.bf16.mxu0 0
    %8620 = vmatpush1.bf16.msra.mxu0 0
    %8621 = vmatprep.subr.bf16.mxu0 0
    %8622 = vmatpush1.bf16.msra.mxu0 0
    %8623 = vmatprep.subr.bf16.mxu0 0
    %8624 = vmatpush1.bf16.msra.mxu0 0
    %8625 = vmatprep.subr.bf16.mxu0 0
    %8626 = vmatpush1.bf16.msra.mxu0 0
    %8627 = vmatprep.subr.bf16.mxu0 0
    %8628 = vmatpush1.bf16.msra.mxu0 0
    %8629 = vmatprep.subr.bf16.mxu0 0
    %8630 = vmatpush1.bf16.msra.mxu0 0
    %8631 = vmatprep.subr.bf16.mxu0 0
    %8632 = vmatpush1.bf16.msra.mxu0 0
    %8633 = vmatprep.subr.bf16.mxu0 0
    %8634 = vmatpush1.bf16.msra.mxu0 0
    %8635 = vmatprep.subr.bf16.mxu0 0
    %8636 = vmatpush1.bf16.msra.mxu0 0
    %8637 = vmatprep.subr.bf16.mxu0 0
    %8638 = vmatpush1.bf16.msra.mxu0 0
    %8639 = vmatprep.mubr.bf16.mxu0 0
    %8640 = vmatmul.mubr.bf16.gmra.mrb[0].mxu0 %v8523
    %v8641 = vpop.f32.mrb[0].mxu0
    %v8642 = vadd.f32 %v8601, %v8641
    %v8643 = vpop.f32.mrb[0].mxu0
    %v8644 = vpop.f32.mrb[0].mxu0
    %v8645 = vadd.f32 %v8604, %v8644
    %v8646 = vpop.f32.mrb[0].mxu0
    %8647 = vdwg.mxu0
    %v8649 = vrot.slane %v8642, 1
    %8650 = vrot.lane.b32.xlu0 %v8649, 32
    %v8651 = vpop.permute.xlu0 %8650
    %v8653 = vrot.slane %v8642, 2
    %8654 = vrot.lane.b32.xlu0 %v8653, 64
    %v8655 = vpop.permute.xlu0 %8654
    %v8657 = vrot.slane %v8642, 3
    %8658 = vrot.lane.b32.xlu0 %v8657, 96
    %v8659 = vpop.permute.xlu0 %8658
    %v8661 = vrot.slane %v8642, 4
    %v8663 = vrot.slane %v8642, 5
    %8664 = vrot.lane.b32.xlu0 %v8663, 32
    %v8665 = vpop.permute.xlu0 %8664
    %v8667 = vrot.slane %v8642, 6
    %8668 = vrot.lane.b32.xlu0 %v8667, 64
    %v8669 = vpop.permute.xlu0 %8668
    %v8671 = vrot.slane %v8642, 7
    %8672 = vrot.lane.b32.xlu0 %v8671, 96
    %v8673 = vpop.permute.xlu0 %8672
    %v8676 = vrot.slane %v8645, 1
    %8677 = vrot.lane.b32.xlu0 %v8676, 32
    %v8678 = vpop.permute.xlu0 %8677
    %v8680 = vrot.slane %v8645, 2
    %8681 = vrot.lane.b32.xlu0 %v8680, 64
    %v8682 = vpop.permute.xlu0 %8681
    %v8684 = vrot.slane %v8645, 3
    %8685 = vrot.lane.b32.xlu0 %v8684, 96
    %v8686 = vpop.permute.xlu0 %8685
    %v8688 = vrot.slane %v8645, 4
    %v8690 = vrot.slane %v8645, 5
    %8691 = vrot.lane.b32.xlu0 %v8690, 32
    %v8692 = vpop.permute.xlu0 %8691
    %v8694 = vrot.slane %v8645, 6
    %8695 = vrot.lane.b32.xlu0 %v8694, 64
    %v8696 = vpop.permute.xlu0 %8695
    %v8698 = vrot.slane %v8645, 7
    %8699 = vrot.lane.b32.xlu0 %v8698, 96
    %v8700 = vpop.permute.xlu0 %8699
    %v8702 = vsel %vm226, %v8642, %v8651
    %v8703 = vsel %vm159, %v8702, %v8655
    %v8704 = vsel %vm101, %v8703, %v8659
    %v8705 = vsel %vm226, %v8661, %v8665
    %v8706 = vsel %vm159, %v8705, %v8669
    %v8707 = vsel %vm101, %v8706, %v8673
    %v8708 = vsel %vm226, %v8645, %v8678
    %v8709 = vsel %vm159, %v8708, %v8682
    %v8710 = vsel %vm101, %v8709, %v8686
    %v8711 = vsel %vm226, %v8688, %v8692
    %v8712 = vsel %vm159, %v8711, %v8696
    %v8713 = vsel %vm101, %v8712, %v8700
    %v8718 = vrot.slane %v8704, 7
    %v8719 = vrot.slane %v8707, 7
    %v8720 = vrot.slane %v8710, 7
    %v8721 = vrot.slane %v8713, 7
    %vm8726 = vcmask 1040384
    %v8727 = vsel %vm8726, %v8371, %v8718
    %v8728 = vsel %vm8726, %v8374, %v8719
    %v8729 = vsel %vm8726, %v8377, %v8720
    %v8730 = vsel %vm8726, %v8380, %v8721
    %v8731 = vpack.c.bf16 %v8727, %v8727
    %v8732 = vpack.c.bf16 %v8728, %v8728
    %v8733 = vpack.c.bf16 %v8729, %v8729
    %v8734 = vpack.c.bf16 %v8730, %v8730
    %v8735 = vld [vmem:[%s6] sm:$0xf]
    %v8736 = vld [vmem:[%s6 + $0x4] sm:$0xf]
    %v8737 = vld [vmem:[%s6 + $0x8] sm:$0xf]
    %v8738 = vld [vmem:[%s6 + $0xc] sm:$0xf]
    %v8739 = vld [vmem:[%s6 + $0x10] sm:$0xf]
    %v8740 = vld [vmem:[%s6 + $0x14] sm:$0xf]
    %v8741 = vld [vmem:[%s6 + $0x18] sm:$0xf]
    %v8742 = vld [vmem:[%s6 + $0x1c] sm:$0xf]
    %v8743 = vld [vmem:[%s6 + $0x20] sm:$0xf]
    %v8744 = vld [vmem:[%s6 + $0x24] sm:$0xf]
    %v8745 = vld [vmem:[%s6 + $0x28] sm:$0xf]
    %v8746 = vld [vmem:[%s6 + $0x2c] sm:$0xf]
    %v8747 = vld [vmem:[%s6 + $0x30] sm:$0xf]
    %v8748 = vld [vmem:[%s6 + $0x34] sm:$0xf]
    %v8749 = vld [vmem:[%s6 + $0x38] sm:$0xf]
    %v8750 = vld [vmem:[%s6 + $0x3c] sm:$0xf]
    %v8751 = vld [vmem:[%s6 + $0x40] sm:$0xf]
    %v8752 = vld [vmem:[%s6 + $0x44] sm:$0xf]
    %v8753 = vld [vmem:[%s6 + $0x48] sm:$0xf]
    %v8754 = vld [vmem:[%s6 + $0x4c] sm:$0xf]
    %v8755 = vld [vmem:[%s6 + $0x50] sm:$0xf]
    %v8756 = vld [vmem:[%s6 + $0x54] sm:$0xf]
    %v8757 = vld [vmem:[%s6 + $0x58] sm:$0xf]
    %v8758 = vld [vmem:[%s6 + $0x5c] sm:$0xf]
    %v8759 = vld [vmem:[%s6 + $0x60] sm:$0xf]
    %v8760 = vld [vmem:[%s6 + $0x64] sm:$0xf]
    %v8761 = vld [vmem:[%s6 + $0x68] sm:$0xf]
    %v8762 = vld [vmem:[%s6 + $0x6c] sm:$0xf]
    %v8763 = vld [vmem:[%s6 + $0x70] sm:$0xf]
    %v8764 = vld [vmem:[%s6 + $0x74] sm:$0xf]
    %v8765 = vld [vmem:[%s6 + $0x78] sm:$0xf]
    %v8766 = vld [vmem:[%s6 + $0x7c] sm:$0xf]
    %v8767 = vld [vmem:[%s6 + $0x80] sm:$0xf]
    %v8768 = vld [vmem:[%s6 + $0x84] sm:$0xf]
    %v8769 = vld [vmem:[%s6 + $0x88] sm:$0xf]
    %v8770 = vld [vmem:[%s6 + $0x8c] sm:$0xf]
    %v8771 = vld [vmem:[%s6 + $0x90] sm:$0xf]
    %v8772 = vld [vmem:[%s6 + $0x94] sm:$0xf]
    %v8773 = vld [vmem:[%s6 + $0x98] sm:$0xf]
    %v8774 = vld [vmem:[%s6 + $0x9c] sm:$0xf]
    %v8775 = vld [vmem:[%s6 + $0xa0] sm:$0xf]
    %v8776 = vld [vmem:[%s6 + $0xa4] sm:$0xf]
    %v8777 = vld [vmem:[%s6 + $0xa8] sm:$0xf]
    %v8778 = vld [vmem:[%s6 + $0xac] sm:$0xf]
    %v8779 = vld [vmem:[%s6 + $0xb0] sm:$0xf]
    %v8780 = vld [vmem:[%s6 + $0xb4] sm:$0xf]
    %v8781 = vld [vmem:[%s6 + $0xb8] sm:$0xf]
    %v8782 = vld [vmem:[%s6 + $0xbc] sm:$0xf]
    %v8783 = vld [vmem:[%s6 + $0xc0] sm:$0xf]
    %v8784 = vld [vmem:[%s6 + $0xc4] sm:$0xf]
    %v8785 = vld [vmem:[%s6 + $0xc8] sm:$0xf]
    %v8786 = vld [vmem:[%s6 + $0xcc] sm:$0xf]
    %v8787 = vld [vmem:[%s6 + $0xd0] sm:$0xf]
    %v8788 = vld [vmem:[%s6 + $0xd4] sm:$0xf]
    %v8789 = vld [vmem:[%s6 + $0xd8] sm:$0xf]
    %v8790 = vld [vmem:[%s6 + $0xdc] sm:$0xf]
    %v8791 = vld [vmem:[%s6 + $0xe0] sm:$0xf]
    %v8792 = vld [vmem:[%s6 + $0xe4] sm:$0xf]
    %v8793 = vld [vmem:[%s6 + $0xe8] sm:$0xf]
    %v8794 = vld [vmem:[%s6 + $0xec] sm:$0xf]
    %v8795 = vld [vmem:[%s6 + $0xf0] sm:$0xf]
    %v8796 = vld [vmem:[%s6 + $0xf4] sm:$0xf]
    %v8797 = vld [vmem:[%s6 + $0xf8] sm:$0xf]
    %v8798 = vld [vmem:[%s6 + $0xfc] sm:$0xf]
    %v8799 = vld [vmem:[%s7] sm:$0x1]
    %v8801 = vlaneseq
    %v8802 = vshrl.u32 %v8801, 7
    %v8803 = vsub.s32 0, %v8802
    %v8804 = vrot.slane %v8799, %v8803
    %v8870 = vunpack.c.l.b16 %v8735
    %v8871 = vunpack.c.l.b16 %v8736
    %v8872 = vunpack.c.l.b16 %v8737
    %v8873 = vunpack.c.l.b16 %v8738
    %v8874 = vunpack.c.l.b16 %v8739
    %v8875 = vunpack.c.l.b16 %v8740
    %v8876 = vunpack.c.l.b16 %v8741
    %v8877 = vunpack.c.l.b16 %v8742
    %v8878 = vunpack.c.l.b16 %v8743
    %v8879 = vunpack.c.l.b16 %v8744
    %v8880 = vunpack.c.l.b16 %v8745
    %v8881 = vunpack.c.l.b16 %v8746
    %v8882 = vunpack.c.l.b16 %v8747
    %v8883 = vunpack.c.l.b16 %v8748
    %v8884 = vunpack.c.l.b16 %v8749
    %v8885 = vunpack.c.l.b16 %v8750
    %v8886 = vunpack.c.l.b16 %v8751
    %v8887 = vunpack.c.l.b16 %v8752
    %v8888 = vunpack.c.l.b16 %v8753
    %v8889 = vunpack.c.l.b16 %v8754
    %v8890 = vunpack.c.l.b16 %v8755
    %v8891 = vunpack.c.l.b16 %v8756
    %v8892 = vunpack.c.l.b16 %v8757
    %v8893 = vunpack.c.l.b16 %v8758
    %v8894 = vunpack.c.l.b16 %v8759
    %v8895 = vunpack.c.l.b16 %v8760
    %v8896 = vunpack.c.l.b16 %v8761
    %v8897 = vunpack.c.l.b16 %v8762
    %v8898 = vunpack.c.l.b16 %v8763
    %v8899 = vunpack.c.l.b16 %v8764
    %v8900 = vunpack.c.l.b16 %v8765
    %v8901 = vunpack.c.l.b16 %v8766
    %v8902 = vunpack.c.l.b16 %v8767
    %v8903 = vunpack.c.l.b16 %v8768
    %v8904 = vunpack.c.l.b16 %v8769
    %v8905 = vunpack.c.l.b16 %v8770
    %v8906 = vunpack.c.l.b16 %v8771
    %v8907 = vunpack.c.l.b16 %v8772
    %v8908 = vunpack.c.l.b16 %v8773
    %v8909 = vunpack.c.l.b16 %v8774
    %v8910 = vunpack.c.l.b16 %v8775
    %v8911 = vunpack.c.l.b16 %v8776
    %v8912 = vunpack.c.l.b16 %v8777
    %v8913 = vunpack.c.l.b16 %v8778
    %v8914 = vunpack.c.l.b16 %v8779
    %v8915 = vunpack.c.l.b16 %v8780
    %v8916 = vunpack.c.l.b16 %v8781
    %v8917 = vunpack.c.l.b16 %v8782
    %v8918 = vunpack.c.l.b16 %v8783
    %v8919 = vunpack.c.l.b16 %v8784
    %v8920 = vunpack.c.l.b16 %v8785
    %v8921 = vunpack.c.l.b16 %v8786
    %v8922 = vunpack.c.l.b16 %v8787
    %v8923 = vunpack.c.l.b16 %v8788
    %v8924 = vunpack.c.l.b16 %v8789
    %v8925 = vunpack.c.l.b16 %v8790
    %v8926 = vunpack.c.l.b16 %v8791
    %v8927 = vunpack.c.l.b16 %v8792
    %v8928 = vunpack.c.l.b16 %v8793
    %v8929 = vunpack.c.l.b16 %v8794
    %v8930 = vunpack.c.l.b16 %v8795
    %v8931 = vunpack.c.l.b16 %v8796
    %v8932 = vunpack.c.l.b16 %v8797
    %v8933 = vunpack.c.l.b16 %v8798
    %v8934 = vpack.c.b16 %v8871, %v8870
    %v8935 = vpack.c.b16 %v8873, %v8872
    %v8936 = vpack.c.b16 %v8875, %v8874
    %v8937 = vpack.c.b16 %v8877, %v8876
    %v8938 = vpack.c.b16 %v8879, %v8878
    %v8939 = vpack.c.b16 %v8881, %v8880
    %v8940 = vpack.c.b16 %v8883, %v8882
    %v8941 = vpack.c.b16 %v8885, %v8884
    %v8942 = vpack.c.b16 %v8887, %v8886
    %v8943 = vpack.c.b16 %v8889, %v8888
    %v8944 = vpack.c.b16 %v8891, %v8890
    %v8945 = vpack.c.b16 %v8893, %v8892
    %v8946 = vpack.c.b16 %v8895, %v8894
    %v8947 = vpack.c.b16 %v8897, %v8896
    %v8948 = vpack.c.b16 %v8899, %v8898
    %v8949 = vpack.c.b16 %v8901, %v8900
    %v8950 = vpack.c.b16 %v8903, %v8902
    %v8951 = vpack.c.b16 %v8905, %v8904
    %v8952 = vpack.c.b16 %v8907, %v8906
    %v8953 = vpack.c.b16 %v8909, %v8908
    %v8954 = vpack.c.b16 %v8911, %v8910
    %v8955 = vpack.c.b16 %v8913, %v8912
    %v8956 = vpack.c.b16 %v8915, %v8914
    %v8957 = vpack.c.b16 %v8917, %v8916
    %v8958 = vpack.c.b16 %v8919, %v8918
    %v8959 = vpack.c.b16 %v8921, %v8920
    %v8960 = vpack.c.b16 %v8923, %v8922
    %v8961 = vpack.c.b16 %v8925, %v8924
    %v8962 = vpack.c.b16 %v8927, %v8926
    %v8963 = vpack.c.b16 %v8929, %v8928
    %v8964 = vpack.c.b16 %v8931, %v8930
    %v8965 = vpack.c.b16 %v8933, %v8932
    %8998 = vmatprep.subr.bf16.mxu0 0
    %8999 = vmatpush1.bf16.msra.mxu0 %v8934
    %9000 = vmatprep.subr.bf16.mxu0 0
    %9001 = vmatpush1.bf16.msra.mxu0 %v8935
    %9002 = vmatprep.subr.bf16.mxu0 0
    %9003 = vmatpush1.bf16.msra.mxu0 %v8936
    %9004 = vmatprep.subr.bf16.mxu0 0
    %9005 = vmatpush1.bf16.msra.mxu0 %v8937
    %9006 = vmatprep.subr.bf16.mxu0 0
    %9007 = vmatpush1.bf16.msra.mxu0 %v8938
    %9008 = vmatprep.subr.bf16.mxu0 0
    %9009 = vmatpush1.bf16.msra.mxu0 %v8939
    %9010 = vmatprep.subr.bf16.mxu0 0
    %9011 = vmatpush1.bf16.msra.mxu0 %v8940
    %9012 = vmatprep.subr.bf16.mxu0 0
    %9013 = vmatpush1.bf16.msra.mxu0 %v8941
    %9014 = vmatprep.subr.bf16.mxu0 0
    %9015 = vmatpush1.bf16.msra.mxu0 %v8942
    %9016 = vmatprep.subr.bf16.mxu0 0
    %9017 = vmatpush1.bf16.msra.mxu0 %v8943
    %9018 = vmatprep.subr.bf16.mxu0 0
    %9019 = vmatpush1.bf16.msra.mxu0 %v8944
    %9020 = vmatprep.subr.bf16.mxu0 0
    %9021 = vmatpush1.bf16.msra.mxu0 %v8945
    %9022 = vmatprep.subr.bf16.mxu0 0
    %9023 = vmatpush1.bf16.msra.mxu0 %v8946
    %9024 = vmatprep.subr.bf16.mxu0 0
    %9025 = vmatpush1.bf16.msra.mxu0 %v8947
    %9026 = vmatprep.subr.bf16.mxu0 0
    %9027 = vmatpush1.bf16.msra.mxu0 %v8948
    %9028 = vmatprep.subr.bf16.mxu0 0
    %9029 = vmatpush1.bf16.msra.mxu0 %v8949
    %9030 = vmatprep.mubr.bf16.mxu0 %v8732
    %9031 = vmatmul.mubr.bf16.gmra.mrb[0].mxu0 %v8731
    %v9032 = vpop.f32.mrb[0].mxu0
    %v9033 = vadd.f32 %v8804, %v9032
    %v9034 = vpop.f32.mrb[0].mxu0
    %v9035 = vpop.f32.mrb[0].mxu0
    %v9036 = vpop.f32.mrb[0].mxu0
    %9037 = vdwg.mxu0
    %9038 = vmatprep.subr.bf16.mxu0 0
    %9039 = vmatpush1.bf16.msra.mxu0 %v8950
    %9040 = vmatprep.subr.bf16.mxu0 0
    %9041 = vmatpush1.bf16.msra.mxu0 %v8951
    %9042 = vmatprep.subr.bf16.mxu0 0
    %9043 = vmatpush1.bf16.msra.mxu0 %v8952
    %9044 = vmatprep.subr.bf16.mxu0 0
    %9045 = vmatpush1.bf16.msra.mxu0 %v8953
    %9046 = vmatprep.subr.bf16.mxu0 0
    %9047 = vmatpush1.bf16.msra.mxu0 %v8954
    %9048 = vmatprep.subr.bf16.mxu0 0
    %9049 = vmatpush1.bf16.msra.mxu0 %v8955
    %9050 = vmatprep.subr.bf16.mxu0 0
    %9051 = vmatpush1.bf16.msra.mxu0 %v8956
    %9052 = vmatprep.subr.bf16.mxu0 0
    %9053 = vmatpush1.bf16.msra.mxu0 %v8957
    %9054 = vmatprep.subr.bf16.mxu0 0
    %9055 = vmatpush1.bf16.msra.mxu0 %v8958
    %9056 = vmatprep.subr.bf16.mxu0 0
    %9057 = vmatpush1.bf16.msra.mxu0 %v8959
    %9058 = vmatprep.subr.bf16.mxu0 0
    %9059 = vmatpush1.bf16.msra.mxu0 %v8960
    %9060 = vmatprep.subr.bf16.mxu0 0
    %9061 = vmatpush1.bf16.msra.mxu0 %v8961
    %9062 = vmatprep.subr.bf16.mxu0 0
    %9063 = vmatpush1.bf16.msra.mxu0 %v8962
    %9064 = vmatprep.subr.bf16.mxu0 0
    %9065 = vmatpush1.bf16.msra.mxu0 %v8963
    %9066 = vmatprep.subr.bf16.mxu0 0
    %9067 = vmatpush1.bf16.msra.mxu0 %v8964
    %9068 = vmatprep.subr.bf16.mxu0 0
    %9069 = vmatpush1.bf16.msra.mxu0 %v8965
    %9070 = vmatprep.mubr.bf16.mxu0 %v8734
    %9071 = vmatmul.mubr.bf16.gmra.mrb[0].mxu0 %v8733
    %v9072 = vpop.f32.mrb[0].mxu0
    %v9073 = vadd.f32 %v9033, %v9072
    %v9074 = vpop.f32.mrb[0].mxu0
    %v9075 = vpop.f32.mrb[0].mxu0
    %v9076 = vpop.f32.mrb[0].mxu0
    %9077 = vdwg.mxu0
    %v9078 = vmax.f32 %v9073, 0.0
    %v9079 = vld [vmem:[%s8] sm:$0xff]
    %v9080 = vld [vmem:[%s8 + $0x8] sm:$0xff]
    %v9081 = vld [vmem:[%s8 + $0x10] sm:$0xff]
    %v9082 = vld [vmem:[%s8 + $0x18] sm:$0xff]
    %v9083 = vld [vmem:[%s8 + $0x20] sm:$0xff]
    %v9084 = vld [vmem:[%s8 + $0x28] sm:$0xff]
    %v9085 = vld [vmem:[%s8 + $0x30] sm:$0xff]
    %v9086 = vld [vmem:[%s8 + $0x38] sm:$0xff]
    %v9087 = vld [vmem:[%s8 + $0x40] sm:$0xff]
    %v9088 = vld [vmem:[%s8 + $0x48] sm:$0xff]
    %v9089 = vld [vmem:[%s8 + $0x50] sm:$0xff]
    %v9090 = vld [vmem:[%s8 + $0x58] sm:$0xff]
    %v9091 = vld [vmem:[%s8 + $0x60] sm:$0xff]
    %v9092 = vld [vmem:[%s8 + $0x68] sm:$0xff]
    %v9093 = vld [vmem:[%s8 + $0x70] sm:$0xff]
    %v9094 = vld [vmem:[%s9] sm:$0x1]
    %v9096 = vlaneseq
    %v9097 = vshrl.u32 %v9096, 7
    %v9098 = vsub.s32 0, %v9097
    %v9099 = vrot.slane %v9094, %v9098
    %v9102 = vsel %vm7648, %v9078, 0
    %9104 = vmatprep.subr.mxu0 0.0
    %9105 = vmatpush1.msra.mxu0 %v9079
    %9106 = vmatprep.subr.mxu0 0.0
    %9107 = vmatpush1.msra.mxu0 %v9080
    %9108 = vmatprep.subr.mxu0 0.0
    %9109 = vmatpush1.msra.mxu0 %v9081
    %9110 = vmatprep.subr.mxu0 0.0
    %9111 = vmatpush1.msra.mxu0 %v9082
    %9112 = vmatprep.subr.mxu0 0.0
    %9113 = vmatpush1.msra.mxu0 %v9083
    %9114 = vmatprep.subr.mxu0 0.0
    %9115 = vmatpush1.msra.mxu0 %v9084
    %9116 = vmatprep.subr.mxu0 0.0
    %9117 = vmatpush1.msra.mxu0 %v9085
    %9118 = vmatprep.subr.mxu0 0.0
    %9119 = vmatpush1.msra.mxu0 %v9086
    %9120 = vmatprep.subr.mxu0 0.0
    %9121 = vmatpush1.msra.mxu0 %v9087
    %9122 = vmatprep.subr.mxu0 0.0
    %9123 = vmatpush1.msra.mxu0 %v9088
    %9124 = vmatprep.subr.mxu0 0.0
    %9125 = vmatpush1.msra.mxu0 %v9089
    %9126 = vmatprep.subr.mxu0 0.0
    %9127 = vmatpush1.msra.mxu0 %v9090
    %9128 = vmatprep.subr.mxu0 0.0
    %9129 = vmatpush1.msra.mxu0 %v9091
    %9130 = vmatprep.subr.mxu0 0.0
    %9131 = vmatpush1.msra.mxu0 %v9092
    %9132 = vmatprep.subr.mxu0 0.0
    %9133 = vmatpush1.msra.mxu0 %v9093
    %9134 = vmatprep.subr.mxu0 0.0
    %9135 = vmatpush1.msra.mxu0 0.0
    %9136 = vmatprep.subr.mxu0 0.0
    %9137 = vmatpush1.msra.mxu0 0.0
    %9138 = vmatprep.subr.mxu0 0.0
    %9139 = vmatpush1.msra.mxu0 0.0
    %9140 = vmatprep.subr.mxu0 0.0
    %9141 = vmatpush1.msra.mxu0 0.0
    %9142 = vmatprep.subr.mxu0 0.0
    %9143 = vmatpush1.msra.mxu0 0.0
    %9144 = vmatprep.subr.mxu0 0.0
    %9145 = vmatpush1.msra.mxu0 0.0
    %9146 = vmatprep.subr.mxu0 0.0
    %9147 = vmatpush1.msra.mxu0 0.0
    %9148 = vmatprep.subr.mxu0 0.0
    %9149 = vmatpush1.msra.mxu0 0.0
    %9150 = vmatprep.subr.mxu0 0.0
    %9151 = vmatpush1.msra.mxu0 0.0
    %9152 = vmatprep.subr.mxu0 0.0
    %9153 = vmatpush1.msra.mxu0 0.0
    %9154 = vmatprep.subr.mxu0 0.0
    %9155 = vmatpush1.msra.mxu0 0.0
    %9156 = vmatprep.subr.mxu0 0.0
    %9157 = vmatpush1.msra.mxu0 0.0
    %9158 = vmatprep.subr.mxu0 0.0
    %9159 = vmatpush1.msra.mxu0 0.0
    %9160 = vmatprep.subr.mxu0 0.0
    %9161 = vmatpush1.msra.mxu0 0.0
    %9162 = vmatprep.subr.mxu0 0.0
    %9163 = vmatpush1.msra.mxu0 0.0
    %9164 = vmatprep.subr.mxu0 0.0
    %9165 = vmatpush1.msra.mxu0 0.0
    %9166 = vmatprep.subr.mxu0 0.0
    %9167 = vmatpush1.msra.mxu0 0.0
    %9168 = vmatprep.mubr.f32.mxu0 0.0
    %9169 = vmatmul.mubr.f32.gmra.mrb[0].mxu0 %v9102
    %v9170 = vpop.f32.mrb[0].mxu0
    %v9171 = vadd.f32 %v9099, %v9170
    %v9172 = vpop.f32.mrb[0].mxu0
    %9173 = vdwg.mxu0
    %v9174 = vmax.f32 %v9171, 0.0
    %v9175 = vld [vmem:[%s10] sm:$0xff]
    %v9176 = vld [vmem:[%s10 + $0x8] sm:$0xff]
    %v9177 = vld [vmem:[%s10 + $0x10] sm:$0xff]
    %v9178 = vld [vmem:[%s10 + $0x18] sm:$0xff]
    %v9179 = vld [vmem:[%s10 + $0x20] sm:$0xff]
    %v9180 = vld [vmem:[%s10 + $0x28] sm:$0xff]
    %v9181 = vld [vmem:[%s10 + $0x30] sm:$0xff]
    %v9182 = vld [vmem:[%s10 + $0x38] sm:$0xff]
    %v9183 = vld [vmem:[%s10 + $0x40] sm:$0xff]
    %v9184 = vld [vmem:[%s10 + $0x48] sm:$0xff]
    %v9185 = vld [vmem:[%s10 + $0x50] sm:$0xf]
    %v9186 = vld [vmem:[%s11] sm:$0x1]
    %v9188 = vlaneseq
    %v9189 = vshrl.u32 %v9188, 7
    %v9190 = vsub.s32 0, %v9189
    %v9191 = vrot.slane %v9186, %v9190
    %vm9193 = vcmask 687104
    %v9195 = vsel %vm9193, %v9174, 0
    %vm9197 = vcmask 1043456
    %v9199 = vsel %vm9197, %v9185, 0
    %9201 = vmatprep.subr.mxu0 0.0
    %9202 = vmatpush1.msra.mxu0 %v9175
    %9203 = vmatprep.subr.mxu0 0.0
    %9204 = vmatpush1.msra.mxu0 %v9176
    %9205 = vmatprep.subr.mxu0 0.0
    %9206 = vmatpush1.msra.mxu0 %v9177
    %9207 = vmatprep.subr.mxu0 0.0
    %9208 = vmatpush1.msra.mxu0 %v9178
    %9209 = vmatprep.subr.mxu0 0.0
    %9210 = vmatpush1.msra.mxu0 %v9179
    %9211 = vmatprep.subr.mxu0 0.0
    %9212 = vmatpush1.msra.mxu0 %v9180
    %9213 = vmatprep.subr.mxu0 0.0
    %9214 = vmatpush1.msra.mxu0 %v9181
    %9215 = vmatprep.subr.mxu0 0.0
    %9216 = vmatpush1.msra.mxu0 %v9182
    %9217 = vmatprep.subr.mxu0 0.0
    %9218 = vmatpush1.msra.mxu0 %v9183
    %9219 = vmatprep.subr.mxu0 0.0
    %9220 = vmatpush1.msra.mxu0 %v9184
    %9221 = vmatprep.subr.mxu0 0.0
    %9222 = vmatpush1.msra.mxu0 %v9199
    %9223 = vmatprep.subr.mxu0 0.0
    %9224 = vmatpush1.msra.mxu0 0.0
    %9225 = vmatprep.subr.mxu0 0.0
    %9226 = vmatpush1.msra.mxu0 0.0
    %9227 = vmatprep.subr.mxu0 0.0
    %9228 = vmatpush1.msra.mxu0 0.0
    %9229 = vmatprep.subr.mxu0 0.0
    %9230 = vmatpush1.msra.mxu0 0.0
    %9231 = vmatprep.subr.mxu0 0.0
    %9232 = vmatpush1.msra.mxu0 0.0
    %9233 = vmatprep.subr.mxu0 0.0
    %9234 = vmatpush1.msra.mxu0 0.0
    %9235 = vmatprep.subr.mxu0 0.0
    %9236 = vmatpush1.msra.mxu0 0.0
    %9237 = vmatprep.subr.mxu0 0.0
    %9238 = vmatpush1.msra.mxu0 0.0
    %9239 = vmatprep.subr.mxu0 0.0
    %9240 = vmatpush1.msra.mxu0 0.0
    %9241 = vmatprep.subr.mxu0 0.0
    %9242 = vmatpush1.msra.mxu0 0.0
    %9243 = vmatprep.subr.mxu0 0.0
    %9244 = vmatpush1.msra.mxu0 0.0
    %9245 = vmatprep.subr.mxu0 0.0
    %9246 = vmatpush1.msra.mxu0 0.0
    %9247 = vmatprep.subr.mxu0 0.0
    %9248 = vmatpush1.msra.mxu0 0.0
    %9249 = vmatprep.subr.mxu0 0.0
    %9250 = vmatpush1.msra.mxu0 0.0
    %9251 = vmatprep.subr.mxu0 0.0
    %9252 = vmatpush1.msra.mxu0 0.0
    %9253 = vmatprep.subr.mxu0 0.0
    %9254 = vmatpush1.msra.mxu0 0.0
    %9255 = vmatprep.subr.mxu0 0.0
    %9256 = vmatpush1.msra.mxu0 0.0
    %9257 = vmatprep.subr.mxu0 0.0
    %9258 = vmatpush1.msra.mxu0 0.0
    %9259 = vmatprep.subr.mxu0 0.0
    %9260 = vmatpush1.msra.mxu0 0.0
    %9261 = vmatprep.subr.mxu0 0.0
    %9262 = vmatpush1.msra.mxu0 0.0
    %9263 = vmatprep.subr.mxu0 0.0
    %9264 = vmatpush1.msra.mxu0 0.0
    %9265 = vmatprep.mubr.f32.mxu0 0.0
    %9266 = vmatmul.mubr.f32.gmra.mrb[0].mxu0 %v9195
    %v9267 = vpop.f32.mrb[0].mxu0
    %v9268 = vadd.f32 %v9191, %v9267
    %v9269 = vpop.f32.mrb[0].mxu0
    %9270 = vdwg.mxu0
    %vm9271 = vcmask 66560
    %9272 = vst.msk [vmem:[#allocation4] sm:$0x3] %vm9271, %v9268
    // Predicated region
    $region50: #{lenet5_forward.1} parent=1 // pred_check
      _
    $region51: #{lenet5_forward.1} parent=1 // pred_check_branch
      %9274 = sbr.rel (0) target = $region53
    $region52: #{lenet5_forward.1} parent=1 // pred_region
      %s9276 = ssub.s32 32, 32
      %9277 = vsyncadd [#allocation5], %s9276
      %s9279 = sshll.u32 [#allocation4], 4
      %s9280 = int_to_ptr.vmem [resolvable:$true] %s9279
      %9282 = dma.vmem_to_hbm [thread:$0]  %s9280, 32, %s12, [#allocation5]
    $region53: #{lenet5_forward.1} parent=1 // pred_fallthru
      _
    // Predicated region
    $region54: #{lenet5_forward.1} parent=1 // pred_check
      _
    $region55: #{lenet5_forward.1} parent=1 // pred_check_branch
      %9284 = sbr.rel (0) target = $region57
    $region56: #{lenet5_forward.1} parent=1 // pred_region
      %9285 = dma.done [#allocation5], 32
    $region57: #{lenet5_forward.1} parent=1 // pred_fallthru
      _
    %9286 = vsyncpa [#allocation5], 1

</llo_original>
